<compile_context>
chip_gen: v5e
topology: v5e:2x2
jax: 0.10.0
libtpu: 0.0.40
codegen_flags: <defaults>
</compile_context>

<pallas_src>
import math

import jax
import jax.numpy as jnp
from jax.experimental import pallas as pl
from jax.experimental.pallas import tpu as pltpu

VTH = 1.0
BN_EPS = 1e-5


# ----------------------------------------------------------------------------
# small helpers
# ----------------------------------------------------------------------------
def _round_up(n, m):
    return ((n + m - 1) // m) * m


def _pick_tile(n, candidates):
    """Largest candidate tile that exactly divides n (or None)."""
    for c in candidates:
        if n >= c and n % c == 0:
            return c
    return None


# ----------------------------------------------------------------------------
# Pallas kernels: K-tiled matmul with fused BN epilogue
# ----------------------------------------------------------------------------
def _mm_bn_kernel(a_ref, w_ref, scale_ref, shift_ref, o_ref, acc_ref):
    k = pl.program_id(2)

    @pl.when(k == 0)
    def _():
        acc_ref[...] = jnp.zeros_like(acc_ref)

    acc_ref[...] += jnp.dot(a_ref[...], w_ref[...],
                            preferred_element_type=jnp.float32)

    @pl.when(k == pl.num_programs(2) - 1)
    def _():
        o_ref[...] = (acc_ref[...] * scale_ref[...] + shift_ref[...]).astype(o_ref.dtype)


def _mm_plain_kernel(a_ref, w_ref, o_ref, acc_ref):
    k = pl.program_id(2)

    @pl.when(k == 0)
    def _():
        acc_ref[...] = jnp.zeros_like(acc_ref)

    acc_ref[...] += jnp.dot(a_ref[...], w_ref[...],
                            preferred_element_type=jnp.float32)

    @pl.when(k == pl.num_programs(2) - 1)
    def _():
        o_ref[...] = acc_ref[...].astype(o_ref.dtype)


def matmul_fused(a, w, scale=None, shift=None, out_dtype=jnp.float32):
    """out = (A @ W) [* scale + shift].

    a: (M, K) any float dtype (cast to bf16), w: (K, N), scale/shift: (N,) f32.
    MXU runs in bf16 with f32 accumulation in a VMEM scratch; BN epilogue in f32.
    """
    M, K = a.shape
    Kw, N = w.shape
    assert K == Kw
    a = a.astype(jnp.bfloat16)
    w = w.astype(jnp.bfloat16)
    has_bn = scale is not None

    # Lane-dense output: pad N up to a multiple of 128 (unmasked vector stores),
    # slice the padding off in the wrapper.  At real ResNet19 sizes N is already
    # 128/256/512 so only the final FC (N=10) pads.
    Np = _round_up(N, 128)
    if Np != N:
        w = jnp.pad(w, ((0, 0), (0, Np - N)))
    if has_bn:
        scale = jnp.asarray(scale, jnp.float32).reshape(-1)
        shift = jnp.asarray(shift, jnp.float32).reshape(-1)
        if Np != N:
            scale = jnp.pad(scale, (0, Np - N))
            shift = jnp.pad(shift, (0, Np - N))
        scale = scale.reshape(1, Np)
        shift = shift.reshape(1, Np)

    # K (reduction) tiling: keep the weight block VMEM-resident-small and let the
    # pipeline hide the weight DMA behind MXU work.  Pad K (rare) so a 128-aligned
    # tile divides it; zero padding does not change the dot product.
    tk = _pick_tile(K, (512, 256, 128))
    if tk is None:
        if K <= 512:
            tk = K                      # single K step, full-dim block
        else:
            Kp = _round_up(K, 512)
            a = jnp.pad(a, ((0, 0), (0, Kp - K)))
            w = jnp.pad(w, ((0, Kp - K), (0, 0)))
            K = Kp
            tk = 512

    tm = _pick_tile(M, (512, 256, 128)) or min(M, 128)
    tn = _pick_tile(Np, (512, 256, 128)) or Np

    grid = (pl.cdiv(M, tm), Np // tn, K // tk)

    in_specs = [
        pl.BlockSpec((tm, tk), lambda i, j, k: (i, k)),
        pl.BlockSpec((tk, tn), lambda i, j, k: (k, j)),
    ]
    args = [a, w]
    if has_bn:
        in_specs += [
            pl.BlockSpec((1, tn), lambda i, j, k: (0, j)),
            pl.BlockSpec((1, tn), lambda i, j, k: (0, j)),
        ]
        args += [scale, shift]

    kernel = _mm_bn_kernel if has_bn else _mm_plain_kernel
    out = pl.pallas_call(
        kernel,
        out_shape=jax.ShapeDtypeStruct((M, Np), out_dtype),
        grid_spec=pltpu.PrefetchScalarGridSpec(
            num_scalar_prefetch=0,
            grid=grid,
            in_specs=in_specs,
            out_specs=pl.BlockSpec((tm, tn), lambda i, j, k: (i, j)),
            scratch_shapes=[pltpu.VMEM((tm, tn), jnp.float32)],
        ),
        compiler_params=pltpu.CompilerParams(
            dimension_semantics=("parallel", "parallel", "arbitrary"),
            # Worst-case tile set (tm=tn=tk=512, bf16 inputs, f32 acc/out) is ~6 MB
            # double-buffered, so this fits v5e/v6e/v7x scoped VMEM comfortably.
            vmem_limit_bytes=32 * 1024 * 1024,
        ),
    )(*args)

    if Np != N:
        out = out[:, :N]
    return out


# ----------------------------------------------------------------------------
# Pallas kernels: IF neuron over T (optionally fused SEW residual add)
# ----------------------------------------------------------------------------
def _make_lif_kernel(T, has_res):
    def kernel(*refs):
        if has_res:
            x_ref, res_ref, o_ref = refs
        else:
            x_ref, o_ref = refs
        mem = jnp.zeros(x_ref.shape[1:], jnp.float32)
        for t in range(T):  # T is small and static -> fully unrolled recurrence
            mem = mem + x_ref[t].astype(jnp.float32)
            spk = (mem >= VTH).astype(jnp.float32)
            if has_res:
                o_ref[t] = (spk + res_ref[t].astype(jnp.float32)).astype(o_ref.dtype)
            else:
                o_ref[t] = spk.astype(o_ref.dtype)
            mem = jnp.where(spk > 0.0, 0.0, mem)   # hard reset
    return kernel


def spike(x, residual=None, out_dtype=jnp.bfloat16):
    """IF SpikingNeuron over the leading time axis, tiled over the feature axis.

    x: (T, ...) pre-activation.  If `residual` is given (same shape), the SEW
    "ADD" residual is fused into the spike output (out = spikes + residual).
    Spikes (and spike+int residuals) are exact in bf16.
    """
    T = x.shape[0]
    rest = x.shape[1:]
    F = math.prod(rest)
    has_res = residual is not None

    x2 = x.reshape(T, F)
    res2 = residual.reshape(T, F) if has_res else None
    pad = (-F) % 128
    if pad:  # zero-pad to 128 lanes: zeros never spike, padding is sliced off
        x2 = jnp.pad(x2, ((0, 0), (0, pad)))
        if has_res:
            res2 = jnp.pad(res2, ((0, 0), (0, pad)))
    Fp = F + pad
    R = Fp // 128
    r_tile = _pick_tile(R, (64, 32, 16, 8)) or R

    x3 = x2.reshape(T, R, 128)
    args = [x3]
    in_specs = [pl.BlockSpec((T, r_tile, 128), lambda i: (0, i, 0))]
    if has_res:
        args.append(res2.reshape(T, R, 128))
        in_specs.append(pl.BlockSpec((T, r_tile, 128), lambda i: (0, i, 0)))

    out = pl.pallas_call(
        _make_lif_kernel(T, has_res),
        out_shape=jax.ShapeDtypeStruct((T, R, 128), out_dtype),
        grid_spec=pltpu.PrefetchScalarGridSpec(
            num_scalar_prefetch=0,
            grid=(R // r_tile,),
            in_specs=in_specs,
            out_specs=pl.BlockSpec((T, r_tile, 128), lambda i: (0, i, 0)),
        ),
        compiler_params=pltpu.CompilerParams(dimension_semantics=("parallel",)),
    )(*args)

    out = out.reshape(T, Fp)
    if pad:
        out = out[:, :F]
    return out.reshape((T,) + rest)


# ----------------------------------------------------------------------------
# Pallas kernel: global average pool (mean over H*W), tiled over B*T
# ----------------------------------------------------------------------------
def _gap_kernel(x_ref, o_ref):
    o_ref[...] = jnp.mean(x_ref[...].astype(jnp.float32), axis=1)


def gap_call(x):
    """x: (BT, HW, C) -> (BT, C) f32."""
    BT, HW, C = x.shape
    bt_tile = _pick_tile(BT, (64, 32, 16, 8)) or BT
    return pl.pallas_call(
        _gap_kernel,
        out_shape=jax.ShapeDtypeStruct((BT, C), jnp.float32),
        grid_spec=pltpu.PrefetchScalarGridSpec(
            num_scalar_prefetch=0,
            grid=(BT // bt_tile,),
            in_specs=[pl.BlockSpec((bt_tile, HW, C), lambda i: (i, 0, 0))],
            out_specs=pl.BlockSpec((bt_tile, C), lambda i: (i, 0)),
        ),
        compiler_params=pltpu.CompilerParams(dimension_semantics=("parallel",)),
    )(x)


# ----------------------------------------------------------------------------
# Plain-JAX glue around the kernels
# ----------------------------------------------------------------------------
def conv_bn_td(x, layer, stride):
    """Time-distributed conv (1x1 or 3x3 pad=1, no bias) + fused eval-mode BN.

    x: (T, B, H, W, Cin) bf16 spikes.  Returns (T, B, Ho, Wo, Cout) f32 pre-activation.
    """
    T, B, H, W, Cin = x.shape
    w_mat = layer["w_mat"]               # (kh*kw*Cin, Cout) bf16, pre-transposed
    k = layer["k"]
    Cout = w_mat.shape[1]
    N = T * B
    xf = x.reshape(N, H, W, Cin)

    if k == 1:  # 1x1 conv (downsample path)
        xs = xf[:, ::stride, ::stride, :]
        Ho, Wo = xs.shape[1], xs.shape[2]
        a = xs.reshape(N * Ho * Wo, Cin)
    else:       # 3x3, padding=1 -> bf16 im2col
        xp = jnp.pad(xf, ((0, 0), (1, 1), (1, 1), (0, 0)))
        Ho = (H + 2 - 3) // stride + 1
        Wo = (W + 2 - 3) // stride + 1
        cols = [xp[:, i:i + stride * Ho:stride, j:j + stride * Wo:stride, :]
                for i in range(3) for j in range(3)]
        a = jnp.stack(cols, axis=3).reshape(N * Ho * Wo, 9 * Cin)

    scale, shift = layer["bn"]
    out = matmul_fused(a, w_mat, scale, shift, out_dtype=jnp.float32)
    return out.reshape(T, B, Ho, Wo, Cout)


def basic_block(x, blk):
    """SEW BasicBlock: conv-bn-spike, conv-bn-spike, ADD residual (fused into spike2)."""
    identity = x
    out = conv_bn_td(x, blk["conv1"], blk["stride"])
    out = spike(out)
    out = conv_bn_td(out, blk["conv2"], 1)
    if blk["downsample"] is not None:
        identity = spike(conv_bn_td(x, blk["downsample"], blk["stride"]))
    # spike2 with the SEW "ADD" residual fused into the kernel epilogue
    return spike(out, residual=identity)


# ----------------------------------------------------------------------------
# Parameter init (deterministic, synthetic) — weights stored pre-transposed bf16
# ----------------------------------------------------------------------------
def _bn_params(c):
    gamma = jnp.ones((c,), jnp.float32)
    beta = jnp.zeros((c,), jnp.float32)
    mean = jnp.zeros((c,), jnp.float32)
    var = jnp.ones((c,), jnp.float32)
    scale = gamma / jnp.sqrt(var + BN_EPS)
    shift = beta - mean * scale
    return scale, shift


def _conv_entry(key, cout, cin, k):
    # kaiming_normal_(mode='fan_out', nonlinearity='relu')
    fan_out = cout * k * k
    std = math.sqrt(2.0 / fan_out)
    w = std * jax.random.normal(key, (cout, cin, k, k), jnp.float32)
    # Pre-transpose once to (kh*kw*Cin, Cout) matching the im2col column order.
    w_mat = jnp.transpose(w, (2, 3, 1, 0)).reshape(k * k * cin, cout).astype(jnp.bfloat16)
    return {"w_mat": w_mat, "k": k, "bn": _bn_params(cout)}


def _linear_entry(key, cout, cin, with_bn):
    bound = 1.0 / math.sqrt(cin)
    w = jax.random.uniform(key, (cout, cin), jnp.float32, -bound, bound)
    entry = {"w_mat": w.T.astype(jnp.bfloat16)}   # (in, out)
    if with_bn:
        entry["bn"] = _bn_params(cout)
    return entry


def make_params(key, in_ch, enc_ch, planes, fc_hidden, out_size):
    keys = iter(jax.random.split(key, 64))
    params = {"encode": _conv_entry(next(keys), enc_ch, in_ch, 3)}
    plan = [(planes[0], 1), (planes[0], 1), (planes[0], 1),
            (planes[1], 2), (planes[1], 1), (planes[1], 1),
            (planes[2], 2), (planes[2], 1)]
    inplanes = enc_ch
    blocks = []
    for p, s in plan:
        blk = {
            "stride": s,
            "conv1": _conv_entry(next(keys), p, inplanes, 3),
            "conv2": _conv_entry(next(keys), p, p, 3),
            "downsample": None,
        }
        if s != 1 or inplanes != p:
            blk["downsample"] = _conv_entry(next(keys), p, inplanes, 1)
        blocks.append(blk)
        inplanes = p
    params["blocks"] = blocks
    params["fc1"] = _linear_entry(next(keys), fc_hidden, planes[2], with_bn=True)
    params["fc2"] = _linear_entry(next(keys), out_size, fc_hidden, with_bn=False)
    return params


# ----------------------------------------------------------------------------
# Full forward pass
# ----------------------------------------------------------------------------
def resnet19_forward(params, x_nchw, T):
    B, C, H, W = x_nchw.shape
    # inputs.unsqueeze(1).repeat(1, T, ...).float()  -> time-major (T, B, H, W, C)
    x = jnp.transpose(x_nchw, (0, 2, 3, 1))
    x = jnp.broadcast_to(x[None], (T, B, H, W, C)).astype(jnp.bfloat16)

    # encode: conv3x3 + tdBN + spike
    x = conv_bn_td(x, params["encode"], 1)
    x = spike(x)

    # 8 SEW BasicBlocks
    for blk in params["blocks"]:
        x = basic_block(x, blk)

    # global adaptive average pool to (1,1)  ->  (T*B, C)
    T_, B_, Hc, Wc, Cc = x.shape
    pooled = gap_call(x.reshape(T_ * B_, Hc * Wc, Cc))

    # fc: Linear + tdBN1d + spike, then final Linear (no BN, no spike)
    fc1 = params["fc1"]
    h = matmul_fused(pooled, fc1["w_mat"], fc1["bn"][0], fc1["bn"][1],
                     out_dtype=jnp.float32)
    h = spike(h.reshape(T, B, -1))
    h = h.reshape(T * B, -1)

    out = matmul_fused(h, params["fc2"]["w_mat"], out_dtype=jnp.float32)
    out = out.reshape(T, B, -1)
    return jnp.transpose(out, (1, 0, 2))   # (B, T, output_size)


# ----------------------------------------------------------------------------
if __name__ == "__main__":
    key = jax.random.PRNGKey(0)
    pkey, xkey = jax.random.split(key)

    # Small-shape configuration consistent with the module structure
    # (original: encode_channels=128, planes=[128,256,512], fc hidden 256).
    T = 2
    enc_ch = 16
    planes = (16, 32, 64)
    fc_hidden = 32
    out_size = 10

    params = make_params(pkey, in_ch=3, enc_ch=enc_ch, planes=planes,
                         fc_hidden=fc_hidden, out_size=out_size)

    x = jax.random.normal(xkey, (2, 3, 16, 16), jnp.float32)  # NCHW input

    fwd = jax.jit(lambda inp: resnet19_forward(params, inp, T))
    out = jax.block_until_ready(fwd(x))
    assert out.shape == (2, T, out_size), out.shape
    assert jnp.all(jnp.isfinite(out))
    print("KERNEL_OK")
</pallas_src>

<mosaic_0001>
module attributes {stable_mosaic.version = 11 : i64} {
  func.func @_mm_bn_kernel(%arg0: i32, %arg1: i32, %arg2: i32, %arg3: memref<512x27xbf16, #tpu.memory_space<vmem>>, %arg4: memref<27x128xbf16, #tpu.memory_space<vmem>>, %arg5: memref<1x128xf32, #tpu.memory_space<vmem>>, %arg6: memref<1x128xf32, #tpu.memory_space<vmem>>, %arg7: memref<512x128xf32, #tpu.memory_space<vmem>>, %arg8: memref<512x128xf32, #tpu.memory_space<vmem>>) attributes {dimension_semantics = [#tpu.dimension_semantics<parallel>, #tpu.dimension_semantics<parallel>, #tpu.dimension_semantics<arbitrary>], iteration_bounds = array<i64: 2, 1, 1>, scalar_prefetch = 0 : i64, scratch_operands = 1 : i64, tpu.core_type = #tpu.core_type<tc>, window_params = [{transform_indices = @transform_0, window_bounds = array<i64: 512, 27>}, {transform_indices = @transform_1, window_bounds = array<i64: 27, 128>}, {transform_indices = @transform_2, window_bounds = array<i64: 1, 128>}, {transform_indices = @transform_3, window_bounds = array<i64: 1, 128>}, {transform_indices = @transform_4, window_bounds = array<i64: 512, 128>}]} {
    %c0_i32 = arith.constant 0 : i32
    %0 = arith.cmpi eq, %arg2, %c0_i32 : i32
    %1 = arith.extui %0 : i1 to i32
    %c0_i32_0 = arith.constant 0 : i32
    %2 = arith.cmpi ne, %1, %c0_i32_0 : i32
    scf.if %2 {
      %cst_10 = arith.constant 0.000000e+00 : f32
      %12 = vector.broadcast %cst_10 : f32 to vector<512x128xf32>
      %c0_11 = arith.constant 0 : index
      %c0_12 = arith.constant 0 : index
      %13 = vector.load %arg8[%c0_11, %c0_12] : memref<512x128xf32, #tpu.memory_space<vmem>>, vector<512x128xf32>
      tpu.vector_store %arg8[%c0_11, %c0_12], %12 {strides = array<i32>} : memref<512x128xf32, #tpu.memory_space<vmem>>, vector<512x128xf32>,
    } else {
    }
    %c0 = arith.constant 0 : index
    %c0_1 = arith.constant 0 : index
    %3 = vector.load %arg8[%c0, %c0_1] : memref<512x128xf32, #tpu.memory_space<vmem>>, vector<512x128xf32>
    %c0_2 = arith.constant 0 : index
    %c0_3 = arith.constant 0 : index
    %4 = vector.load %arg3[%c0_2, %c0_3] : memref<512x27xbf16, #tpu.memory_space<vmem>>, vector<512x27xbf16>
    %c0_4 = arith.constant 0 : index
    %c0_5 = arith.constant 0 : index
    %5 = vector.load %arg4[%c0_4, %c0_5] : memref<27x128xbf16, #tpu.memory_space<vmem>>, vector<27x128xbf16>
    %cst = arith.constant dense<0.000000e+00> : vector<512x128xf32>
    %6 = tpu.matmul %4, %5, %cst {dimension_numbers = #tpu.dot_dimension_numbers<[1], [0], [0], [1], [0, 0, 1, 1], [], []>} : vector<512x27xbf16>, vector<27x128xbf16>, vector<512x128xf32> -> vector<512x128xf32>
    %7 = arith.addf %3, %6 : vector<512x128xf32>
    %c0_6 = arith.constant 0 : index
    %c0_7 = arith.constant 0 : index
    %8 = vector.load %arg8[%c0_6, %c0_7] : memref<512x128xf32, #tpu.memory_space<vmem>>, vector<512x128xf32>
    tpu.vector_store %arg8[%c0_6, %c0_7], %7 {strides = array<i32>} : memref<512x128xf32, #tpu.memory_space<vmem>>, vector<512x128xf32>,
    %c0_i32_8 = arith.constant 0 : i32
    %9 = arith.cmpi eq, %arg2, %c0_i32_8 : i32
    %10 = arith.extui %9 : i1 to i32
    %c0_i32_9 = arith.constant 0 : i32
    %11 = arith.cmpi ne, %10, %c0_i32_9 : i32
    scf.if %11 {
      %c0_10 = arith.constant 0 : index
      %c0_11 = arith.constant 0 : index
      %12 = vector.load %arg8[%c0_10, %c0_11] : memref<512x128xf32, #tpu.memory_space<vmem>>, vector<512x128xf32>
      %c0_12 = arith.constant 0 : index
      %c0_13 = arith.constant 0 : index
      %13 = vector.load %arg5[%c0_12, %c0_13] : memref<1x128xf32, #tpu.memory_space<vmem>>, vector<1x128xf32>
      %14 = vector.broadcast %13 : vector<1x128xf32> to vector<512x128xf32>
      %15 = arith.mulf %12, %14 : vector<512x128xf32>
      %c0_14 = arith.constant 0 : index
      %c0_15 = arith.constant 0 : index
      %16 = vector.load %arg6[%c0_14, %c0_15] : memref<1x128xf32, #tpu.memory_space<vmem>>, vector<1x128xf32>
      %17 = vector.broadcast %16 : vector<1x128xf32> to vector<512x128xf32>
      %18 = arith.addf %15, %17 : vector<512x128xf32>
      %c0_16 = arith.constant 0 : index
      %c0_17 = arith.constant 0 : index
      %19 = vector.load %arg7[%c0_16, %c0_17] : memref<512x128xf32, #tpu.memory_space<vmem>>, vector<512x128xf32>
      tpu.vector_store %arg7[%c0_16, %c0_17], %18 {strides = array<i32>} : memref<512x128xf32, #tpu.memory_space<vmem>>, vector<512x128xf32>,
    } else {
    }
    return
  }
  func.func @transform_0(%arg0: i32, %arg1: i32, %arg2: i32) -> (i32, i32) {
    %c0_i32 = arith.constant 0 : i32
    return %arg0, %arg2 : i32, i32
  }
  func.func @transform_1(%arg0: i32, %arg1: i32, %arg2: i32) -> (i32, i32) {
    %c0_i32 = arith.constant 0 : i32
    return %arg2, %arg1 : i32, i32
  }
  func.func @transform_2(%arg0: i32, %arg1: i32, %arg2: i32) -> (i32, i32) {
    %c0_i32 = arith.constant 0 : i32
    %c0_i32_0 = arith.constant 0 : i32
    return %c0_i32, %arg1 : i32, i32
  }
  func.func @transform_3(%arg0: i32, %arg1: i32, %arg2: i32) -> (i32, i32) {
    %c0_i32 = arith.constant 0 : i32
    %c0_i32_0 = arith.constant 0 : i32
    return %c0_i32, %arg1 : i32, i32
  }
  func.func @transform_4(%arg0: i32, %arg1: i32, %arg2: i32) -> (i32, i32) {
    %c0_i32 = arith.constant 0 : i32
    return %arg0, %arg1 : i32, i32
  }
}

module attributes {stable_mosaic.version = 11 : i64} {
  func.func @kernel(%arg0: i32, %arg1: memref<2x64x128xf32, #tpu.memory_space<vmem>>, %arg2: memref<2x64x128xbf16, #tpu.memory_space<vmem>>) attributes {dimension_semantics = [#tpu.dimension_semantics<parallel>], iteration_bounds = array<i64: 1>, scalar_prefetch = 0 : i64, scratch_operands = 0 : i64, tpu.core_type = #tpu.core_type<tc>, window_params = [{transform_indices = @transform_0, window_bounds = array<i64: 2, 64, 128>}, {transform_indices = @transform_1, window_bounds = array<i64: 2, 64, 128>}]} {
    %cst = arith.constant 0.000000e+00 : f32
    %0 = vector.broadcast %cst : f32 to vector<64x128xf32>
    %c0 = arith.constant 0 : index
    %c0_0 = arith.constant 0 : index
    %c0_1 = arith.constant 0 : index
    %1 = vector.load %arg1[%c0, %c0_0, %c0_1] : memref<2x64x128xf32, #tpu.memory_space<vmem>>, vector<1x64x128xf32>
    %2 = vector.shape_cast %1 : vector<1x64x128xf32> to vector<64x128xf32>
    %3 = arith.addf %0, %2 : vector<64x128xf32>
    %cst_2 = arith.constant 1.000000e+00 : f32
    %4 = vector.broadcast %cst_2 : f32 to vector<64x128xf32>
    %5 = arith.cmpf oge, %3, %4 : vector<64x128xf32>
    %6 = arith.extui %5 : vector<64x128xi1> to vector<64x128xi32>
    %7 = arith.sitofp %6 : vector<64x128xi32> to vector<64x128xf32>
    %8 = arith.truncf %7 : vector<64x128xf32> to vector<64x128xbf16>
    %c0_3 = arith.constant 0 : index
    %c0_4 = arith.constant 0 : index
    %c0_5 = arith.constant 0 : index
    %9 = vector.load %arg2[%c0_3, %c0_4, %c0_5] : memref<2x64x128xbf16, #tpu.memory_space<vmem>>, vector<1x64x128xbf16>
    %10 = vector.shape_cast %9 : vector<1x64x128xbf16> to vector<64x128xbf16>
    %11 = vector.shape_cast %8 : vector<64x128xbf16> to vector<1x64x128xbf16>
    tpu.vector_store %arg2[%c0_3, %c0_4, %c0_5], %11 {strides = array<i32>} : memref<2x64x128xbf16, #tpu.memory_space<vmem>>, vector<1x64x128xbf16>,
    %cst_6 = arith.constant 0.000000e+00 : f32
    %12 = vector.broadcast %cst_6 : f32 to vector<64x128xf32>
    %13 = arith.cmpf ogt, %7, %12 : vector<64x128xf32>
    %cst_7 = arith.constant 0.000000e+00 : f32
    %14 = vector.broadcast %cst_7 : f32 to vector<64x128xf32>
    %15 = arith.select %13, %14, %3 : vector<64x128xi1>, vector<64x128xf32>
    %c1 = arith.constant 1 : index
    %c0_8 = arith.constant 0 : index
    %c0_9 = arith.constant 0 : index
    %16 = vector.load %arg1[%c1, %c0_8, %c0_9] : memref<2x64x128xf32, #tpu.memory_space<vmem>>, vector<1x64x128xf32>
    %17 = vector.shape_cast %16 : vector<1x64x128xf32> to vector<64x128xf32>
    %18 = arith.addf %15, %17 : vector<64x128xf32>
    %cst_10 = arith.constant 1.000000e+00 : f32
    %19 = vector.broadcast %cst_10 : f32 to vector<64x128xf32>
    %20 = arith.cmpf oge, %18, %19 : vector<64x128xf32>
    %21 = arith.extui %20 : vector<64x128xi1> to vector<64x128xi32>
    %22 = arith.sitofp %21 : vector<64x128xi32> to vector<64x128xf32>
    %23 = arith.truncf %22 : vector<64x128xf32> to vector<64x128xbf16>
    %c1_11 = arith.constant 1 : index
    %c0_12 = arith.constant 0 : index
    %c0_13 = arith.constant 0 : index
    %24 = vector.load %arg2[%c1_11, %c0_12, %c0_13] : memref<2x64x128xbf16, #tpu.memory_space<vmem>>, vector<1x64x128xbf16>
    %25 = vector.shape_cast %24 : vector<1x64x128xbf16> to vector<64x128xbf16>
    %26 = vector.shape_cast %23 : vector<64x128xbf16> to vector<1x64x128xbf16>
    tpu.vector_store %arg2[%c1_11, %c0_12, %c0_13], %26 {strides = array<i32>} : memref<2x64x128xbf16, #tpu.memory_space<vmem>>, vector<1x64x128xbf16>,
    return
  }
  func.func @transform_0(%arg0: i32) -> (i32, i32, i32) {
    %c0_i32 = arith.constant 0 : i32
    %c0_i32_0 = arith.constant 0 : i32
    %c0_i32_1 = arith.constant 0 : i32
    return %c0_i32, %arg0, %c0_i32_0 : i32, i32, i32
  }
  func.func @transform_1(%arg0: i32) -> (i32, i32, i32) {
    %c0_i32 = arith.constant 0 : i32
    %c0_i32_0 = arith.constant 0 : i32
    %c0_i32_1 = arith.constant 0 : i32
    return %c0_i32, %arg0, %c0_i32_0 : i32, i32, i32
  }
}

module attributes {stable_mosaic.version = 11 : i64} {
  func.func @_mm_bn_kernel(%arg0: i32, %arg1: i32, %arg2: i32, %arg3: memref<512x144xbf16, #tpu.memory_space<vmem>>, %arg4: memref<144x128xbf16, #tpu.memory_space<vmem>>, %arg5: memref<1x128xf32, #tpu.memory_space<vmem>>, %arg6: memref<1x128xf32, #tpu.memory_space<vmem>>, %arg7: memref<512x128xf32, #tpu.memory_space<vmem>>, %arg8: memref<512x128xf32, #tpu.memory_space<vmem>>) attributes {dimension_semantics = [#tpu.dimension_semantics<parallel>, #tpu.dimension_semantics<parallel>, #tpu.dimension_semantics<arbitrary>], iteration_bounds = array<i64: 2, 1, 1>, scalar_prefetch = 0 : i64, scratch_operands = 1 : i64, tpu.core_type = #tpu.core_type<tc>, window_params = [{transform_indices = @transform_0, window_bounds = array<i64: 512, 144>}, {transform_indices = @transform_1, window_bounds = array<i64: 144, 128>}, {transform_indices = @transform_2, window_bounds = array<i64: 1, 128>}, {transform_indices = @transform_3, window_bounds = array<i64: 1, 128>}, {transform_indices = @transform_4, window_bounds = array<i64: 512, 128>}]} {
    %c0_i32 = arith.constant 0 : i32
    %0 = arith.cmpi eq, %arg2, %c0_i32 : i32
    %1 = arith.extui %0 : i1 to i32
    %c0_i32_0 = arith.constant 0 : i32
    %2 = arith.cmpi ne, %1, %c0_i32_0 : i32
    scf.if %2 {
      %cst_10 = arith.constant 0.000000e+00 : f32
      %12 = vector.broadcast %cst_10 : f32 to vector<512x128xf32>
      %c0_11 = arith.constant 0 : index
      %c0_12 = arith.constant 0 : index
      %13 = vector.load %arg8[%c0_11, %c0_12] : memref<512x128xf32, #tpu.memory_space<vmem>>, vector<512x128xf32>
      tpu.vector_store %arg8[%c0_11, %c0_12], %12 {strides = array<i32>} : memref<512x128xf32, #tpu.memory_space<vmem>>, vector<512x128xf32>,
    } else {
    }
    %c0 = arith.constant 0 : index
    %c0_1 = arith.constant 0 : index
    %3 = vector.load %arg8[%c0, %c0_1] : memref<512x128xf32, #tpu.memory_space<vmem>>, vector<512x128xf32>
    %c0_2 = arith.constant 0 : index
    %c0_3 = arith.constant 0 : index
    %4 = vector.load %arg3[%c0_2, %c0_3] : memref<512x144xbf16, #tpu.memory_space<vmem>>, vector<512x144xbf16>
    %c0_4 = arith.constant 0 : index
    %c0_5 = arith.constant 0 : index
    %5 = vector.load %arg4[%c0_4, %c0_5] : memref<144x128xbf16, #tpu.memory_space<vmem>>, vector<144x128xbf16>
    %cst = arith.constant dense<0.000000e+00> : vector<512x128xf32>
    %6 = tpu.matmul %4, %5, %cst {dimension_numbers = #tpu.dot_dimension_numbers<[1], [0], [0], [1], [0, 0, 1, 1], [], []>} : vector<512x144xbf16>, vector<144x128xbf16>, vector<512x128xf32> -> vector<512x128xf32>
    %7 = arith.addf %3, %6 : vector<512x128xf32>
    %c0_6 = arith.constant 0 : index
    %c0_7 = arith.constant 0 : index
    %8 = vector.load %arg8[%c0_6, %c0_7] : memref<512x128xf32, #tpu.memory_space<vmem>>, vector<512x128xf32>
    tpu.vector_store %arg8[%c0_6, %c0_7], %7 {strides = array<i32>} : memref<512x128xf32, #tpu.memory_space<vmem>>, vector<512x128xf32>,
    %c0_i32_8 = arith.constant 0 : i32
    %9 = arith.cmpi eq, %arg2, %c0_i32_8 : i32
    %10 = arith.extui %9 : i1 to i32
    %c0_i32_9 = arith.constant 0 : i32
    %11 = arith.cmpi ne, %10, %c0_i32_9 : i32
    scf.if %11 {
      %c0_10 = arith.constant 0 : index
      %c0_11 = arith.constant 0 : index
      %12 = vector.load %arg8[%c0_10, %c0_11] : memref<512x128xf32, #tpu.memory_space<vmem>>, vector<512x128xf32>
      %c0_12 = arith.constant 0 : index
      %c0_13 = arith.constant 0 : index
      %13 = vector.load %arg5[%c0_12, %c0_13] : memref<1x128xf32, #tpu.memory_space<vmem>>, vector<1x128xf32>
      %14 = vector.broadcast %13 : vector<1x128xf32> to vector<512x128xf32>
      %15 = arith.mulf %12, %14 : vector<512x128xf32>
      %c0_14 = arith.constant 0 : index
      %c0_15 = arith.constant 0 : index
      %16 = vector.load %arg6[%c0_14, %c0_15] : memref<1x128xf32, #tpu.memory_space<vmem>>, vector<1x128xf32>
      %17 = vector.broadcast %16 : vector<1x128xf32> to vector<512x128xf32>
      %18 = arith.addf %15, %17 : vector<512x128xf32>
      %c0_16 = arith.constant 0 : index
      %c0_17 = arith.constant 0 : index
      %19 = vector.load %arg7[%c0_16, %c0_17] : memref<512x128xf32, #tpu.memory_space<vmem>>, vector<512x128xf32>
      tpu.vector_store %arg7[%c0_16, %c0_17], %18 {strides = array<i32>} : memref<512x128xf32, #tpu.memory_space<vmem>>, vector<512x128xf32>,
    } else {
    }
    return
  }
  func.func @transform_0(%arg0: i32, %arg1: i32, %arg2: i32) -> (i32, i32) {
    %c0_i32 = arith.constant 0 : i32
    return %arg0, %arg2 : i32, i32
  }
  func.func @transform_1(%arg0: i32, %arg1: i32, %arg2: i32) -> (i32, i32) {
    %c0_i32 = arith.constant 0 : i32
    return %arg2, %arg1 : i32, i32
  }
  func.func @transform_2(%arg0: i32, %arg1: i32, %arg2: i32) -> (i32, i32) {
    %c0_i32 = arith.constant 0 : i32
    %c0_i32_0 = arith.constant 0 : i32
    return %c0_i32, %arg1 : i32, i32
  }
  func.func @transform_3(%arg0: i32, %arg1: i32, %arg2: i32) -> (i32, i32) {
    %c0_i32 = arith.constant 0 : i32
    %c0_i32_0 = arith.constant 0 : i32
    return %c0_i32, %arg1 : i32, i32
  }
  func.func @transform_4(%arg0: i32, %arg1: i32, %arg2: i32) -> (i32, i32) {
    %c0_i32 = arith.constant 0 : i32
    return %arg0, %arg1 : i32, i32
  }
}

module attributes {stable_mosaic.version = 11 : i64} {
  func.func @kernel(%arg0: i32, %arg1: memref<2x64x128xf32, #tpu.memory_space<vmem>>, %arg2: memref<2x64x128xbf16, #tpu.memory_space<vmem>>, %arg3: memref<2x64x128xbf16, #tpu.memory_space<vmem>>) attributes {dimension_semantics = [#tpu.dimension_semantics<parallel>], iteration_bounds = array<i64: 1>, scalar_prefetch = 0 : i64, scratch_operands = 0 : i64, tpu.core_type = #tpu.core_type<tc>, window_params = [{transform_indices = @transform_0, window_bounds = array<i64: 2, 64, 128>}, {transform_indices = @transform_1, window_bounds = array<i64: 2, 64, 128>}, {transform_indices = @transform_2, window_bounds = array<i64: 2, 64, 128>}]} {
    %cst = arith.constant 0.000000e+00 : f32
    %0 = vector.broadcast %cst : f32 to vector<64x128xf32>
    %c0 = arith.constant 0 : index
    %c0_0 = arith.constant 0 : index
    %c0_1 = arith.constant 0 : index
    %1 = vector.load %arg1[%c0, %c0_0, %c0_1] : memref<2x64x128xf32, #tpu.memory_space<vmem>>, vector<1x64x128xf32>
    %2 = vector.shape_cast %1 : vector<1x64x128xf32> to vector<64x128xf32>
    %3 = arith.addf %0, %2 : vector<64x128xf32>
    %cst_2 = arith.constant 1.000000e+00 : f32
    %4 = vector.broadcast %cst_2 : f32 to vector<64x128xf32>
    %5 = arith.cmpf oge, %3, %4 : vector<64x128xf32>
    %6 = arith.extui %5 : vector<64x128xi1> to vector<64x128xi32>
    %7 = arith.sitofp %6 : vector<64x128xi32> to vector<64x128xf32>
    %c0_3 = arith.constant 0 : index
    %c0_4 = arith.constant 0 : index
    %c0_5 = arith.constant 0 : index
    %8 = vector.load %arg2[%c0_3, %c0_4, %c0_5] : memref<2x64x128xbf16, #tpu.memory_space<vmem>>, vector<1x64x128xbf16>
    %9 = vector.shape_cast %8 : vector<1x64x128xbf16> to vector<64x128xbf16>
    %10 = arith.extf %9 : vector<64x128xbf16> to vector<64x128xf32>
    %11 = arith.addf %7, %10 : vector<64x128xf32>
    %12 = arith.truncf %11 : vector<64x128xf32> to vector<64x128xbf16>
    %c0_6 = arith.constant 0 : index
    %c0_7 = arith.constant 0 : index
    %c0_8 = arith.constant 0 : index
    %13 = vector.load %arg3[%c0_6, %c0_7, %c0_8] : memref<2x64x128xbf16, #tpu.memory_space<vmem>>, vector<1x64x128xbf16>
    %14 = vector.shape_cast %13 : vector<1x64x128xbf16> to vector<64x128xbf16>
    %15 = vector.shape_cast %12 : vector<64x128xbf16> to vector<1x64x128xbf16>
    tpu.vector_store %arg3[%c0_6, %c0_7, %c0_8], %15 {strides = array<i32>} : memref<2x64x128xbf16, #tpu.memory_space<vmem>>, vector<1x64x128xbf16>,
    %cst_9 = arith.constant 0.000000e+00 : f32
    %16 = vector.broadcast %cst_9 : f32 to vector<64x128xf32>
    %17 = arith.cmpf ogt, %7, %16 : vector<64x128xf32>
    %cst_10 = arith.constant 0.000000e+00 : f32
    %18 = vector.broadcast %cst_10 : f32 to vector<64x128xf32>
    %19 = arith.select %17, %18, %3 : vector<64x128xi1>, vector<64x128xf32>
    %c1 = arith.constant 1 : index
    %c0_11 = arith.constant 0 : index
    %c0_12 = arith.constant 0 : index
    %20 = vector.load %arg1[%c1, %c0_11, %c0_12] : memref<2x64x128xf32, #tpu.memory_space<vmem>>, vector<1x64x128xf32>
    %21 = vector.shape_cast %20 : vector<1x64x128xf32> to vector<64x128xf32>
    %22 = arith.addf %19, %21 : vector<64x128xf32>
    %cst_13 = arith.constant 1.000000e+00 : f32
    %23 = vector.broadcast %cst_13 : f32 to vector<64x128xf32>
    %24 = arith.cmpf oge, %22, %23 : vector<64x128xf32>
    %25 = arith.extui %24 : vector<64x128xi1> to vector<64x128xi32>
    %26 = arith.sitofp %25 : vector<64x128xi32> to vector<64x128xf32>
    %c1_14 = arith.constant 1 : index
    %c0_15 = arith.constant 0 : index
    %c0_16 = arith.constant 0 : index
    %27 = vector.load %arg2[%c1_14, %c0_15, %c0_16] : memref<2x64x128xbf16, #tpu.memory_space<vmem>>, vector<1x64x128xbf16>
    %28 = vector.shape_cast %27 : vector<1x64x128xbf16> to vector<64x128xbf16>
    %29 = arith.extf %28 : vector<64x128xbf16> to vector<64x128xf32>
    %30 = arith.addf %26, %29 : vector<64x128xf32>
    %31 = arith.truncf %30 : vector<64x128xf32> to vector<64x128xbf16>
    %c1_17 = arith.constant 1 : index
    %c0_18 = arith.constant 0 : index
    %c0_19 = arith.constant 0 : index
    %32 = vector.load %arg3[%c1_17, %c0_18, %c0_19] : memref<2x64x128xbf16, #tpu.memory_space<vmem>>, vector<1x64x128xbf16>
    %33 = vector.shape_cast %32 : vector<1x64x128xbf16> to vector<64x128xbf16>
    %34 = vector.shape_cast %31 : vector<64x128xbf16> to vector<1x64x128xbf16>
    tpu.vector_store %arg3[%c1_17, %c0_18, %c0_19], %34 {strides = array<i32>} : memref<2x64x128xbf16, #tpu.memory_space<vmem>>, vector<1x64x128xbf16>,
    return
  }
  func.func @transform_0(%arg0: i32) -> (i32, i32, i32) {
    %c0_i32 = arith.constant 0 : i32
    %c0_i32_0 = arith.constant 0 : i32
    %c0_i32_1 = arith.constant 0 : i32
    return %c0_i32, %arg0, %c0_i32_0 : i32, i32, i32
  }
  func.func @transform_1(%arg0: i32) -> (i32, i32, i32) {
    %c0_i32 = arith.constant 0 : i32
    %c0_i32_0 = arith.constant 0 : i32
    %c0_i32_1 = arith.constant 0 : i32
    return %c0_i32, %arg0, %c0_i32_0 : i32, i32, i32
  }
  func.func @transform_2(%arg0: i32) -> (i32, i32, i32) {
    %c0_i32 = arith.constant 0 : i32
    %c0_i32_0 = arith.constant 0 : i32
    %c0_i32_1 = arith.constant 0 : i32
    return %c0_i32, %arg0, %c0_i32_0 : i32, i32, i32
  }
}

module attributes {stable_mosaic.version = 11 : i64} {
  func.func @_mm_bn_kernel(%arg0: i32, %arg1: i32, %arg2: i32, %arg3: memref<256x144xbf16, #tpu.memory_space<vmem>>, %arg4: memref<144x128xbf16, #tpu.memory_space<vmem>>, %arg5: memref<1x128xf32, #tpu.memory_space<vmem>>, %arg6: memref<1x128xf32, #tpu.memory_space<vmem>>, %arg7: memref<256x128xf32, #tpu.memory_space<vmem>>, %arg8: memref<256x128xf32, #tpu.memory_space<vmem>>) attributes {dimension_semantics = [#tpu.dimension_semantics<parallel>, #tpu.dimension_semantics<parallel>, #tpu.dimension_semantics<arbitrary>], iteration_bounds = array<i64: 1, 1, 1>, scalar_prefetch = 0 : i64, scratch_operands = 1 : i64, tpu.core_type = #tpu.core_type<tc>, window_params = [{transform_indices = @transform_0, window_bounds = array<i64: 256, 144>}, {transform_indices = @transform_1, window_bounds = array<i64: 144, 128>}, {transform_indices = @transform_2, window_bounds = array<i64: 1, 128>}, {transform_indices = @transform_3, window_bounds = array<i64: 1, 128>}, {transform_indices = @transform_4, window_bounds = array<i64: 256, 128>}]} {
    %c0_i32 = arith.constant 0 : i32
    %0 = arith.cmpi eq, %arg2, %c0_i32 : i32
    %1 = arith.extui %0 : i1 to i32
    %c0_i32_0 = arith.constant 0 : i32
    %2 = arith.cmpi ne, %1, %c0_i32_0 : i32
    scf.if %2 {
      %cst_10 = arith.constant 0.000000e+00 : f32
      %12 = vector.broadcast %cst_10 : f32 to vector<256x128xf32>
      %c0_11 = arith.constant 0 : index
      %c0_12 = arith.constant 0 : index
      %13 = vector.load %arg8[%c0_11, %c0_12] : memref<256x128xf32, #tpu.memory_space<vmem>>, vector<256x128xf32>
      tpu.vector_store %arg8[%c0_11, %c0_12], %12 {strides = array<i32>} : memref<256x128xf32, #tpu.memory_space<vmem>>, vector<256x128xf32>,
    } else {
    }
    %c0 = arith.constant 0 : index
    %c0_1 = arith.constant 0 : index
    %3 = vector.load %arg8[%c0, %c0_1] : memref<256x128xf32, #tpu.memory_space<vmem>>, vector<256x128xf32>
    %c0_2 = arith.constant 0 : index
    %c0_3 = arith.constant 0 : index
    %4 = vector.load %arg3[%c0_2, %c0_3] : memref<256x144xbf16, #tpu.memory_space<vmem>>, vector<256x144xbf16>
    %c0_4 = arith.constant 0 : index
    %c0_5 = arith.constant 0 : index
    %5 = vector.load %arg4[%c0_4, %c0_5] : memref<144x128xbf16, #tpu.memory_space<vmem>>, vector<144x128xbf16>
    %cst = arith.constant dense<0.000000e+00> : vector<256x128xf32>
    %6 = tpu.matmul %4, %5, %cst {dimension_numbers = #tpu.dot_dimension_numbers<[1], [0], [0], [1], [0, 0, 1, 1], [], []>} : vector<256x144xbf16>, vector<144x128xbf16>, vector<256x128xf32> -> vector<256x128xf32>
    %7 = arith.addf %3, %6 : vector<256x128xf32>
    %c0_6 = arith.constant 0 : index
    %c0_7 = arith.constant 0 : index
    %8 = vector.load %arg8[%c0_6, %c0_7] : memref<256x128xf32, #tpu.memory_space<vmem>>, vector<256x128xf32>
    tpu.vector_store %arg8[%c0_6, %c0_7], %7 {strides = array<i32>} : memref<256x128xf32, #tpu.memory_space<vmem>>, vector<256x128xf32>,
    %c0_i32_8 = arith.constant 0 : i32
    %9 = arith.cmpi eq, %arg2, %c0_i32_8 : i32
    %10 = arith.extui %9 : i1 to i32
    %c0_i32_9 = arith.constant 0 : i32
    %11 = arith.cmpi ne, %10, %c0_i32_9 : i32
    scf.if %11 {
      %c0_10 = arith.constant 0 : index
      %c0_11 = arith.constant 0 : index
      %12 = vector.load %arg8[%c0_10, %c0_11] : memref<256x128xf32, #tpu.memory_space<vmem>>, vector<256x128xf32>
      %c0_12 = arith.constant 0 : index
      %c0_13 = arith.constant 0 : index
      %13 = vector.load %arg5[%c0_12, %c0_13] : memref<1x128xf32, #tpu.memory_space<vmem>>, vector<1x128xf32>
      %14 = vector.broadcast %13 : vector<1x128xf32> to vector<256x128xf32>
      %15 = arith.mulf %12, %14 : vector<256x128xf32>
      %c0_14 = arith.constant 0 : index
      %c0_15 = arith.constant 0 : index
      %16 = vector.load %arg6[%c0_14, %c0_15] : memref<1x128xf32, #tpu.memory_space<vmem>>, vector<1x128xf32>
      %17 = vector.broadcast %16 : vector<1x128xf32> to vector<256x128xf32>
      %18 = arith.addf %15, %17 : vector<256x128xf32>
      %c0_16 = arith.constant 0 : index
      %c0_17 = arith.constant 0 : index
      %19 = vector.load %arg7[%c0_16, %c0_17] : memref<256x128xf32, #tpu.memory_space<vmem>>, vector<256x128xf32>
      tpu.vector_store %arg7[%c0_16, %c0_17], %18 {strides = array<i32>} : memref<256x128xf32, #tpu.memory_space<vmem>>, vector<256x128xf32>,
    } else {
    }
    return
  }
  func.func @transform_0(%arg0: i32, %arg1: i32, %arg2: i32) -> (i32, i32) {
    %c0_i32 = arith.constant 0 : i32
    return %arg0, %arg2 : i32, i32
  }
  func.func @transform_1(%arg0: i32, %arg1: i32, %arg2: i32) -> (i32, i32) {
    %c0_i32 = arith.constant 0 : i32
    return %arg2, %arg1 : i32, i32
  }
  func.func @transform_2(%arg0: i32, %arg1: i32, %arg2: i32) -> (i32, i32) {
    %c0_i32 = arith.constant 0 : i32
    %c0_i32_0 = arith.constant 0 : i32
    return %c0_i32, %arg1 : i32, i32
  }
  func.func @transform_3(%arg0: i32, %arg1: i32, %arg2: i32) -> (i32, i32) {
    %c0_i32 = arith.constant 0 : i32
    %c0_i32_0 = arith.constant 0 : i32
    return %c0_i32, %arg1 : i32, i32
  }
  func.func @transform_4(%arg0: i32, %arg1: i32, %arg2: i32) -> (i32, i32) {
    %c0_i32 = arith.constant 0 : i32
    return %arg0, %arg1 : i32, i32
  }
}

module attributes {stable_mosaic.version = 11 : i64} {
  func.func @kernel(%arg0: i32, %arg1: memref<2x32x128xf32, #tpu.memory_space<vmem>>, %arg2: memref<2x32x128xbf16, #tpu.memory_space<vmem>>) attributes {dimension_semantics = [#tpu.dimension_semantics<parallel>], iteration_bounds = array<i64: 1>, scalar_prefetch = 0 : i64, scratch_operands = 0 : i64, tpu.core_type = #tpu.core_type<tc>, window_params = [{transform_indices = @transform_0, window_bounds = array<i64: 2, 32, 128>}, {transform_indices = @transform_1, window_bounds = array<i64: 2, 32, 128>}]} {
    %cst = arith.constant 0.000000e+00 : f32
    %0 = vector.broadcast %cst : f32 to vector<32x128xf32>
    %c0 = arith.constant 0 : index
    %c0_0 = arith.constant 0 : index
    %c0_1 = arith.constant 0 : index
    %1 = vector.load %arg1[%c0, %c0_0, %c0_1] : memref<2x32x128xf32, #tpu.memory_space<vmem>>, vector<1x32x128xf32>
    %2 = vector.shape_cast %1 : vector<1x32x128xf32> to vector<32x128xf32>
    %3 = arith.addf %0, %2 : vector<32x128xf32>
    %cst_2 = arith.constant 1.000000e+00 : f32
    %4 = vector.broadcast %cst_2 : f32 to vector<32x128xf32>
    %5 = arith.cmpf oge, %3, %4 : vector<32x128xf32>
    %6 = arith.extui %5 : vector<32x128xi1> to vector<32x128xi32>
    %7 = arith.sitofp %6 : vector<32x128xi32> to vector<32x128xf32>
    %8 = arith.truncf %7 : vector<32x128xf32> to vector<32x128xbf16>
    %c0_3 = arith.constant 0 : index
    %c0_4 = arith.constant 0 : index
    %c0_5 = arith.constant 0 : index
    %9 = vector.load %arg2[%c0_3, %c0_4, %c0_5] : memref<2x32x128xbf16, #tpu.memory_space<vmem>>, vector<1x32x128xbf16>
    %10 = vector.shape_cast %9 : vector<1x32x128xbf16> to vector<32x128xbf16>
    %11 = vector.shape_cast %8 : vector<32x128xbf16> to vector<1x32x128xbf16>
    tpu.vector_store %arg2[%c0_3, %c0_4, %c0_5], %11 {strides = array<i32>} : memref<2x32x128xbf16, #tpu.memory_space<vmem>>, vector<1x32x128xbf16>,
    %cst_6 = arith.constant 0.000000e+00 : f32
    %12 = vector.broadcast %cst_6 : f32 to vector<32x128xf32>
    %13 = arith.cmpf ogt, %7, %12 : vector<32x128xf32>
    %cst_7 = arith.constant 0.000000e+00 : f32
    %14 = vector.broadcast %cst_7 : f32 to vector<32x128xf32>
    %15 = arith.select %13, %14, %3 : vector<32x128xi1>, vector<32x128xf32>
    %c1 = arith.constant 1 : index
    %c0_8 = arith.constant 0 : index
    %c0_9 = arith.constant 0 : index
    %16 = vector.load %arg1[%c1, %c0_8, %c0_9] : memref<2x32x128xf32, #tpu.memory_space<vmem>>, vector<1x32x128xf32>
    %17 = vector.shape_cast %16 : vector<1x32x128xf32> to vector<32x128xf32>
    %18 = arith.addf %15, %17 : vector<32x128xf32>
    %cst_10 = arith.constant 1.000000e+00 : f32
    %19 = vector.broadcast %cst_10 : f32 to vector<32x128xf32>
    %20 = arith.cmpf oge, %18, %19 : vector<32x128xf32>
    %21 = arith.extui %20 : vector<32x128xi1> to vector<32x128xi32>
    %22 = arith.sitofp %21 : vector<32x128xi32> to vector<32x128xf32>
    %23 = arith.truncf %22 : vector<32x128xf32> to vector<32x128xbf16>
    %c1_11 = arith.constant 1 : index
    %c0_12 = arith.constant 0 : index
    %c0_13 = arith.constant 0 : index
    %24 = vector.load %arg2[%c1_11, %c0_12, %c0_13] : memref<2x32x128xbf16, #tpu.memory_space<vmem>>, vector<1x32x128xbf16>
    %25 = vector.shape_cast %24 : vector<1x32x128xbf16> to vector<32x128xbf16>
    %26 = vector.shape_cast %23 : vector<32x128xbf16> to vector<1x32x128xbf16>
    tpu.vector_store %arg2[%c1_11, %c0_12, %c0_13], %26 {strides = array<i32>} : memref<2x32x128xbf16, #tpu.memory_space<vmem>>, vector<1x32x128xbf16>,
    return
  }
  func.func @transform_0(%arg0: i32) -> (i32, i32, i32) {
    %c0_i32 = arith.constant 0 : i32
    %c0_i32_0 = arith.constant 0 : i32
    %c0_i32_1 = arith.constant 0 : i32
    return %c0_i32, %arg0, %c0_i32_0 : i32, i32, i32
  }
  func.func @transform_1(%arg0: i32) -> (i32, i32, i32) {
    %c0_i32 = arith.constant 0 : i32
    %c0_i32_0 = arith.constant 0 : i32
    %c0_i32_1 = arith.constant 0 : i32
    return %c0_i32, %arg0, %c0_i32_0 : i32, i32, i32
  }
}

module attributes {stable_mosaic.version = 11 : i64} {
  func.func @_mm_bn_kernel(%arg0: i32, %arg1: i32, %arg2: i32, %arg3: memref<256x288xbf16, #tpu.memory_space<vmem>>, %arg4: memref<288x128xbf16, #tpu.memory_space<vmem>>, %arg5: memref<1x128xf32, #tpu.memory_space<vmem>>, %arg6: memref<1x128xf32, #tpu.memory_space<vmem>>, %arg7: memref<256x128xf32, #tpu.memory_space<vmem>>, %arg8: memref<256x128xf32, #tpu.memory_space<vmem>>) attributes {dimension_semantics = [#tpu.dimension_semantics<parallel>, #tpu.dimension_semantics<parallel>, #tpu.dimension_semantics<arbitrary>], iteration_bounds = array<i64: 1, 1, 1>, scalar_prefetch = 0 : i64, scratch_operands = 1 : i64, tpu.core_type = #tpu.core_type<tc>, window_params = [{transform_indices = @transform_0, window_bounds = array<i64: 256, 288>}, {transform_indices = @transform_1, window_bounds = array<i64: 288, 128>}, {transform_indices = @transform_2, window_bounds = array<i64: 1, 128>}, {transform_indices = @transform_3, window_bounds = array<i64: 1, 128>}, {transform_indices = @transform_4, window_bounds = array<i64: 256, 128>}]} {
    %c0_i32 = arith.constant 0 : i32
    %0 = arith.cmpi eq, %arg2, %c0_i32 : i32
    %1 = arith.extui %0 : i1 to i32
    %c0_i32_0 = arith.constant 0 : i32
    %2 = arith.cmpi ne, %1, %c0_i32_0 : i32
    scf.if %2 {
      %cst_10 = arith.constant 0.000000e+00 : f32
      %12 = vector.broadcast %cst_10 : f32 to vector<256x128xf32>
      %c0_11 = arith.constant 0 : index
      %c0_12 = arith.constant 0 : index
      %13 = vector.load %arg8[%c0_11, %c0_12] : memref<256x128xf32, #tpu.memory_space<vmem>>, vector<256x128xf32>
      tpu.vector_store %arg8[%c0_11, %c0_12], %12 {strides = array<i32>} : memref<256x128xf32, #tpu.memory_space<vmem>>, vector<256x128xf32>,
    } else {
    }
    %c0 = arith.constant 0 : index
    %c0_1 = arith.constant 0 : index
    %3 = vector.load %arg8[%c0, %c0_1] : memref<256x128xf32, #tpu.memory_space<vmem>>, vector<256x128xf32>
    %c0_2 = arith.constant 0 : index
    %c0_3 = arith.constant 0 : index
    %4 = vector.load %arg3[%c0_2, %c0_3] : memref<256x288xbf16, #tpu.memory_space<vmem>>, vector<256x288xbf16>
    %c0_4 = arith.constant 0 : index
    %c0_5 = arith.constant 0 : index
    %5 = vector.load %arg4[%c0_4, %c0_5] : memref<288x128xbf16, #tpu.memory_space<vmem>>, vector<288x128xbf16>
    %cst = arith.constant dense<0.000000e+00> : vector<256x128xf32>
    %6 = tpu.matmul %4, %5, %cst {dimension_numbers = #tpu.dot_dimension_numbers<[1], [0], [0], [1], [0, 0, 1, 1], [], []>} : vector<256x288xbf16>, vector<288x128xbf16>, vector<256x128xf32> -> vector<256x128xf32>
    %7 = arith.addf %3, %6 : vector<256x128xf32>
    %c0_6 = arith.constant 0 : index
    %c0_7 = arith.constant 0 : index
    %8 = vector.load %arg8[%c0_6, %c0_7] : memref<256x128xf32, #tpu.memory_space<vmem>>, vector<256x128xf32>
    tpu.vector_store %arg8[%c0_6, %c0_7], %7 {strides = array<i32>} : memref<256x128xf32, #tpu.memory_space<vmem>>, vector<256x128xf32>,
    %c0_i32_8 = arith.constant 0 : i32
    %9 = arith.cmpi eq, %arg2, %c0_i32_8 : i32
    %10 = arith.extui %9 : i1 to i32
    %c0_i32_9 = arith.constant 0 : i32
    %11 = arith.cmpi ne, %10, %c0_i32_9 : i32
    scf.if %11 {
      %c0_10 = arith.constant 0 : index
      %c0_11 = arith.constant 0 : index
      %12 = vector.load %arg8[%c0_10, %c0_11] : memref<256x128xf32, #tpu.memory_space<vmem>>, vector<256x128xf32>
      %c0_12 = arith.constant 0 : index
      %c0_13 = arith.constant 0 : index
      %13 = vector.load %arg5[%c0_12, %c0_13] : memref<1x128xf32, #tpu.memory_space<vmem>>, vector<1x128xf32>
      %14 = vector.broadcast %13 : vector<1x128xf32> to vector<256x128xf32>
      %15 = arith.mulf %12, %14 : vector<256x128xf32>
      %c0_14 = arith.constant 0 : index
      %c0_15 = arith.constant 0 : index
      %16 = vector.load %arg6[%c0_14, %c0_15] : memref<1x128xf32, #tpu.memory_space<vmem>>, vector<1x128xf32>
      %17 = vector.broadcast %16 : vector<1x128xf32> to vector<256x128xf32>
      %18 = arith.addf %15, %17 : vector<256x128xf32>
      %c0_16 = arith.constant 0 : index
      %c0_17 = arith.constant 0 : index
      %19 = vector.load %arg7[%c0_16, %c0_17] : memref<256x128xf32, #tpu.memory_space<vmem>>, vector<256x128xf32>
      tpu.vector_store %arg7[%c0_16, %c0_17], %18 {strides = array<i32>} : memref<256x128xf32, #tpu.memory_space<vmem>>, vector<256x128xf32>,
    } else {
    }
    return
  }
  func.func @transform_0(%arg0: i32, %arg1: i32, %arg2: i32) -> (i32, i32) {
    %c0_i32 = arith.constant 0 : i32
    return %arg0, %arg2 : i32, i32
  }
  func.func @transform_1(%arg0: i32, %arg1: i32, %arg2: i32) -> (i32, i32) {
    %c0_i32 = arith.constant 0 : i32
    return %arg2, %arg1 : i32, i32
  }
  func.func @transform_2(%arg0: i32, %arg1: i32, %arg2: i32) -> (i32, i32) {
    %c0_i32 = arith.constant 0 : i32
    %c0_i32_0 = arith.constant 0 : i32
    return %c0_i32, %arg1 : i32, i32
  }
  func.func @transform_3(%arg0: i32, %arg1: i32, %arg2: i32) -> (i32, i32) {
    %c0_i32 = arith.constant 0 : i32
    %c0_i32_0 = arith.constant 0 : i32
    return %c0_i32, %arg1 : i32, i32
  }
  func.func @transform_4(%arg0: i32, %arg1: i32, %arg2: i32) -> (i32, i32) {
    %c0_i32 = arith.constant 0 : i32
    return %arg0, %arg1 : i32, i32
  }
}

module attributes {stable_mosaic.version = 11 : i64} {
  func.func @_mm_bn_kernel(%arg0: i32, %arg1: i32, %arg2: i32, %arg3: memref<256x16xbf16, #tpu.memory_space<vmem>>, %arg4: memref<16x128xbf16, #tpu.memory_space<vmem>>, %arg5: memref<1x128xf32, #tpu.memory_space<vmem>>, %arg6: memref<1x128xf32, #tpu.memory_space<vmem>>, %arg7: memref<256x128xf32, #tpu.memory_space<vmem>>, %arg8: memref<256x128xf32, #tpu.memory_space<vmem>>) attributes {dimension_semantics = [#tpu.dimension_semantics<parallel>, #tpu.dimension_semantics<parallel>, #tpu.dimension_semantics<arbitrary>], iteration_bounds = array<i64: 1, 1, 1>, scalar_prefetch = 0 : i64, scratch_operands = 1 : i64, tpu.core_type = #tpu.core_type<tc>, window_params = [{transform_indices = @transform_0, window_bounds = array<i64: 256, 16>}, {transform_indices = @transform_1, window_bounds = array<i64: 16, 128>}, {transform_indices = @transform_2, window_bounds = array<i64: 1, 128>}, {transform_indices = @transform_3, window_bounds = array<i64: 1, 128>}, {transform_indices = @transform_4, window_bounds = array<i64: 256, 128>}]} {
    %c0_i32 = arith.constant 0 : i32
    %0 = arith.cmpi eq, %arg2, %c0_i32 : i32
    %1 = arith.extui %0 : i1 to i32
    %c0_i32_0 = arith.constant 0 : i32
    %2 = arith.cmpi ne, %1, %c0_i32_0 : i32
    scf.if %2 {
      %cst_10 = arith.constant 0.000000e+00 : f32
      %12 = vector.broadcast %cst_10 : f32 to vector<256x128xf32>
      %c0_11 = arith.constant 0 : index
      %c0_12 = arith.constant 0 : index
      %13 = vector.load %arg8[%c0_11, %c0_12] : memref<256x128xf32, #tpu.memory_space<vmem>>, vector<256x128xf32>
      tpu.vector_store %arg8[%c0_11, %c0_12], %12 {strides = array<i32>} : memref<256x128xf32, #tpu.memory_space<vmem>>, vector<256x128xf32>,
    } else {
    }
    %c0 = arith.constant 0 : index
    %c0_1 = arith.constant 0 : index
    %3 = vector.load %arg8[%c0, %c0_1] : memref<256x128xf32, #tpu.memory_space<vmem>>, vector<256x128xf32>
    %c0_2 = arith.constant 0 : index
    %c0_3 = arith.constant 0 : index
    %4 = vector.load %arg3[%c0_2, %c0_3] : memref<256x16xbf16, #tpu.memory_space<vmem>>, vector<256x16xbf16>
    %c0_4 = arith.constant 0 : index
    %c0_5 = arith.constant 0 : index
    %5 = vector.load %arg4[%c0_4, %c0_5] : memref<16x128xbf16, #tpu.memory_space<vmem>>, vector<16x128xbf16>
    %cst = arith.constant dense<0.000000e+00> : vector<256x128xf32>
    %6 = tpu.matmul %4, %5, %cst {dimension_numbers = #tpu.dot_dimension_numbers<[1], [0], [0], [1], [0, 0, 1, 1], [], []>} : vector<256x16xbf16>, vector<16x128xbf16>, vector<256x128xf32> -> vector<256x128xf32>
    %7 = arith.addf %3, %6 : vector<256x128xf32>
    %c0_6 = arith.constant 0 : index
    %c0_7 = arith.constant 0 : index
    %8 = vector.load %arg8[%c0_6, %c0_7] : memref<256x128xf32, #tpu.memory_space<vmem>>, vector<256x128xf32>
    tpu.vector_store %arg8[%c0_6, %c0_7], %7 {strides = array<i32>} : memref<256x128xf32, #tpu.memory_space<vmem>>, vector<256x128xf32>,
    %c0_i32_8 = arith.constant 0 : i32
    %9 = arith.cmpi eq, %arg2, %c0_i32_8 : i32
    %10 = arith.extui %9 : i1 to i32
    %c0_i32_9 = arith.constant 0 : i32
    %11 = arith.cmpi ne, %10, %c0_i32_9 : i32
    scf.if %11 {
      %c0_10 = arith.constant 0 : index
      %c0_11 = arith.constant 0 : index
      %12 = vector.load %arg8[%c0_10, %c0_11] : memref<256x128xf32, #tpu.memory_space<vmem>>, vector<256x128xf32>
      %c0_12 = arith.constant 0 : index
      %c0_13 = arith.constant 0 : index
      %13 = vector.load %arg5[%c0_12, %c0_13] : memref<1x128xf32, #tpu.memory_space<vmem>>, vector<1x128xf32>
      %14 = vector.broadcast %13 : vector<1x128xf32> to vector<256x128xf32>
      %15 = arith.mulf %12, %14 : vector<256x128xf32>
      %c0_14 = arith.constant 0 : index
      %c0_15 = arith.constant 0 : index
      %16 = vector.load %arg6[%c0_14, %c0_15] : memref<1x128xf32, #tpu.memory_space<vmem>>, vector<1x128xf32>
      %17 = vector.broadcast %16 : vector<1x128xf32> to vector<256x128xf32>
      %18 = arith.addf %15, %17 : vector<256x128xf32>
      %c0_16 = arith.constant 0 : index
      %c0_17 = arith.constant 0 : index
      %19 = vector.load %arg7[%c0_16, %c0_17] : memref<256x128xf32, #tpu.memory_space<vmem>>, vector<256x128xf32>
      tpu.vector_store %arg7[%c0_16, %c0_17], %18 {strides = array<i32>} : memref<256x128xf32, #tpu.memory_space<vmem>>, vector<256x128xf32>,
    } else {
    }
    return
  }
  func.func @transform_0(%arg0: i32, %arg1: i32, %arg2: i32) -> (i32, i32) {
    %c0_i32 = arith.constant 0 : i32
    return %arg0, %arg2 : i32, i32
  }
  func.func @transform_1(%arg0: i32, %arg1: i32, %arg2: i32) -> (i32, i32) {
    %c0_i32 = arith.constant 0 : i32
    return %arg2, %arg1 : i32, i32
  }
  func.func @transform_2(%arg0: i32, %arg1: i32, %arg2: i32) -> (i32, i32) {
    %c0_i32 = arith.constant 0 : i32
    %c0_i32_0 = arith.constant 0 : i32
    return %c0_i32, %arg1 : i32, i32
  }
  func.func @transform_3(%arg0: i32, %arg1: i32, %arg2: i32) -> (i32, i32) {
    %c0_i32 = arith.constant 0 : i32
    %c0_i32_0 = arith.constant 0 : i32
    return %c0_i32, %arg1 : i32, i32
  }
  func.func @transform_4(%arg0: i32, %arg1: i32, %arg2: i32) -> (i32, i32) {
    %c0_i32 = arith.constant 0 : i32
    return %arg0, %arg1 : i32, i32
  }
}

module attributes {stable_mosaic.version = 11 : i64} {
  func.func @kernel(%arg0: i32, %arg1: memref<2x32x128xf32, #tpu.memory_space<vmem>>, %arg2: memref<2x32x128xbf16, #tpu.memory_space<vmem>>, %arg3: memref<2x32x128xbf16, #tpu.memory_space<vmem>>) attributes {dimension_semantics = [#tpu.dimension_semantics<parallel>], iteration_bounds = array<i64: 1>, scalar_prefetch = 0 : i64, scratch_operands = 0 : i64, tpu.core_type = #tpu.core_type<tc>, window_params = [{transform_indices = @transform_0, window_bounds = array<i64: 2, 32, 128>}, {transform_indices = @transform_1, window_bounds = array<i64: 2, 32, 128>}, {transform_indices = @transform_2, window_bounds = array<i64: 2, 32, 128>}]} {
    %cst = arith.constant 0.000000e+00 : f32
    %0 = vector.broadcast %cst : f32 to vector<32x128xf32>
    %c0 = arith.constant 0 : index
    %c0_0 = arith.constant 0 : index
    %c0_1 = arith.constant 0 : index
    %1 = vector.load %arg1[%c0, %c0_0, %c0_1] : memref<2x32x128xf32, #tpu.memory_space<vmem>>, vector<1x32x128xf32>
    %2 = vector.shape_cast %1 : vector<1x32x128xf32> to vector<32x128xf32>
    %3 = arith.addf %0, %2 : vector<32x128xf32>
    %cst_2 = arith.constant 1.000000e+00 : f32
    %4 = vector.broadcast %cst_2 : f32 to vector<32x128xf32>
    %5 = arith.cmpf oge, %3, %4 : vector<32x128xf32>
    %6 = arith.extui %5 : vector<32x128xi1> to vector<32x128xi32>
    %7 = arith.sitofp %6 : vector<32x128xi32> to vector<32x128xf32>
    %c0_3 = arith.constant 0 : index
    %c0_4 = arith.constant 0 : index
    %c0_5 = arith.constant 0 : index
    %8 = vector.load %arg2[%c0_3, %c0_4, %c0_5] : memref<2x32x128xbf16, #tpu.memory_space<vmem>>, vector<1x32x128xbf16>
    %9 = vector.shape_cast %8 : vector<1x32x128xbf16> to vector<32x128xbf16>
    %10 = arith.extf %9 : vector<32x128xbf16> to vector<32x128xf32>
    %11 = arith.addf %7, %10 : vector<32x128xf32>
    %12 = arith.truncf %11 : vector<32x128xf32> to vector<32x128xbf16>
    %c0_6 = arith.constant 0 : index
    %c0_7 = arith.constant 0 : index
    %c0_8 = arith.constant 0 : index
    %13 = vector.load %arg3[%c0_6, %c0_7, %c0_8] : memref<2x32x128xbf16, #tpu.memory_space<vmem>>, vector<1x32x128xbf16>
    %14 = vector.shape_cast %13 : vector<1x32x128xbf16> to vector<32x128xbf16>
    %15 = vector.shape_cast %12 : vector<32x128xbf16> to vector<1x32x128xbf16>
    tpu.vector_store %arg3[%c0_6, %c0_7, %c0_8], %15 {strides = array<i32>} : memref<2x32x128xbf16, #tpu.memory_space<vmem>>, vector<1x32x128xbf16>,
    %cst_9 = arith.constant 0.000000e+00 : f32
    %16 = vector.broadcast %cst_9 : f32 to vector<32x128xf32>
    %17 = arith.cmpf ogt, %7, %16 : vector<32x128xf32>
    %cst_10 = arith.constant 0.000000e+00 : f32
    %18 = vector.broadcast %cst_10 : f32 to vector<32x128xf32>
    %19 = arith.select %17, %18, %3 : vector<32x128xi1>, vector<32x128xf32>
    %c1 = arith.constant 1 : index
    %c0_11 = arith.constant 0 : index
    %c0_12 = arith.constant 0 : index
    %20 = vector.load %arg1[%c1, %c0_11, %c0_12] : memref<2x32x128xf32, #tpu.memory_space<vmem>>, vector<1x32x128xf32>
    %21 = vector.shape_cast %20 : vector<1x32x128xf32> to vector<32x128xf32>
    %22 = arith.addf %19, %21 : vector<32x128xf32>
    %cst_13 = arith.constant 1.000000e+00 : f32
    %23 = vector.broadcast %cst_13 : f32 to vector<32x128xf32>
    %24 = arith.cmpf oge, %22, %23 : vector<32x128xf32>
    %25 = arith.extui %24 : vector<32x128xi1> to vector<32x128xi32>
    %26 = arith.sitofp %25 : vector<32x128xi32> to vector<32x128xf32>
    %c1_14 = arith.constant 1 : index
    %c0_15 = arith.constant 0 : index
    %c0_16 = arith.constant 0 : index
    %27 = vector.load %arg2[%c1_14, %c0_15, %c0_16] : memref<2x32x128xbf16, #tpu.memory_space<vmem>>, vector<1x32x128xbf16>
    %28 = vector.shape_cast %27 : vector<1x32x128xbf16> to vector<32x128xbf16>
    %29 = arith.extf %28 : vector<32x128xbf16> to vector<32x128xf32>
    %30 = arith.addf %26, %29 : vector<32x128xf32>
    %31 = arith.truncf %30 : vector<32x128xf32> to vector<32x128xbf16>
    %c1_17 = arith.constant 1 : index
    %c0_18 = arith.constant 0 : index
    %c0_19 = arith.constant 0 : index
    %32 = vector.load %arg3[%c1_17, %c0_18, %c0_19] : memref<2x32x128xbf16, #tpu.memory_space<vmem>>, vector<1x32x128xbf16>
    %33 = vector.shape_cast %32 : vector<1x32x128xbf16> to vector<32x128xbf16>
    %34 = vector.shape_cast %31 : vector<32x128xbf16> to vector<1x32x128xbf16>
    tpu.vector_store %arg3[%c1_17, %c0_18, %c0_19], %34 {strides = array<i32>} : memref<2x32x128xbf16, #tpu.memory_space<vmem>>, vector<1x32x128xbf16>,
    return
  }
  func.func @transform_0(%arg0: i32) -> (i32, i32, i32) {
    %c0_i32 = arith.constant 0 : i32
    %c0_i32_0 = arith.constant 0 : i32
    %c0_i32_1 = arith.constant 0 : i32
    return %c0_i32, %arg0, %c0_i32_0 : i32, i32, i32
  }
  func.func @transform_1(%arg0: i32) -> (i32, i32, i32) {
    %c0_i32 = arith.constant 0 : i32
    %c0_i32_0 = arith.constant 0 : i32
    %c0_i32_1 = arith.constant 0 : i32
    return %c0_i32, %arg0, %c0_i32_0 : i32, i32, i32
  }
  func.func @transform_2(%arg0: i32) -> (i32, i32, i32) {
    %c0_i32 = arith.constant 0 : i32
    %c0_i32_0 = arith.constant 0 : i32
    %c0_i32_1 = arith.constant 0 : i32
    return %c0_i32, %arg0, %c0_i32_0 : i32, i32, i32
  }
}

module attributes {stable_mosaic.version = 11 : i64} {
  func.func @_mm_bn_kernel(%arg0: i32, %arg1: i32, %arg2: i32, %arg3: memref<64x288xbf16, #tpu.memory_space<vmem>>, %arg4: memref<288x128xbf16, #tpu.memory_space<vmem>>, %arg5: memref<1x128xf32, #tpu.memory_space<vmem>>, %arg6: memref<1x128xf32, #tpu.memory_space<vmem>>, %arg7: memref<64x128xf32, #tpu.memory_space<vmem>>, %arg8: memref<64x128xf32, #tpu.memory_space<vmem>>) attributes {dimension_semantics = [#tpu.dimension_semantics<parallel>, #tpu.dimension_semantics<parallel>, #tpu.dimension_semantics<arbitrary>], iteration_bounds = array<i64: 1, 1, 1>, scalar_prefetch = 0 : i64, scratch_operands = 1 : i64, tpu.core_type = #tpu.core_type<tc>, window_params = [{transform_indices = @transform_0, window_bounds = array<i64: 64, 288>}, {transform_indices = @transform_1, window_bounds = array<i64: 288, 128>}, {transform_indices = @transform_2, window_bounds = array<i64: 1, 128>}, {transform_indices = @transform_3, window_bounds = array<i64: 1, 128>}, {transform_indices = @transform_4, window_bounds = array<i64: 64, 128>}]} {
    %c0_i32 = arith.constant 0 : i32
    %0 = arith.cmpi eq, %arg2, %c0_i32 : i32
    %1 = arith.extui %0 : i1 to i32
    %c0_i32_0 = arith.constant 0 : i32
    %2 = arith.cmpi ne, %1, %c0_i32_0 : i32
    scf.if %2 {
      %cst_10 = arith.constant 0.000000e+00 : f32
      %12 = vector.broadcast %cst_10 : f32 to vector<64x128xf32>
      %c0_11 = arith.constant 0 : index
      %c0_12 = arith.constant 0 : index
      %13 = vector.load %arg8[%c0_11, %c0_12] : memref<64x128xf32, #tpu.memory_space<vmem>>, vector<64x128xf32>
      tpu.vector_store %arg8[%c0_11, %c0_12], %12 {strides = array<i32>} : memref<64x128xf32, #tpu.memory_space<vmem>>, vector<64x128xf32>,
    } else {
    }
    %c0 = arith.constant 0 : index
    %c0_1 = arith.constant 0 : index
    %3 = vector.load %arg8[%c0, %c0_1] : memref<64x128xf32, #tpu.memory_space<vmem>>, vector<64x128xf32>
    %c0_2 = arith.constant 0 : index
    %c0_3 = arith.constant 0 : index
    %4 = vector.load %arg3[%c0_2, %c0_3] : memref<64x288xbf16, #tpu.memory_space<vmem>>, vector<64x288xbf16>
    %c0_4 = arith.constant 0 : index
    %c0_5 = arith.constant 0 : index
    %5 = vector.load %arg4[%c0_4, %c0_5] : memref<288x128xbf16, #tpu.memory_space<vmem>>, vector<288x128xbf16>
    %cst = arith.constant dense<0.000000e+00> : vector<64x128xf32>
    %6 = tpu.matmul %4, %5, %cst {dimension_numbers = #tpu.dot_dimension_numbers<[1], [0], [0], [1], [0, 0, 1, 1], [], []>} : vector<64x288xbf16>, vector<288x128xbf16>, vector<64x128xf32> -> vector<64x128xf32>
    %7 = arith.addf %3, %6 : vector<64x128xf32>
    %c0_6 = arith.constant 0 : index
    %c0_7 = arith.constant 0 : index
    %8 = vector.load %arg8[%c0_6, %c0_7] : memref<64x128xf32, #tpu.memory_space<vmem>>, vector<64x128xf32>
    tpu.vector_store %arg8[%c0_6, %c0_7], %7 {strides = array<i32>} : memref<64x128xf32, #tpu.memory_space<vmem>>, vector<64x128xf32>,
    %c0_i32_8 = arith.constant 0 : i32
    %9 = arith.cmpi eq, %arg2, %c0_i32_8 : i32
    %10 = arith.extui %9 : i1 to i32
    %c0_i32_9 = arith.constant 0 : i32
    %11 = arith.cmpi ne, %10, %c0_i32_9 : i32
    scf.if %11 {
      %c0_10 = arith.constant 0 : index
      %c0_11 = arith.constant 0 : index
      %12 = vector.load %arg8[%c0_10, %c0_11] : memref<64x128xf32, #tpu.memory_space<vmem>>, vector<64x128xf32>
      %c0_12 = arith.constant 0 : index
      %c0_13 = arith.constant 0 : index
      %13 = vector.load %arg5[%c0_12, %c0_13] : memref<1x128xf32, #tpu.memory_space<vmem>>, vector<1x128xf32>
      %14 = vector.broadcast %13 : vector<1x128xf32> to vector<64x128xf32>
      %15 = arith.mulf %12, %14 : vector<64x128xf32>
      %c0_14 = arith.constant 0 : index
      %c0_15 = arith.constant 0 : index
      %16 = vector.load %arg6[%c0_14, %c0_15] : memref<1x128xf32, #tpu.memory_space<vmem>>, vector<1x128xf32>
      %17 = vector.broadcast %16 : vector<1x128xf32> to vector<64x128xf32>
      %18 = arith.addf %15, %17 : vector<64x128xf32>
      %c0_16 = arith.constant 0 : index
      %c0_17 = arith.constant 0 : index
      %19 = vector.load %arg7[%c0_16, %c0_17] : memref<64x128xf32, #tpu.memory_space<vmem>>, vector<64x128xf32>
      tpu.vector_store %arg7[%c0_16, %c0_17], %18 {strides = array<i32>} : memref<64x128xf32, #tpu.memory_space<vmem>>, vector<64x128xf32>,
    } else {
    }
    return
  }
  func.func @transform_0(%arg0: i32, %arg1: i32, %arg2: i32) -> (i32, i32) {
    %c0_i32 = arith.constant 0 : i32
    return %arg0, %arg2 : i32, i32
  }
  func.func @transform_1(%arg0: i32, %arg1: i32, %arg2: i32) -> (i32, i32) {
    %c0_i32 = arith.constant 0 : i32
    return %arg2, %arg1 : i32, i32
  }
  func.func @transform_2(%arg0: i32, %arg1: i32, %arg2: i32) -> (i32, i32) {
    %c0_i32 = arith.constant 0 : i32
    %c0_i32_0 = arith.constant 0 : i32
    return %c0_i32, %arg1 : i32, i32
  }
  func.func @transform_3(%arg0: i32, %arg1: i32, %arg2: i32) -> (i32, i32) {
    %c0_i32 = arith.constant 0 : i32
    %c0_i32_0 = arith.constant 0 : i32
    return %c0_i32, %arg1 : i32, i32
  }
  func.func @transform_4(%arg0: i32, %arg1: i32, %arg2: i32) -> (i32, i32) {
    %c0_i32 = arith.constant 0 : i32
    return %arg0, %arg1 : i32, i32
  }
}

module attributes {stable_mosaic.version = 11 : i64} {
  func.func @kernel(%arg0: i32, %arg1: memref<2x16x128xf32, #tpu.memory_space<vmem>>, %arg2: memref<2x16x128xbf16, #tpu.memory_space<vmem>>) attributes {dimension_semantics = [#tpu.dimension_semantics<parallel>], iteration_bounds = array<i64: 1>, scalar_prefetch = 0 : i64, scratch_operands = 0 : i64, tpu.core_type = #tpu.core_type<tc>, window_params = [{transform_indices = @transform_0, window_bounds = array<i64: 2, 16, 128>}, {transform_indices = @transform_1, window_bounds = array<i64: 2, 16, 128>}]} {
    %cst = arith.constant 0.000000e+00 : f32
    %0 = vector.broadcast %cst : f32 to vector<16x128xf32>
    %c0 = arith.constant 0 : index
    %c0_0 = arith.constant 0 : index
    %c0_1 = arith.constant 0 : index
    %1 = vector.load %arg1[%c0, %c0_0, %c0_1] : memref<2x16x128xf32, #tpu.memory_space<vmem>>, vector<1x16x128xf32>
    %2 = vector.shape_cast %1 : vector<1x16x128xf32> to vector<16x128xf32>
    %3 = arith.addf %0, %2 : vector<16x128xf32>
    %cst_2 = arith.constant 1.000000e+00 : f32
    %4 = vector.broadcast %cst_2 : f32 to vector<16x128xf32>
    %5 = arith.cmpf oge, %3, %4 : vector<16x128xf32>
    %6 = arith.extui %5 : vector<16x128xi1> to vector<16x128xi32>
    %7 = arith.sitofp %6 : vector<16x128xi32> to vector<16x128xf32>
    %8 = arith.truncf %7 : vector<16x128xf32> to vector<16x128xbf16>
    %c0_3 = arith.constant 0 : index
    %c0_4 = arith.constant 0 : index
    %c0_5 = arith.constant 0 : index
    %9 = vector.load %arg2[%c0_3, %c0_4, %c0_5] : memref<2x16x128xbf16, #tpu.memory_space<vmem>>, vector<1x16x128xbf16>
    %10 = vector.shape_cast %9 : vector<1x16x128xbf16> to vector<16x128xbf16>
    %11 = vector.shape_cast %8 : vector<16x128xbf16> to vector<1x16x128xbf16>
    tpu.vector_store %arg2[%c0_3, %c0_4, %c0_5], %11 {strides = array<i32>} : memref<2x16x128xbf16, #tpu.memory_space<vmem>>, vector<1x16x128xbf16>,
    %cst_6 = arith.constant 0.000000e+00 : f32
    %12 = vector.broadcast %cst_6 : f32 to vector<16x128xf32>
    %13 = arith.cmpf ogt, %7, %12 : vector<16x128xf32>
    %cst_7 = arith.constant 0.000000e+00 : f32
    %14 = vector.broadcast %cst_7 : f32 to vector<16x128xf32>
    %15 = arith.select %13, %14, %3 : vector<16x128xi1>, vector<16x128xf32>
    %c1 = arith.constant 1 : index
    %c0_8 = arith.constant 0 : index
    %c0_9 = arith.constant 0 : index
    %16 = vector.load %arg1[%c1, %c0_8, %c0_9] : memref<2x16x128xf32, #tpu.memory_space<vmem>>, vector<1x16x128xf32>
    %17 = vector.shape_cast %16 : vector<1x16x128xf32> to vector<16x128xf32>
    %18 = arith.addf %15, %17 : vector<16x128xf32>
    %cst_10 = arith.constant 1.000000e+00 : f32
    %19 = vector.broadcast %cst_10 : f32 to vector<16x128xf32>
    %20 = arith.cmpf oge, %18, %19 : vector<16x128xf32>
    %21 = arith.extui %20 : vector<16x128xi1> to vector<16x128xi32>
    %22 = arith.sitofp %21 : vector<16x128xi32> to vector<16x128xf32>
    %23 = arith.truncf %22 : vector<16x128xf32> to vector<16x128xbf16>
    %c1_11 = arith.constant 1 : index
    %c0_12 = arith.constant 0 : index
    %c0_13 = arith.constant 0 : index
    %24 = vector.load %arg2[%c1_11, %c0_12, %c0_13] : memref<2x16x128xbf16, #tpu.memory_space<vmem>>, vector<1x16x128xbf16>
    %25 = vector.shape_cast %24 : vector<1x16x128xbf16> to vector<16x128xbf16>
    %26 = vector.shape_cast %23 : vector<16x128xbf16> to vector<1x16x128xbf16>
    tpu.vector_store %arg2[%c1_11, %c0_12, %c0_13], %26 {strides = array<i32>} : memref<2x16x128xbf16, #tpu.memory_space<vmem>>, vector<1x16x128xbf16>,
    return
  }
  func.func @transform_0(%arg0: i32) -> (i32, i32, i32) {
    %c0_i32 = arith.constant 0 : i32
    %c0_i32_0 = arith.constant 0 : i32
    %c0_i32_1 = arith.constant 0 : i32
    return %c0_i32, %arg0, %c0_i32_0 : i32, i32, i32
  }
  func.func @transform_1(%arg0: i32) -> (i32, i32, i32) {
    %c0_i32 = arith.constant 0 : i32
    %c0_i32_0 = arith.constant 0 : i32
    %c0_i32_1 = arith.constant 0 : i32
    return %c0_i32, %arg0, %c0_i32_0 : i32, i32, i32
  }
}

module attributes {stable_mosaic.version = 11 : i64} {
  func.func @_mm_bn_kernel(%arg0: i32, %arg1: i32, %arg2: i32, %arg3: memref<64x512xbf16, #tpu.memory_space<vmem>>, %arg4: memref<512x128xbf16, #tpu.memory_space<vmem>>, %arg5: memref<1x128xf32, #tpu.memory_space<vmem>>, %arg6: memref<1x128xf32, #tpu.memory_space<vmem>>, %arg7: memref<64x128xf32, #tpu.memory_space<vmem>>, %arg8: memref<64x128xf32, #tpu.memory_space<vmem>>) attributes {dimension_semantics = [#tpu.dimension_semantics<parallel>, #tpu.dimension_semantics<parallel>, #tpu.dimension_semantics<arbitrary>], iteration_bounds = array<i64: 1, 1, 2>, scalar_prefetch = 0 : i64, scratch_operands = 1 : i64, tpu.core_type = #tpu.core_type<tc>, window_params = [{transform_indices = @transform_0, window_bounds = array<i64: 64, 512>}, {transform_indices = @transform_1, window_bounds = array<i64: 512, 128>}, {transform_indices = @transform_2, window_bounds = array<i64: 1, 128>}, {transform_indices = @transform_3, window_bounds = array<i64: 1, 128>}, {transform_indices = @transform_4, window_bounds = array<i64: 64, 128>}]} {
    %c0_i32 = arith.constant 0 : i32
    %0 = arith.cmpi eq, %arg2, %c0_i32 : i32
    %1 = arith.extui %0 : i1 to i32
    %c0_i32_0 = arith.constant 0 : i32
    %2 = arith.cmpi ne, %1, %c0_i32_0 : i32
    scf.if %2 {
      %cst_9 = arith.constant 0.000000e+00 : f32
      %12 = vector.broadcast %cst_9 : f32 to vector<64x128xf32>
      %c0_10 = arith.constant 0 : index
      %c0_11 = arith.constant 0 : index
      %13 = vector.load %arg8[%c0_10, %c0_11] : memref<64x128xf32, #tpu.memory_space<vmem>>, vector<64x128xf32>
      tpu.vector_store %arg8[%c0_10, %c0_11], %12 {strides = array<i32>} : memref<64x128xf32, #tpu.memory_space<vmem>>, vector<64x128xf32>,
    } else {
    }
    %c0 = arith.constant 0 : index
    %c0_1 = arith.constant 0 : index
    %3 = vector.load %arg8[%c0, %c0_1] : memref<64x128xf32, #tpu.memory_space<vmem>>, vector<64x128xf32>
    %c0_2 = arith.constant 0 : index
    %c0_3 = arith.constant 0 : index
    %4 = vector.load %arg3[%c0_2, %c0_3] : memref<64x512xbf16, #tpu.memory_space<vmem>>, vector<64x512xbf16>
    %c0_4 = arith.constant 0 : index
    %c0_5 = arith.constant 0 : index
    %5 = vector.load %arg4[%c0_4, %c0_5] : memref<512x128xbf16, #tpu.memory_space<vmem>>, vector<512x128xbf16>
    %cst = arith.constant dense<0.000000e+00> : vector<64x128xf32>
    %6 = tpu.matmul %4, %5, %cst {dimension_numbers = #tpu.dot_dimension_numbers<[1], [0], [0], [1], [0, 0, 1, 1], [], []>} : vector<64x512xbf16>, vector<512x128xbf16>, vector<64x128xf32> -> vector<64x128xf32>
    %7 = arith.addf %3, %6 : vector<64x128xf32>
    %c0_6 = arith.constant 0 : index
    %c0_7 = arith.constant 0 : index
    %8 = vector.load %arg8[%c0_6, %c0_7] : memref<64x128xf32, #tpu.memory_space<vmem>>, vector<64x128xf32>
    tpu.vector_store %arg8[%c0_6, %c0_7], %7 {strides = array<i32>} : memref<64x128xf32, #tpu.memory_space<vmem>>, vector<64x128xf32>,
    %c1_i32 = arith.constant 1 : i32
    %9 = arith.cmpi eq, %arg2, %c1_i32 : i32
    %10 = arith.extui %9 : i1 to i32
    %c0_i32_8 = arith.constant 0 : i32
    %11 = arith.cmpi ne, %10, %c0_i32_8 : i32
    scf.if %11 {
      %c0_9 = arith.constant 0 : index
      %c0_10 = arith.constant 0 : index
      %12 = vector.load %arg8[%c0_9, %c0_10] : memref<64x128xf32, #tpu.memory_space<vmem>>, vector<64x128xf32>
      %c0_11 = arith.constant 0 : index
      %c0_12 = arith.constant 0 : index
      %13 = vector.load %arg5[%c0_11, %c0_12] : memref<1x128xf32, #tpu.memory_space<vmem>>, vector<1x128xf32>
      %14 = vector.broadcast %13 : vector<1x128xf32> to vector<64x128xf32>
      %15 = arith.mulf %12, %14 : vector<64x128xf32>
      %c0_13 = arith.constant 0 : index
      %c0_14 = arith.constant 0 : index
      %16 = vector.load %arg6[%c0_13, %c0_14] : memref<1x128xf32, #tpu.memory_space<vmem>>, vector<1x128xf32>
      %17 = vector.broadcast %16 : vector<1x128xf32> to vector<64x128xf32>
      %18 = arith.addf %15, %17 : vector<64x128xf32>
      %c0_15 = arith.constant 0 : index
      %c0_16 = arith.constant 0 : index
      %19 = vector.load %arg7[%c0_15, %c0_16] : memref<64x128xf32, #tpu.memory_space<vmem>>, vector<64x128xf32>
      tpu.vector_store %arg7[%c0_15, %c0_16], %18 {strides = array<i32>} : memref<64x128xf32, #tpu.memory_space<vmem>>, vector<64x128xf32>,
    } else {
    }
    return
  }
  func.func @transform_0(%arg0: i32, %arg1: i32, %arg2: i32) -> (i32, i32) {
    %c0_i32 = arith.constant 0 : i32
    return %arg0, %arg2 : i32, i32
  }
  func.func @transform_1(%arg0: i32, %arg1: i32, %arg2: i32) -> (i32, i32) {
    %c0_i32 = arith.constant 0 : i32
    return %arg2, %arg1 : i32, i32
  }
  func.func @transform_2(%arg0: i32, %arg1: i32, %arg2: i32) -> (i32, i32) {
    %c0_i32 = arith.constant 0 : i32
    %c0_i32_0 = arith.constant 0 : i32
    return %c0_i32, %arg1 : i32, i32
  }
  func.func @transform_3(%arg0: i32, %arg1: i32, %arg2: i32) -> (i32, i32) {
    %c0_i32 = arith.constant 0 : i32
    %c0_i32_0 = arith.constant 0 : i32
    return %c0_i32, %arg1 : i32, i32
  }
  func.func @transform_4(%arg0: i32, %arg1: i32, %arg2: i32) -> (i32, i32) {
    %c0_i32 = arith.constant 0 : i32
    return %arg0, %arg1 : i32, i32
  }
}

module attributes {stable_mosaic.version = 11 : i64} {
  func.func @_mm_bn_kernel(%arg0: i32, %arg1: i32, %arg2: i32, %arg3: memref<64x32xbf16, #tpu.memory_space<vmem>>, %arg4: memref<32x128xbf16, #tpu.memory_space<vmem>>, %arg5: memref<1x128xf32, #tpu.memory_space<vmem>>, %arg6: memref<1x128xf32, #tpu.memory_space<vmem>>, %arg7: memref<64x128xf32, #tpu.memory_space<vmem>>, %arg8: memref<64x128xf32, #tpu.memory_space<vmem>>) attributes {dimension_semantics = [#tpu.dimension_semantics<parallel>, #tpu.dimension_semantics<parallel>, #tpu.dimension_semantics<arbitrary>], iteration_bounds = array<i64: 1, 1, 1>, scalar_prefetch = 0 : i64, scratch_operands = 1 : i64, tpu.core_type = #tpu.core_type<tc>, window_params = [{transform_indices = @transform_0, window_bounds = array<i64: 64, 32>}, {transform_indices = @transform_1, window_bounds = array<i64: 32, 128>}, {transform_indices = @transform_2, window_bounds = array<i64: 1, 128>}, {transform_indices = @transform_3, window_bounds = array<i64: 1, 128>}, {transform_indices = @transform_4, window_bounds = array<i64: 64, 128>}]} {
    %c0_i32 = arith.constant 0 : i32
    %0 = arith.cmpi eq, %arg2, %c0_i32 : i32
    %1 = arith.extui %0 : i1 to i32
    %c0_i32_0 = arith.constant 0 : i32
    %2 = arith.cmpi ne, %1, %c0_i32_0 : i32
    scf.if %2 {
      %cst_10 = arith.constant 0.000000e+00 : f32
      %12 = vector.broadcast %cst_10 : f32 to vector<64x128xf32>
      %c0_11 = arith.constant 0 : index
      %c0_12 = arith.constant 0 : index
      %13 = vector.load %arg8[%c0_11, %c0_12] : memref<64x128xf32, #tpu.memory_space<vmem>>, vector<64x128xf32>
      tpu.vector_store %arg8[%c0_11, %c0_12], %12 {strides = array<i32>} : memref<64x128xf32, #tpu.memory_space<vmem>>, vector<64x128xf32>,
    } else {
    }
    %c0 = arith.constant 0 : index
    %c0_1 = arith.constant 0 : index
    %3 = vector.load %arg8[%c0, %c0_1] : memref<64x128xf32, #tpu.memory_space<vmem>>, vector<64x128xf32>
    %c0_2 = arith.constant 0 : index
    %c0_3 = arith.constant 0 : index
    %4 = vector.load %arg3[%c0_2, %c0_3] : memref<64x32xbf16, #tpu.memory_space<vmem>>, vector<64x32xbf16>
    %c0_4 = arith.constant 0 : index
    %c0_5 = arith.constant 0 : index
    %5 = vector.load %arg4[%c0_4, %c0_5] : memref<32x128xbf16, #tpu.memory_space<vmem>>, vector<32x128xbf16>
    %cst = arith.constant dense<0.000000e+00> : vector<64x128xf32>
    %6 = tpu.matmul %4, %5, %cst {dimension_numbers = #tpu.dot_dimension_numbers<[1], [0], [0], [1], [0, 0, 1, 1], [], []>} : vector<64x32xbf16>, vector<32x128xbf16>, vector<64x128xf32> -> vector<64x128xf32>
    %7 = arith.addf %3, %6 : vector<64x128xf32>
    %c0_6 = arith.constant 0 : index
    %c0_7 = arith.constant 0 : index
    %8 = vector.load %arg8[%c0_6, %c0_7] : memref<64x128xf32, #tpu.memory_space<vmem>>, vector<64x128xf32>
    tpu.vector_store %arg8[%c0_6, %c0_7], %7 {strides = array<i32>} : memref<64x128xf32, #tpu.memory_space<vmem>>, vector<64x128xf32>,
    %c0_i32_8 = arith.constant 0 : i32
    %9 = arith.cmpi eq, %arg2, %c0_i32_8 : i32
    %10 = arith.extui %9 : i1 to i32
    %c0_i32_9 = arith.constant 0 : i32
    %11 = arith.cmpi ne, %10, %c0_i32_9 : i32
    scf.if %11 {
      %c0_10 = arith.constant 0 : index
      %c0_11 = arith.constant 0 : index
      %12 = vector.load %arg8[%c0_10, %c0_11] : memref<64x128xf32, #tpu.memory_space<vmem>>, vector<64x128xf32>
      %c0_12 = arith.constant 0 : index
      %c0_13 = arith.constant 0 : index
      %13 = vector.load %arg5[%c0_12, %c0_13] : memref<1x128xf32, #tpu.memory_space<vmem>>, vector<1x128xf32>
      %14 = vector.broadcast %13 : vector<1x128xf32> to vector<64x128xf32>
      %15 = arith.mulf %12, %14 : vector<64x128xf32>
      %c0_14 = arith.constant 0 : index
      %c0_15 = arith.constant 0 : index
      %16 = vector.load %arg6[%c0_14, %c0_15] : memref<1x128xf32, #tpu.memory_space<vmem>>, vector<1x128xf32>
      %17 = vector.broadcast %16 : vector<1x128xf32> to vector<64x128xf32>
      %18 = arith.addf %15, %17 : vector<64x128xf32>
      %c0_16 = arith.constant 0 : index
      %c0_17 = arith.constant 0 : index
      %19 = vector.load %arg7[%c0_16, %c0_17] : memref<64x128xf32, #tpu.memory_space<vmem>>, vector<64x128xf32>
      tpu.vector_store %arg7[%c0_16, %c0_17], %18 {strides = array<i32>} : memref<64x128xf32, #tpu.memory_space<vmem>>, vector<64x128xf32>,
    } else {
    }
    return
  }
  func.func @transform_0(%arg0: i32, %arg1: i32, %arg2: i32) -> (i32, i32) {
    %c0_i32 = arith.constant 0 : i32
    return %arg0, %arg2 : i32, i32
  }
  func.func @transform_1(%arg0: i32, %arg1: i32, %arg2: i32) -> (i32, i32) {
    %c0_i32 = arith.constant 0 : i32
    return %arg2, %arg1 : i32, i32
  }
  func.func @transform_2(%arg0: i32, %arg1: i32, %arg2: i32) -> (i32, i32) {
    %c0_i32 = arith.constant 0 : i32
    %c0_i32_0 = arith.constant 0 : i32
    return %c0_i32, %arg1 : i32, i32
  }
  func.func @transform_3(%arg0: i32, %arg1: i32, %arg2: i32) -> (i32, i32) {
    %c0_i32 = arith.constant 0 : i32
    %c0_i32_0 = arith.constant 0 : i32
    return %c0_i32, %arg1 : i32, i32
  }
  func.func @transform_4(%arg0: i32, %arg1: i32, %arg2: i32) -> (i32, i32) {
    %c0_i32 = arith.constant 0 : i32
    return %arg0, %arg1 : i32, i32
  }
}

module attributes {stable_mosaic.version = 11 : i64} {
  func.func @kernel(%arg0: i32, %arg1: memref<2x16x128xf32, #tpu.memory_space<vmem>>, %arg2: memref<2x16x128xbf16, #tpu.memory_space<vmem>>, %arg3: memref<2x16x128xbf16, #tpu.memory_space<vmem>>) attributes {dimension_semantics = [#tpu.dimension_semantics<parallel>], iteration_bounds = array<i64: 1>, scalar_prefetch = 0 : i64, scratch_operands = 0 : i64, tpu.core_type = #tpu.core_type<tc>, window_params = [{transform_indices = @transform_0, window_bounds = array<i64: 2, 16, 128>}, {transform_indices = @transform_1, window_bounds = array<i64: 2, 16, 128>}, {transform_indices = @transform_2, window_bounds = array<i64: 2, 16, 128>}]} {
    %cst = arith.constant 0.000000e+00 : f32
    %0 = vector.broadcast %cst : f32 to vector<16x128xf32>
    %c0 = arith.constant 0 : index
    %c0_0 = arith.constant 0 : index
    %c0_1 = arith.constant 0 : index
    %1 = vector.load %arg1[%c0, %c0_0, %c0_1] : memref<2x16x128xf32, #tpu.memory_space<vmem>>, vector<1x16x128xf32>
    %2 = vector.shape_cast %1 : vector<1x16x128xf32> to vector<16x128xf32>
    %3 = arith.addf %0, %2 : vector<16x128xf32>
    %cst_2 = arith.constant 1.000000e+00 : f32
    %4 = vector.broadcast %cst_2 : f32 to vector<16x128xf32>
    %5 = arith.cmpf oge, %3, %4 : vector<16x128xf32>
    %6 = arith.extui %5 : vector<16x128xi1> to vector<16x128xi32>
    %7 = arith.sitofp %6 : vector<16x128xi32> to vector<16x128xf32>
    %c0_3 = arith.constant 0 : index
    %c0_4 = arith.constant 0 : index
    %c0_5 = arith.constant 0 : index
    %8 = vector.load %arg2[%c0_3, %c0_4, %c0_5] : memref<2x16x128xbf16, #tpu.memory_space<vmem>>, vector<1x16x128xbf16>
    %9 = vector.shape_cast %8 : vector<1x16x128xbf16> to vector<16x128xbf16>
    %10 = arith.extf %9 : vector<16x128xbf16> to vector<16x128xf32>
    %11 = arith.addf %7, %10 : vector<16x128xf32>
    %12 = arith.truncf %11 : vector<16x128xf32> to vector<16x128xbf16>
    %c0_6 = arith.constant 0 : index
    %c0_7 = arith.constant 0 : index
    %c0_8 = arith.constant 0 : index
    %13 = vector.load %arg3[%c0_6, %c0_7, %c0_8] : memref<2x16x128xbf16, #tpu.memory_space<vmem>>, vector<1x16x128xbf16>
    %14 = vector.shape_cast %13 : vector<1x16x128xbf16> to vector<16x128xbf16>
    %15 = vector.shape_cast %12 : vector<16x128xbf16> to vector<1x16x128xbf16>
    tpu.vector_store %arg3[%c0_6, %c0_7, %c0_8], %15 {strides = array<i32>} : memref<2x16x128xbf16, #tpu.memory_space<vmem>>, vector<1x16x128xbf16>,
    %cst_9 = arith.constant 0.000000e+00 : f32
    %16 = vector.broadcast %cst_9 : f32 to vector<16x128xf32>
    %17 = arith.cmpf ogt, %7, %16 : vector<16x128xf32>
    %cst_10 = arith.constant 0.000000e+00 : f32
    %18 = vector.broadcast %cst_10 : f32 to vector<16x128xf32>
    %19 = arith.select %17, %18, %3 : vector<16x128xi1>, vector<16x128xf32>
    %c1 = arith.constant 1 : index
    %c0_11 = arith.constant 0 : index
    %c0_12 = arith.constant 0 : index
    %20 = vector.load %arg1[%c1, %c0_11, %c0_12] : memref<2x16x128xf32, #tpu.memory_space<vmem>>, vector<1x16x128xf32>
    %21 = vector.shape_cast %20 : vector<1x16x128xf32> to vector<16x128xf32>
    %22 = arith.addf %19, %21 : vector<16x128xf32>
    %cst_13 = arith.constant 1.000000e+00 : f32
    %23 = vector.broadcast %cst_13 : f32 to vector<16x128xf32>
    %24 = arith.cmpf oge, %22, %23 : vector<16x128xf32>
    %25 = arith.extui %24 : vector<16x128xi1> to vector<16x128xi32>
    %26 = arith.sitofp %25 : vector<16x128xi32> to vector<16x128xf32>
    %c1_14 = arith.constant 1 : index
    %c0_15 = arith.constant 0 : index
    %c0_16 = arith.constant 0 : index
    %27 = vector.load %arg2[%c1_14, %c0_15, %c0_16] : memref<2x16x128xbf16, #tpu.memory_space<vmem>>, vector<1x16x128xbf16>
    %28 = vector.shape_cast %27 : vector<1x16x128xbf16> to vector<16x128xbf16>
    %29 = arith.extf %28 : vector<16x128xbf16> to vector<16x128xf32>
    %30 = arith.addf %26, %29 : vector<16x128xf32>
    %31 = arith.truncf %30 : vector<16x128xf32> to vector<16x128xbf16>
    %c1_17 = arith.constant 1 : index
    %c0_18 = arith.constant 0 : index
    %c0_19 = arith.constant 0 : index
    %32 = vector.load %arg3[%c1_17, %c0_18, %c0_19] : memref<2x16x128xbf16, #tpu.memory_space<vmem>>, vector<1x16x128xbf16>
    %33 = vector.shape_cast %32 : vector<1x16x128xbf16> to vector<16x128xbf16>
    %34 = vector.shape_cast %31 : vector<16x128xbf16> to vector<1x16x128xbf16>
    tpu.vector_store %arg3[%c1_17, %c0_18, %c0_19], %34 {strides = array<i32>} : memref<2x16x128xbf16, #tpu.memory_space<vmem>>, vector<1x16x128xbf16>,
    return
  }
  func.func @transform_0(%arg0: i32) -> (i32, i32, i32) {
    %c0_i32 = arith.constant 0 : i32
    %c0_i32_0 = arith.constant 0 : i32
    %c0_i32_1 = arith.constant 0 : i32
    return %c0_i32, %arg0, %c0_i32_0 : i32, i32, i32
  }
  func.func @transform_1(%arg0: i32) -> (i32, i32, i32) {
    %c0_i32 = arith.constant 0 : i32
    %c0_i32_0 = arith.constant 0 : i32
    %c0_i32_1 = arith.constant 0 : i32
    return %c0_i32, %arg0, %c0_i32_0 : i32, i32, i32
  }
  func.func @transform_2(%arg0: i32) -> (i32, i32, i32) {
    %c0_i32 = arith.constant 0 : i32
    %c0_i32_0 = arith.constant 0 : i32
    %c0_i32_1 = arith.constant 0 : i32
    return %c0_i32, %arg0, %c0_i32_0 : i32, i32, i32
  }
}

module attributes {stable_mosaic.version = 11 : i64} {
  func.func @_gap_kernel(%arg0: i32, %arg1: memref<4x16x64xbf16, #tpu.memory_space<vmem>>, %arg2: memref<4x64xf32, #tpu.memory_space<vmem>>) attributes {dimension_semantics = [#tpu.dimension_semantics<parallel>], iteration_bounds = array<i64: 1>, scalar_prefetch = 0 : i64, scratch_operands = 0 : i64, tpu.core_type = #tpu.core_type<tc>, window_params = [{transform_indices = @transform_0, window_bounds = array<i64: 4, 16, 64>}, {transform_indices = @transform_1, window_bounds = array<i64: 4, 64>}]} {
    %c0 = arith.constant 0 : index
    %c0_0 = arith.constant 0 : index
    %c0_1 = arith.constant 0 : index
    %0 = vector.load %arg1[%c0, %c0_0, %c0_1] : memref<4x16x64xbf16, #tpu.memory_space<vmem>>, vector<4x16x64xbf16>
    %1 = arith.extf %0 : vector<4x16x64xbf16> to vector<4x16x64xf32>
    %cst = arith.constant dense<0.000000e+00> : vector<4x64xf32>
    %2 = vector.multi_reduction <add>, %1, %cst [1] : vector<4x16x64xf32> to vector<4x64xf32>
    %cst_2 = arith.constant 1.600000e+01 : f32
    %3 = vector.broadcast %cst_2 : f32 to vector<4x64xf32>
    %4 = arith.divf %2, %3 : vector<4x64xf32>
    %c0_3 = arith.constant 0 : index
    %c0_4 = arith.constant 0 : index
    %5 = vector.load %arg2[%c0_3, %c0_4] : memref<4x64xf32, #tpu.memory_space<vmem>>, vector<4x64xf32>
    tpu.vector_store %arg2[%c0_3, %c0_4], %4 {strides = array<i32>} : memref<4x64xf32, #tpu.memory_space<vmem>>, vector<4x64xf32>,
    return
  }
  func.func @transform_0(%arg0: i32) -> (i32, i32, i32) {
    %c0_i32 = arith.constant 0 : i32
    %c0_i32_0 = arith.constant 0 : i32
    %c0_i32_1 = arith.constant 0 : i32
    return %arg0, %c0_i32, %c0_i32_0 : i32, i32, i32
  }
  func.func @transform_1(%arg0: i32) -> (i32, i32) {
    %c0_i32 = arith.constant 0 : i32
    %c0_i32_0 = arith.constant 0 : i32
    return %arg0, %c0_i32 : i32, i32
  }
}

module attributes {stable_mosaic.version = 11 : i64} {
  func.func @_mm_bn_kernel(%arg0: i32, %arg1: i32, %arg2: i32, %arg3: memref<4x64xbf16, #tpu.memory_space<vmem>>, %arg4: memref<64x128xbf16, #tpu.memory_space<vmem>>, %arg5: memref<1x128xf32, #tpu.memory_space<vmem>>, %arg6: memref<1x128xf32, #tpu.memory_space<vmem>>, %arg7: memref<4x128xf32, #tpu.memory_space<vmem>>, %arg8: memref<4x128xf32, #tpu.memory_space<vmem>>) attributes {dimension_semantics = [#tpu.dimension_semantics<parallel>, #tpu.dimension_semantics<parallel>, #tpu.dimension_semantics<arbitrary>], iteration_bounds = array<i64: 1, 1, 1>, scalar_prefetch = 0 : i64, scratch_operands = 1 : i64, tpu.core_type = #tpu.core_type<tc>, window_params = [{transform_indices = @transform_0, window_bounds = array<i64: 4, 64>}, {transform_indices = @transform_1, window_bounds = array<i64: 64, 128>}, {transform_indices = @transform_2, window_bounds = array<i64: 1, 128>}, {transform_indices = @transform_3, window_bounds = array<i64: 1, 128>}, {transform_indices = @transform_4, window_bounds = array<i64: 4, 128>}]} {
    %c0_i32 = arith.constant 0 : i32
    %0 = arith.cmpi eq, %arg2, %c0_i32 : i32
    %1 = arith.extui %0 : i1 to i32
    %c0_i32_0 = arith.constant 0 : i32
    %2 = arith.cmpi ne, %1, %c0_i32_0 : i32
    scf.if %2 {
      %cst_10 = arith.constant 0.000000e+00 : f32
      %12 = vector.broadcast %cst_10 : f32 to vector<4x128xf32>
      %c0_11 = arith.constant 0 : index
      %c0_12 = arith.constant 0 : index
      %13 = vector.load %arg8[%c0_11, %c0_12] : memref<4x128xf32, #tpu.memory_space<vmem>>, vector<4x128xf32>
      tpu.vector_store %arg8[%c0_11, %c0_12], %12 {strides = array<i32>} : memref<4x128xf32, #tpu.memory_space<vmem>>, vector<4x128xf32>,
    } else {
    }
    %c0 = arith.constant 0 : index
    %c0_1 = arith.constant 0 : index
    %3 = vector.load %arg8[%c0, %c0_1] : memref<4x128xf32, #tpu.memory_space<vmem>>, vector<4x128xf32>
    %c0_2 = arith.constant 0 : index
    %c0_3 = arith.constant 0 : index
    %4 = vector.load %arg3[%c0_2, %c0_3] : memref<4x64xbf16, #tpu.memory_space<vmem>>, vector<4x64xbf16>
    %c0_4 = arith.constant 0 : index
    %c0_5 = arith.constant 0 : index
    %5 = vector.load %arg4[%c0_4, %c0_5] : memref<64x128xbf16, #tpu.memory_space<vmem>>, vector<64x128xbf16>
    %cst = arith.constant dense<0.000000e+00> : vector<4x128xf32>
    %6 = tpu.matmul %4, %5, %cst {dimension_numbers = #tpu.dot_dimension_numbers<[1], [0], [0], [1], [0, 0, 1, 1], [], []>} : vector<4x64xbf16>, vector<64x128xbf16>, vector<4x128xf32> -> vector<4x128xf32>
    %7 = arith.addf %3, %6 : vector<4x128xf32>
    %c0_6 = arith.constant 0 : index
    %c0_7 = arith.constant 0 : index
    %8 = vector.load %arg8[%c0_6, %c0_7] : memref<4x128xf32, #tpu.memory_space<vmem>>, vector<4x128xf32>
    tpu.vector_store %arg8[%c0_6, %c0_7], %7 {strides = array<i32>} : memref<4x128xf32, #tpu.memory_space<vmem>>, vector<4x128xf32>,
    %c0_i32_8 = arith.constant 0 : i32
    %9 = arith.cmpi eq, %arg2, %c0_i32_8 : i32
    %10 = arith.extui %9 : i1 to i32
    %c0_i32_9 = arith.constant 0 : i32
    %11 = arith.cmpi ne, %10, %c0_i32_9 : i32
    scf.if %11 {
      %c0_10 = arith.constant 0 : index
      %c0_11 = arith.constant 0 : index
      %12 = vector.load %arg8[%c0_10, %c0_11] : memref<4x128xf32, #tpu.memory_space<vmem>>, vector<4x128xf32>
      %c0_12 = arith.constant 0 : index
      %c0_13 = arith.constant 0 : index
      %13 = vector.load %arg5[%c0_12, %c0_13] : memref<1x128xf32, #tpu.memory_space<vmem>>, vector<1x128xf32>
      %14 = vector.broadcast %13 : vector<1x128xf32> to vector<4x128xf32>
      %15 = arith.mulf %12, %14 : vector<4x128xf32>
      %c0_14 = arith.constant 0 : index
      %c0_15 = arith.constant 0 : index
      %16 = vector.load %arg6[%c0_14, %c0_15] : memref<1x128xf32, #tpu.memory_space<vmem>>, vector<1x128xf32>
      %17 = vector.broadcast %16 : vector<1x128xf32> to vector<4x128xf32>
      %18 = arith.addf %15, %17 : vector<4x128xf32>
      %c0_16 = arith.constant 0 : index
      %c0_17 = arith.constant 0 : index
      %19 = vector.load %arg7[%c0_16, %c0_17] : memref<4x128xf32, #tpu.memory_space<vmem>>, vector<4x128xf32>
      tpu.vector_store %arg7[%c0_16, %c0_17], %18 {strides = array<i32>} : memref<4x128xf32, #tpu.memory_space<vmem>>, vector<4x128xf32>,
    } else {
    }
    return
  }
  func.func @transform_0(%arg0: i32, %arg1: i32, %arg2: i32) -> (i32, i32) {
    %c0_i32 = arith.constant 0 : i32
    return %arg0, %arg2 : i32, i32
  }
  func.func @transform_1(%arg0: i32, %arg1: i32, %arg2: i32) -> (i32, i32) {
    %c0_i32 = arith.constant 0 : i32
    return %arg2, %arg1 : i32, i32
  }
  func.func @transform_2(%arg0: i32, %arg1: i32, %arg2: i32) -> (i32, i32) {
    %c0_i32 = arith.constant 0 : i32
    %c0_i32_0 = arith.constant 0 : i32
    return %c0_i32, %arg1 : i32, i32
  }
  func.func @transform_3(%arg0: i32, %arg1: i32, %arg2: i32) -> (i32, i32) {
    %c0_i32 = arith.constant 0 : i32
    %c0_i32_0 = arith.constant 0 : i32
    return %c0_i32, %arg1 : i32, i32
  }
  func.func @transform_4(%arg0: i32, %arg1: i32, %arg2: i32) -> (i32, i32) {
    %c0_i32 = arith.constant 0 : i32
    return %arg0, %arg1 : i32, i32
  }
}

module attributes {stable_mosaic.version = 11 : i64} {
  func.func @kernel(%arg0: i32, %arg1: memref<2x1x128xf32, #tpu.memory_space<vmem>>, %arg2: memref<2x1x128xbf16, #tpu.memory_space<vmem>>) attributes {dimension_semantics = [#tpu.dimension_semantics<parallel>], iteration_bounds = array<i64: 1>, scalar_prefetch = 0 : i64, scratch_operands = 0 : i64, tpu.core_type = #tpu.core_type<tc>, window_params = [{transform_indices = @transform_0, window_bounds = array<i64: 2, 1, 128>}, {transform_indices = @transform_1, window_bounds = array<i64: 2, 1, 128>}]} {
    %cst = arith.constant 0.000000e+00 : f32
    %0 = vector.broadcast %cst : f32 to vector<1x128xf32>
    %c0 = arith.constant 0 : index
    %c0_0 = arith.constant 0 : index
    %c0_1 = arith.constant 0 : index
    %1 = vector.load %arg1[%c0, %c0_0, %c0_1] : memref<2x1x128xf32, #tpu.memory_space<vmem>>, vector<1x1x128xf32>
    %2 = vector.shape_cast %1 : vector<1x1x128xf32> to vector<1x128xf32>
    %3 = arith.addf %0, %2 : vector<1x128xf32>
    %cst_2 = arith.constant 1.000000e+00 : f32
    %4 = vector.broadcast %cst_2 : f32 to vector<1x128xf32>
    %5 = arith.cmpf oge, %3, %4 : vector<1x128xf32>
    %6 = arith.extui %5 : vector<1x128xi1> to vector<1x128xi32>
    %7 = arith.sitofp %6 : vector<1x128xi32> to vector<1x128xf32>
    %8 = arith.truncf %7 : vector<1x128xf32> to vector<1x128xbf16>
    %c0_3 = arith.constant 0 : index
    %c0_4 = arith.constant 0 : index
    %c0_5 = arith.constant 0 : index
    %9 = vector.load %arg2[%c0_3, %c0_4, %c0_5] : memref<2x1x128xbf16, #tpu.memory_space<vmem>>, vector<1x1x128xbf16>
    %10 = vector.shape_cast %9 : vector<1x1x128xbf16> to vector<1x128xbf16>
    %11 = vector.shape_cast %8 : vector<1x128xbf16> to vector<1x1x128xbf16>
    tpu.vector_store %arg2[%c0_3, %c0_4, %c0_5], %11 {strides = array<i32>} : memref<2x1x128xbf16, #tpu.memory_space<vmem>>, vector<1x1x128xbf16>,
    %cst_6 = arith.constant 0.000000e+00 : f32
    %12 = vector.broadcast %cst_6 : f32 to vector<1x128xf32>
    %13 = arith.cmpf ogt, %7, %12 : vector<1x128xf32>
    %cst_7 = arith.constant 0.000000e+00 : f32
    %14 = vector.broadcast %cst_7 : f32 to vector<1x128xf32>
    %15 = arith.select %13, %14, %3 : vector<1x128xi1>, vector<1x128xf32>
    %c1 = arith.constant 1 : index
    %c0_8 = arith.constant 0 : index
    %c0_9 = arith.constant 0 : index
    %16 = vector.load %arg1[%c1, %c0_8, %c0_9] : memref<2x1x128xf32, #tpu.memory_space<vmem>>, vector<1x1x128xf32>
    %17 = vector.shape_cast %16 : vector<1x1x128xf32> to vector<1x128xf32>
    %18 = arith.addf %15, %17 : vector<1x128xf32>
    %cst_10 = arith.constant 1.000000e+00 : f32
    %19 = vector.broadcast %cst_10 : f32 to vector<1x128xf32>
    %20 = arith.cmpf oge, %18, %19 : vector<1x128xf32>
    %21 = arith.extui %20 : vector<1x128xi1> to vector<1x128xi32>
    %22 = arith.sitofp %21 : vector<1x128xi32> to vector<1x128xf32>
    %23 = arith.truncf %22 : vector<1x128xf32> to vector<1x128xbf16>
    %c1_11 = arith.constant 1 : index
    %c0_12 = arith.constant 0 : index
    %c0_13 = arith.constant 0 : index
    %24 = vector.load %arg2[%c1_11, %c0_12, %c0_13] : memref<2x1x128xbf16, #tpu.memory_space<vmem>>, vector<1x1x128xbf16>
    %25 = vector.shape_cast %24 : vector<1x1x128xbf16> to vector<1x128xbf16>
    %26 = vector.shape_cast %23 : vector<1x128xbf16> to vector<1x1x128xbf16>
    tpu.vector_store %arg2[%c1_11, %c0_12, %c0_13], %26 {strides = array<i32>} : memref<2x1x128xbf16, #tpu.memory_space<vmem>>, vector<1x1x128xbf16>,
    return
  }
  func.func @transform_0(%arg0: i32) -> (i32, i32, i32) {
    %c0_i32 = arith.constant 0 : i32
    %c0_i32_0 = arith.constant 0 : i32
    %c0_i32_1 = arith.constant 0 : i32
    return %c0_i32, %arg0, %c0_i32_0 : i32, i32, i32
  }
  func.func @transform_1(%arg0: i32) -> (i32, i32, i32) {
    %c0_i32 = arith.constant 0 : i32
    %c0_i32_0 = arith.constant 0 : i32
    %c0_i32_1 = arith.constant 0 : i32
    return %c0_i32, %arg0, %c0_i32_0 : i32, i32, i32
  }
}

module attributes {stable_mosaic.version = 11 : i64} {
  func.func @_mm_plain_kernel(%arg0: i32, %arg1: i32, %arg2: i32, %arg3: memref<4x32xbf16, #tpu.memory_space<vmem>>, %arg4: memref<32x128xbf16, #tpu.memory_space<vmem>>, %arg5: memref<4x128xf32, #tpu.memory_space<vmem>>, %arg6: memref<4x128xf32, #tpu.memory_space<vmem>>) attributes {dimension_semantics = [#tpu.dimension_semantics<parallel>, #tpu.dimension_semantics<parallel>, #tpu.dimension_semantics<arbitrary>], iteration_bounds = array<i64: 1, 1, 1>, scalar_prefetch = 0 : i64, scratch_operands = 1 : i64, tpu.core_type = #tpu.core_type<tc>, window_params = [{transform_indices = @transform_0, window_bounds = array<i64: 4, 32>}, {transform_indices = @transform_1, window_bounds = array<i64: 32, 128>}, {transform_indices = @transform_2, window_bounds = array<i64: 4, 128>}]} {
    %c0_i32 = arith.constant 0 : i32
    %0 = arith.cmpi eq, %arg2, %c0_i32 : i32
    %1 = arith.extui %0 : i1 to i32
    %c0_i32_0 = arith.constant 0 : i32
    %2 = arith.cmpi ne, %1, %c0_i32_0 : i32
    scf.if %2 {
      %cst_10 = arith.constant 0.000000e+00 : f32
      %12 = vector.broadcast %cst_10 : f32 to vector<4x128xf32>
      %c0_11 = arith.constant 0 : index
      %c0_12 = arith.constant 0 : index
      %13 = vector.load %arg6[%c0_11, %c0_12] : memref<4x128xf32, #tpu.memory_space<vmem>>, vector<4x128xf32>
      tpu.vector_store %arg6[%c0_11, %c0_12], %12 {strides = array<i32>} : memref<4x128xf32, #tpu.memory_space<vmem>>, vector<4x128xf32>,
    } else {
    }
    %c0 = arith.constant 0 : index
    %c0_1 = arith.constant 0 : index
    %3 = vector.load %arg6[%c0, %c0_1] : memref<4x128xf32, #tpu.memory_space<vmem>>, vector<4x128xf32>
    %c0_2 = arith.constant 0 : index
    %c0_3 = arith.constant 0 : index
    %4 = vector.load %arg3[%c0_2, %c0_3] : memref<4x32xbf16, #tpu.memory_space<vmem>>, vector<4x32xbf16>
    %c0_4 = arith.constant 0 : index
    %c0_5 = arith.constant 0 : index
    %5 = vector.load %arg4[%c0_4, %c0_5] : memref<32x128xbf16, #tpu.memory_space<vmem>>, vector<32x128xbf16>
    %cst = arith.constant dense<0.000000e+00> : vector<4x128xf32>
    %6 = tpu.matmul %4, %5, %cst {dimension_numbers = #tpu.dot_dimension_numbers<[1], [0], [0], [1], [0, 0, 1, 1], [], []>} : vector<4x32xbf16>, vector<32x128xbf16>, vector<4x128xf32> -> vector<4x128xf32>
    %7 = arith.addf %3, %6 : vector<4x128xf32>
    %c0_6 = arith.constant 0 : index
    %c0_7 = arith.constant 0 : index
    %8 = vector.load %arg6[%c0_6, %c0_7] : memref<4x128xf32, #tpu.memory_space<vmem>>, vector<4x128xf32>
    tpu.vector_store %arg6[%c0_6, %c0_7], %7 {strides = array<i32>} : memref<4x128xf32, #tpu.memory_space<vmem>>, vector<4x128xf32>,
    %c0_i32_8 = arith.constant 0 : i32
    %9 = arith.cmpi eq, %arg2, %c0_i32_8 : i32
    %10 = arith.extui %9 : i1 to i32
    %c0_i32_9 = arith.constant 0 : i32
    %11 = arith.cmpi ne, %10, %c0_i32_9 : i32
    scf.if %11 {
      %c0_10 = arith.constant 0 : index
      %c0_11 = arith.constant 0 : index
      %12 = vector.load %arg6[%c0_10, %c0_11] : memref<4x128xf32, #tpu.memory_space<vmem>>, vector<4x128xf32>
      %c0_12 = arith.constant 0 : index
      %c0_13 = arith.constant 0 : index
      %13 = vector.load %arg5[%c0_12, %c0_13] : memref<4x128xf32, #tpu.memory_space<vmem>>, vector<4x128xf32>
      tpu.vector_store %arg5[%c0_12, %c0_13], %12 {strides = array<i32>} : memref<4x128xf32, #tpu.memory_space<vmem>>, vector<4x128xf32>,
    } else {
    }
    return
  }
  func.func @transform_0(%arg0: i32, %arg1: i32, %arg2: i32) -> (i32, i32) {
    %c0_i32 = arith.constant 0 : i32
    return %arg0, %arg2 : i32, i32
  }
  func.func @transform_1(%arg0: i32, %arg1: i32, %arg2: i32) -> (i32, i32) {
    %c0_i32 = arith.constant 0 : i32
    return %arg2, %arg1 : i32, i32
  }
  func.func @transform_2(%arg0: i32, %arg1: i32, %arg2: i32) -> (i32, i32) {
    %c0_i32 = arith.constant 0 : i32
    return %arg0, %arg1 : i32, i32
  }
}

</mosaic_0001>

<llo_original>
// kernel: _lambda_.43
$region0: #{_lambda_.43}
  #allocation0 [shape = 'u32[]', space=smem, size = 0x4, offset = 0x4, fixed_abs, tag = 'smem constant byte address 0x4 - core index']
  #allocation1 [shape = 'u32[72,128]{1,0:T(1,128)}', space=vmem, size = 0x9000, scoped, tag = 'internal scratch']
  %s0 = inlined_call_operand.vmem [shape: f32[2,64,128], index: 0, kind: input, shape index: {}]
  %s1 = inlined_call_operand.vmem [shape: bf16[2,64,128], index: 1, kind: output, shape index: {}]
  %s2 = sld [smem:[#allocation0]]
  $region14: #{_lambda_.43} parent=0
    _
  %s4 = ssub.s32 1, %s2
  %s5 = scalar_select 0, %s4, %s2
  // Predicated region
  $region2: #{_lambda_.43} parent=0 // pred_check
    _
  $region3: #{_lambda_.43} parent=0 // pred_check_branch
    %7 = sbr.rel (0) target = $region5
  $region4: #{_lambda_.43} parent=0 // pred_region
    _
  $region5: #{_lambda_.43} parent=0 // pred_fallthru
    _
  %v8 = vld [vmem:[%s0] sm:$0xff]
  %v9 = vld [vmem:[%s0 + $0x8] sm:$0xff]
  %v10 = vld [vmem:[%s0 + $0x10] sm:$0xff]
  %v11 = vld [vmem:[%s0 + $0x18] sm:$0xff]
  %v12 = vld [vmem:[%s0 + $0x20] sm:$0xff]
  %v13 = vld [vmem:[%s0 + $0x28] sm:$0xff]
  %v14 = vld [vmem:[%s0 + $0x30] sm:$0xff]
  %v15 = vld [vmem:[%s0 + $0x38] sm:$0xff]
  %v16 = vadd.f32 %v8, 0.0
  %v17 = vadd.f32 %v9, 0.0
  %v18 = vadd.f32 %v10, 0.0
  %v19 = vadd.f32 %v11, 0.0
  %v20 = vadd.f32 %v12, 0.0
  %v21 = vadd.f32 %v13, 0.0
  %v22 = vadd.f32 %v14, 0.0
  %v23 = vadd.f32 %v15, 0.0
  %vm24 = vcmp.ge.f32.partialorder %v16, 1.0
  %vm25 = vcmp.ge.f32.partialorder %v17, 1.0
  %vm26 = vcmp.ge.f32.partialorder %v18, 1.0
  %vm27 = vcmp.ge.f32.partialorder %v19, 1.0
  %vm28 = vcmp.ge.f32.partialorder %v20, 1.0
  %vm29 = vcmp.ge.f32.partialorder %v21, 1.0
  %vm30 = vcmp.ge.f32.partialorder %v22, 1.0
  %vm31 = vcmp.ge.f32.partialorder %v23, 1.0
  %v32 = vsel %vm24, 1, 0
  %v33 = vsel %vm25, 1, 0
  %v34 = vsel %vm26, 1, 0
  %v35 = vsel %vm27, 1, 0
  %v36 = vsel %vm28, 1, 0
  %v37 = vsel %vm29, 1, 0
  %v38 = vsel %vm30, 1, 0
  %v39 = vsel %vm31, 1, 0
  %v40 = vcvt.s32.f32 %v32
  %v41 = vcvt.s32.f32 %v33
  %v42 = vcvt.s32.f32 %v34
  %v43 = vcvt.s32.f32 %v35
  %v44 = vcvt.s32.f32 %v36
  %v45 = vcvt.s32.f32 %v37
  %v46 = vcvt.s32.f32 %v38
  %v47 = vcvt.s32.f32 %v39
  %v48 = vpack.c.bf16 %v40, %v40
  %v49 = vpack.c.bf16 %v41, %v41
  %v50 = vpack.c.bf16 %v42, %v42
  %v51 = vpack.c.bf16 %v43, %v43
  %v52 = vpack.c.bf16 %v44, %v44
  %v53 = vpack.c.bf16 %v45, %v45
  %v54 = vpack.c.bf16 %v46, %v46
  %v55 = vpack.c.bf16 %v47, %v47
  %56 = vst [vmem:[%s1] sm:$0xf] %v48
  %57 = vst [vmem:[%s1 + $0x4] sm:$0xf] %v49
  %58 = vst [vmem:[%s1 + $0x8] sm:$0xf] %v50
  %59 = vst [vmem:[%s1 + $0xc] sm:$0xf] %v51
  %60 = vst [vmem:[%s1 + $0x10] sm:$0xf] %v52
  %61 = vst [vmem:[%s1 + $0x14] sm:$0xf] %v53
  %62 = vst [vmem:[%s1 + $0x18] sm:$0xf] %v54
  %63 = vst [vmem:[%s1 + $0x1c] sm:$0xf] %v55
  %vm64 = vcmp.gt.f32.partialorder %v40, 0.0
  %vm65 = vcmp.gt.f32.partialorder %v41, 0.0
  %vm66 = vcmp.gt.f32.partialorder %v42, 0.0
  %vm67 = vcmp.gt.f32.partialorder %v43, 0.0
  %vm68 = vcmp.gt.f32.partialorder %v44, 0.0
  %vm69 = vcmp.gt.f32.partialorder %v45, 0.0
  %vm70 = vcmp.gt.f32.partialorder %v46, 0.0
  %vm71 = vcmp.gt.f32.partialorder %v47, 0.0
  %v72 = vsel %vm64, 0.0, %v16
  %v73 = vsel %vm65, 0.0, %v17
  %v74 = vsel %vm66, 0.0, %v18
  %v75 = vsel %vm67, 0.0, %v19
  %v76 = vsel %vm68, 0.0, %v20
  %v77 = vsel %vm69, 0.0, %v21
  %v78 = vsel %vm70, 0.0, %v22
  %v79 = vsel %vm71, 0.0, %v23
  %s80 = scalar_lea.vmem %s0, 64
  %v81 = vld [vmem:[%s80] sm:$0xff]
  %v82 = vld [vmem:[%s80 + $0x8] sm:$0xff]
  %v83 = vld [vmem:[%s80 + $0x10] sm:$0xff]
  %v84 = vld [vmem:[%s80 + $0x18] sm:$0xff]
  %v85 = vld [vmem:[%s80 + $0x20] sm:$0xff]
  %v86 = vld [vmem:[%s80 + $0x28] sm:$0xff]
  %v87 = vld [vmem:[%s80 + $0x30] sm:$0xff]
  %v88 = vld [vmem:[%s80 + $0x38] sm:$0xff]
  %v89 = vadd.f32 %v72, %v81
  %v90 = vadd.f32 %v73, %v82
  %v91 = vadd.f32 %v74, %v83
  %v92 = vadd.f32 %v75, %v84
  %v93 = vadd.f32 %v76, %v85
  %v94 = vadd.f32 %v77, %v86
  %v95 = vadd.f32 %v78, %v87
  %v96 = vadd.f32 %v79, %v88
  %vm97 = vcmp.ge.f32.partialorder %v89, 1.0
  %vm98 = vcmp.ge.f32.partialorder %v90, 1.0
  %vm99 = vcmp.ge.f32.partialorder %v91, 1.0
  %vm100 = vcmp.ge.f32.partialorder %v92, 1.0
  %vm101 = vcmp.ge.f32.partialorder %v93, 1.0
  %vm102 = vcmp.ge.f32.partialorder %v94, 1.0
  %vm103 = vcmp.ge.f32.partialorder %v95, 1.0
  %vm104 = vcmp.ge.f32.partialorder %v96, 1.0
  %v105 = vsel %vm97, 1, 0
  %v106 = vsel %vm98, 1, 0
  %v107 = vsel %vm99, 1, 0
  %v108 = vsel %vm100, 1, 0
  %v109 = vsel %vm101, 1, 0
  %v110 = vsel %vm102, 1, 0
  %v111 = vsel %vm103, 1, 0
  %v112 = vsel %vm104, 1, 0
  %v113 = vcvt.s32.f32 %v105
  %v114 = vcvt.s32.f32 %v106
  %v115 = vcvt.s32.f32 %v107
  %v116 = vcvt.s32.f32 %v108
  %v117 = vcvt.s32.f32 %v109
  %v118 = vcvt.s32.f32 %v110
  %v119 = vcvt.s32.f32 %v111
  %v120 = vcvt.s32.f32 %v112
  %v121 = vpack.c.bf16 %v113, %v113
  %v122 = vpack.c.bf16 %v114, %v114
  %v123 = vpack.c.bf16 %v115, %v115
  %v124 = vpack.c.bf16 %v116, %v116
  %v125 = vpack.c.bf16 %v117, %v117
  %v126 = vpack.c.bf16 %v118, %v118
  %v127 = vpack.c.bf16 %v119, %v119
  %v128 = vpack.c.bf16 %v120, %v120
  %s129 = scalar_lea.vmem %s1, 32
  %130 = vst [vmem:[%s129] sm:$0xf] %v121
  %131 = vst [vmem:[%s129 + $0x4] sm:$0xf] %v122
  %132 = vst [vmem:[%s129 + $0x8] sm:$0xf] %v123
  %133 = vst [vmem:[%s129 + $0xc] sm:$0xf] %v124
  %134 = vst [vmem:[%s129 + $0x10] sm:$0xf] %v125
  %135 = vst [vmem:[%s129 + $0x14] sm:$0xf] %v126
  %136 = vst [vmem:[%s129 + $0x18] sm:$0xf] %v127
  %137 = vst [vmem:[%s129 + $0x1c] sm:$0xf] %v128
  // Predicated region
  $region6: #{_lambda_.43} parent=0 // pred_check
    _
  $region7: #{_lambda_.43} parent=0 // pred_check_branch
    %139 = sbr.rel (0) target = $region9
  $region8: #{_lambda_.43} parent=0 // pred_region
    _
  $region9: #{_lambda_.43} parent=0 // pred_fallthru
    _
  // Predicated region
  $region10: #{_lambda_.43} parent=0 // pred_check
    _
  $region11: #{_lambda_.43} parent=0 // pred_check_branch
    %141 = sbr.rel (0) target = $region13
  $region12: #{_lambda_.43} parent=0 // pred_region
    _
  $region13: #{_lambda_.43} parent=0 // pred_fallthru
    _

// kernel: _lambda_.42
$region0: #{_lambda_.42}
  #allocation0 [shape = 'u32[]', space=smem, size = 0x4, offset = 0x4, fixed_abs, tag = 'smem constant byte address 0x4 - core index']
  #allocation1 [shape = 'u32[72,128]{1,0:T(1,128)}', space=vmem, size = 0x9000, scoped, tag = 'internal scratch']
  #allocation2 [shape = 'f32[512,128]{1,0:T(8,128)}', space=vmem, size = 0x40000, scoped, tag = 'scratch operand']
  %s0 = inlined_call_operand.vmem [shape: bf16[1024,27], index: 0, kind: input, shape index: {}]
  %s1 = inlined_call_operand.vmem [shape: bf16[27,128], index: 1, kind: input, shape index: {}]
  %s2 = inlined_call_operand.vmem [shape: f32[1,128], index: 2, kind: input, shape index: {}]
  %s3 = inlined_call_operand.vmem [shape: f32[1,128], index: 3, kind: input, shape index: {}]
  %s4 = inlined_call_operand.vmem [shape: f32[1024,128], index: 4, kind: output, shape index: {}]
  %s5 = sld [smem:[#allocation0]]
  $region57: #{_lambda_.42} parent=0
    _
  %s7 = ssub.s32 1, %s5
  %s8 = scalar_select 0, %s7, %s5
  loop: start=0, step=1, limit=4
  $region2: #{_lambda_.42} parent=0 // loop_pre_header
    _
  $region3: #{_lambda_.42} parent=0 // loop_header
    %s10 = sphi 0, %s14
    %p11 = scmp.ge.s32.totalorder %s10, 4
    %s17 = sphi 0, %s36
    %s18 = sphi 0, %s32
    %s19 = sphi 0, %s28
    %s20 = sphi 0, %s17
    %s21 = sphi 0, %s18
    %s22 = sphi 0, %s19
    %s23 = sphi 0, %s20
    %s24 = sphi 0, %s21
    %s25 = sphi 0, %s22
    %s41 = sphi 0, %s43
    %s44 = sphi 0, %s41
    %s45 = sphi 0, %s44
    %s61 = sphi 0, %s45
    %s69 = sphi 0, %s71
    %s72 = sphi 0, %s69
    %s73 = sphi 0, %s72
    %s89 = sphi 0, %s73
    %s95 = sphi 0, %s97
    %s98 = sphi 0, %s95
    %s99 = sphi 0, %s98
    %s115 = sphi 0, %s99
    %s121 = sphi 0, %s123
    %s124 = sphi 0, %s121
    %s125 = sphi 0, %s124
    %s141 = sphi 0, %s125
    %s149 = sphi 0, %s151
    %s152 = sphi 0, %s149
    %s153 = sphi 0, %s152
    %s169 = sphi 0, %s153
  $region4: #{_lambda_.42} parent=0 // loop_header_branch
    %13 = sbr.rel (%p11) target = $region8
  $region5: #{_lambda_.42} parent=0 // loop_body
    %s15 = ssub.s32 %s10, 1
    %s16 = ssub.s32 %s10, 2
    %s26 = sadd.s32 1, %s19
    %p27 = scmp.ge.s32.totalorder %s26, 1
    %s28 = scalar_select %p27, 0, %s26
    %s29 = sadd.s32 1, %s18
    %s30 = scalar_select %p27, %s29, %s18
    %p31 = scmp.ge.s32.totalorder %s30, 1
    %s32 = scalar_select %p31, 0, %s30
    %s33 = sadd.s32 1, %s17
    %s34 = scalar_select %p31, %s33, %s17
    %p35 = scmp.ge.s32.totalorder %s34, 2
    %s36 = scalar_select %p35, 0, %s34
    %s37 = ssub.s32 %s17, %s36
    %s38 = ssub.s32 %s19, %s28
    %s39 = sor.u32 %s37, %s38
    %p40 = scmp.eq.s32.totalorder %s39, 0
    %s42 = sadd.s32 %s41, 1
    %s43 = scalar_select %p40, %s41, %s42
    %p46 = pneg %p40
    %p47 = scmp.eq.s32.totalorder %s10, 1
    %p48 = por %p46, %p47
    %p49 = scmp.ne.s32.totalorder %s41, %s44
    %p50 = scmp.eq.s32.totalorder %s10, 0
    %p51 = por %p49, %p50
    %p52 = scmp.ne.s32.totalorder %s41, %s44
    %p53 = scmp.eq.s32.totalorder %s15, 1
    %p54 = por %p52, %p53
    %p55 = scmp.ne.s32.totalorder %s44, %s45
    %p56 = scmp.eq.s32.totalorder %s15, 0
    %p57 = por %p55, %p56
    %p58 = scmp.ne.s32.totalorder %s44, %s45
    %p59 = scmp.eq.s32.totalorder %s16, 1
    %p60 = por %p58, %p59
    %p62 = scmp.ne.s32.totalorder %s45, %s61
    %p63 = scmp.eq.s32.totalorder %s16, 0
    %p64 = por %p62, %p63
    %s65 = ssub.s32 %s19, %s28
    %s66 = ssub.s32 %s18, %s32
    %s67 = sor.u32 %s65, %s66
    %p68 = scmp.eq.s32.totalorder %s67, 0
    %s70 = sadd.s32 %s69, 1
    %s71 = scalar_select %p68, %s69, %s70
    %p74 = pneg %p68
    %p75 = scmp.eq.s32.totalorder %s10, 1
    %p76 = por %p74, %p75
    %p77 = scmp.ne.s32.totalorder %s69, %s72
    %p78 = scmp.eq.s32.totalorder %s10, 0
    %p79 = por %p77, %p78
    %p80 = scmp.ne.s32.totalorder %s69, %s72
    %p81 = scmp.eq.s32.totalorder %s15, 1
    %p82 = por %p80, %p81
    %p83 = scmp.ne.s32.totalorder %s72, %s73
    %p84 = scmp.eq.s32.totalorder %s15, 0
    %p85 = por %p83, %p84
    %p86 = scmp.ne.s32.totalorder %s72, %s73
    %p87 = scmp.eq.s32.totalorder %s16, 1
    %p88 = por %p86, %p87
    %p90 = scmp.ne.s32.totalorder %s73, %s89
    %p91 = scmp.eq.s32.totalorder %s16, 0
    %p92 = por %p90, %p91
    %s93 = ssub.s32 %s18, %s32
    %p94 = scmp.eq.s32.totalorder %s93, 0
    %s96 = sadd.s32 %s95, 1
    %s97 = scalar_select %p94, %s95, %s96
    %p100 = pneg %p94
    %p101 = scmp.eq.s32.totalorder %s10, 1
    %p102 = por %p100, %p101
    %p103 = scmp.ne.s32.totalorder %s95, %s98
    %p104 = scmp.eq.s32.totalorder %s10, 0
    %p105 = por %p103, %p104
    %p106 = scmp.ne.s32.totalorder %s95, %s98
    %p107 = scmp.eq.s32.totalorder %s15, 1
    %p108 = por %p106, %p107
    %p109 = scmp.ne.s32.totalorder %s98, %s99
    %p110 = scmp.eq.s32.totalorder %s15, 0
    %p111 = por %p109, %p110
    %p112 = scmp.ne.s32.totalorder %s98, %s99
    %p113 = scmp.eq.s32.totalorder %s16, 1
    %p114 = por %p112, %p113
    %p116 = scmp.ne.s32.totalorder %s99, %s115
    %p117 = scmp.eq.s32.totalorder %s16, 0
    %p118 = por %p116, %p117
    %s119 = ssub.s32 %s18, %s32
    %p120 = scmp.eq.s32.totalorder %s119, 0
    %s122 = sadd.s32 %s121, 1
    %s123 = scalar_select %p120, %s121, %s122
    %p126 = pneg %p120
    %p127 = scmp.eq.s32.totalorder %s10, 1
    %p128 = por %p126, %p127
    %p129 = scmp.ne.s32.totalorder %s121, %s124
    %p130 = scmp.eq.s32.totalorder %s10, 0
    %p131 = por %p129, %p130
    %p132 = scmp.ne.s32.totalorder %s121, %s124
    %p133 = scmp.eq.s32.totalorder %s15, 1
    %p134 = por %p132, %p133
    %p135 = scmp.ne.s32.totalorder %s124, %s125
    %p136 = scmp.eq.s32.totalorder %s15, 0
    %p137 = por %p135, %p136
    %p138 = scmp.ne.s32.totalorder %s124, %s125
    %p139 = scmp.eq.s32.totalorder %s16, 1
    %p140 = por %p138, %p139
    %p142 = scmp.ne.s32.totalorder %s125, %s141
    %p143 = scmp.eq.s32.totalorder %s16, 0
    %p144 = por %p142, %p143
    %s145 = ssub.s32 %s17, %s36
    %s146 = ssub.s32 %s18, %s32
    %s147 = sor.u32 %s145, %s146
    %p148 = scmp.eq.s32.totalorder %s147, 0
    %s150 = sadd.s32 %s149, 1
    %s151 = scalar_select %p148, %s149, %s150
    %p154 = pneg %p148
    %p155 = scmp.eq.s32.totalorder %s10, 1
    %p156 = por %p154, %p155
    %p157 = scmp.ne.s32.totalorder %s149, %s152
    %p158 = scmp.eq.s32.totalorder %s10, 0
    %p159 = por %p157, %p158
    %p160 = scmp.ne.s32.totalorder %s149, %s152
    %p161 = scmp.eq.s32.totalorder %s15, 1
    %p162 = por %p160, %p161
    %p163 = scmp.ne.s32.totalorder %s152, %s153
    %p164 = scmp.eq.s32.totalorder %s15, 0
    %p165 = por %p163, %p164
    %p166 = scmp.ne.s32.totalorder %s152, %s153
    %p167 = scmp.eq.s32.totalorder %s16, 1
    %p168 = por %p166, %p167
    %p170 = scmp.ne.s32.totalorder %s153, %s169
    %p171 = scmp.eq.s32.totalorder %s16, 0
    %p172 = por %p170, %p171
    %p173 = scmp.le.s32.totalorder 1, %s10
    %p174 = scmp.lt.s32.totalorder %s10, 3
    %p175 = pnand %p173, %p174
    %p176 = pneg %p175
    // Predicated region
    $region9: #{_lambda_.42} parent=5 // pred_check
      _
    $region10: #{_lambda_.42} parent=5 // pred_check_branch
      %178 = sbr.rel (%p175) target = $region12
    $region11: #{_lambda_.42} parent=5 // pred_region
      %s179 = ssub.s32 %s10, 1
      // Predicated region
      $region13: #{_lambda_.42} parent=11 // pred_check
        %p180 = pneg %p85
      $region14: #{_lambda_.42} parent=11 // pred_check_branch
        %182 = sbr.rel (%p180) target = $region16
      $region15: #{_lambda_.42} parent=11 // pred_region
        %s183 = smul.u32 4, %s22
        %p184 = scmp.lt.s32.totalorder %s183, 3
        %s185 = scalar_select %p184, %s183, 3
        %p186 = scmp.lt.s32.totalorder %s21, 0
        %s187 = scalar_select %p186, %s21, 0
        %s188 = sadd.s32 %s187, %s185
        %s189 = smul.addr %s188, 4
        %s190 = scalar_lea.vmem %s1, %s189
        %s191 = smul.u32 4, %s22
      $region16: #{_lambda_.42} parent=11 // pred_fallthru
        _
      // Predicated region
      $region17: #{_lambda_.42} parent=11 // pred_check
        %p192 = pneg %p111
      $region18: #{_lambda_.42} parent=11 // pred_check_branch
        %194 = sbr.rel (%p192) target = $region20
      $region19: #{_lambda_.42} parent=11 // pred_region
        %p195 = scmp.lt.s32.totalorder %s21, 0
        %s196 = scalar_select %p195, %s21, 0
        %s197 = scalar_lea.vmem %s2, %s196
      $region20: #{_lambda_.42} parent=11 // pred_fallthru
        _
      // Predicated region
      $region21: #{_lambda_.42} parent=11 // pred_check
        %p198 = pneg %p137
      $region22: #{_lambda_.42} parent=11 // pred_check_branch
        %200 = sbr.rel (%p198) target = $region24
      $region23: #{_lambda_.42} parent=11 // pred_region
        %p201 = scmp.lt.s32.totalorder %s21, 0
        %s202 = scalar_select %p201, %s21, 0
        %s203 = scalar_lea.vmem %s3, %s202
      $region24: #{_lambda_.42} parent=11 // pred_fallthru
        _
    $region12: #{_lambda_.42} parent=5 // pred_fallthru
      _
    %p204 = scmp.lt.s32.totalorder %s10, 2
    // Predicated region
    $region25: #{_lambda_.42} parent=5 // pred_check
      %p205 = pneg %p204
    $region26: #{_lambda_.42} parent=5 // pred_check_branch
      %207 = sbr.rel (%p205) target = $region28
    $region27: #{_lambda_.42} parent=5 // pred_region
      // Predicated region
      $region29: #{_lambda_.42} parent=27 // pred_check
        %p208 = pneg %p51
      $region30: #{_lambda_.42} parent=27 // pred_check_branch
        %210 = sbr.rel (%p208) target = $region32
      $region31: #{_lambda_.42} parent=27 // pred_region
        %s211 = smul.u32 64, %s17
        %p212 = scmp.lt.s32.totalorder %s211, 127
        %s213 = scalar_select %p212, %s211, 127
        %p214 = scmp.lt.s32.totalorder %s19, 0
        %s215 = scalar_select %p214, %s19, 0
        %s216 = sadd.s32 %s215, %s213
        %s217 = smul.addr %s216, 4
        %s218 = scalar_lea.vmem %s0, %s217
        %s219 = smul.u32 64, %s17
      $region32: #{_lambda_.42} parent=27 // pred_fallthru
        _
    $region28: #{_lambda_.42} parent=5 // pred_fallthru
      _
    %p220 = scmp.le.s32.totalorder 1, %s10
    %p221 = scmp.lt.s32.totalorder %s10, 3
    %p222 = pnand %p220, %p221
    %p223 = pneg %p222
    // Predicated region
    $region33: #{_lambda_.42} parent=5 // pred_check
      _
    $region34: #{_lambda_.42} parent=5 // pred_check_branch
      %225 = sbr.rel (%p222) target = $region36
    $region35: #{_lambda_.42} parent=5 // pred_region
      %s226 = ssub.s32 %s10, 1
      %s227 = smul.u32 64, %s20
      %p228 = scmp.lt.s32.totalorder %s227, 127
      %s229 = scalar_select %p228, %s227, 127
      %p230 = scmp.lt.s32.totalorder %s22, 0
      %s231 = scalar_select %p230, %s22, 0
      %s232 = sadd.s32 %s231, %s229
      %s233 = smul.addr %s232, 4
      %s234 = scalar_lea.vmem %s0, %s233
      %p235 = pneg %p57
      %p236 = pneg %p54
      %s237 = smul.u32 4, %s22
      %p238 = scmp.lt.s32.totalorder %s237, 3
      %s239 = scalar_select %p238, %s237, 3
      %p240 = scmp.lt.s32.totalorder %s21, 0
      %s241 = scalar_select %p240, %s21, 0
      %s242 = sadd.s32 %s241, %s239
      %s243 = smul.addr %s242, 4
      %s244 = scalar_lea.vmem %s1, %s243
      %p245 = pneg %p85
      %p246 = pneg %p82
      %p247 = scmp.lt.s32.totalorder %s21, 0
      %s248 = scalar_select %p247, %s21, 0
      %s249 = scalar_lea.vmem %s2, %s248
      %p250 = pneg %p111
      %p251 = pneg %p108
      %p252 = scmp.lt.s32.totalorder %s21, 0
      %s253 = scalar_select %p252, %s21, 0
      %s254 = scalar_lea.vmem %s3, %s253
      %p255 = pneg %p137
      %p256 = pneg %p134
      %p257 = pneg %p165
      %p258 = pneg %p162
      %s259 = smul.u32 64, %s20
      %p260 = scmp.lt.s32.totalorder %s259, 127
      %s261 = scalar_select %p260, %s259, 127
      %p262 = scmp.lt.s32.totalorder %s21, 0
      %s263 = scalar_select %p262, %s21, 0
      %s264 = sadd.s32 %s263, %s261
      %s265 = smul.addr %s264, 8
      %s266 = scalar_lea.vmem %s4, %s265
      %s267 = smul.u32 64, %s20
      %p268 = scmp.lt.s32.totalorder %s267, 127
      %s269 = scalar_select %p268, %s267, 127
      %p270 = scmp.lt.s32.totalorder %s22, 0
      %s271 = scalar_select %p270, %s22, 0
      %s272 = sadd.s32 %s271, %s269
      %s273 = smul.addr %s272, 4
      %s274 = scalar_lea.vmem %s0, %s273
      %s275 = smul.u32 64, %s20
      %s276 = smul.u32 4, %s22
      %p277 = scmp.lt.s32.totalorder %s276, 3
      %s278 = scalar_select %p277, %s276, 3
      %p279 = scmp.lt.s32.totalorder %s21, 0
      %s280 = scalar_select %p279, %s21, 0
      %s281 = sadd.s32 %s280, %s278
      %s282 = smul.addr %s281, 4
      %s283 = scalar_lea.vmem %s1, %s282
      %s284 = smul.u32 4, %s22
      %p285 = scmp.lt.s32.totalorder %s21, 0
      %s286 = scalar_select %p285, %s21, 0
      %s287 = scalar_lea.vmem %s2, %s286
      %p288 = scmp.lt.s32.totalorder %s21, 0
      %s289 = scalar_select %p288, %s21, 0
      %s290 = scalar_lea.vmem %s3, %s289
      %s291 = smul.u32 64, %s20
      %p292 = scmp.lt.s32.totalorder %s291, 127
      %s293 = scalar_select %p292, %s291, 127
      %p294 = scmp.lt.s32.totalorder %s21, 0
      %s295 = scalar_select %p294, %s21, 0
      %s296 = sadd.s32 %s295, %s293
      %s297 = smul.addr %s296, 8
      %s298 = scalar_lea.vmem %s4, %s297
      %s299 = smul.u32 64, %s20
      %p301 = scmp.eq.s32.totalorder %s22, 0
      // Predicated region
      $region37: #{_lambda_.42} parent=35 // pred_check
        %p302 = pneg %p301
      $region38: #{_lambda_.42} parent=35 // pred_check_branch
        %304 = sbr.rel (%p302) target = $region40
      $region39: #{_lambda_.42} parent=35 // pred_region
        %305 = vst [vmem:[#allocation2] sm:$0xff] 0.0
        %306 = vst [vmem:[#allocation2 + $0x8] sm:$0xff] 0.0
        %307 = vst [vmem:[#allocation2 + $0x10] sm:$0xff] 0.0
        %308 = vst [vmem:[#allocation2 + $0x18] sm:$0xff] 0.0
        %309 = vst [vmem:[#allocation2 + $0x20] sm:$0xff] 0.0
        %310 = vst [vmem:[#allocation2 + $0x28] sm:$0xff] 0.0
        %311 = vst [vmem:[#allocation2 + $0x30] sm:$0xff] 0.0
        %312 = vst [vmem:[#allocation2 + $0x38] sm:$0xff] 0.0
        %313 = vst [vmem:[#allocation2 + $0x40] sm:$0xff] 0.0
        %314 = vst [vmem:[#allocation2 + $0x48] sm:$0xff] 0.0
        %315 = vst [vmem:[#allocation2 + $0x50] sm:$0xff] 0.0
        %316 = vst [vmem:[#allocation2 + $0x58] sm:$0xff] 0.0
        %317 = vst [vmem:[#allocation2 + $0x60] sm:$0xff] 0.0
        %318 = vst [vmem:[#allocation2 + $0x68] sm:$0xff] 0.0
        %319 = vst [vmem:[#allocation2 + $0x70] sm:$0xff] 0.0
        %320 = vst [vmem:[#allocation2 + $0x78] sm:$0xff] 0.0
        %321 = vst [vmem:[#allocation2 + $0x80] sm:$0xff] 0.0
        %322 = vst [vmem:[#allocation2 + $0x88] sm:$0xff] 0.0
        %323 = vst [vmem:[#allocation2 + $0x90] sm:$0xff] 0.0
        %324 = vst [vmem:[#allocation2 + $0x98] sm:$0xff] 0.0
        %325 = vst [vmem:[#allocation2 + $0xa0] sm:$0xff] 0.0
        %326 = vst [vmem:[#allocation2 + $0xa8] sm:$0xff] 0.0
        %327 = vst [vmem:[#allocation2 + $0xb0] sm:$0xff] 0.0
        %328 = vst [vmem:[#allocation2 + $0xb8] sm:$0xff] 0.0
        %329 = vst [vmem:[#allocation2 + $0xc0] sm:$0xff] 0.0
        %330 = vst [vmem:[#allocation2 + $0xc8] sm:$0xff] 0.0
        %331 = vst [vmem:[#allocation2 + $0xd0] sm:$0xff] 0.0
        %332 = vst [vmem:[#allocation2 + $0xd8] sm:$0xff] 0.0
        %333 = vst [vmem:[#allocation2 + $0xe0] sm:$0xff] 0.0
        %334 = vst [vmem:[#allocation2 + $0xe8] sm:$0xff] 0.0
        %335 = vst [vmem:[#allocation2 + $0xf0] sm:$0xff] 0.0
        %336 = vst [vmem:[#allocation2 + $0xf8] sm:$0xff] 0.0
        %337 = vst [vmem:[#allocation2 + $0x100] sm:$0xff] 0.0
        %338 = vst [vmem:[#allocation2 + $0x108] sm:$0xff] 0.0
        %339 = vst [vmem:[#allocation2 + $0x110] sm:$0xff] 0.0
        %340 = vst [vmem:[#allocation2 + $0x118] sm:$0xff] 0.0
        %341 = vst [vmem:[#allocation2 + $0x120] sm:$0xff] 0.0
        %342 = vst [vmem:[#allocation2 + $0x128] sm:$0xff] 0.0
        %343 = vst [vmem:[#allocation2 + $0x130] sm:$0xff] 0.0
        %344 = vst [vmem:[#allocation2 + $0x138] sm:$0xff] 0.0
        %345 = vst [vmem:[#allocation2 + $0x140] sm:$0xff] 0.0
        %346 = vst [vmem:[#allocation2 + $0x148] sm:$0xff] 0.0
        %347 = vst [vmem:[#allocation2 + $0x150] sm:$0xff] 0.0
        %348 = vst [vmem:[#allocation2 + $0x158] sm:$0xff] 0.0
        %349 = vst [vmem:[#allocation2 + $0x160] sm:$0xff] 0.0
        %350 = vst [vmem:[#allocation2 + $0x168] sm:$0xff] 0.0
        %351 = vst [vmem:[#allocation2 + $0x170] sm:$0xff] 0.0
        %352 = vst [vmem:[#allocation2 + $0x178] sm:$0xff] 0.0
        %353 = vst [vmem:[#allocation2 + $0x180] sm:$0xff] 0.0
        %354 = vst [vmem:[#allocation2 + $0x188] sm:$0xff] 0.0
        %355 = vst [vmem:[#allocation2 + $0x190] sm:$0xff] 0.0
        %356 = vst [vmem:[#allocation2 + $0x198] sm:$0xff] 0.0
        %357 = vst [vmem:[#allocation2 + $0x1a0] sm:$0xff] 0.0
        %358 = vst [vmem:[#allocation2 + $0x1a8] sm:$0xff] 0.0
        %359 = vst [vmem:[#allocation2 + $0x1b0] sm:$0xff] 0.0
        %360 = vst [vmem:[#allocation2 + $0x1b8] sm:$0xff] 0.0
        %361 = vst [vmem:[#allocation2 + $0x1c0] sm:$0xff] 0.0
        %362 = vst [vmem:[#allocation2 + $0x1c8] sm:$0xff] 0.0
        %363 = vst [vmem:[#allocation2 + $0x1d0] sm:$0xff] 0.0
        %364 = vst [vmem:[#allocation2 + $0x1d8] sm:$0xff] 0.0
        %365 = vst [vmem:[#allocation2 + $0x1e0] sm:$0xff] 0.0
        %366 = vst [vmem:[#allocation2 + $0x1e8] sm:$0xff] 0.0
        %367 = vst [vmem:[#allocation2 + $0x1f0] sm:$0xff] 0.0
        %368 = vst [vmem:[#allocation2 + $0x1f8] sm:$0xff] 0.0
      $region40: #{_lambda_.42} parent=35 // pred_fallthru
        _
      %v369 = vld [vmem:[#allocation2] sm:$0xff]
      %v370 = vld [vmem:[#allocation2 + $0x8] sm:$0xff]
      %v371 = vld [vmem:[#allocation2 + $0x10] sm:$0xff]
      %v372 = vld [vmem:[#allocation2 + $0x18] sm:$0xff]
      %v373 = vld [vmem:[#allocation2 + $0x20] sm:$0xff]
      %v374 = vld [vmem:[#allocation2 + $0x28] sm:$0xff]
      %v375 = vld [vmem:[#allocation2 + $0x30] sm:$0xff]
      %v376 = vld [vmem:[#allocation2 + $0x38] sm:$0xff]
      %v377 = vld [vmem:[#allocation2 + $0x40] sm:$0xff]
      %v378 = vld [vmem:[#allocation2 + $0x48] sm:$0xff]
      %v379 = vld [vmem:[#allocation2 + $0x50] sm:$0xff]
      %v380 = vld [vmem:[#allocation2 + $0x58] sm:$0xff]
      %v381 = vld [vmem:[#allocation2 + $0x60] sm:$0xff]
      %v382 = vld [vmem:[#allocation2 + $0x68] sm:$0xff]
      %v383 = vld [vmem:[#allocation2 + $0x70] sm:$0xff]
      %v384 = vld [vmem:[#allocation2 + $0x78] sm:$0xff]
      %v385 = vld [vmem:[#allocation2 + $0x80] sm:$0xff]
      %v386 = vld [vmem:[#allocation2 + $0x88] sm:$0xff]
      %v387 = vld [vmem:[#allocation2 + $0x90] sm:$0xff]
      %v388 = vld [vmem:[#allocation2 + $0x98] sm:$0xff]
      %v389 = vld [vmem:[#allocation2 + $0xa0] sm:$0xff]
      %v390 = vld [vmem:[#allocation2 + $0xa8] sm:$0xff]
      %v391 = vld [vmem:[#allocation2 + $0xb0] sm:$0xff]
      %v392 = vld [vmem:[#allocation2 + $0xb8] sm:$0xff]
      %v393 = vld [vmem:[#allocation2 + $0xc0] sm:$0xff]
      %v394 = vld [vmem:[#allocation2 + $0xc8] sm:$0xff]
      %v395 = vld [vmem:[#allocation2 + $0xd0] sm:$0xff]
      %v396 = vld [vmem:[#allocation2 + $0xd8] sm:$0xff]
      %v397 = vld [vmem:[#allocation2 + $0xe0] sm:$0xff]
      %v398 = vld [vmem:[#allocation2 + $0xe8] sm:$0xff]
      %v399 = vld [vmem:[#allocation2 + $0xf0] sm:$0xff]
      %v400 = vld [vmem:[#allocation2 + $0xf8] sm:$0xff]
      %v401 = vld [vmem:[#allocation2 + $0x100] sm:$0xff]
      %v402 = vld [vmem:[#allocation2 + $0x108] sm:$0xff]
      %v403 = vld [vmem:[#allocation2 + $0x110] sm:$0xff]
      %v404 = vld [vmem:[#allocation2 + $0x118] sm:$0xff]
      %v405 = vld [vmem:[#allocation2 + $0x120] sm:$0xff]
      %v406 = vld [vmem:[#allocation2 + $0x128] sm:$0xff]
      %v407 = vld [vmem:[#allocation2 + $0x130] sm:$0xff]
      %v408 = vld [vmem:[#allocation2 + $0x138] sm:$0xff]
      %v409 = vld [vmem:[#allocation2 + $0x140] sm:$0xff]
      %v410 = vld [vmem:[#allocation2 + $0x148] sm:$0xff]
      %v411 = vld [vmem:[#allocation2 + $0x150] sm:$0xff]
      %v412 = vld [vmem:[#allocation2 + $0x158] sm:$0xff]
      %v413 = vld [vmem:[#allocation2 + $0x160] sm:$0xff]
      %v414 = vld [vmem:[#allocation2 + $0x168] sm:$0xff]
      %v415 = vld [vmem:[#allocation2 + $0x170] sm:$0xff]
      %v416 = vld [vmem:[#allocation2 + $0x178] sm:$0xff]
      %v417 = vld [vmem:[#allocation2 + $0x180] sm:$0xff]
      %v418 = vld [vmem:[#allocation2 + $0x188] sm:$0xff]
      %v419 = vld [vmem:[#allocation2 + $0x190] sm:$0xff]
      %v420 = vld [vmem:[#allocation2 + $0x198] sm:$0xff]
      %v421 = vld [vmem:[#allocation2 + $0x1a0] sm:$0xff]
      %v422 = vld [vmem:[#allocation2 + $0x1a8] sm:$0xff]
      %v423 = vld [vmem:[#allocation2 + $0x1b0] sm:$0xff]
      %v424 = vld [vmem:[#allocation2 + $0x1b8] sm:$0xff]
      %v425 = vld [vmem:[#allocation2 + $0x1c0] sm:$0xff]
      %v426 = vld [vmem:[#allocation2 + $0x1c8] sm:$0xff]
      %v427 = vld [vmem:[#allocation2 + $0x1d0] sm:$0xff]
      %v428 = vld [vmem:[#allocation2 + $0x1d8] sm:$0xff]
      %v429 = vld [vmem:[#allocation2 + $0x1e0] sm:$0xff]
      %v430 = vld [vmem:[#allocation2 + $0x1e8] sm:$0xff]
      %v431 = vld [vmem:[#allocation2 + $0x1f0] sm:$0xff]
      %v432 = vld [vmem:[#allocation2 + $0x1f8] sm:$0xff]
      %v433 = vld [vmem:[%s274] sm:$0xf]
      %v434 = vld [vmem:[%s274 + $0x4] sm:$0xf]
      %v435 = vld [vmem:[%s274 + $0x8] sm:$0xf]
      %v436 = vld [vmem:[%s274 + $0xc] sm:$0xf]
      %v437 = vld [vmem:[%s274 + $0x10] sm:$0xf]
      %v438 = vld [vmem:[%s274 + $0x14] sm:$0xf]
      %v439 = vld [vmem:[%s274 + $0x18] sm:$0xf]
      %v440 = vld [vmem:[%s274 + $0x1c] sm:$0xf]
      %v441 = vld [vmem:[%s274 + $0x20] sm:$0xf]
      %v442 = vld [vmem:[%s274 + $0x24] sm:$0xf]
      %v443 = vld [vmem:[%s274 + $0x28] sm:$0xf]
      %v444 = vld [vmem:[%s274 + $0x2c] sm:$0xf]
      %v445 = vld [vmem:[%s274 + $0x30] sm:$0xf]
      %v446 = vld [vmem:[%s274 + $0x34] sm:$0xf]
      %v447 = vld [vmem:[%s274 + $0x38] sm:$0xf]
      %v448 = vld [vmem:[%s274 + $0x3c] sm:$0xf]
      %v449 = vld [vmem:[%s274 + $0x40] sm:$0xf]
      %v450 = vld [vmem:[%s274 + $0x44] sm:$0xf]
      %v451 = vld [vmem:[%s274 + $0x48] sm:$0xf]
      %v452 = vld [vmem:[%s274 + $0x4c] sm:$0xf]
      %v453 = vld [vmem:[%s274 + $0x50] sm:$0xf]
      %v454 = vld [vmem:[%s274 + $0x54] sm:$0xf]
      %v455 = vld [vmem:[%s274 + $0x58] sm:$0xf]
      %v456 = vld [vmem:[%s274 + $0x5c] sm:$0xf]
      %v457 = vld [vmem:[%s274 + $0x60] sm:$0xf]
      %v458 = vld [vmem:[%s274 + $0x64] sm:$0xf]
      %v459 = vld [vmem:[%s274 + $0x68] sm:$0xf]
      %v460 = vld [vmem:[%s274 + $0x6c] sm:$0xf]
      %v461 = vld [vmem:[%s274 + $0x70] sm:$0xf]
      %v462 = vld [vmem:[%s274 + $0x74] sm:$0xf]
      %v463 = vld [vmem:[%s274 + $0x78] sm:$0xf]
      %v464 = vld [vmem:[%s274 + $0x7c] sm:$0xf]
      %v465 = vld [vmem:[%s274 + $0x80] sm:$0xf]
      %v466 = vld [vmem:[%s274 + $0x84] sm:$0xf]
      %v467 = vld [vmem:[%s274 + $0x88] sm:$0xf]
      %v468 = vld [vmem:[%s274 + $0x8c] sm:$0xf]
      %v469 = vld [vmem:[%s274 + $0x90] sm:$0xf]
      %v470 = vld [vmem:[%s274 + $0x94] sm:$0xf]
      %v471 = vld [vmem:[%s274 + $0x98] sm:$0xf]
      %v472 = vld [vmem:[%s274 + $0x9c] sm:$0xf]
      %v473 = vld [vmem:[%s274 + $0xa0] sm:$0xf]
      %v474 = vld [vmem:[%s274 + $0xa4] sm:$0xf]
      %v475 = vld [vmem:[%s274 + $0xa8] sm:$0xf]
      %v476 = vld [vmem:[%s274 + $0xac] sm:$0xf]
      %v477 = vld [vmem:[%s274 + $0xb0] sm:$0xf]
      %v478 = vld [vmem:[%s274 + $0xb4] sm:$0xf]
      %v479 = vld [vmem:[%s274 + $0xb8] sm:$0xf]
      %v480 = vld [vmem:[%s274 + $0xbc] sm:$0xf]
      %v481 = vld [vmem:[%s274 + $0xc0] sm:$0xf]
      %v482 = vld [vmem:[%s274 + $0xc4] sm:$0xf]
      %v483 = vld [vmem:[%s274 + $0xc8] sm:$0xf]
      %v484 = vld [vmem:[%s274 + $0xcc] sm:$0xf]
      %v485 = vld [vmem:[%s274 + $0xd0] sm:$0xf]
      %v486 = vld [vmem:[%s274 + $0xd4] sm:$0xf]
      %v487 = vld [vmem:[%s274 + $0xd8] sm:$0xf]
      %v488 = vld [vmem:[%s274 + $0xdc] sm:$0xf]
      %v489 = vld [vmem:[%s274 + $0xe0] sm:$0xf]
      %v490 = vld [vmem:[%s274 + $0xe4] sm:$0xf]
      %v491 = vld [vmem:[%s274 + $0xe8] sm:$0xf]
      %v492 = vld [vmem:[%s274 + $0xec] sm:$0xf]
      %v493 = vld [vmem:[%s274 + $0xf0] sm:$0xf]
      %v494 = vld [vmem:[%s274 + $0xf4] sm:$0xf]
      %v495 = vld [vmem:[%s274 + $0xf8] sm:$0xf]
      %v496 = vld [vmem:[%s274 + $0xfc] sm:$0xf]
      %v497 = vld [vmem:[%s283] sm:$0xf]
      %v498 = vld [vmem:[%s283 + $0x4] sm:$0xf]
      %v499 = vld [vmem:[%s283 + $0x8] sm:$0xf]
      %v500 = vld [vmem:[%s283 + $0xc] sm:$0x3]
      %v565 = vunpack.c.l.b16 %v433
      %v566 = vunpack.c.l.b16 %v434
      %v567 = vunpack.c.l.b16 %v435
      %v568 = vunpack.c.l.b16 %v436
      %v569 = vunpack.c.l.b16 %v437
      %v570 = vunpack.c.l.b16 %v438
      %v571 = vunpack.c.l.b16 %v439
      %v572 = vunpack.c.l.b16 %v440
      %v573 = vunpack.c.l.b16 %v441
      %v574 = vunpack.c.l.b16 %v442
      %v575 = vunpack.c.l.b16 %v443
      %v576 = vunpack.c.l.b16 %v444
      %v577 = vunpack.c.l.b16 %v445
      %v578 = vunpack.c.l.b16 %v446
      %v579 = vunpack.c.l.b16 %v447
      %v580 = vunpack.c.l.b16 %v448
      %v581 = vunpack.c.l.b16 %v449
      %v582 = vunpack.c.l.b16 %v450
      %v583 = vunpack.c.l.b16 %v451
      %v584 = vunpack.c.l.b16 %v452
      %v585 = vunpack.c.l.b16 %v453
      %v586 = vunpack.c.l.b16 %v454
      %v587 = vunpack.c.l.b16 %v455
      %v588 = vunpack.c.l.b16 %v456
      %v589 = vunpack.c.l.b16 %v457
      %v590 = vunpack.c.l.b16 %v458
      %v591 = vunpack.c.l.b16 %v459
      %v592 = vunpack.c.l.b16 %v460
      %v593 = vunpack.c.l.b16 %v461
      %v594 = vunpack.c.l.b16 %v462
      %v595 = vunpack.c.l.b16 %v463
      %v596 = vunpack.c.l.b16 %v464
      %v597 = vunpack.c.l.b16 %v465
      %v598 = vunpack.c.l.b16 %v466
      %v599 = vunpack.c.l.b16 %v467
      %v600 = vunpack.c.l.b16 %v468
      %v601 = vunpack.c.l.b16 %v469
      %v602 = vunpack.c.l.b16 %v470
      %v603 = vunpack.c.l.b16 %v471
      %v604 = vunpack.c.l.b16 %v472
      %v605 = vunpack.c.l.b16 %v473
      %v606 = vunpack.c.l.b16 %v474
      %v607 = vunpack.c.l.b16 %v475
      %v608 = vunpack.c.l.b16 %v476
      %v609 = vunpack.c.l.b16 %v477
      %v610 = vunpack.c.l.b16 %v478
      %v611 = vunpack.c.l.b16 %v479
      %v612 = vunpack.c.l.b16 %v480
      %v613 = vunpack.c.l.b16 %v481
      %v614 = vunpack.c.l.b16 %v482
      %v615 = vunpack.c.l.b16 %v483
      %v616 = vunpack.c.l.b16 %v484
      %v617 = vunpack.c.l.b16 %v485
      %v618 = vunpack.c.l.b16 %v486
      %v619 = vunpack.c.l.b16 %v487
      %v620 = vunpack.c.l.b16 %v488
      %v621 = vunpack.c.l.b16 %v489
      %v622 = vunpack.c.l.b16 %v490
      %v623 = vunpack.c.l.b16 %v491
      %v624 = vunpack.c.l.b16 %v492
      %v625 = vunpack.c.l.b16 %v493
      %v626 = vunpack.c.l.b16 %v494
      %v627 = vunpack.c.l.b16 %v495
      %v628 = vunpack.c.l.b16 %v496
      %v629 = vpack.c.b16 %v566, %v565
      %v630 = vpack.c.b16 %v568, %v567
      %v631 = vpack.c.b16 %v570, %v569
      %v632 = vpack.c.b16 %v572, %v571
      %v633 = vpack.c.b16 %v574, %v573
      %v634 = vpack.c.b16 %v576, %v575
      %v635 = vpack.c.b16 %v578, %v577
      %v636 = vpack.c.b16 %v580, %v579
      %v637 = vpack.c.b16 %v582, %v581
      %v638 = vpack.c.b16 %v584, %v583
      %v639 = vpack.c.b16 %v586, %v585
      %v640 = vpack.c.b16 %v588, %v587
      %v641 = vpack.c.b16 %v590, %v589
      %v642 = vpack.c.b16 %v592, %v591
      %v643 = vpack.c.b16 %v594, %v593
      %v644 = vpack.c.b16 %v596, %v595
      %v645 = vpack.c.b16 %v598, %v597
      %v646 = vpack.c.b16 %v600, %v599
      %v647 = vpack.c.b16 %v602, %v601
      %v648 = vpack.c.b16 %v604, %v603
      %v649 = vpack.c.b16 %v606, %v605
      %v650 = vpack.c.b16 %v608, %v607
      %v651 = vpack.c.b16 %v610, %v609
      %v652 = vpack.c.b16 %v612, %v611
      %v653 = vpack.c.b16 %v614, %v613
      %v654 = vpack.c.b16 %v616, %v615
      %v655 = vpack.c.b16 %v618, %v617
      %v656 = vpack.c.b16 %v620, %v619
      %v657 = vpack.c.b16 %v622, %v621
      %v658 = vpack.c.b16 %v624, %v623
      %v659 = vpack.c.b16 %v626, %v625
      %v660 = vpack.c.b16 %v628, %v627
      %v665 = vunpack.c.l.b16 %v497
      %v666 = vunpack.c.l.b16 %v498
      %v667 = vunpack.c.l.b16 %v499
      %v668 = vunpack.c.l.b16 %v500
      %v669 = vpack.c.b16 %v666, %v665
      %v670 = vpack.c.b16 %v668, %v667
      %vm672 = vcmask 220160
      %v674 = vsel %vm672, %v629, 0
      %v677 = vsel %vm672, %v630, 0
      %v680 = vsel %vm672, %v631, 0
      %v683 = vsel %vm672, %v632, 0
      %v686 = vsel %vm672, %v633, 0
      %v689 = vsel %vm672, %v634, 0
      %v692 = vsel %vm672, %v635, 0
      %v695 = vsel %vm672, %v636, 0
      %v698 = vsel %vm672, %v637, 0
      %v701 = vsel %vm672, %v638, 0
      %v704 = vsel %vm672, %v639, 0
      %v707 = vsel %vm672, %v640, 0
      %v710 = vsel %vm672, %v641, 0
      %v713 = vsel %vm672, %v642, 0
      %v716 = vsel %vm672, %v643, 0
      %v719 = vsel %vm672, %v644, 0
      %v722 = vsel %vm672, %v645, 0
      %v725 = vsel %vm672, %v646, 0
      %v728 = vsel %vm672, %v647, 0
      %v731 = vsel %vm672, %v648, 0
      %v734 = vsel %vm672, %v649, 0
      %v737 = vsel %vm672, %v650, 0
      %v740 = vsel %vm672, %v651, 0
      %v743 = vsel %vm672, %v652, 0
      %v746 = vsel %vm672, %v653, 0
      %v749 = vsel %vm672, %v654, 0
      %v752 = vsel %vm672, %v655, 0
      %v755 = vsel %vm672, %v656, 0
      %v758 = vsel %vm672, %v657, 0
      %v761 = vsel %vm672, %v658, 0
      %v764 = vsel %vm672, %v659, 0
      %v767 = vsel %vm672, %v660, 0
      %vm769 = vcmask 1044480
      %vm770 = vcmask 1045504
      %v771 = vsel %vm769, 4294967295, 65535
      %v772 = vsel %vm770, %v771, 0
      %v774 = vand.u32 %v670, %v772
      %776 = vmatpush.bf16.msra.mxu0 0
      %777 = vmatpush.bf16.msra.mxu0 0
      %778 = vmatpush.bf16.msra.mxu0 0
      %779 = vmatpush.bf16.msra.mxu0 0
      %780 = vmatpush.bf16.msra.mxu0 0
      %781 = vmatpush.bf16.msra.mxu0 0
      %782 = vmatpush.bf16.msra.mxu0 %v774
      %783 = vmatpush.bf16.msra.mxu0 %v669
      %784 = vmatmul.bf16.gmra.mxu0 %v674
      %v785 = vpop.f32.mrf.mxu0
      %v786 = vadd.f32 0.0, %v785
      %v787 = vpop.f32.mrf.mxu0
      %v788 = vadd.f32 0.0, %v787
      %789 = vmatmul.bf16.gmra.mxu0 %v677
      %v790 = vpop.f32.mrf.mxu0
      %v791 = vadd.f32 0.0, %v790
      %v792 = vpop.f32.mrf.mxu0
      %v793 = vadd.f32 0.0, %v792
      %794 = vmatmul.bf16.gmra.mxu0 %v680
      %v795 = vpop.f32.mrf.mxu0
      %v796 = vadd.f32 0.0, %v795
      %v797 = vpop.f32.mrf.mxu0
      %v798 = vadd.f32 0.0, %v797
      %799 = vmatmul.bf16.gmra.mxu0 %v683
      %v800 = vpop.f32.mrf.mxu0
      %v801 = vadd.f32 0.0, %v800
      %v802 = vpop.f32.mrf.mxu0
      %v803 = vadd.f32 0.0, %v802
      %804 = vmatmul.bf16.gmra.mxu0 %v686
      %v805 = vpop.f32.mrf.mxu0
      %v806 = vadd.f32 0.0, %v805
      %v807 = vpop.f32.mrf.mxu0
      %v808 = vadd.f32 0.0, %v807
      %809 = vmatmul.bf16.gmra.mxu0 %v689
      %v810 = vpop.f32.mrf.mxu0
      %v811 = vadd.f32 0.0, %v810
      %v812 = vpop.f32.mrf.mxu0
      %v813 = vadd.f32 0.0, %v812
      %814 = vmatmul.bf16.gmra.mxu0 %v692
      %v815 = vpop.f32.mrf.mxu0
      %v816 = vadd.f32 0.0, %v815
      %v817 = vpop.f32.mrf.mxu0
      %v818 = vadd.f32 0.0, %v817
      %819 = vmatmul.bf16.gmra.mxu0 %v695
      %v820 = vpop.f32.mrf.mxu0
      %v821 = vadd.f32 0.0, %v820
      %v822 = vpop.f32.mrf.mxu0
      %v823 = vadd.f32 0.0, %v822
      %824 = vmatmul.bf16.gmra.mxu0 %v698
      %v825 = vpop.f32.mrf.mxu0
      %v826 = vadd.f32 0.0, %v825
      %v827 = vpop.f32.mrf.mxu0
      %v828 = vadd.f32 0.0, %v827
      %829 = vmatmul.bf16.gmra.mxu0 %v701
      %v830 = vpop.f32.mrf.mxu0
      %v831 = vadd.f32 0.0, %v830
      %v832 = vpop.f32.mrf.mxu0
      %v833 = vadd.f32 0.0, %v832
      %834 = vmatmul.bf16.gmra.mxu0 %v704
      %v835 = vpop.f32.mrf.mxu0
      %v836 = vadd.f32 0.0, %v835
      %v837 = vpop.f32.mrf.mxu0
      %v838 = vadd.f32 0.0, %v837
      %839 = vmatmul.bf16.gmra.mxu0 %v707
      %v840 = vpop.f32.mrf.mxu0
      %v841 = vadd.f32 0.0, %v840
      %v842 = vpop.f32.mrf.mxu0
      %v843 = vadd.f32 0.0, %v842
      %844 = vmatmul.bf16.gmra.mxu0 %v710
      %v845 = vpop.f32.mrf.mxu0
      %v846 = vadd.f32 0.0, %v845
      %v847 = vpop.f32.mrf.mxu0
      %v848 = vadd.f32 0.0, %v847
      %849 = vmatmul.bf16.gmra.mxu0 %v713
      %v850 = vpop.f32.mrf.mxu0
      %v851 = vadd.f32 0.0, %v850
      %v852 = vpop.f32.mrf.mxu0
      %v853 = vadd.f32 0.0, %v852
      %854 = vmatmul.bf16.gmra.mxu0 %v716
      %v855 = vpop.f32.mrf.mxu0
      %v856 = vadd.f32 0.0, %v855
      %v857 = vpop.f32.mrf.mxu0
      %v858 = vadd.f32 0.0, %v857
      %859 = vmatmul.bf16.gmra.mxu0 %v719
      %v860 = vpop.f32.mrf.mxu0
      %v861 = vadd.f32 0.0, %v860
      %v862 = vpop.f32.mrf.mxu0
      %v863 = vadd.f32 0.0, %v862
      %864 = vmatmul.bf16.gmra.mxu0 %v722
      %v865 = vpop.f32.mrf.mxu0
      %v866 = vadd.f32 0.0, %v865
      %v867 = vpop.f32.mrf.mxu0
      %v868 = vadd.f32 0.0, %v867
      %869 = vmatmul.bf16.gmra.mxu0 %v725
      %v870 = vpop.f32.mrf.mxu0
      %v871 = vadd.f32 0.0, %v870
      %v872 = vpop.f32.mrf.mxu0
      %v873 = vadd.f32 0.0, %v872
      %874 = vmatmul.bf16.gmra.mxu0 %v728
      %v875 = vpop.f32.mrf.mxu0
      %v876 = vadd.f32 0.0, %v875
      %v877 = vpop.f32.mrf.mxu0
      %v878 = vadd.f32 0.0, %v877
      %879 = vmatmul.bf16.gmra.mxu0 %v731
      %v880 = vpop.f32.mrf.mxu0
      %v881 = vadd.f32 0.0, %v880
      %v882 = vpop.f32.mrf.mxu0
      %v883 = vadd.f32 0.0, %v882
      %884 = vmatmul.bf16.gmra.mxu0 %v734
      %v885 = vpop.f32.mrf.mxu0
      %v886 = vadd.f32 0.0, %v885
      %v887 = vpop.f32.mrf.mxu0
      %v888 = vadd.f32 0.0, %v887
      %889 = vmatmul.bf16.gmra.mxu0 %v737
      %v890 = vpop.f32.mrf.mxu0
      %v891 = vadd.f32 0.0, %v890
      %v892 = vpop.f32.mrf.mxu0
      %v893 = vadd.f32 0.0, %v892
      %894 = vmatmul.bf16.gmra.mxu0 %v740
      %v895 = vpop.f32.mrf.mxu0
      %v896 = vadd.f32 0.0, %v895
      %v897 = vpop.f32.mrf.mxu0
      %v898 = vadd.f32 0.0, %v897
      %899 = vmatmul.bf16.gmra.mxu0 %v743
      %v900 = vpop.f32.mrf.mxu0
      %v901 = vadd.f32 0.0, %v900
      %v902 = vpop.f32.mrf.mxu0
      %v903 = vadd.f32 0.0, %v902
      %904 = vmatmul.bf16.gmra.mxu0 %v746
      %v905 = vpop.f32.mrf.mxu0
      %v906 = vadd.f32 0.0, %v905
      %v907 = vpop.f32.mrf.mxu0
      %v908 = vadd.f32 0.0, %v907
      %909 = vmatmul.bf16.gmra.mxu0 %v749
      %v910 = vpop.f32.mrf.mxu0
      %v911 = vadd.f32 0.0, %v910
      %v912 = vpop.f32.mrf.mxu0
      %v913 = vadd.f32 0.0, %v912
      %914 = vmatmul.bf16.gmra.mxu0 %v752
      %v915 = vpop.f32.mrf.mxu0
      %v916 = vadd.f32 0.0, %v915
      %v917 = vpop.f32.mrf.mxu0
      %v918 = vadd.f32 0.0, %v917
      %919 = vmatmul.bf16.gmra.mxu0 %v755
      %v920 = vpop.f32.mrf.mxu0
      %v921 = vadd.f32 0.0, %v920
      %v922 = vpop.f32.mrf.mxu0
      %v923 = vadd.f32 0.0, %v922
      %924 = vmatmul.bf16.gmra.mxu0 %v758
      %v925 = vpop.f32.mrf.mxu0
      %v926 = vadd.f32 0.0, %v925
      %v927 = vpop.f32.mrf.mxu0
      %v928 = vadd.f32 0.0, %v927
      %929 = vmatmul.bf16.gmra.mxu0 %v761
      %v930 = vpop.f32.mrf.mxu0
      %v931 = vadd.f32 0.0, %v930
      %v932 = vpop.f32.mrf.mxu0
      %v933 = vadd.f32 0.0, %v932
      %934 = vmatmul.bf16.gmra.mxu0 %v764
      %v935 = vpop.f32.mrf.mxu0
      %v936 = vadd.f32 0.0, %v935
      %v937 = vpop.f32.mrf.mxu0
      %v938 = vadd.f32 0.0, %v937
      %939 = vmatmul.bf16.gmra.mxu0 %v767
      %v940 = vpop.f32.mrf.mxu0
      %v941 = vadd.f32 0.0, %v940
      %v942 = vpop.f32.mrf.mxu0
      %v943 = vadd.f32 0.0, %v942
      %944 = vdwg.mxu0
      %v945 = vadd.f32 %v369, %v786
      %v946 = vadd.f32 %v370, %v788
      %v947 = vadd.f32 %v371, %v791
      %v948 = vadd.f32 %v372, %v793
      %v949 = vadd.f32 %v373, %v796
      %v950 = vadd.f32 %v374, %v798
      %v951 = vadd.f32 %v375, %v801
      %v952 = vadd.f32 %v376, %v803
      %v953 = vadd.f32 %v377, %v806
      %v954 = vadd.f32 %v378, %v808
      %v955 = vadd.f32 %v379, %v811
      %v956 = vadd.f32 %v380, %v813
      %v957 = vadd.f32 %v381, %v816
      %v958 = vadd.f32 %v382, %v818
      %v959 = vadd.f32 %v383, %v821
      %v960 = vadd.f32 %v384, %v823
      %v961 = vadd.f32 %v385, %v826
      %v962 = vadd.f32 %v386, %v828
      %v963 = vadd.f32 %v387, %v831
      %v964 = vadd.f32 %v388, %v833
      %v965 = vadd.f32 %v389, %v836
      %v966 = vadd.f32 %v390, %v838
      %v967 = vadd.f32 %v391, %v841
      %v968 = vadd.f32 %v392, %v843
      %v969 = vadd.f32 %v393, %v846
      %v970 = vadd.f32 %v394, %v848
      %v971 = vadd.f32 %v395, %v851
      %v972 = vadd.f32 %v396, %v853
      %v973 = vadd.f32 %v397, %v856
      %v974 = vadd.f32 %v398, %v858
      %v975 = vadd.f32 %v399, %v861
      %v976 = vadd.f32 %v400, %v863
      %v977 = vadd.f32 %v401, %v866
      %v978 = vadd.f32 %v402, %v868
      %v979 = vadd.f32 %v403, %v871
      %v980 = vadd.f32 %v404, %v873
      %v981 = vadd.f32 %v405, %v876
      %v982 = vadd.f32 %v406, %v878
      %v983 = vadd.f32 %v407, %v881
      %v984 = vadd.f32 %v408, %v883
      %v985 = vadd.f32 %v409, %v886
      %v986 = vadd.f32 %v410, %v888
      %v987 = vadd.f32 %v411, %v891
      %v988 = vadd.f32 %v412, %v893
      %v989 = vadd.f32 %v413, %v896
      %v990 = vadd.f32 %v414, %v898
      %v991 = vadd.f32 %v415, %v901
      %v992 = vadd.f32 %v416, %v903
      %v993 = vadd.f32 %v417, %v906
      %v994 = vadd.f32 %v418, %v908
      %v995 = vadd.f32 %v419, %v911
      %v996 = vadd.f32 %v420, %v913
      %v997 = vadd.f32 %v421, %v916
      %v998 = vadd.f32 %v422, %v918
      %v999 = vadd.f32 %v423, %v921
      %v1000 = vadd.f32 %v424, %v923
      %v1001 = vadd.f32 %v425, %v926
      %v1002 = vadd.f32 %v426, %v928
      %v1003 = vadd.f32 %v427, %v931
      %v1004 = vadd.f32 %v428, %v933
      %v1005 = vadd.f32 %v429, %v936
      %v1006 = vadd.f32 %v430, %v938
      %v1007 = vadd.f32 %v431, %v941
      %v1008 = vadd.f32 %v432, %v943
      %1009 = vst [vmem:[#allocation2] sm:$0xff] %v945
      %1010 = vst [vmem:[#allocation2 + $0x8] sm:$0xff] %v946
      %1011 = vst [vmem:[#allocation2 + $0x10] sm:$0xff] %v947
      %1012 = vst [vmem:[#allocation2 + $0x18] sm:$0xff] %v948
      %1013 = vst [vmem:[#allocation2 + $0x20] sm:$0xff] %v949
      %1014 = vst [vmem:[#allocation2 + $0x28] sm:$0xff] %v950
      %1015 = vst [vmem:[#allocation2 + $0x30] sm:$0xff] %v951
      %1016 = vst [vmem:[#allocation2 + $0x38] sm:$0xff] %v952
      %1017 = vst [vmem:[#allocation2 + $0x40] sm:$0xff] %v953
      %1018 = vst [vmem:[#allocation2 + $0x48] sm:$0xff] %v954
      %1019 = vst [vmem:[#allocation2 + $0x50] sm:$0xff] %v955
      %1020 = vst [vmem:[#allocation2 + $0x58] sm:$0xff] %v956
      %1021 = vst [vmem:[#allocation2 + $0x60] sm:$0xff] %v957
      %1022 = vst [vmem:[#allocation2 + $0x68] sm:$0xff] %v958
      %1023 = vst [vmem:[#allocation2 + $0x70] sm:$0xff] %v959
      %1024 = vst [vmem:[#allocation2 + $0x78] sm:$0xff] %v960
      %1025 = vst [vmem:[#allocation2 + $0x80] sm:$0xff] %v961
      %1026 = vst [vmem:[#allocation2 + $0x88] sm:$0xff] %v962
      %1027 = vst [vmem:[#allocation2 + $0x90] sm:$0xff] %v963
      %1028 = vst [vmem:[#allocation2 + $0x98] sm:$0xff] %v964
      %1029 = vst [vmem:[#allocation2 + $0xa0] sm:$0xff] %v965
      %1030 = vst [vmem:[#allocation2 + $0xa8] sm:$0xff] %v966
      %1031 = vst [vmem:[#allocation2 + $0xb0] sm:$0xff] %v967
      %1032 = vst [vmem:[#allocation2 + $0xb8] sm:$0xff] %v968
      %1033 = vst [vmem:[#allocation2 + $0xc0] sm:$0xff] %v969
      %1034 = vst [vmem:[#allocation2 + $0xc8] sm:$0xff] %v970
      %1035 = vst [vmem:[#allocation2 + $0xd0] sm:$0xff] %v971
      %1036 = vst [vmem:[#allocation2 + $0xd8] sm:$0xff] %v972
      %1037 = vst [vmem:[#allocation2 + $0xe0] sm:$0xff] %v973
      %1038 = vst [vmem:[#allocation2 + $0xe8] sm:$0xff] %v974
      %1039 = vst [vmem:[#allocation2 + $0xf0] sm:$0xff] %v975
      %1040 = vst [vmem:[#allocation2 + $0xf8] sm:$0xff] %v976
      %1041 = vst [vmem:[#allocation2 + $0x100] sm:$0xff] %v977
      %1042 = vst [vmem:[#allocation2 + $0x108] sm:$0xff] %v978
      %1043 = vst [vmem:[#allocation2 + $0x110] sm:$0xff] %v979
      %1044 = vst [vmem:[#allocation2 + $0x118] sm:$0xff] %v980
      %1045 = vst [vmem:[#allocation2 + $0x120] sm:$0xff] %v981
      %1046 = vst [vmem:[#allocation2 + $0x128] sm:$0xff] %v982
      %1047 = vst [vmem:[#allocation2 + $0x130] sm:$0xff] %v983
      %1048 = vst [vmem:[#allocation2 + $0x138] sm:$0xff] %v984
      %1049 = vst [vmem:[#allocation2 + $0x140] sm:$0xff] %v985
      %1050 = vst [vmem:[#allocation2 + $0x148] sm:$0xff] %v986
      %1051 = vst [vmem:[#allocation2 + $0x150] sm:$0xff] %v987
      %1052 = vst [vmem:[#allocation2 + $0x158] sm:$0xff] %v988
      %1053 = vst [vmem:[#allocation2 + $0x160] sm:$0xff] %v989
      %1054 = vst [vmem:[#allocation2 + $0x168] sm:$0xff] %v990
      %1055 = vst [vmem:[#allocation2 + $0x170] sm:$0xff] %v991
      %1056 = vst [vmem:[#allocation2 + $0x178] sm:$0xff] %v992
      %1057 = vst [vmem:[#allocation2 + $0x180] sm:$0xff] %v993
      %1058 = vst [vmem:[#allocation2 + $0x188] sm:$0xff] %v994
      %1059 = vst [vmem:[#allocation2 + $0x190] sm:$0xff] %v995
      %1060 = vst [vmem:[#allocation2 + $0x198] sm:$0xff] %v996
      %1061 = vst [vmem:[#allocation2 + $0x1a0] sm:$0xff] %v997
      %1062 = vst [vmem:[#allocation2 + $0x1a8] sm:$0xff] %v998
      %1063 = vst [vmem:[#allocation2 + $0x1b0] sm:$0xff] %v999
      %1064 = vst [vmem:[#allocation2 + $0x1b8] sm:$0xff] %v1000
      %1065 = vst [vmem:[#allocation2 + $0x1c0] sm:$0xff] %v1001
      %1066 = vst [vmem:[#allocation2 + $0x1c8] sm:$0xff] %v1002
      %1067 = vst [vmem:[#allocation2 + $0x1d0] sm:$0xff] %v1003
      %1068 = vst [vmem:[#allocation2 + $0x1d8] sm:$0xff] %v1004
      %1069 = vst [vmem:[#allocation2 + $0x1e0] sm:$0xff] %v1005
      %1070 = vst [vmem:[#allocation2 + $0x1e8] sm:$0xff] %v1006
      %1071 = vst [vmem:[#allocation2 + $0x1f0] sm:$0xff] %v1007
      %1072 = vst [vmem:[#allocation2 + $0x1f8] sm:$0xff] %v1008
      // Predicated region
      $region41: #{_lambda_.42} parent=35 // pred_check
        %p1073 = pneg %p301
      $region42: #{_lambda_.42} parent=35 // pred_check_branch
        %1075 = sbr.rel (%p1073) target = $region44
      $region43: #{_lambda_.42} parent=35 // pred_region
        %v1076 = vld [vmem:[#allocation2] sm:$0xff]
        %v1077 = vld [vmem:[#allocation2 + $0x8] sm:$0xff]
        %v1078 = vld [vmem:[#allocation2 + $0x10] sm:$0xff]
        %v1079 = vld [vmem:[#allocation2 + $0x18] sm:$0xff]
        %v1080 = vld [vmem:[#allocation2 + $0x20] sm:$0xff]
        %v1081 = vld [vmem:[#allocation2 + $0x28] sm:$0xff]
        %v1082 = vld [vmem:[#allocation2 + $0x30] sm:$0xff]
        %v1083 = vld [vmem:[#allocation2 + $0x38] sm:$0xff]
        %v1084 = vld [vmem:[#allocation2 + $0x40] sm:$0xff]
        %v1085 = vld [vmem:[#allocation2 + $0x48] sm:$0xff]
        %v1086 = vld [vmem:[#allocation2 + $0x50] sm:$0xff]
        %v1087 = vld [vmem:[#allocation2 + $0x58] sm:$0xff]
        %v1088 = vld [vmem:[#allocation2 + $0x60] sm:$0xff]
        %v1089 = vld [vmem:[#allocation2 + $0x68] sm:$0xff]
        %v1090 = vld [vmem:[#allocation2 + $0x70] sm:$0xff]
        %v1091 = vld [vmem:[#allocation2 + $0x78] sm:$0xff]
        %v1092 = vld [vmem:[#allocation2 + $0x80] sm:$0xff]
        %v1093 = vld [vmem:[#allocation2 + $0x88] sm:$0xff]
        %v1094 = vld [vmem:[#allocation2 + $0x90] sm:$0xff]
        %v1095 = vld [vmem:[#allocation2 + $0x98] sm:$0xff]
        %v1096 = vld [vmem:[#allocation2 + $0xa0] sm:$0xff]
        %v1097 = vld [vmem:[#allocation2 + $0xa8] sm:$0xff]
        %v1098 = vld [vmem:[#allocation2 + $0xb0] sm:$0xff]
        %v1099 = vld [vmem:[#allocation2 + $0xb8] sm:$0xff]
        %v1100 = vld [vmem:[#allocation2 + $0xc0] sm:$0xff]
        %v1101 = vld [vmem:[#allocation2 + $0xc8] sm:$0xff]
        %v1102 = vld [vmem:[#allocation2 + $0xd0] sm:$0xff]
        %v1103 = vld [vmem:[#allocation2 + $0xd8] sm:$0xff]
        %v1104 = vld [vmem:[#allocation2 + $0xe0] sm:$0xff]
        %v1105 = vld [vmem:[#allocation2 + $0xe8] sm:$0xff]
        %v1106 = vld [vmem:[#allocation2 + $0xf0] sm:$0xff]
        %v1107 = vld [vmem:[#allocation2 + $0xf8] sm:$0xff]
        %v1108 = vld [vmem:[#allocation2 + $0x100] sm:$0xff]
        %v1109 = vld [vmem:[#allocation2 + $0x108] sm:$0xff]
        %v1110 = vld [vmem:[#allocation2 + $0x110] sm:$0xff]
        %v1111 = vld [vmem:[#allocation2 + $0x118] sm:$0xff]
        %v1112 = vld [vmem:[#allocation2 + $0x120] sm:$0xff]
        %v1113 = vld [vmem:[#allocation2 + $0x128] sm:$0xff]
        %v1114 = vld [vmem:[#allocation2 + $0x130] sm:$0xff]
        %v1115 = vld [vmem:[#allocation2 + $0x138] sm:$0xff]
        %v1116 = vld [vmem:[#allocation2 + $0x140] sm:$0xff]
        %v1117 = vld [vmem:[#allocation2 + $0x148] sm:$0xff]
        %v1118 = vld [vmem:[#allocation2 + $0x150] sm:$0xff]
        %v1119 = vld [vmem:[#allocation2 + $0x158] sm:$0xff]
        %v1120 = vld [vmem:[#allocation2 + $0x160] sm:$0xff]
        %v1121 = vld [vmem:[#allocation2 + $0x168] sm:$0xff]
        %v1122 = vld [vmem:[#allocation2 + $0x170] sm:$0xff]
        %v1123 = vld [vmem:[#allocation2 + $0x178] sm:$0xff]
        %v1124 = vld [vmem:[#allocation2 + $0x180] sm:$0xff]
        %v1125 = vld [vmem:[#allocation2 + $0x188] sm:$0xff]
        %v1126 = vld [vmem:[#allocation2 + $0x190] sm:$0xff]
        %v1127 = vld [vmem:[#allocation2 + $0x198] sm:$0xff]
        %v1128 = vld [vmem:[#allocation2 + $0x1a0] sm:$0xff]
        %v1129 = vld [vmem:[#allocation2 + $0x1a8] sm:$0xff]
        %v1130 = vld [vmem:[#allocation2 + $0x1b0] sm:$0xff]
        %v1131 = vld [vmem:[#allocation2 + $0x1b8] sm:$0xff]
        %v1132 = vld [vmem:[#allocation2 + $0x1c0] sm:$0xff]
        %v1133 = vld [vmem:[#allocation2 + $0x1c8] sm:$0xff]
        %v1134 = vld [vmem:[#allocation2 + $0x1d0] sm:$0xff]
        %v1135 = vld [vmem:[#allocation2 + $0x1d8] sm:$0xff]
        %v1136 = vld [vmem:[#allocation2 + $0x1e0] sm:$0xff]
        %v1137 = vld [vmem:[#allocation2 + $0x1e8] sm:$0xff]
        %v1138 = vld [vmem:[#allocation2 + $0x1f0] sm:$0xff]
        %v1139 = vld [vmem:[#allocation2 + $0x1f8] sm:$0xff]
        %v1140 = vld [vmem:[%s287] sm:$0x1]
        %v1142 = vperm.slane %v1140, 0
        %v1144 = vmul.f32 %v1076, %v1142
        %v1145 = vmul.f32 %v1077, %v1142
        %v1146 = vmul.f32 %v1078, %v1142
        %v1147 = vmul.f32 %v1079, %v1142
        %v1148 = vmul.f32 %v1080, %v1142
        %v1149 = vmul.f32 %v1081, %v1142
        %v1150 = vmul.f32 %v1082, %v1142
        %v1151 = vmul.f32 %v1083, %v1142
        %v1152 = vmul.f32 %v1084, %v1142
        %v1153 = vmul.f32 %v1085, %v1142
        %v1154 = vmul.f32 %v1086, %v1142
        %v1155 = vmul.f32 %v1087, %v1142
        %v1156 = vmul.f32 %v1088, %v1142
        %v1157 = vmul.f32 %v1089, %v1142
        %v1158 = vmul.f32 %v1090, %v1142
        %v1159 = vmul.f32 %v1091, %v1142
        %v1160 = vmul.f32 %v1092, %v1142
        %v1161 = vmul.f32 %v1093, %v1142
        %v1162 = vmul.f32 %v1094, %v1142
        %v1163 = vmul.f32 %v1095, %v1142
        %v1164 = vmul.f32 %v1096, %v1142
        %v1165 = vmul.f32 %v1097, %v1142
        %v1166 = vmul.f32 %v1098, %v1142
        %v1167 = vmul.f32 %v1099, %v1142
        %v1168 = vmul.f32 %v1100, %v1142
        %v1169 = vmul.f32 %v1101, %v1142
        %v1170 = vmul.f32 %v1102, %v1142
        %v1171 = vmul.f32 %v1103, %v1142
        %v1172 = vmul.f32 %v1104, %v1142
        %v1173 = vmul.f32 %v1105, %v1142
        %v1174 = vmul.f32 %v1106, %v1142
        %v1175 = vmul.f32 %v1107, %v1142
        %v1176 = vmul.f32 %v1108, %v1142
        %v1177 = vmul.f32 %v1109, %v1142
        %v1178 = vmul.f32 %v1110, %v1142
        %v1179 = vmul.f32 %v1111, %v1142
        %v1180 = vmul.f32 %v1112, %v1142
        %v1181 = vmul.f32 %v1113, %v1142
        %v1182 = vmul.f32 %v1114, %v1142
        %v1183 = vmul.f32 %v1115, %v1142
        %v1184 = vmul.f32 %v1116, %v1142
        %v1185 = vmul.f32 %v1117, %v1142
        %v1186 = vmul.f32 %v1118, %v1142
        %v1187 = vmul.f32 %v1119, %v1142
        %v1188 = vmul.f32 %v1120, %v1142
        %v1189 = vmul.f32 %v1121, %v1142
        %v1190 = vmul.f32 %v1122, %v1142
        %v1191 = vmul.f32 %v1123, %v1142
        %v1192 = vmul.f32 %v1124, %v1142
        %v1193 = vmul.f32 %v1125, %v1142
        %v1194 = vmul.f32 %v1126, %v1142
        %v1195 = vmul.f32 %v1127, %v1142
        %v1196 = vmul.f32 %v1128, %v1142
        %v1197 = vmul.f32 %v1129, %v1142
        %v1198 = vmul.f32 %v1130, %v1142
        %v1199 = vmul.f32 %v1131, %v1142
        %v1200 = vmul.f32 %v1132, %v1142
        %v1201 = vmul.f32 %v1133, %v1142
        %v1202 = vmul.f32 %v1134, %v1142
        %v1203 = vmul.f32 %v1135, %v1142
        %v1204 = vmul.f32 %v1136, %v1142
        %v1205 = vmul.f32 %v1137, %v1142
        %v1206 = vmul.f32 %v1138, %v1142
        %v1207 = vmul.f32 %v1139, %v1142
        %v1208 = vld [vmem:[%s290] sm:$0x1]
        %v1210 = vperm.slane %v1208, 0
        %v1212 = vadd.f32 %v1144, %v1210
        %v1213 = vadd.f32 %v1145, %v1210
        %v1214 = vadd.f32 %v1146, %v1210
        %v1215 = vadd.f32 %v1147, %v1210
        %v1216 = vadd.f32 %v1148, %v1210
        %v1217 = vadd.f32 %v1149, %v1210
        %v1218 = vadd.f32 %v1150, %v1210
        %v1219 = vadd.f32 %v1151, %v1210
        %v1220 = vadd.f32 %v1152, %v1210
        %v1221 = vadd.f32 %v1153, %v1210
        %v1222 = vadd.f32 %v1154, %v1210
        %v1223 = vadd.f32 %v1155, %v1210
        %v1224 = vadd.f32 %v1156, %v1210
        %v1225 = vadd.f32 %v1157, %v1210
        %v1226 = vadd.f32 %v1158, %v1210
        %v1227 = vadd.f32 %v1159, %v1210
        %v1228 = vadd.f32 %v1160, %v1210
        %v1229 = vadd.f32 %v1161, %v1210
        %v1230 = vadd.f32 %v1162, %v1210
        %v1231 = vadd.f32 %v1163, %v1210
        %v1232 = vadd.f32 %v1164, %v1210
        %v1233 = vadd.f32 %v1165, %v1210
        %v1234 = vadd.f32 %v1166, %v1210
        %v1235 = vadd.f32 %v1167, %v1210
        %v1236 = vadd.f32 %v1168, %v1210
        %v1237 = vadd.f32 %v1169, %v1210
        %v1238 = vadd.f32 %v1170, %v1210
        %v1239 = vadd.f32 %v1171, %v1210
        %v1240 = vadd.f32 %v1172, %v1210
        %v1241 = vadd.f32 %v1173, %v1210
        %v1242 = vadd.f32 %v1174, %v1210
        %v1243 = vadd.f32 %v1175, %v1210
        %v1244 = vadd.f32 %v1176, %v1210
        %v1245 = vadd.f32 %v1177, %v1210
        %v1246 = vadd.f32 %v1178, %v1210
        %v1247 = vadd.f32 %v1179, %v1210
        %v1248 = vadd.f32 %v1180, %v1210
        %v1249 = vadd.f32 %v1181, %v1210
        %v1250 = vadd.f32 %v1182, %v1210
        %v1251 = vadd.f32 %v1183, %v1210
        %v1252 = vadd.f32 %v1184, %v1210
        %v1253 = vadd.f32 %v1185, %v1210
        %v1254 = vadd.f32 %v1186, %v1210
        %v1255 = vadd.f32 %v1187, %v1210
        %v1256 = vadd.f32 %v1188, %v1210
        %v1257 = vadd.f32 %v1189, %v1210
        %v1258 = vadd.f32 %v1190, %v1210
        %v1259 = vadd.f32 %v1191, %v1210
        %v1260 = vadd.f32 %v1192, %v1210
        %v1261 = vadd.f32 %v1193, %v1210
        %v1262 = vadd.f32 %v1194, %v1210
        %v1263 = vadd.f32 %v1195, %v1210
        %v1264 = vadd.f32 %v1196, %v1210
        %v1265 = vadd.f32 %v1197, %v1210
        %v1266 = vadd.f32 %v1198, %v1210
        %v1267 = vadd.f32 %v1199, %v1210
        %v1268 = vadd.f32 %v1200, %v1210
        %v1269 = vadd.f32 %v1201, %v1210
        %v1270 = vadd.f32 %v1202, %v1210
        %v1271 = vadd.f32 %v1203, %v1210
        %v1272 = vadd.f32 %v1204, %v1210
        %v1273 = vadd.f32 %v1205, %v1210
        %v1274 = vadd.f32 %v1206, %v1210
        %v1275 = vadd.f32 %v1207, %v1210
        %1276 = vst [vmem:[%s298] sm:$0xff] %v1212
        %1277 = vst [vmem:[%s298 + $0x8] sm:$0xff] %v1213
        %1278 = vst [vmem:[%s298 + $0x10] sm:$0xff] %v1214
        %1279 = vst [vmem:[%s298 + $0x18] sm:$0xff] %v1215
        %1280 = vst [vmem:[%s298 + $0x20] sm:$0xff] %v1216
        %1281 = vst [vmem:[%s298 + $0x28] sm:$0xff] %v1217
        %1282 = vst [vmem:[%s298 + $0x30] sm:$0xff] %v1218
        %1283 = vst [vmem:[%s298 + $0x38] sm:$0xff] %v1219
        %1284 = vst [vmem:[%s298 + $0x40] sm:$0xff] %v1220
        %1285 = vst [vmem:[%s298 + $0x48] sm:$0xff] %v1221
        %1286 = vst [vmem:[%s298 + $0x50] sm:$0xff] %v1222
        %1287 = vst [vmem:[%s298 + $0x58] sm:$0xff] %v1223
        %1288 = vst [vmem:[%s298 + $0x60] sm:$0xff] %v1224
        %1289 = vst [vmem:[%s298 + $0x68] sm:$0xff] %v1225
        %1290 = vst [vmem:[%s298 + $0x70] sm:$0xff] %v1226
        %1291 = vst [vmem:[%s298 + $0x78] sm:$0xff] %v1227
        %1292 = vst [vmem:[%s298 + $0x80] sm:$0xff] %v1228
        %1293 = vst [vmem:[%s298 + $0x88] sm:$0xff] %v1229
        %1294 = vst [vmem:[%s298 + $0x90] sm:$0xff] %v1230
        %1295 = vst [vmem:[%s298 + $0x98] sm:$0xff] %v1231
        %1296 = vst [vmem:[%s298 + $0xa0] sm:$0xff] %v1232
        %1297 = vst [vmem:[%s298 + $0xa8] sm:$0xff] %v1233
        %1298 = vst [vmem:[%s298 + $0xb0] sm:$0xff] %v1234
        %1299 = vst [vmem:[%s298 + $0xb8] sm:$0xff] %v1235
        %1300 = vst [vmem:[%s298 + $0xc0] sm:$0xff] %v1236
        %1301 = vst [vmem:[%s298 + $0xc8] sm:$0xff] %v1237
        %1302 = vst [vmem:[%s298 + $0xd0] sm:$0xff] %v1238
        %1303 = vst [vmem:[%s298 + $0xd8] sm:$0xff] %v1239
        %1304 = vst [vmem:[%s298 + $0xe0] sm:$0xff] %v1240
        %1305 = vst [vmem:[%s298 + $0xe8] sm:$0xff] %v1241
        %1306 = vst [vmem:[%s298 + $0xf0] sm:$0xff] %v1242
        %1307 = vst [vmem:[%s298 + $0xf8] sm:$0xff] %v1243
        %1308 = vst [vmem:[%s298 + $0x100] sm:$0xff] %v1244
        %1309 = vst [vmem:[%s298 + $0x108] sm:$0xff] %v1245
        %1310 = vst [vmem:[%s298 + $0x110] sm:$0xff] %v1246
        %1311 = vst [vmem:[%s298 + $0x118] sm:$0xff] %v1247
        %1312 = vst [vmem:[%s298 + $0x120] sm:$0xff] %v1248
        %1313 = vst [vmem:[%s298 + $0x128] sm:$0xff] %v1249
        %1314 = vst [vmem:[%s298 + $0x130] sm:$0xff] %v1250
        %1315 = vst [vmem:[%s298 + $0x138] sm:$0xff] %v1251
        %1316 = vst [vmem:[%s298 + $0x140] sm:$0xff] %v1252
        %1317 = vst [vmem:[%s298 + $0x148] sm:$0xff] %v1253
        %1318 = vst [vmem:[%s298 + $0x150] sm:$0xff] %v1254
        %1319 = vst [vmem:[%s298 + $0x158] sm:$0xff] %v1255
        %1320 = vst [vmem:[%s298 + $0x160] sm:$0xff] %v1256
        %1321 = vst [vmem:[%s298 + $0x168] sm:$0xff] %v1257
        %1322 = vst [vmem:[%s298 + $0x170] sm:$0xff] %v1258
        %1323 = vst [vmem:[%s298 + $0x178] sm:$0xff] %v1259
        %1324 = vst [vmem:[%s298 + $0x180] sm:$0xff] %v1260
        %1325 = vst [vmem:[%s298 + $0x188] sm:$0xff] %v1261
        %1326 = vst [vmem:[%s298 + $0x190] sm:$0xff] %v1262
        %1327 = vst [vmem:[%s298 + $0x198] sm:$0xff] %v1263
        %1328 = vst [vmem:[%s298 + $0x1a0] sm:$0xff] %v1264
        %1329 = vst [vmem:[%s298 + $0x1a8] sm:$0xff] %v1265
        %1330 = vst [vmem:[%s298 + $0x1b0] sm:$0xff] %v1266
        %1331 = vst [vmem:[%s298 + $0x1b8] sm:$0xff] %v1267
        %1332 = vst [vmem:[%s298 + $0x1c0] sm:$0xff] %v1268
        %1333 = vst [vmem:[%s298 + $0x1c8] sm:$0xff] %v1269
        %1334 = vst [vmem:[%s298 + $0x1d0] sm:$0xff] %v1270
        %1335 = vst [vmem:[%s298 + $0x1d8] sm:$0xff] %v1271
        %1336 = vst [vmem:[%s298 + $0x1e0] sm:$0xff] %v1272
        %1337 = vst [vmem:[%s298 + $0x1e8] sm:$0xff] %v1273
        %1338 = vst [vmem:[%s298 + $0x1f0] sm:$0xff] %v1274
        %1339 = vst [vmem:[%s298 + $0x1f8] sm:$0xff] %v1275
      $region44: #{_lambda_.42} parent=35 // pred_fallthru
        _
      %s1340 = smul.u32 64, %s20
      %p1341 = scmp.lt.s32.totalorder %s1340, 127
      %s1342 = scalar_select %p1341, %s1340, 127
      %p1343 = scmp.lt.s32.totalorder %s21, 0
      %s1344 = scalar_select %p1343, %s21, 0
      %s1345 = sadd.s32 %s1344, %s1342
      %s1346 = smul.addr %s1345, 8
      %s1347 = scalar_lea.vmem %s4, %s1346
      // Predicated region
      $region45: #{_lambda_.42} parent=35 // pred_check
        %p1348 = pneg %p162
      $region46: #{_lambda_.42} parent=35 // pred_check_branch
        %1350 = sbr.rel (%p1348) target = $region48
      $region47: #{_lambda_.42} parent=35 // pred_region
        %s1351 = smul.u32 64, %s20
      $region48: #{_lambda_.42} parent=35 // pred_fallthru
        _
    $region36: #{_lambda_.42} parent=5 // pred_fallthru
      _
    %p1352 = scmp.le.s32.totalorder 2, %s10
    // Predicated region
    $region49: #{_lambda_.42} parent=5 // pred_check
      %p1353 = pneg %p1352
    $region50: #{_lambda_.42} parent=5 // pred_check_branch
      %1355 = sbr.rel (%p1353) target = $region52
    $region51: #{_lambda_.42} parent=5 // pred_region
      %s1356 = ssub.s32 %s10, 2
      // Predicated region
      $region53: #{_lambda_.42} parent=51 // pred_check
        %p1357 = pneg %p168
      $region54: #{_lambda_.42} parent=51 // pred_check_branch
        %1359 = sbr.rel (%p1357) target = $region56
      $region55: #{_lambda_.42} parent=51 // pred_region
        %s1360 = smul.u32 64, %s23
        %p1361 = scmp.lt.s32.totalorder %s1360, 127
        %s1362 = scalar_select %p1361, %s1360, 127
        %p1363 = scmp.lt.s32.totalorder %s24, 0
        %s1364 = scalar_select %p1363, %s24, 0
        %s1365 = sadd.s32 %s1364, %s1362
        %s1366 = smul.addr %s1365, 8
        %s1367 = scalar_lea.vmem %s4, %s1366
      $region56: #{_lambda_.42} parent=51 // pred_fallthru
        _
    $region52: #{_lambda_.42} parent=5 // pred_fallthru
      _
  $region6: #{_lambda_.42} parent=0 // loop_footer
    %s14 = sadd.s32 1, %s10
  $region7: #{_lambda_.42} parent=0 // loop_footer_branch
    %9 = sbr.rel target = $region3
  $region8: #{_lambda_.42} parent=0 // loop_exit
    _

// kernel: _lambda_.44
$region0: #{_lambda_.44}
  #allocation0 [shape = 'u32[]', space=smem, size = 0x4, offset = 0x4, fixed_abs, tag = 'smem constant byte address 0x4 - core index']
  #allocation1 [shape = 'u32[72,128]{1,0:T(1,128)}', space=vmem, size = 0x9000, scoped, tag = 'internal scratch']
  #allocation2 [shape = 'f32[512,128]{1,0:T(8,128)}', space=vmem, size = 0x40000, scoped, tag = 'scratch operand']
  %s0 = inlined_call_operand.vmem [shape: bf16[1024,144], index: 0, kind: input, shape index: {}]
  %s1 = inlined_call_operand.vmem [shape: bf16[144,128], index: 1, kind: input, shape index: {}]
  %s2 = inlined_call_operand.vmem [shape: f32[1,128], index: 2, kind: input, shape index: {}]
  %s3 = inlined_call_operand.vmem [shape: f32[1,128], index: 3, kind: input, shape index: {}]
  %s4 = inlined_call_operand.vmem [shape: f32[1024,128], index: 4, kind: output, shape index: {}]
  %s5 = sld [smem:[#allocation0]]
  $region57: #{_lambda_.44} parent=0
    _
  %s7 = ssub.s32 1, %s5
  %s8 = scalar_select 0, %s7, %s5
  loop: start=0, step=1, limit=4
  $region2: #{_lambda_.44} parent=0 // loop_pre_header
    _
  $region3: #{_lambda_.44} parent=0 // loop_header
    %s10 = sphi 0, %s14
    %p11 = scmp.ge.s32.totalorder %s10, 4
    %s17 = sphi 0, %s36
    %s18 = sphi 0, %s32
    %s19 = sphi 0, %s28
    %s20 = sphi 0, %s17
    %s21 = sphi 0, %s18
    %s22 = sphi 0, %s19
    %s23 = sphi 0, %s20
    %s24 = sphi 0, %s21
    %s25 = sphi 0, %s22
    %s41 = sphi 0, %s43
    %s44 = sphi 0, %s41
    %s45 = sphi 0, %s44
    %s61 = sphi 0, %s45
    %s69 = sphi 0, %s71
    %s72 = sphi 0, %s69
    %s73 = sphi 0, %s72
    %s89 = sphi 0, %s73
    %s95 = sphi 0, %s97
    %s98 = sphi 0, %s95
    %s99 = sphi 0, %s98
    %s115 = sphi 0, %s99
    %s121 = sphi 0, %s123
    %s124 = sphi 0, %s121
    %s125 = sphi 0, %s124
    %s141 = sphi 0, %s125
    %s149 = sphi 0, %s151
    %s152 = sphi 0, %s149
    %s153 = sphi 0, %s152
    %s169 = sphi 0, %s153
  $region4: #{_lambda_.44} parent=0 // loop_header_branch
    %13 = sbr.rel (%p11) target = $region8
  $region5: #{_lambda_.44} parent=0 // loop_body
    %s15 = ssub.s32 %s10, 1
    %s16 = ssub.s32 %s10, 2
    %s26 = sadd.s32 1, %s19
    %p27 = scmp.ge.s32.totalorder %s26, 1
    %s28 = scalar_select %p27, 0, %s26
    %s29 = sadd.s32 1, %s18
    %s30 = scalar_select %p27, %s29, %s18
    %p31 = scmp.ge.s32.totalorder %s30, 1
    %s32 = scalar_select %p31, 0, %s30
    %s33 = sadd.s32 1, %s17
    %s34 = scalar_select %p31, %s33, %s17
    %p35 = scmp.ge.s32.totalorder %s34, 2
    %s36 = scalar_select %p35, 0, %s34
    %s37 = ssub.s32 %s17, %s36
    %s38 = ssub.s32 %s19, %s28
    %s39 = sor.u32 %s37, %s38
    %p40 = scmp.eq.s32.totalorder %s39, 0
    %s42 = sadd.s32 %s41, 1
    %s43 = scalar_select %p40, %s41, %s42
    %p46 = pneg %p40
    %p47 = scmp.eq.s32.totalorder %s10, 1
    %p48 = por %p46, %p47
    %p49 = scmp.ne.s32.totalorder %s41, %s44
    %p50 = scmp.eq.s32.totalorder %s10, 0
    %p51 = por %p49, %p50
    %p52 = scmp.ne.s32.totalorder %s41, %s44
    %p53 = scmp.eq.s32.totalorder %s15, 1
    %p54 = por %p52, %p53
    %p55 = scmp.ne.s32.totalorder %s44, %s45
    %p56 = scmp.eq.s32.totalorder %s15, 0
    %p57 = por %p55, %p56
    %p58 = scmp.ne.s32.totalorder %s44, %s45
    %p59 = scmp.eq.s32.totalorder %s16, 1
    %p60 = por %p58, %p59
    %p62 = scmp.ne.s32.totalorder %s45, %s61
    %p63 = scmp.eq.s32.totalorder %s16, 0
    %p64 = por %p62, %p63
    %s65 = ssub.s32 %s19, %s28
    %s66 = ssub.s32 %s18, %s32
    %s67 = sor.u32 %s65, %s66
    %p68 = scmp.eq.s32.totalorder %s67, 0
    %s70 = sadd.s32 %s69, 1
    %s71 = scalar_select %p68, %s69, %s70
    %p74 = pneg %p68
    %p75 = scmp.eq.s32.totalorder %s10, 1
    %p76 = por %p74, %p75
    %p77 = scmp.ne.s32.totalorder %s69, %s72
    %p78 = scmp.eq.s32.totalorder %s10, 0
    %p79 = por %p77, %p78
    %p80 = scmp.ne.s32.totalorder %s69, %s72
    %p81 = scmp.eq.s32.totalorder %s15, 1
    %p82 = por %p80, %p81
    %p83 = scmp.ne.s32.totalorder %s72, %s73
    %p84 = scmp.eq.s32.totalorder %s15, 0
    %p85 = por %p83, %p84
    %p86 = scmp.ne.s32.totalorder %s72, %s73
    %p87 = scmp.eq.s32.totalorder %s16, 1
    %p88 = por %p86, %p87
    %p90 = scmp.ne.s32.totalorder %s73, %s89
    %p91 = scmp.eq.s32.totalorder %s16, 0
    %p92 = por %p90, %p91
    %s93 = ssub.s32 %s18, %s32
    %p94 = scmp.eq.s32.totalorder %s93, 0
    %s96 = sadd.s32 %s95, 1
    %s97 = scalar_select %p94, %s95, %s96
    %p100 = pneg %p94
    %p101 = scmp.eq.s32.totalorder %s10, 1
    %p102 = por %p100, %p101
    %p103 = scmp.ne.s32.totalorder %s95, %s98
    %p104 = scmp.eq.s32.totalorder %s10, 0
    %p105 = por %p103, %p104
    %p106 = scmp.ne.s32.totalorder %s95, %s98
    %p107 = scmp.eq.s32.totalorder %s15, 1
    %p108 = por %p106, %p107
    %p109 = scmp.ne.s32.totalorder %s98, %s99
    %p110 = scmp.eq.s32.totalorder %s15, 0
    %p111 = por %p109, %p110
    %p112 = scmp.ne.s32.totalorder %s98, %s99
    %p113 = scmp.eq.s32.totalorder %s16, 1
    %p114 = por %p112, %p113
    %p116 = scmp.ne.s32.totalorder %s99, %s115
    %p117 = scmp.eq.s32.totalorder %s16, 0
    %p118 = por %p116, %p117
    %s119 = ssub.s32 %s18, %s32
    %p120 = scmp.eq.s32.totalorder %s119, 0
    %s122 = sadd.s32 %s121, 1
    %s123 = scalar_select %p120, %s121, %s122
    %p126 = pneg %p120
    %p127 = scmp.eq.s32.totalorder %s10, 1
    %p128 = por %p126, %p127
    %p129 = scmp.ne.s32.totalorder %s121, %s124
    %p130 = scmp.eq.s32.totalorder %s10, 0
    %p131 = por %p129, %p130
    %p132 = scmp.ne.s32.totalorder %s121, %s124
    %p133 = scmp.eq.s32.totalorder %s15, 1
    %p134 = por %p132, %p133
    %p135 = scmp.ne.s32.totalorder %s124, %s125
    %p136 = scmp.eq.s32.totalorder %s15, 0
    %p137 = por %p135, %p136
    %p138 = scmp.ne.s32.totalorder %s124, %s125
    %p139 = scmp.eq.s32.totalorder %s16, 1
    %p140 = por %p138, %p139
    %p142 = scmp.ne.s32.totalorder %s125, %s141
    %p143 = scmp.eq.s32.totalorder %s16, 0
    %p144 = por %p142, %p143
    %s145 = ssub.s32 %s17, %s36
    %s146 = ssub.s32 %s18, %s32
    %s147 = sor.u32 %s145, %s146
    %p148 = scmp.eq.s32.totalorder %s147, 0
    %s150 = sadd.s32 %s149, 1
    %s151 = scalar_select %p148, %s149, %s150
    %p154 = pneg %p148
    %p155 = scmp.eq.s32.totalorder %s10, 1
    %p156 = por %p154, %p155
    %p157 = scmp.ne.s32.totalorder %s149, %s152
    %p158 = scmp.eq.s32.totalorder %s10, 0
    %p159 = por %p157, %p158
    %p160 = scmp.ne.s32.totalorder %s149, %s152
    %p161 = scmp.eq.s32.totalorder %s15, 1
    %p162 = por %p160, %p161
    %p163 = scmp.ne.s32.totalorder %s152, %s153
    %p164 = scmp.eq.s32.totalorder %s15, 0
    %p165 = por %p163, %p164
    %p166 = scmp.ne.s32.totalorder %s152, %s153
    %p167 = scmp.eq.s32.totalorder %s16, 1
    %p168 = por %p166, %p167
    %p170 = scmp.ne.s32.totalorder %s153, %s169
    %p171 = scmp.eq.s32.totalorder %s16, 0
    %p172 = por %p170, %p171
    %p173 = scmp.le.s32.totalorder 1, %s10
    %p174 = scmp.lt.s32.totalorder %s10, 3
    %p175 = pnand %p173, %p174
    %p176 = pneg %p175
    // Predicated region
    $region9: #{_lambda_.44} parent=5 // pred_check
      _
    $region10: #{_lambda_.44} parent=5 // pred_check_branch
      %178 = sbr.rel (%p175) target = $region12
    $region11: #{_lambda_.44} parent=5 // pred_region
      %s179 = ssub.s32 %s10, 1
      // Predicated region
      $region13: #{_lambda_.44} parent=11 // pred_check
        %p180 = pneg %p85
      $region14: #{_lambda_.44} parent=11 // pred_check_branch
        %182 = sbr.rel (%p180) target = $region16
      $region15: #{_lambda_.44} parent=11 // pred_region
        %s183 = smul.u32 18, %s22
        %p184 = scmp.lt.s32.totalorder %s183, 17
        %s185 = scalar_select %p184, %s183, 17
        %p186 = scmp.lt.s32.totalorder %s21, 0
        %s187 = scalar_select %p186, %s21, 0
        %s188 = sadd.s32 %s187, %s185
        %s189 = smul.addr %s188, 4
        %s190 = scalar_lea.vmem %s1, %s189
        %s191 = smul.u32 18, %s22
      $region16: #{_lambda_.44} parent=11 // pred_fallthru
        _
      // Predicated region
      $region17: #{_lambda_.44} parent=11 // pred_check
        %p192 = pneg %p111
      $region18: #{_lambda_.44} parent=11 // pred_check_branch
        %194 = sbr.rel (%p192) target = $region20
      $region19: #{_lambda_.44} parent=11 // pred_region
        %p195 = scmp.lt.s32.totalorder %s21, 0
        %s196 = scalar_select %p195, %s21, 0
        %s197 = scalar_lea.vmem %s2, %s196
      $region20: #{_lambda_.44} parent=11 // pred_fallthru
        _
      // Predicated region
      $region21: #{_lambda_.44} parent=11 // pred_check
        %p198 = pneg %p137
      $region22: #{_lambda_.44} parent=11 // pred_check_branch
        %200 = sbr.rel (%p198) target = $region24
      $region23: #{_lambda_.44} parent=11 // pred_region
        %p201 = scmp.lt.s32.totalorder %s21, 0
        %s202 = scalar_select %p201, %s21, 0
        %s203 = scalar_lea.vmem %s3, %s202
      $region24: #{_lambda_.44} parent=11 // pred_fallthru
        _
    $region12: #{_lambda_.44} parent=5 // pred_fallthru
      _
    %p204 = scmp.lt.s32.totalorder %s10, 2
    // Predicated region
    $region25: #{_lambda_.44} parent=5 // pred_check
      %p205 = pneg %p204
    $region26: #{_lambda_.44} parent=5 // pred_check_branch
      %207 = sbr.rel (%p205) target = $region28
    $region27: #{_lambda_.44} parent=5 // pred_region
      // Predicated region
      $region29: #{_lambda_.44} parent=27 // pred_check
        %p208 = pneg %p51
      $region30: #{_lambda_.44} parent=27 // pred_check_branch
        %210 = sbr.rel (%p208) target = $region32
      $region31: #{_lambda_.44} parent=27 // pred_region
        %s211 = smul.u32 64, %s17
        %s212 = smul.u32 2, %s19
        %p213 = scmp.lt.s32.totalorder %s211, 127
        %s214 = scalar_select %p213, %s211, 127
        %p215 = scmp.lt.s32.totalorder %s212, 1
        %s216 = scalar_select %p215, %s212, 1
        %s217 = smul.addr %s214, 2
        %s218 = sadd.s32 %s216, %s217
        %s219 = smul.addr %s218, 4
        %s220 = scalar_lea.vmem %s0, %s219
        %s221 = smul.u32 64, %s17
        %s222 = smul.u32 2, %s19
      $region32: #{_lambda_.44} parent=27 // pred_fallthru
        _
    $region28: #{_lambda_.44} parent=5 // pred_fallthru
      _
    %p223 = scmp.le.s32.totalorder 1, %s10
    %p224 = scmp.lt.s32.totalorder %s10, 3
    %p225 = pnand %p223, %p224
    %p226 = pneg %p225
    // Predicated region
    $region33: #{_lambda_.44} parent=5 // pred_check
      _
    $region34: #{_lambda_.44} parent=5 // pred_check_branch
      %228 = sbr.rel (%p225) target = $region36
    $region35: #{_lambda_.44} parent=5 // pred_region
      %s229 = ssub.s32 %s10, 1
      %s230 = smul.u32 64, %s20
      %s231 = smul.u32 2, %s22
      %p232 = scmp.lt.s32.totalorder %s230, 127
      %s233 = scalar_select %p232, %s230, 127
      %p234 = scmp.lt.s32.totalorder %s231, 1
      %s235 = scalar_select %p234, %s231, 1
      %s236 = smul.addr %s233, 2
      %s237 = sadd.s32 %s235, %s236
      %s238 = smul.addr %s237, 4
      %s239 = scalar_lea.vmem %s0, %s238
      %p240 = pneg %p57
      %p241 = pneg %p54
      %s242 = smul.u32 18, %s22
      %p243 = scmp.lt.s32.totalorder %s242, 17
      %s244 = scalar_select %p243, %s242, 17
      %p245 = scmp.lt.s32.totalorder %s21, 0
      %s246 = scalar_select %p245, %s21, 0
      %s247 = sadd.s32 %s246, %s244
      %s248 = smul.addr %s247, 4
      %s249 = scalar_lea.vmem %s1, %s248
      %p250 = pneg %p85
      %p251 = pneg %p82
      %p252 = scmp.lt.s32.totalorder %s21, 0
      %s253 = scalar_select %p252, %s21, 0
      %s254 = scalar_lea.vmem %s2, %s253
      %p255 = pneg %p111
      %p256 = pneg %p108
      %p257 = scmp.lt.s32.totalorder %s21, 0
      %s258 = scalar_select %p257, %s21, 0
      %s259 = scalar_lea.vmem %s3, %s258
      %p260 = pneg %p137
      %p261 = pneg %p134
      %p262 = pneg %p165
      %p263 = pneg %p162
      %s264 = smul.u32 64, %s20
      %p265 = scmp.lt.s32.totalorder %s264, 127
      %s266 = scalar_select %p265, %s264, 127
      %p267 = scmp.lt.s32.totalorder %s21, 0
      %s268 = scalar_select %p267, %s21, 0
      %s269 = sadd.s32 %s268, %s266
      %s270 = smul.addr %s269, 8
      %s271 = scalar_lea.vmem %s4, %s270
      %s272 = smul.u32 64, %s20
      %s273 = smul.u32 2, %s22
      %p274 = scmp.lt.s32.totalorder %s272, 127
      %s275 = scalar_select %p274, %s272, 127
      %p276 = scmp.lt.s32.totalorder %s273, 1
      %s277 = scalar_select %p276, %s273, 1
      %s278 = smul.addr %s275, 2
      %s279 = sadd.s32 %s277, %s278
      %s280 = smul.addr %s279, 4
      %s281 = scalar_lea.vmem %s0, %s280
      %s282 = smul.u32 64, %s20
      %s283 = smul.u32 2, %s22
      %s284 = smul.u32 18, %s22
      %p285 = scmp.lt.s32.totalorder %s284, 17
      %s286 = scalar_select %p285, %s284, 17
      %p287 = scmp.lt.s32.totalorder %s21, 0
      %s288 = scalar_select %p287, %s21, 0
      %s289 = sadd.s32 %s288, %s286
      %s290 = smul.addr %s289, 4
      %s291 = scalar_lea.vmem %s1, %s290
      %s292 = smul.u32 18, %s22
      %p293 = scmp.lt.s32.totalorder %s21, 0
      %s294 = scalar_select %p293, %s21, 0
      %s295 = scalar_lea.vmem %s2, %s294
      %p296 = scmp.lt.s32.totalorder %s21, 0
      %s297 = scalar_select %p296, %s21, 0
      %s298 = scalar_lea.vmem %s3, %s297
      %s299 = smul.u32 64, %s20
      %p300 = scmp.lt.s32.totalorder %s299, 127
      %s301 = scalar_select %p300, %s299, 127
      %p302 = scmp.lt.s32.totalorder %s21, 0
      %s303 = scalar_select %p302, %s21, 0
      %s304 = sadd.s32 %s303, %s301
      %s305 = smul.addr %s304, 8
      %s306 = scalar_lea.vmem %s4, %s305
      %s307 = smul.u32 64, %s20
      %p309 = scmp.eq.s32.totalorder %s22, 0
      // Predicated region
      $region37: #{_lambda_.44} parent=35 // pred_check
        %p310 = pneg %p309
      $region38: #{_lambda_.44} parent=35 // pred_check_branch
        %312 = sbr.rel (%p310) target = $region40
      $region39: #{_lambda_.44} parent=35 // pred_region
        %313 = vst [vmem:[#allocation2] sm:$0xff] 0.0
        %314 = vst [vmem:[#allocation2 + $0x8] sm:$0xff] 0.0
        %315 = vst [vmem:[#allocation2 + $0x10] sm:$0xff] 0.0
        %316 = vst [vmem:[#allocation2 + $0x18] sm:$0xff] 0.0
        %317 = vst [vmem:[#allocation2 + $0x20] sm:$0xff] 0.0
        %318 = vst [vmem:[#allocation2 + $0x28] sm:$0xff] 0.0
        %319 = vst [vmem:[#allocation2 + $0x30] sm:$0xff] 0.0
        %320 = vst [vmem:[#allocation2 + $0x38] sm:$0xff] 0.0
        %321 = vst [vmem:[#allocation2 + $0x40] sm:$0xff] 0.0
        %322 = vst [vmem:[#allocation2 + $0x48] sm:$0xff] 0.0
        %323 = vst [vmem:[#allocation2 + $0x50] sm:$0xff] 0.0
        %324 = vst [vmem:[#allocation2 + $0x58] sm:$0xff] 0.0
        %325 = vst [vmem:[#allocation2 + $0x60] sm:$0xff] 0.0
        %326 = vst [vmem:[#allocation2 + $0x68] sm:$0xff] 0.0
        %327 = vst [vmem:[#allocation2 + $0x70] sm:$0xff] 0.0
        %328 = vst [vmem:[#allocation2 + $0x78] sm:$0xff] 0.0
        %329 = vst [vmem:[#allocation2 + $0x80] sm:$0xff] 0.0
        %330 = vst [vmem:[#allocation2 + $0x88] sm:$0xff] 0.0
        %331 = vst [vmem:[#allocation2 + $0x90] sm:$0xff] 0.0
        %332 = vst [vmem:[#allocation2 + $0x98] sm:$0xff] 0.0
        %333 = vst [vmem:[#allocation2 + $0xa0] sm:$0xff] 0.0
        %334 = vst [vmem:[#allocation2 + $0xa8] sm:$0xff] 0.0
        %335 = vst [vmem:[#allocation2 + $0xb0] sm:$0xff] 0.0
        %336 = vst [vmem:[#allocation2 + $0xb8] sm:$0xff] 0.0
        %337 = vst [vmem:[#allocation2 + $0xc0] sm:$0xff] 0.0
        %338 = vst [vmem:[#allocation2 + $0xc8] sm:$0xff] 0.0
        %339 = vst [vmem:[#allocation2 + $0xd0] sm:$0xff] 0.0
        %340 = vst [vmem:[#allocation2 + $0xd8] sm:$0xff] 0.0
        %341 = vst [vmem:[#allocation2 + $0xe0] sm:$0xff] 0.0
        %342 = vst [vmem:[#allocation2 + $0xe8] sm:$0xff] 0.0
        %343 = vst [vmem:[#allocation2 + $0xf0] sm:$0xff] 0.0
        %344 = vst [vmem:[#allocation2 + $0xf8] sm:$0xff] 0.0
        %345 = vst [vmem:[#allocation2 + $0x100] sm:$0xff] 0.0
        %346 = vst [vmem:[#allocation2 + $0x108] sm:$0xff] 0.0
        %347 = vst [vmem:[#allocation2 + $0x110] sm:$0xff] 0.0
        %348 = vst [vmem:[#allocation2 + $0x118] sm:$0xff] 0.0
        %349 = vst [vmem:[#allocation2 + $0x120] sm:$0xff] 0.0
        %350 = vst [vmem:[#allocation2 + $0x128] sm:$0xff] 0.0
        %351 = vst [vmem:[#allocation2 + $0x130] sm:$0xff] 0.0
        %352 = vst [vmem:[#allocation2 + $0x138] sm:$0xff] 0.0
        %353 = vst [vmem:[#allocation2 + $0x140] sm:$0xff] 0.0
        %354 = vst [vmem:[#allocation2 + $0x148] sm:$0xff] 0.0
        %355 = vst [vmem:[#allocation2 + $0x150] sm:$0xff] 0.0
        %356 = vst [vmem:[#allocation2 + $0x158] sm:$0xff] 0.0
        %357 = vst [vmem:[#allocation2 + $0x160] sm:$0xff] 0.0
        %358 = vst [vmem:[#allocation2 + $0x168] sm:$0xff] 0.0
        %359 = vst [vmem:[#allocation2 + $0x170] sm:$0xff] 0.0
        %360 = vst [vmem:[#allocation2 + $0x178] sm:$0xff] 0.0
        %361 = vst [vmem:[#allocation2 + $0x180] sm:$0xff] 0.0
        %362 = vst [vmem:[#allocation2 + $0x188] sm:$0xff] 0.0
        %363 = vst [vmem:[#allocation2 + $0x190] sm:$0xff] 0.0
        %364 = vst [vmem:[#allocation2 + $0x198] sm:$0xff] 0.0
        %365 = vst [vmem:[#allocation2 + $0x1a0] sm:$0xff] 0.0
        %366 = vst [vmem:[#allocation2 + $0x1a8] sm:$0xff] 0.0
        %367 = vst [vmem:[#allocation2 + $0x1b0] sm:$0xff] 0.0
        %368 = vst [vmem:[#allocation2 + $0x1b8] sm:$0xff] 0.0
        %369 = vst [vmem:[#allocation2 + $0x1c0] sm:$0xff] 0.0
        %370 = vst [vmem:[#allocation2 + $0x1c8] sm:$0xff] 0.0
        %371 = vst [vmem:[#allocation2 + $0x1d0] sm:$0xff] 0.0
        %372 = vst [vmem:[#allocation2 + $0x1d8] sm:$0xff] 0.0
        %373 = vst [vmem:[#allocation2 + $0x1e0] sm:$0xff] 0.0
        %374 = vst [vmem:[#allocation2 + $0x1e8] sm:$0xff] 0.0
        %375 = vst [vmem:[#allocation2 + $0x1f0] sm:$0xff] 0.0
        %376 = vst [vmem:[#allocation2 + $0x1f8] sm:$0xff] 0.0
      $region40: #{_lambda_.44} parent=35 // pred_fallthru
        _
      %v377 = vld [vmem:[#allocation2] sm:$0xff]
      %v378 = vld [vmem:[#allocation2 + $0x8] sm:$0xff]
      %v379 = vld [vmem:[#allocation2 + $0x10] sm:$0xff]
      %v380 = vld [vmem:[#allocation2 + $0x18] sm:$0xff]
      %v381 = vld [vmem:[#allocation2 + $0x20] sm:$0xff]
      %v382 = vld [vmem:[#allocation2 + $0x28] sm:$0xff]
      %v383 = vld [vmem:[#allocation2 + $0x30] sm:$0xff]
      %v384 = vld [vmem:[#allocation2 + $0x38] sm:$0xff]
      %v385 = vld [vmem:[#allocation2 + $0x40] sm:$0xff]
      %v386 = vld [vmem:[#allocation2 + $0x48] sm:$0xff]
      %v387 = vld [vmem:[#allocation2 + $0x50] sm:$0xff]
      %v388 = vld [vmem:[#allocation2 + $0x58] sm:$0xff]
      %v389 = vld [vmem:[#allocation2 + $0x60] sm:$0xff]
      %v390 = vld [vmem:[#allocation2 + $0x68] sm:$0xff]
      %v391 = vld [vmem:[#allocation2 + $0x70] sm:$0xff]
      %v392 = vld [vmem:[#allocation2 + $0x78] sm:$0xff]
      %v393 = vld [vmem:[#allocation2 + $0x80] sm:$0xff]
      %v394 = vld [vmem:[#allocation2 + $0x88] sm:$0xff]
      %v395 = vld [vmem:[#allocation2 + $0x90] sm:$0xff]
      %v396 = vld [vmem:[#allocation2 + $0x98] sm:$0xff]
      %v397 = vld [vmem:[#allocation2 + $0xa0] sm:$0xff]
      %v398 = vld [vmem:[#allocation2 + $0xa8] sm:$0xff]
      %v399 = vld [vmem:[#allocation2 + $0xb0] sm:$0xff]
      %v400 = vld [vmem:[#allocation2 + $0xb8] sm:$0xff]
      %v401 = vld [vmem:[#allocation2 + $0xc0] sm:$0xff]
      %v402 = vld [vmem:[#allocation2 + $0xc8] sm:$0xff]
      %v403 = vld [vmem:[#allocation2 + $0xd0] sm:$0xff]
      %v404 = vld [vmem:[#allocation2 + $0xd8] sm:$0xff]
      %v405 = vld [vmem:[#allocation2 + $0xe0] sm:$0xff]
      %v406 = vld [vmem:[#allocation2 + $0xe8] sm:$0xff]
      %v407 = vld [vmem:[#allocation2 + $0xf0] sm:$0xff]
      %v408 = vld [vmem:[#allocation2 + $0xf8] sm:$0xff]
      %v409 = vld [vmem:[#allocation2 + $0x100] sm:$0xff]
      %v410 = vld [vmem:[#allocation2 + $0x108] sm:$0xff]
      %v411 = vld [vmem:[#allocation2 + $0x110] sm:$0xff]
      %v412 = vld [vmem:[#allocation2 + $0x118] sm:$0xff]
      %v413 = vld [vmem:[#allocation2 + $0x120] sm:$0xff]
      %v414 = vld [vmem:[#allocation2 + $0x128] sm:$0xff]
      %v415 = vld [vmem:[#allocation2 + $0x130] sm:$0xff]
      %v416 = vld [vmem:[#allocation2 + $0x138] sm:$0xff]
      %v417 = vld [vmem:[#allocation2 + $0x140] sm:$0xff]
      %v418 = vld [vmem:[#allocation2 + $0x148] sm:$0xff]
      %v419 = vld [vmem:[#allocation2 + $0x150] sm:$0xff]
      %v420 = vld [vmem:[#allocation2 + $0x158] sm:$0xff]
      %v421 = vld [vmem:[#allocation2 + $0x160] sm:$0xff]
      %v422 = vld [vmem:[#allocation2 + $0x168] sm:$0xff]
      %v423 = vld [vmem:[#allocation2 + $0x170] sm:$0xff]
      %v424 = vld [vmem:[#allocation2 + $0x178] sm:$0xff]
      %v425 = vld [vmem:[#allocation2 + $0x180] sm:$0xff]
      %v426 = vld [vmem:[#allocation2 + $0x188] sm:$0xff]
      %v427 = vld [vmem:[#allocation2 + $0x190] sm:$0xff]
      %v428 = vld [vmem:[#allocation2 + $0x198] sm:$0xff]
      %v429 = vld [vmem:[#allocation2 + $0x1a0] sm:$0xff]
      %v430 = vld [vmem:[#allocation2 + $0x1a8] sm:$0xff]
      %v431 = vld [vmem:[#allocation2 + $0x1b0] sm:$0xff]
      %v432 = vld [vmem:[#allocation2 + $0x1b8] sm:$0xff]
      %v433 = vld [vmem:[#allocation2 + $0x1c0] sm:$0xff]
      %v434 = vld [vmem:[#allocation2 + $0x1c8] sm:$0xff]
      %v435 = vld [vmem:[#allocation2 + $0x1d0] sm:$0xff]
      %v436 = vld [vmem:[#allocation2 + $0x1d8] sm:$0xff]
      %v437 = vld [vmem:[#allocation2 + $0x1e0] sm:$0xff]
      %v438 = vld [vmem:[#allocation2 + $0x1e8] sm:$0xff]
      %v439 = vld [vmem:[#allocation2 + $0x1f0] sm:$0xff]
      %v440 = vld [vmem:[#allocation2 + $0x1f8] sm:$0xff]
      %v441 = vld [vmem:[%s281] sm:$0xff]
      %v442 = vld [vmem:[%s281 + $0x8] sm:$0xff]
      %v443 = vld [vmem:[%s281 + $0x10] sm:$0xff]
      %v444 = vld [vmem:[%s281 + $0x18] sm:$0xff]
      %v445 = vld [vmem:[%s281 + $0x20] sm:$0xff]
      %v446 = vld [vmem:[%s281 + $0x28] sm:$0xff]
      %v447 = vld [vmem:[%s281 + $0x30] sm:$0xff]
      %v448 = vld [vmem:[%s281 + $0x38] sm:$0xff]
      %v449 = vld [vmem:[%s281 + $0x40] sm:$0xff]
      %v450 = vld [vmem:[%s281 + $0x48] sm:$0xff]
      %v451 = vld [vmem:[%s281 + $0x50] sm:$0xff]
      %v452 = vld [vmem:[%s281 + $0x58] sm:$0xff]
      %v453 = vld [vmem:[%s281 + $0x60] sm:$0xff]
      %v454 = vld [vmem:[%s281 + $0x68] sm:$0xff]
      %v455 = vld [vmem:[%s281 + $0x70] sm:$0xff]
      %v456 = vld [vmem:[%s281 + $0x78] sm:$0xff]
      %v457 = vld [vmem:[%s281 + $0x80] sm:$0xff]
      %v458 = vld [vmem:[%s281 + $0x88] sm:$0xff]
      %v459 = vld [vmem:[%s281 + $0x90] sm:$0xff]
      %v460 = vld [vmem:[%s281 + $0x98] sm:$0xff]
      %v461 = vld [vmem:[%s281 + $0xa0] sm:$0xff]
      %v462 = vld [vmem:[%s281 + $0xa8] sm:$0xff]
      %v463 = vld [vmem:[%s281 + $0xb0] sm:$0xff]
      %v464 = vld [vmem:[%s281 + $0xb8] sm:$0xff]
      %v465 = vld [vmem:[%s281 + $0xc0] sm:$0xff]
      %v466 = vld [vmem:[%s281 + $0xc8] sm:$0xff]
      %v467 = vld [vmem:[%s281 + $0xd0] sm:$0xff]
      %v468 = vld [vmem:[%s281 + $0xd8] sm:$0xff]
      %v469 = vld [vmem:[%s281 + $0xe0] sm:$0xff]
      %v470 = vld [vmem:[%s281 + $0xe8] sm:$0xff]
      %v471 = vld [vmem:[%s281 + $0xf0] sm:$0xff]
      %v472 = vld [vmem:[%s281 + $0xf8] sm:$0xff]
      %v473 = vld [vmem:[%s281 + $0x100] sm:$0xff]
      %v474 = vld [vmem:[%s281 + $0x108] sm:$0xff]
      %v475 = vld [vmem:[%s281 + $0x110] sm:$0xff]
      %v476 = vld [vmem:[%s281 + $0x118] sm:$0xff]
      %v477 = vld [vmem:[%s281 + $0x120] sm:$0xff]
      %v478 = vld [vmem:[%s281 + $0x128] sm:$0xff]
      %v479 = vld [vmem:[%s281 + $0x130] sm:$0xff]
      %v480 = vld [vmem:[%s281 + $0x138] sm:$0xff]
      %v481 = vld [vmem:[%s281 + $0x140] sm:$0xff]
      %v482 = vld [vmem:[%s281 + $0x148] sm:$0xff]
      %v483 = vld [vmem:[%s281 + $0x150] sm:$0xff]
      %v484 = vld [vmem:[%s281 + $0x158] sm:$0xff]
      %v485 = vld [vmem:[%s281 + $0x160] sm:$0xff]
      %v486 = vld [vmem:[%s281 + $0x168] sm:$0xff]
      %v487 = vld [vmem:[%s281 + $0x170] sm:$0xff]
      %v488 = vld [vmem:[%s281 + $0x178] sm:$0xff]
      %v489 = vld [vmem:[%s281 + $0x180] sm:$0xff]
      %v490 = vld [vmem:[%s281 + $0x188] sm:$0xff]
      %v491 = vld [vmem:[%s281 + $0x190] sm:$0xff]
      %v492 = vld [vmem:[%s281 + $0x198] sm:$0xff]
      %v493 = vld [vmem:[%s281 + $0x1a0] sm:$0xff]
      %v494 = vld [vmem:[%s281 + $0x1a8] sm:$0xff]
      %v495 = vld [vmem:[%s281 + $0x1b0] sm:$0xff]
      %v496 = vld [vmem:[%s281 + $0x1b8] sm:$0xff]
      %v497 = vld [vmem:[%s281 + $0x1c0] sm:$0xff]
      %v498 = vld [vmem:[%s281 + $0x1c8] sm:$0xff]
      %v499 = vld [vmem:[%s281 + $0x1d0] sm:$0xff]
      %v500 = vld [vmem:[%s281 + $0x1d8] sm:$0xff]
      %v501 = vld [vmem:[%s281 + $0x1e0] sm:$0xff]
      %v502 = vld [vmem:[%s281 + $0x1e8] sm:$0xff]
      %v503 = vld [vmem:[%s281 + $0x1f0] sm:$0xff]
      %v504 = vld [vmem:[%s281 + $0x1f8] sm:$0xff]
      %v505 = vld [vmem:[%s291] sm:$0xf]
      %v506 = vld [vmem:[%s291 + $0x4] sm:$0xf]
      %v507 = vld [vmem:[%s291 + $0x8] sm:$0xf]
      %v508 = vld [vmem:[%s291 + $0xc] sm:$0xf]
      %v509 = vld [vmem:[%s291 + $0x10] sm:$0xf]
      %v510 = vld [vmem:[%s291 + $0x14] sm:$0xf]
      %v511 = vld [vmem:[%s291 + $0x18] sm:$0xf]
      %v512 = vld [vmem:[%s291 + $0x1c] sm:$0xf]
      %v513 = vld [vmem:[%s291 + $0x20] sm:$0xf]
      %v514 = vld [vmem:[%s291 + $0x24] sm:$0xf]
      %v515 = vld [vmem:[%s291 + $0x28] sm:$0xf]
      %v516 = vld [vmem:[%s291 + $0x2c] sm:$0xf]
      %v517 = vld [vmem:[%s291 + $0x30] sm:$0xf]
      %v518 = vld [vmem:[%s291 + $0x34] sm:$0xf]
      %v519 = vld [vmem:[%s291 + $0x38] sm:$0xf]
      %v520 = vld [vmem:[%s291 + $0x3c] sm:$0xf]
      %v521 = vld [vmem:[%s291 + $0x40] sm:$0xf]
      %v522 = vld [vmem:[%s291 + $0x44] sm:$0xf]
      %v587 = vunpack.c.l.b16 %v441
      %v588 = vunpack.c.h.b16 %v441
      %v589 = vunpack.c.l.b16 %v442
      %v590 = vunpack.c.h.b16 %v442
      %v591 = vunpack.c.l.b16 %v443
      %v592 = vunpack.c.h.b16 %v443
      %v593 = vunpack.c.l.b16 %v444
      %v594 = vunpack.c.h.b16 %v444
      %v595 = vunpack.c.l.b16 %v445
      %v596 = vunpack.c.h.b16 %v445
      %v597 = vunpack.c.l.b16 %v446
      %v598 = vunpack.c.h.b16 %v446
      %v599 = vunpack.c.l.b16 %v447
      %v600 = vunpack.c.h.b16 %v447
      %v601 = vunpack.c.l.b16 %v448
      %v602 = vunpack.c.h.b16 %v448
      %v603 = vunpack.c.l.b16 %v449
      %v604 = vunpack.c.h.b16 %v449
      %v605 = vunpack.c.l.b16 %v450
      %v606 = vunpack.c.h.b16 %v450
      %v607 = vunpack.c.l.b16 %v451
      %v608 = vunpack.c.h.b16 %v451
      %v609 = vunpack.c.l.b16 %v452
      %v610 = vunpack.c.h.b16 %v452
      %v611 = vunpack.c.l.b16 %v453
      %v612 = vunpack.c.h.b16 %v453
      %v613 = vunpack.c.l.b16 %v454
      %v614 = vunpack.c.h.b16 %v454
      %v615 = vunpack.c.l.b16 %v455
      %v616 = vunpack.c.h.b16 %v455
      %v617 = vunpack.c.l.b16 %v456
      %v618 = vunpack.c.h.b16 %v456
      %v619 = vunpack.c.l.b16 %v457
      %v620 = vunpack.c.h.b16 %v457
      %v621 = vunpack.c.l.b16 %v458
      %v622 = vunpack.c.h.b16 %v458
      %v623 = vunpack.c.l.b16 %v459
      %v624 = vunpack.c.h.b16 %v459
      %v625 = vunpack.c.l.b16 %v460
      %v626 = vunpack.c.h.b16 %v460
      %v627 = vunpack.c.l.b16 %v461
      %v628 = vunpack.c.h.b16 %v461
      %v629 = vunpack.c.l.b16 %v462
      %v630 = vunpack.c.h.b16 %v462
      %v631 = vunpack.c.l.b16 %v463
      %v632 = vunpack.c.h.b16 %v463
      %v633 = vunpack.c.l.b16 %v464
      %v634 = vunpack.c.h.b16 %v464
      %v635 = vunpack.c.l.b16 %v465
      %v636 = vunpack.c.h.b16 %v465
      %v637 = vunpack.c.l.b16 %v466
      %v638 = vunpack.c.h.b16 %v466
      %v639 = vunpack.c.l.b16 %v467
      %v640 = vunpack.c.h.b16 %v467
      %v641 = vunpack.c.l.b16 %v468
      %v642 = vunpack.c.h.b16 %v468
      %v643 = vunpack.c.l.b16 %v469
      %v644 = vunpack.c.h.b16 %v469
      %v645 = vunpack.c.l.b16 %v470
      %v646 = vunpack.c.h.b16 %v470
      %v647 = vunpack.c.l.b16 %v471
      %v648 = vunpack.c.h.b16 %v471
      %v649 = vunpack.c.l.b16 %v472
      %v650 = vunpack.c.h.b16 %v472
      %v651 = vunpack.c.l.b16 %v473
      %v652 = vunpack.c.h.b16 %v473
      %v653 = vunpack.c.l.b16 %v474
      %v654 = vunpack.c.h.b16 %v474
      %v655 = vunpack.c.l.b16 %v475
      %v656 = vunpack.c.h.b16 %v475
      %v657 = vunpack.c.l.b16 %v476
      %v658 = vunpack.c.h.b16 %v476
      %v659 = vunpack.c.l.b16 %v477
      %v660 = vunpack.c.h.b16 %v477
      %v661 = vunpack.c.l.b16 %v478
      %v662 = vunpack.c.h.b16 %v478
      %v663 = vunpack.c.l.b16 %v479
      %v664 = vunpack.c.h.b16 %v479
      %v665 = vunpack.c.l.b16 %v480
      %v666 = vunpack.c.h.b16 %v480
      %v667 = vunpack.c.l.b16 %v481
      %v668 = vunpack.c.h.b16 %v481
      %v669 = vunpack.c.l.b16 %v482
      %v670 = vunpack.c.h.b16 %v482
      %v671 = vunpack.c.l.b16 %v483
      %v672 = vunpack.c.h.b16 %v483
      %v673 = vunpack.c.l.b16 %v484
      %v674 = vunpack.c.h.b16 %v484
      %v675 = vunpack.c.l.b16 %v485
      %v676 = vunpack.c.h.b16 %v485
      %v677 = vunpack.c.l.b16 %v486
      %v678 = vunpack.c.h.b16 %v486
      %v679 = vunpack.c.l.b16 %v487
      %v680 = vunpack.c.h.b16 %v487
      %v681 = vunpack.c.l.b16 %v488
      %v682 = vunpack.c.h.b16 %v488
      %v683 = vunpack.c.l.b16 %v489
      %v684 = vunpack.c.h.b16 %v489
      %v685 = vunpack.c.l.b16 %v490
      %v686 = vunpack.c.h.b16 %v490
      %v687 = vunpack.c.l.b16 %v491
      %v688 = vunpack.c.h.b16 %v491
      %v689 = vunpack.c.l.b16 %v492
      %v690 = vunpack.c.h.b16 %v492
      %v691 = vunpack.c.l.b16 %v493
      %v692 = vunpack.c.h.b16 %v493
      %v693 = vunpack.c.l.b16 %v494
      %v694 = vunpack.c.h.b16 %v494
      %v695 = vunpack.c.l.b16 %v495
      %v696 = vunpack.c.h.b16 %v495
      %v697 = vunpack.c.l.b16 %v496
      %v698 = vunpack.c.h.b16 %v496
      %v699 = vunpack.c.l.b16 %v497
      %v700 = vunpack.c.h.b16 %v497
      %v701 = vunpack.c.l.b16 %v498
      %v702 = vunpack.c.h.b16 %v498
      %v703 = vunpack.c.l.b16 %v499
      %v704 = vunpack.c.h.b16 %v499
      %v705 = vunpack.c.l.b16 %v500
      %v706 = vunpack.c.h.b16 %v500
      %v707 = vunpack.c.l.b16 %v501
      %v708 = vunpack.c.h.b16 %v501
      %v709 = vunpack.c.l.b16 %v502
      %v710 = vunpack.c.h.b16 %v502
      %v711 = vunpack.c.l.b16 %v503
      %v712 = vunpack.c.h.b16 %v503
      %v713 = vunpack.c.l.b16 %v504
      %v714 = vunpack.c.h.b16 %v504
      %v715 = vpack.c.b16 %v589, %v587
      %v716 = vpack.c.b16 %v590, %v588
      %v717 = vpack.c.b16 %v593, %v591
      %v718 = vpack.c.b16 %v594, %v592
      %v719 = vpack.c.b16 %v597, %v595
      %v720 = vpack.c.b16 %v598, %v596
      %v721 = vpack.c.b16 %v601, %v599
      %v722 = vpack.c.b16 %v602, %v600
      %v723 = vpack.c.b16 %v605, %v603
      %v724 = vpack.c.b16 %v606, %v604
      %v725 = vpack.c.b16 %v609, %v607
      %v726 = vpack.c.b16 %v610, %v608
      %v727 = vpack.c.b16 %v613, %v611
      %v728 = vpack.c.b16 %v614, %v612
      %v729 = vpack.c.b16 %v617, %v615
      %v730 = vpack.c.b16 %v618, %v616
      %v731 = vpack.c.b16 %v621, %v619
      %v732 = vpack.c.b16 %v622, %v620
      %v733 = vpack.c.b16 %v625, %v623
      %v734 = vpack.c.b16 %v626, %v624
      %v735 = vpack.c.b16 %v629, %v627
      %v736 = vpack.c.b16 %v630, %v628
      %v737 = vpack.c.b16 %v633, %v631
      %v738 = vpack.c.b16 %v634, %v632
      %v739 = vpack.c.b16 %v637, %v635
      %v740 = vpack.c.b16 %v638, %v636
      %v741 = vpack.c.b16 %v641, %v639
      %v742 = vpack.c.b16 %v642, %v640
      %v743 = vpack.c.b16 %v645, %v643
      %v744 = vpack.c.b16 %v646, %v644
      %v745 = vpack.c.b16 %v649, %v647
      %v746 = vpack.c.b16 %v650, %v648
      %v747 = vpack.c.b16 %v653, %v651
      %v748 = vpack.c.b16 %v654, %v652
      %v749 = vpack.c.b16 %v657, %v655
      %v750 = vpack.c.b16 %v658, %v656
      %v751 = vpack.c.b16 %v661, %v659
      %v752 = vpack.c.b16 %v662, %v660
      %v753 = vpack.c.b16 %v665, %v663
      %v754 = vpack.c.b16 %v666, %v664
      %v755 = vpack.c.b16 %v669, %v667
      %v756 = vpack.c.b16 %v670, %v668
      %v757 = vpack.c.b16 %v673, %v671
      %v758 = vpack.c.b16 %v674, %v672
      %v759 = vpack.c.b16 %v677, %v675
      %v760 = vpack.c.b16 %v678, %v676
      %v761 = vpack.c.b16 %v681, %v679
      %v762 = vpack.c.b16 %v682, %v680
      %v763 = vpack.c.b16 %v685, %v683
      %v764 = vpack.c.b16 %v686, %v684
      %v765 = vpack.c.b16 %v689, %v687
      %v766 = vpack.c.b16 %v690, %v688
      %v767 = vpack.c.b16 %v693, %v691
      %v768 = vpack.c.b16 %v694, %v692
      %v769 = vpack.c.b16 %v697, %v695
      %v770 = vpack.c.b16 %v698, %v696
      %v771 = vpack.c.b16 %v701, %v699
      %v772 = vpack.c.b16 %v702, %v700
      %v773 = vpack.c.b16 %v705, %v703
      %v774 = vpack.c.b16 %v706, %v704
      %v775 = vpack.c.b16 %v709, %v707
      %v776 = vpack.c.b16 %v710, %v708
      %v777 = vpack.c.b16 %v713, %v711
      %v778 = vpack.c.b16 %v714, %v712
      %v829 = vunpack.c.l.b16 %v505
      %v830 = vunpack.c.l.b16 %v506
      %v831 = vunpack.c.l.b16 %v507
      %v832 = vunpack.c.l.b16 %v508
      %v833 = vunpack.c.l.b16 %v509
      %v834 = vunpack.c.l.b16 %v510
      %v835 = vunpack.c.l.b16 %v511
      %v836 = vunpack.c.l.b16 %v512
      %v837 = vunpack.c.l.b16 %v513
      %v838 = vunpack.c.l.b16 %v514
      %v839 = vunpack.c.l.b16 %v515
      %v840 = vunpack.c.l.b16 %v516
      %v841 = vunpack.c.l.b16 %v517
      %v842 = vunpack.c.l.b16 %v518
      %v843 = vunpack.c.l.b16 %v519
      %v844 = vunpack.c.l.b16 %v520
      %v845 = vunpack.c.l.b16 %v521
      %v846 = vunpack.c.l.b16 %v522
      %v847 = vpack.c.b16 %v830, %v829
      %v848 = vpack.c.b16 %v832, %v831
      %v849 = vpack.c.b16 %v834, %v833
      %v850 = vpack.c.b16 %v836, %v835
      %v851 = vpack.c.b16 %v838, %v837
      %v852 = vpack.c.b16 %v840, %v839
      %v853 = vpack.c.b16 %v842, %v841
      %v854 = vpack.c.b16 %v844, %v843
      %v855 = vpack.c.b16 %v846, %v845
      %vm865 = vcmask 130048
      %v867 = vsel %vm865, %v716, 0
      %v870 = vsel %vm865, %v718, 0
      %v873 = vsel %vm865, %v720, 0
      %v876 = vsel %vm865, %v722, 0
      %v879 = vsel %vm865, %v724, 0
      %v882 = vsel %vm865, %v726, 0
      %v885 = vsel %vm865, %v728, 0
      %v888 = vsel %vm865, %v730, 0
      %v891 = vsel %vm865, %v732, 0
      %v894 = vsel %vm865, %v734, 0
      %v897 = vsel %vm865, %v736, 0
      %v900 = vsel %vm865, %v738, 0
      %v903 = vsel %vm865, %v740, 0
      %v906 = vsel %vm865, %v742, 0
      %v909 = vsel %vm865, %v744, 0
      %v912 = vsel %vm865, %v746, 0
      %v915 = vsel %vm865, %v748, 0
      %v918 = vsel %vm865, %v750, 0
      %v921 = vsel %vm865, %v752, 0
      %v924 = vsel %vm865, %v754, 0
      %v927 = vsel %vm865, %v756, 0
      %v930 = vsel %vm865, %v758, 0
      %v933 = vsel %vm865, %v760, 0
      %v936 = vsel %vm865, %v762, 0
      %v939 = vsel %vm865, %v764, 0
      %v942 = vsel %vm865, %v766, 0
      %v945 = vsel %vm865, %v768, 0
      %v948 = vsel %vm865, %v770, 0
      %v951 = vsel %vm865, %v772, 0
      %v954 = vsel %vm865, %v774, 0
      %v957 = vsel %vm865, %v776, 0
      %v960 = vsel %vm865, %v778, 0
      %962 = vmatpush.bf16.msra.mxu0 %v854
      %963 = vmatpush.bf16.msra.mxu0 %v853
      %964 = vmatpush.bf16.msra.mxu0 %v852
      %965 = vmatpush.bf16.msra.mxu0 %v851
      %966 = vmatpush.bf16.msra.mxu0 %v850
      %967 = vmatpush.bf16.msra.mxu0 %v849
      %968 = vmatpush.bf16.msra.mxu0 %v848
      %969 = vmatpush.bf16.msra.mxu0 %v847
      %970 = vmatmul.bf16.gmra.mxu0 %v715
      %v971 = vpop.f32.mrf.mxu0
      %v972 = vadd.f32 0.0, %v971
      %v973 = vpop.f32.mrf.mxu0
      %v974 = vadd.f32 0.0, %v973
      %975 = vmatmul.bf16.gmra.mxu0 %v717
      %v976 = vpop.f32.mrf.mxu0
      %v977 = vadd.f32 0.0, %v976
      %v978 = vpop.f32.mrf.mxu0
      %v979 = vadd.f32 0.0, %v978
      %980 = vmatmul.bf16.gmra.mxu0 %v719
      %v981 = vpop.f32.mrf.mxu0
      %v982 = vadd.f32 0.0, %v981
      %v983 = vpop.f32.mrf.mxu0
      %v984 = vadd.f32 0.0, %v983
      %985 = vmatmul.bf16.gmra.mxu0 %v721
      %v986 = vpop.f32.mrf.mxu0
      %v987 = vadd.f32 0.0, %v986
      %v988 = vpop.f32.mrf.mxu0
      %v989 = vadd.f32 0.0, %v988
      %990 = vmatmul.bf16.gmra.mxu0 %v723
      %v991 = vpop.f32.mrf.mxu0
      %v992 = vadd.f32 0.0, %v991
      %v993 = vpop.f32.mrf.mxu0
      %v994 = vadd.f32 0.0, %v993
      %995 = vmatmul.bf16.gmra.mxu0 %v725
      %v996 = vpop.f32.mrf.mxu0
      %v997 = vadd.f32 0.0, %v996
      %v998 = vpop.f32.mrf.mxu0
      %v999 = vadd.f32 0.0, %v998
      %1000 = vmatmul.bf16.gmra.mxu0 %v727
      %v1001 = vpop.f32.mrf.mxu0
      %v1002 = vadd.f32 0.0, %v1001
      %v1003 = vpop.f32.mrf.mxu0
      %v1004 = vadd.f32 0.0, %v1003
      %1005 = vmatmul.bf16.gmra.mxu0 %v729
      %v1006 = vpop.f32.mrf.mxu0
      %v1007 = vadd.f32 0.0, %v1006
      %v1008 = vpop.f32.mrf.mxu0
      %v1009 = vadd.f32 0.0, %v1008
      %1010 = vmatmul.bf16.gmra.mxu0 %v731
      %v1011 = vpop.f32.mrf.mxu0
      %v1012 = vadd.f32 0.0, %v1011
      %v1013 = vpop.f32.mrf.mxu0
      %v1014 = vadd.f32 0.0, %v1013
      %1015 = vmatmul.bf16.gmra.mxu0 %v733
      %v1016 = vpop.f32.mrf.mxu0
      %v1017 = vadd.f32 0.0, %v1016
      %v1018 = vpop.f32.mrf.mxu0
      %v1019 = vadd.f32 0.0, %v1018
      %1020 = vmatmul.bf16.gmra.mxu0 %v735
      %v1021 = vpop.f32.mrf.mxu0
      %v1022 = vadd.f32 0.0, %v1021
      %v1023 = vpop.f32.mrf.mxu0
      %v1024 = vadd.f32 0.0, %v1023
      %1025 = vmatmul.bf16.gmra.mxu0 %v737
      %v1026 = vpop.f32.mrf.mxu0
      %v1027 = vadd.f32 0.0, %v1026
      %v1028 = vpop.f32.mrf.mxu0
      %v1029 = vadd.f32 0.0, %v1028
      %1030 = vmatmul.bf16.gmra.mxu0 %v739
      %v1031 = vpop.f32.mrf.mxu0
      %v1032 = vadd.f32 0.0, %v1031
      %v1033 = vpop.f32.mrf.mxu0
      %v1034 = vadd.f32 0.0, %v1033
      %1035 = vmatmul.bf16.gmra.mxu0 %v741
      %v1036 = vpop.f32.mrf.mxu0
      %v1037 = vadd.f32 0.0, %v1036
      %v1038 = vpop.f32.mrf.mxu0
      %v1039 = vadd.f32 0.0, %v1038
      %1040 = vmatmul.bf16.gmra.mxu0 %v743
      %v1041 = vpop.f32.mrf.mxu0
      %v1042 = vadd.f32 0.0, %v1041
      %v1043 = vpop.f32.mrf.mxu0
      %v1044 = vadd.f32 0.0, %v1043
      %1045 = vmatmul.bf16.gmra.mxu0 %v745
      %v1046 = vpop.f32.mrf.mxu0
      %v1047 = vadd.f32 0.0, %v1046
      %v1048 = vpop.f32.mrf.mxu0
      %v1049 = vadd.f32 0.0, %v1048
      %1050 = vmatmul.bf16.gmra.mxu0 %v747
      %v1051 = vpop.f32.mrf.mxu0
      %v1052 = vadd.f32 0.0, %v1051
      %v1053 = vpop.f32.mrf.mxu0
      %v1054 = vadd.f32 0.0, %v1053
      %1055 = vmatmul.bf16.gmra.mxu0 %v749
      %v1056 = vpop.f32.mrf.mxu0
      %v1057 = vadd.f32 0.0, %v1056
      %v1058 = vpop.f32.mrf.mxu0
      %v1059 = vadd.f32 0.0, %v1058
      %1060 = vmatmul.bf16.gmra.mxu0 %v751
      %v1061 = vpop.f32.mrf.mxu0
      %v1062 = vadd.f32 0.0, %v1061
      %v1063 = vpop.f32.mrf.mxu0
      %v1064 = vadd.f32 0.0, %v1063
      %1065 = vmatmul.bf16.gmra.mxu0 %v753
      %v1066 = vpop.f32.mrf.mxu0
      %v1067 = vadd.f32 0.0, %v1066
      %v1068 = vpop.f32.mrf.mxu0
      %v1069 = vadd.f32 0.0, %v1068
      %1070 = vmatmul.bf16.gmra.mxu0 %v755
      %v1071 = vpop.f32.mrf.mxu0
      %v1072 = vadd.f32 0.0, %v1071
      %v1073 = vpop.f32.mrf.mxu0
      %v1074 = vadd.f32 0.0, %v1073
      %1075 = vmatmul.bf16.gmra.mxu0 %v757
      %v1076 = vpop.f32.mrf.mxu0
      %v1077 = vadd.f32 0.0, %v1076
      %v1078 = vpop.f32.mrf.mxu0
      %v1079 = vadd.f32 0.0, %v1078
      %1080 = vmatmul.bf16.gmra.mxu0 %v759
      %v1081 = vpop.f32.mrf.mxu0
      %v1082 = vadd.f32 0.0, %v1081
      %v1083 = vpop.f32.mrf.mxu0
      %v1084 = vadd.f32 0.0, %v1083
      %1085 = vmatmul.bf16.gmra.mxu0 %v761
      %v1086 = vpop.f32.mrf.mxu0
      %v1087 = vadd.f32 0.0, %v1086
      %v1088 = vpop.f32.mrf.mxu0
      %v1089 = vadd.f32 0.0, %v1088
      %1090 = vmatmul.bf16.gmra.mxu0 %v763
      %v1091 = vpop.f32.mrf.mxu0
      %v1092 = vadd.f32 0.0, %v1091
      %v1093 = vpop.f32.mrf.mxu0
      %v1094 = vadd.f32 0.0, %v1093
      %1095 = vmatmul.bf16.gmra.mxu0 %v765
      %v1096 = vpop.f32.mrf.mxu0
      %v1097 = vadd.f32 0.0, %v1096
      %v1098 = vpop.f32.mrf.mxu0
      %v1099 = vadd.f32 0.0, %v1098
      %1100 = vmatmul.bf16.gmra.mxu0 %v767
      %v1101 = vpop.f32.mrf.mxu0
      %v1102 = vadd.f32 0.0, %v1101
      %v1103 = vpop.f32.mrf.mxu0
      %v1104 = vadd.f32 0.0, %v1103
      %1105 = vmatmul.bf16.gmra.mxu0 %v769
      %v1106 = vpop.f32.mrf.mxu0
      %v1107 = vadd.f32 0.0, %v1106
      %v1108 = vpop.f32.mrf.mxu0
      %v1109 = vadd.f32 0.0, %v1108
      %1110 = vmatmul.bf16.gmra.mxu0 %v771
      %v1111 = vpop.f32.mrf.mxu0
      %v1112 = vadd.f32 0.0, %v1111
      %v1113 = vpop.f32.mrf.mxu0
      %v1114 = vadd.f32 0.0, %v1113
      %1115 = vmatmul.bf16.gmra.mxu0 %v773
      %v1116 = vpop.f32.mrf.mxu0
      %v1117 = vadd.f32 0.0, %v1116
      %v1118 = vpop.f32.mrf.mxu0
      %v1119 = vadd.f32 0.0, %v1118
      %1120 = vmatmul.bf16.gmra.mxu0 %v775
      %v1121 = vpop.f32.mrf.mxu0
      %v1122 = vadd.f32 0.0, %v1121
      %v1123 = vpop.f32.mrf.mxu0
      %v1124 = vadd.f32 0.0, %v1123
      %1125 = vmatmul.bf16.gmra.mxu0 %v777
      %v1126 = vpop.f32.mrf.mxu0
      %v1127 = vadd.f32 0.0, %v1126
      %v1128 = vpop.f32.mrf.mxu0
      %v1129 = vadd.f32 0.0, %v1128
      %1130 = vdwg.mxu0
      %1131 = vmatpush.bf16.msra.mxu0 0
      %1132 = vmatpush.bf16.msra.mxu0 0
      %1133 = vmatpush.bf16.msra.mxu0 0
      %1134 = vmatpush.bf16.msra.mxu0 0
      %1135 = vmatpush.bf16.msra.mxu0 0
      %1136 = vmatpush.bf16.msra.mxu0 0
      %1137 = vmatpush.bf16.msra.mxu0 0
      %1138 = vmatpush.bf16.msra.mxu0 %v855
      %1139 = vmatmul.bf16.gmra.mxu0 %v867
      %v1140 = vpop.f32.mrf.mxu0
      %v1141 = vadd.f32 %v972, %v1140
      %v1142 = vpop.f32.mrf.mxu0
      %v1143 = vadd.f32 %v974, %v1142
      %1144 = vmatmul.bf16.gmra.mxu0 %v870
      %v1145 = vpop.f32.mrf.mxu0
      %v1146 = vadd.f32 %v977, %v1145
      %v1147 = vpop.f32.mrf.mxu0
      %v1148 = vadd.f32 %v979, %v1147
      %1149 = vmatmul.bf16.gmra.mxu0 %v873
      %v1150 = vpop.f32.mrf.mxu0
      %v1151 = vadd.f32 %v982, %v1150
      %v1152 = vpop.f32.mrf.mxu0
      %v1153 = vadd.f32 %v984, %v1152
      %1154 = vmatmul.bf16.gmra.mxu0 %v876
      %v1155 = vpop.f32.mrf.mxu0
      %v1156 = vadd.f32 %v987, %v1155
      %v1157 = vpop.f32.mrf.mxu0
      %v1158 = vadd.f32 %v989, %v1157
      %1159 = vmatmul.bf16.gmra.mxu0 %v879
      %v1160 = vpop.f32.mrf.mxu0
      %v1161 = vadd.f32 %v992, %v1160
      %v1162 = vpop.f32.mrf.mxu0
      %v1163 = vadd.f32 %v994, %v1162
      %1164 = vmatmul.bf16.gmra.mxu0 %v882
      %v1165 = vpop.f32.mrf.mxu0
      %v1166 = vadd.f32 %v997, %v1165
      %v1167 = vpop.f32.mrf.mxu0
      %v1168 = vadd.f32 %v999, %v1167
      %1169 = vmatmul.bf16.gmra.mxu0 %v885
      %v1170 = vpop.f32.mrf.mxu0
      %v1171 = vadd.f32 %v1002, %v1170
      %v1172 = vpop.f32.mrf.mxu0
      %v1173 = vadd.f32 %v1004, %v1172
      %1174 = vmatmul.bf16.gmra.mxu0 %v888
      %v1175 = vpop.f32.mrf.mxu0
      %v1176 = vadd.f32 %v1007, %v1175
      %v1177 = vpop.f32.mrf.mxu0
      %v1178 = vadd.f32 %v1009, %v1177
      %1179 = vmatmul.bf16.gmra.mxu0 %v891
      %v1180 = vpop.f32.mrf.mxu0
      %v1181 = vadd.f32 %v1012, %v1180
      %v1182 = vpop.f32.mrf.mxu0
      %v1183 = vadd.f32 %v1014, %v1182
      %1184 = vmatmul.bf16.gmra.mxu0 %v894
      %v1185 = vpop.f32.mrf.mxu0
      %v1186 = vadd.f32 %v1017, %v1185
      %v1187 = vpop.f32.mrf.mxu0
      %v1188 = vadd.f32 %v1019, %v1187
      %1189 = vmatmul.bf16.gmra.mxu0 %v897
      %v1190 = vpop.f32.mrf.mxu0
      %v1191 = vadd.f32 %v1022, %v1190
      %v1192 = vpop.f32.mrf.mxu0
      %v1193 = vadd.f32 %v1024, %v1192
      %1194 = vmatmul.bf16.gmra.mxu0 %v900
      %v1195 = vpop.f32.mrf.mxu0
      %v1196 = vadd.f32 %v1027, %v1195
      %v1197 = vpop.f32.mrf.mxu0
      %v1198 = vadd.f32 %v1029, %v1197
      %1199 = vmatmul.bf16.gmra.mxu0 %v903
      %v1200 = vpop.f32.mrf.mxu0
      %v1201 = vadd.f32 %v1032, %v1200
      %v1202 = vpop.f32.mrf.mxu0
      %v1203 = vadd.f32 %v1034, %v1202
      %1204 = vmatmul.bf16.gmra.mxu0 %v906
      %v1205 = vpop.f32.mrf.mxu0
      %v1206 = vadd.f32 %v1037, %v1205
      %v1207 = vpop.f32.mrf.mxu0
      %v1208 = vadd.f32 %v1039, %v1207
      %1209 = vmatmul.bf16.gmra.mxu0 %v909
      %v1210 = vpop.f32.mrf.mxu0
      %v1211 = vadd.f32 %v1042, %v1210
      %v1212 = vpop.f32.mrf.mxu0
      %v1213 = vadd.f32 %v1044, %v1212
      %1214 = vmatmul.bf16.gmra.mxu0 %v912
      %v1215 = vpop.f32.mrf.mxu0
      %v1216 = vadd.f32 %v1047, %v1215
      %v1217 = vpop.f32.mrf.mxu0
      %v1218 = vadd.f32 %v1049, %v1217
      %1219 = vmatmul.bf16.gmra.mxu0 %v915
      %v1220 = vpop.f32.mrf.mxu0
      %v1221 = vadd.f32 %v1052, %v1220
      %v1222 = vpop.f32.mrf.mxu0
      %v1223 = vadd.f32 %v1054, %v1222
      %1224 = vmatmul.bf16.gmra.mxu0 %v918
      %v1225 = vpop.f32.mrf.mxu0
      %v1226 = vadd.f32 %v1057, %v1225
      %v1227 = vpop.f32.mrf.mxu0
      %v1228 = vadd.f32 %v1059, %v1227
      %1229 = vmatmul.bf16.gmra.mxu0 %v921
      %v1230 = vpop.f32.mrf.mxu0
      %v1231 = vadd.f32 %v1062, %v1230
      %v1232 = vpop.f32.mrf.mxu0
      %v1233 = vadd.f32 %v1064, %v1232
      %1234 = vmatmul.bf16.gmra.mxu0 %v924
      %v1235 = vpop.f32.mrf.mxu0
      %v1236 = vadd.f32 %v1067, %v1235
      %v1237 = vpop.f32.mrf.mxu0
      %v1238 = vadd.f32 %v1069, %v1237
      %1239 = vmatmul.bf16.gmra.mxu0 %v927
      %v1240 = vpop.f32.mrf.mxu0
      %v1241 = vadd.f32 %v1072, %v1240
      %v1242 = vpop.f32.mrf.mxu0
      %v1243 = vadd.f32 %v1074, %v1242
      %1244 = vmatmul.bf16.gmra.mxu0 %v930
      %v1245 = vpop.f32.mrf.mxu0
      %v1246 = vadd.f32 %v1077, %v1245
      %v1247 = vpop.f32.mrf.mxu0
      %v1248 = vadd.f32 %v1079, %v1247
      %1249 = vmatmul.bf16.gmra.mxu0 %v933
      %v1250 = vpop.f32.mrf.mxu0
      %v1251 = vadd.f32 %v1082, %v1250
      %v1252 = vpop.f32.mrf.mxu0
      %v1253 = vadd.f32 %v1084, %v1252
      %1254 = vmatmul.bf16.gmra.mxu0 %v936
      %v1255 = vpop.f32.mrf.mxu0
      %v1256 = vadd.f32 %v1087, %v1255
      %v1257 = vpop.f32.mrf.mxu0
      %v1258 = vadd.f32 %v1089, %v1257
      %1259 = vmatmul.bf16.gmra.mxu0 %v939
      %v1260 = vpop.f32.mrf.mxu0
      %v1261 = vadd.f32 %v1092, %v1260
      %v1262 = vpop.f32.mrf.mxu0
      %v1263 = vadd.f32 %v1094, %v1262
      %1264 = vmatmul.bf16.gmra.mxu0 %v942
      %v1265 = vpop.f32.mrf.mxu0
      %v1266 = vadd.f32 %v1097, %v1265
      %v1267 = vpop.f32.mrf.mxu0
      %v1268 = vadd.f32 %v1099, %v1267
      %1269 = vmatmul.bf16.gmra.mxu0 %v945
      %v1270 = vpop.f32.mrf.mxu0
      %v1271 = vadd.f32 %v1102, %v1270
      %v1272 = vpop.f32.mrf.mxu0
      %v1273 = vadd.f32 %v1104, %v1272
      %1274 = vmatmul.bf16.gmra.mxu0 %v948
      %v1275 = vpop.f32.mrf.mxu0
      %v1276 = vadd.f32 %v1107, %v1275
      %v1277 = vpop.f32.mrf.mxu0
      %v1278 = vadd.f32 %v1109, %v1277
      %1279 = vmatmul.bf16.gmra.mxu0 %v951
      %v1280 = vpop.f32.mrf.mxu0
      %v1281 = vadd.f32 %v1112, %v1280
      %v1282 = vpop.f32.mrf.mxu0
      %v1283 = vadd.f32 %v1114, %v1282
      %1284 = vmatmul.bf16.gmra.mxu0 %v954
      %v1285 = vpop.f32.mrf.mxu0
      %v1286 = vadd.f32 %v1117, %v1285
      %v1287 = vpop.f32.mrf.mxu0
      %v1288 = vadd.f32 %v1119, %v1287
      %1289 = vmatmul.bf16.gmra.mxu0 %v957
      %v1290 = vpop.f32.mrf.mxu0
      %v1291 = vadd.f32 %v1122, %v1290
      %v1292 = vpop.f32.mrf.mxu0
      %v1293 = vadd.f32 %v1124, %v1292
      %1294 = vmatmul.bf16.gmra.mxu0 %v960
      %v1295 = vpop.f32.mrf.mxu0
      %v1296 = vadd.f32 %v1127, %v1295
      %v1297 = vpop.f32.mrf.mxu0
      %v1298 = vadd.f32 %v1129, %v1297
      %1299 = vdwg.mxu0
      %v1300 = vadd.f32 %v377, %v1141
      %v1301 = vadd.f32 %v378, %v1143
      %v1302 = vadd.f32 %v379, %v1146
      %v1303 = vadd.f32 %v380, %v1148
      %v1304 = vadd.f32 %v381, %v1151
      %v1305 = vadd.f32 %v382, %v1153
      %v1306 = vadd.f32 %v383, %v1156
      %v1307 = vadd.f32 %v384, %v1158
      %v1308 = vadd.f32 %v385, %v1161
      %v1309 = vadd.f32 %v386, %v1163
      %v1310 = vadd.f32 %v387, %v1166
      %v1311 = vadd.f32 %v388, %v1168
      %v1312 = vadd.f32 %v389, %v1171
      %v1313 = vadd.f32 %v390, %v1173
      %v1314 = vadd.f32 %v391, %v1176
      %v1315 = vadd.f32 %v392, %v1178
      %v1316 = vadd.f32 %v393, %v1181
      %v1317 = vadd.f32 %v394, %v1183
      %v1318 = vadd.f32 %v395, %v1186
      %v1319 = vadd.f32 %v396, %v1188
      %v1320 = vadd.f32 %v397, %v1191
      %v1321 = vadd.f32 %v398, %v1193
      %v1322 = vadd.f32 %v399, %v1196
      %v1323 = vadd.f32 %v400, %v1198
      %v1324 = vadd.f32 %v401, %v1201
      %v1325 = vadd.f32 %v402, %v1203
      %v1326 = vadd.f32 %v403, %v1206
      %v1327 = vadd.f32 %v404, %v1208
      %v1328 = vadd.f32 %v405, %v1211
      %v1329 = vadd.f32 %v406, %v1213
      %v1330 = vadd.f32 %v407, %v1216
      %v1331 = vadd.f32 %v408, %v1218
      %v1332 = vadd.f32 %v409, %v1221
      %v1333 = vadd.f32 %v410, %v1223
      %v1334 = vadd.f32 %v411, %v1226
      %v1335 = vadd.f32 %v412, %v1228
      %v1336 = vadd.f32 %v413, %v1231
      %v1337 = vadd.f32 %v414, %v1233
      %v1338 = vadd.f32 %v415, %v1236
      %v1339 = vadd.f32 %v416, %v1238
      %v1340 = vadd.f32 %v417, %v1241
      %v1341 = vadd.f32 %v418, %v1243
      %v1342 = vadd.f32 %v419, %v1246
      %v1343 = vadd.f32 %v420, %v1248
      %v1344 = vadd.f32 %v421, %v1251
      %v1345 = vadd.f32 %v422, %v1253
      %v1346 = vadd.f32 %v423, %v1256
      %v1347 = vadd.f32 %v424, %v1258
      %v1348 = vadd.f32 %v425, %v1261
      %v1349 = vadd.f32 %v426, %v1263
      %v1350 = vadd.f32 %v427, %v1266
      %v1351 = vadd.f32 %v428, %v1268
      %v1352 = vadd.f32 %v429, %v1271
      %v1353 = vadd.f32 %v430, %v1273
      %v1354 = vadd.f32 %v431, %v1276
      %v1355 = vadd.f32 %v432, %v1278
      %v1356 = vadd.f32 %v433, %v1281
      %v1357 = vadd.f32 %v434, %v1283
      %v1358 = vadd.f32 %v435, %v1286
      %v1359 = vadd.f32 %v436, %v1288
      %v1360 = vadd.f32 %v437, %v1291
      %v1361 = vadd.f32 %v438, %v1293
      %v1362 = vadd.f32 %v439, %v1296
      %v1363 = vadd.f32 %v440, %v1298
      %1364 = vst [vmem:[#allocation2] sm:$0xff] %v1300
      %1365 = vst [vmem:[#allocation2 + $0x8] sm:$0xff] %v1301
      %1366 = vst [vmem:[#allocation2 + $0x10] sm:$0xff] %v1302
      %1367 = vst [vmem:[#allocation2 + $0x18] sm:$0xff] %v1303
      %1368 = vst [vmem:[#allocation2 + $0x20] sm:$0xff] %v1304
      %1369 = vst [vmem:[#allocation2 + $0x28] sm:$0xff] %v1305
      %1370 = vst [vmem:[#allocation2 + $0x30] sm:$0xff] %v1306
      %1371 = vst [vmem:[#allocation2 + $0x38] sm:$0xff] %v1307
      %1372 = vst [vmem:[#allocation2 + $0x40] sm:$0xff] %v1308
      %1373 = vst [vmem:[#allocation2 + $0x48] sm:$0xff] %v1309
      %1374 = vst [vmem:[#allocation2 + $0x50] sm:$0xff] %v1310
      %1375 = vst [vmem:[#allocation2 + $0x58] sm:$0xff] %v1311
      %1376 = vst [vmem:[#allocation2 + $0x60] sm:$0xff] %v1312
      %1377 = vst [vmem:[#allocation2 + $0x68] sm:$0xff] %v1313
      %1378 = vst [vmem:[#allocation2 + $0x70] sm:$0xff] %v1314
      %1379 = vst [vmem:[#allocation2 + $0x78] sm:$0xff] %v1315
      %1380 = vst [vmem:[#allocation2 + $0x80] sm:$0xff] %v1316
      %1381 = vst [vmem:[#allocation2 + $0x88] sm:$0xff] %v1317
      %1382 = vst [vmem:[#allocation2 + $0x90] sm:$0xff] %v1318
      %1383 = vst [vmem:[#allocation2 + $0x98] sm:$0xff] %v1319
      %1384 = vst [vmem:[#allocation2 + $0xa0] sm:$0xff] %v1320
      %1385 = vst [vmem:[#allocation2 + $0xa8] sm:$0xff] %v1321
      %1386 = vst [vmem:[#allocation2 + $0xb0] sm:$0xff] %v1322
      %1387 = vst [vmem:[#allocation2 + $0xb8] sm:$0xff] %v1323
      %1388 = vst [vmem:[#allocation2 + $0xc0] sm:$0xff] %v1324
      %1389 = vst [vmem:[#allocation2 + $0xc8] sm:$0xff] %v1325
      %1390 = vst [vmem:[#allocation2 + $0xd0] sm:$0xff] %v1326
      %1391 = vst [vmem:[#allocation2 + $0xd8] sm:$0xff] %v1327
      %1392 = vst [vmem:[#allocation2 + $0xe0] sm:$0xff] %v1328
      %1393 = vst [vmem:[#allocation2 + $0xe8] sm:$0xff] %v1329
      %1394 = vst [vmem:[#allocation2 + $0xf0] sm:$0xff] %v1330
      %1395 = vst [vmem:[#allocation2 + $0xf8] sm:$0xff] %v1331
      %1396 = vst [vmem:[#allocation2 + $0x100] sm:$0xff] %v1332
      %1397 = vst [vmem:[#allocation2 + $0x108] sm:$0xff] %v1333
      %1398 = vst [vmem:[#allocation2 + $0x110] sm:$0xff] %v1334
      %1399 = vst [vmem:[#allocation2 + $0x118] sm:$0xff] %v1335
      %1400 = vst [vmem:[#allocation2 + $0x120] sm:$0xff] %v1336
      %1401 = vst [vmem:[#allocation2 + $0x128] sm:$0xff] %v1337
      %1402 = vst [vmem:[#allocation2 + $0x130] sm:$0xff] %v1338
      %1403 = vst [vmem:[#allocation2 + $0x138] sm:$0xff] %v1339
      %1404 = vst [vmem:[#allocation2 + $0x140] sm:$0xff] %v1340
      %1405 = vst [vmem:[#allocation2 + $0x148] sm:$0xff] %v1341
      %1406 = vst [vmem:[#allocation2 + $0x150] sm:$0xff] %v1342
      %1407 = vst [vmem:[#allocation2 + $0x158] sm:$0xff] %v1343
      %1408 = vst [vmem:[#allocation2 + $0x160] sm:$0xff] %v1344
      %1409 = vst [vmem:[#allocation2 + $0x168] sm:$0xff] %v1345
      %1410 = vst [vmem:[#allocation2 + $0x170] sm:$0xff] %v1346
      %1411 = vst [vmem:[#allocation2 + $0x178] sm:$0xff] %v1347
      %1412 = vst [vmem:[#allocation2 + $0x180] sm:$0xff] %v1348
      %1413 = vst [vmem:[#allocation2 + $0x188] sm:$0xff] %v1349
      %1414 = vst [vmem:[#allocation2 + $0x190] sm:$0xff] %v1350
      %1415 = vst [vmem:[#allocation2 + $0x198] sm:$0xff] %v1351
      %1416 = vst [vmem:[#allocation2 + $0x1a0] sm:$0xff] %v1352
      %1417 = vst [vmem:[#allocation2 + $0x1a8] sm:$0xff] %v1353
      %1418 = vst [vmem:[#allocation2 + $0x1b0] sm:$0xff] %v1354
      %1419 = vst [vmem:[#allocation2 + $0x1b8] sm:$0xff] %v1355
      %1420 = vst [vmem:[#allocation2 + $0x1c0] sm:$0xff] %v1356
      %1421 = vst [vmem:[#allocation2 + $0x1c8] sm:$0xff] %v1357
      %1422 = vst [vmem:[#allocation2 + $0x1d0] sm:$0xff] %v1358
      %1423 = vst [vmem:[#allocation2 + $0x1d8] sm:$0xff] %v1359
      %1424 = vst [vmem:[#allocation2 + $0x1e0] sm:$0xff] %v1360
      %1425 = vst [vmem:[#allocation2 + $0x1e8] sm:$0xff] %v1361
      %1426 = vst [vmem:[#allocation2 + $0x1f0] sm:$0xff] %v1362
      %1427 = vst [vmem:[#allocation2 + $0x1f8] sm:$0xff] %v1363
      // Predicated region
      $region41: #{_lambda_.44} parent=35 // pred_check
        %p1428 = pneg %p309
      $region42: #{_lambda_.44} parent=35 // pred_check_branch
        %1430 = sbr.rel (%p1428) target = $region44
      $region43: #{_lambda_.44} parent=35 // pred_region
        %v1431 = vld [vmem:[#allocation2] sm:$0xff]
        %v1432 = vld [vmem:[#allocation2 + $0x8] sm:$0xff]
        %v1433 = vld [vmem:[#allocation2 + $0x10] sm:$0xff]
        %v1434 = vld [vmem:[#allocation2 + $0x18] sm:$0xff]
        %v1435 = vld [vmem:[#allocation2 + $0x20] sm:$0xff]
        %v1436 = vld [vmem:[#allocation2 + $0x28] sm:$0xff]
        %v1437 = vld [vmem:[#allocation2 + $0x30] sm:$0xff]
        %v1438 = vld [vmem:[#allocation2 + $0x38] sm:$0xff]
        %v1439 = vld [vmem:[#allocation2 + $0x40] sm:$0xff]
        %v1440 = vld [vmem:[#allocation2 + $0x48] sm:$0xff]
        %v1441 = vld [vmem:[#allocation2 + $0x50] sm:$0xff]
        %v1442 = vld [vmem:[#allocation2 + $0x58] sm:$0xff]
        %v1443 = vld [vmem:[#allocation2 + $0x60] sm:$0xff]
        %v1444 = vld [vmem:[#allocation2 + $0x68] sm:$0xff]
        %v1445 = vld [vmem:[#allocation2 + $0x70] sm:$0xff]
        %v1446 = vld [vmem:[#allocation2 + $0x78] sm:$0xff]
        %v1447 = vld [vmem:[#allocation2 + $0x80] sm:$0xff]
        %v1448 = vld [vmem:[#allocation2 + $0x88] sm:$0xff]
        %v1449 = vld [vmem:[#allocation2 + $0x90] sm:$0xff]
        %v1450 = vld [vmem:[#allocation2 + $0x98] sm:$0xff]
        %v1451 = vld [vmem:[#allocation2 + $0xa0] sm:$0xff]
        %v1452 = vld [vmem:[#allocation2 + $0xa8] sm:$0xff]
        %v1453 = vld [vmem:[#allocation2 + $0xb0] sm:$0xff]
        %v1454 = vld [vmem:[#allocation2 + $0xb8] sm:$0xff]
        %v1455 = vld [vmem:[#allocation2 + $0xc0] sm:$0xff]
        %v1456 = vld [vmem:[#allocation2 + $0xc8] sm:$0xff]
        %v1457 = vld [vmem:[#allocation2 + $0xd0] sm:$0xff]
        %v1458 = vld [vmem:[#allocation2 + $0xd8] sm:$0xff]
        %v1459 = vld [vmem:[#allocation2 + $0xe0] sm:$0xff]
        %v1460 = vld [vmem:[#allocation2 + $0xe8] sm:$0xff]
        %v1461 = vld [vmem:[#allocation2 + $0xf0] sm:$0xff]
        %v1462 = vld [vmem:[#allocation2 + $0xf8] sm:$0xff]
        %v1463 = vld [vmem:[#allocation2 + $0x100] sm:$0xff]
        %v1464 = vld [vmem:[#allocation2 + $0x108] sm:$0xff]
        %v1465 = vld [vmem:[#allocation2 + $0x110] sm:$0xff]
        %v1466 = vld [vmem:[#allocation2 + $0x118] sm:$0xff]
        %v1467 = vld [vmem:[#allocation2 + $0x120] sm:$0xff]
        %v1468 = vld [vmem:[#allocation2 + $0x128] sm:$0xff]
        %v1469 = vld [vmem:[#allocation2 + $0x130] sm:$0xff]
        %v1470 = vld [vmem:[#allocation2 + $0x138] sm:$0xff]
        %v1471 = vld [vmem:[#allocation2 + $0x140] sm:$0xff]
        %v1472 = vld [vmem:[#allocation2 + $0x148] sm:$0xff]
        %v1473 = vld [vmem:[#allocation2 + $0x150] sm:$0xff]
        %v1474 = vld [vmem:[#allocation2 + $0x158] sm:$0xff]
        %v1475 = vld [vmem:[#allocation2 + $0x160] sm:$0xff]
        %v1476 = vld [vmem:[#allocation2 + $0x168] sm:$0xff]
        %v1477 = vld [vmem:[#allocation2 + $0x170] sm:$0xff]
        %v1478 = vld [vmem:[#allocation2 + $0x178] sm:$0xff]
        %v1479 = vld [vmem:[#allocation2 + $0x180] sm:$0xff]
        %v1480 = vld [vmem:[#allocation2 + $0x188] sm:$0xff]
        %v1481 = vld [vmem:[#allocation2 + $0x190] sm:$0xff]
        %v1482 = vld [vmem:[#allocation2 + $0x198] sm:$0xff]
        %v1483 = vld [vmem:[#allocation2 + $0x1a0] sm:$0xff]
        %v1484 = vld [vmem:[#allocation2 + $0x1a8] sm:$0xff]
        %v1485 = vld [vmem:[#allocation2 + $0x1b0] sm:$0xff]
        %v1486 = vld [vmem:[#allocation2 + $0x1b8] sm:$0xff]
        %v1487 = vld [vmem:[#allocation2 + $0x1c0] sm:$0xff]
        %v1488 = vld [vmem:[#allocation2 + $0x1c8] sm:$0xff]
        %v1489 = vld [vmem:[#allocation2 + $0x1d0] sm:$0xff]
        %v1490 = vld [vmem:[#allocation2 + $0x1d8] sm:$0xff]
        %v1491 = vld [vmem:[#allocation2 + $0x1e0] sm:$0xff]
        %v1492 = vld [vmem:[#allocation2 + $0x1e8] sm:$0xff]
        %v1493 = vld [vmem:[#allocation2 + $0x1f0] sm:$0xff]
        %v1494 = vld [vmem:[#allocation2 + $0x1f8] sm:$0xff]
        %v1495 = vld [vmem:[%s295] sm:$0x1]
        %v1497 = vperm.slane %v1495, 0
        %v1499 = vmul.f32 %v1431, %v1497
        %v1500 = vmul.f32 %v1432, %v1497
        %v1501 = vmul.f32 %v1433, %v1497
        %v1502 = vmul.f32 %v1434, %v1497
        %v1503 = vmul.f32 %v1435, %v1497
        %v1504 = vmul.f32 %v1436, %v1497
        %v1505 = vmul.f32 %v1437, %v1497
        %v1506 = vmul.f32 %v1438, %v1497
        %v1507 = vmul.f32 %v1439, %v1497
        %v1508 = vmul.f32 %v1440, %v1497
        %v1509 = vmul.f32 %v1441, %v1497
        %v1510 = vmul.f32 %v1442, %v1497
        %v1511 = vmul.f32 %v1443, %v1497
        %v1512 = vmul.f32 %v1444, %v1497
        %v1513 = vmul.f32 %v1445, %v1497
        %v1514 = vmul.f32 %v1446, %v1497
        %v1515 = vmul.f32 %v1447, %v1497
        %v1516 = vmul.f32 %v1448, %v1497
        %v1517 = vmul.f32 %v1449, %v1497
        %v1518 = vmul.f32 %v1450, %v1497
        %v1519 = vmul.f32 %v1451, %v1497
        %v1520 = vmul.f32 %v1452, %v1497
        %v1521 = vmul.f32 %v1453, %v1497
        %v1522 = vmul.f32 %v1454, %v1497
        %v1523 = vmul.f32 %v1455, %v1497
        %v1524 = vmul.f32 %v1456, %v1497
        %v1525 = vmul.f32 %v1457, %v1497
        %v1526 = vmul.f32 %v1458, %v1497
        %v1527 = vmul.f32 %v1459, %v1497
        %v1528 = vmul.f32 %v1460, %v1497
        %v1529 = vmul.f32 %v1461, %v1497
        %v1530 = vmul.f32 %v1462, %v1497
        %v1531 = vmul.f32 %v1463, %v1497
        %v1532 = vmul.f32 %v1464, %v1497
        %v1533 = vmul.f32 %v1465, %v1497
        %v1534 = vmul.f32 %v1466, %v1497
        %v1535 = vmul.f32 %v1467, %v1497
        %v1536 = vmul.f32 %v1468, %v1497
        %v1537 = vmul.f32 %v1469, %v1497
        %v1538 = vmul.f32 %v1470, %v1497
        %v1539 = vmul.f32 %v1471, %v1497
        %v1540 = vmul.f32 %v1472, %v1497
        %v1541 = vmul.f32 %v1473, %v1497
        %v1542 = vmul.f32 %v1474, %v1497
        %v1543 = vmul.f32 %v1475, %v1497
        %v1544 = vmul.f32 %v1476, %v1497
        %v1545 = vmul.f32 %v1477, %v1497
        %v1546 = vmul.f32 %v1478, %v1497
        %v1547 = vmul.f32 %v1479, %v1497
        %v1548 = vmul.f32 %v1480, %v1497
        %v1549 = vmul.f32 %v1481, %v1497
        %v1550 = vmul.f32 %v1482, %v1497
        %v1551 = vmul.f32 %v1483, %v1497
        %v1552 = vmul.f32 %v1484, %v1497
        %v1553 = vmul.f32 %v1485, %v1497
        %v1554 = vmul.f32 %v1486, %v1497
        %v1555 = vmul.f32 %v1487, %v1497
        %v1556 = vmul.f32 %v1488, %v1497
        %v1557 = vmul.f32 %v1489, %v1497
        %v1558 = vmul.f32 %v1490, %v1497
        %v1559 = vmul.f32 %v1491, %v1497
        %v1560 = vmul.f32 %v1492, %v1497
        %v1561 = vmul.f32 %v1493, %v1497
        %v1562 = vmul.f32 %v1494, %v1497
        %v1563 = vld [vmem:[%s298] sm:$0x1]
        %v1565 = vperm.slane %v1563, 0
        %v1567 = vadd.f32 %v1499, %v1565
        %v1568 = vadd.f32 %v1500, %v1565
        %v1569 = vadd.f32 %v1501, %v1565
        %v1570 = vadd.f32 %v1502, %v1565
        %v1571 = vadd.f32 %v1503, %v1565
        %v1572 = vadd.f32 %v1504, %v1565
        %v1573 = vadd.f32 %v1505, %v1565
        %v1574 = vadd.f32 %v1506, %v1565
        %v1575 = vadd.f32 %v1507, %v1565
        %v1576 = vadd.f32 %v1508, %v1565
        %v1577 = vadd.f32 %v1509, %v1565
        %v1578 = vadd.f32 %v1510, %v1565
        %v1579 = vadd.f32 %v1511, %v1565
        %v1580 = vadd.f32 %v1512, %v1565
        %v1581 = vadd.f32 %v1513, %v1565
        %v1582 = vadd.f32 %v1514, %v1565
        %v1583 = vadd.f32 %v1515, %v1565
        %v1584 = vadd.f32 %v1516, %v1565
        %v1585 = vadd.f32 %v1517, %v1565
        %v1586 = vadd.f32 %v1518, %v1565
        %v1587 = vadd.f32 %v1519, %v1565
        %v1588 = vadd.f32 %v1520, %v1565
        %v1589 = vadd.f32 %v1521, %v1565
        %v1590 = vadd.f32 %v1522, %v1565
        %v1591 = vadd.f32 %v1523, %v1565
        %v1592 = vadd.f32 %v1524, %v1565
        %v1593 = vadd.f32 %v1525, %v1565
        %v1594 = vadd.f32 %v1526, %v1565
        %v1595 = vadd.f32 %v1527, %v1565
        %v1596 = vadd.f32 %v1528, %v1565
        %v1597 = vadd.f32 %v1529, %v1565
        %v1598 = vadd.f32 %v1530, %v1565
        %v1599 = vadd.f32 %v1531, %v1565
        %v1600 = vadd.f32 %v1532, %v1565
        %v1601 = vadd.f32 %v1533, %v1565
        %v1602 = vadd.f32 %v1534, %v1565
        %v1603 = vadd.f32 %v1535, %v1565
        %v1604 = vadd.f32 %v1536, %v1565
        %v1605 = vadd.f32 %v1537, %v1565
        %v1606 = vadd.f32 %v1538, %v1565
        %v1607 = vadd.f32 %v1539, %v1565
        %v1608 = vadd.f32 %v1540, %v1565
        %v1609 = vadd.f32 %v1541, %v1565
        %v1610 = vadd.f32 %v1542, %v1565
        %v1611 = vadd.f32 %v1543, %v1565
        %v1612 = vadd.f32 %v1544, %v1565
        %v1613 = vadd.f32 %v1545, %v1565
        %v1614 = vadd.f32 %v1546, %v1565
        %v1615 = vadd.f32 %v1547, %v1565
        %v1616 = vadd.f32 %v1548, %v1565
        %v1617 = vadd.f32 %v1549, %v1565
        %v1618 = vadd.f32 %v1550, %v1565
        %v1619 = vadd.f32 %v1551, %v1565
        %v1620 = vadd.f32 %v1552, %v1565
        %v1621 = vadd.f32 %v1553, %v1565
        %v1622 = vadd.f32 %v1554, %v1565
        %v1623 = vadd.f32 %v1555, %v1565
        %v1624 = vadd.f32 %v1556, %v1565
        %v1625 = vadd.f32 %v1557, %v1565
        %v1626 = vadd.f32 %v1558, %v1565
        %v1627 = vadd.f32 %v1559, %v1565
        %v1628 = vadd.f32 %v1560, %v1565
        %v1629 = vadd.f32 %v1561, %v1565
        %v1630 = vadd.f32 %v1562, %v1565
        %1631 = vst [vmem:[%s306] sm:$0xff] %v1567
        %1632 = vst [vmem:[%s306 + $0x8] sm:$0xff] %v1568
        %1633 = vst [vmem:[%s306 + $0x10] sm:$0xff] %v1569
        %1634 = vst [vmem:[%s306 + $0x18] sm:$0xff] %v1570
        %1635 = vst [vmem:[%s306 + $0x20] sm:$0xff] %v1571
        %1636 = vst [vmem:[%s306 + $0x28] sm:$0xff] %v1572
        %1637 = vst [vmem:[%s306 + $0x30] sm:$0xff] %v1573
        %1638 = vst [vmem:[%s306 + $0x38] sm:$0xff] %v1574
        %1639 = vst [vmem:[%s306 + $0x40] sm:$0xff] %v1575
        %1640 = vst [vmem:[%s306 + $0x48] sm:$0xff] %v1576
        %1641 = vst [vmem:[%s306 + $0x50] sm:$0xff] %v1577
        %1642 = vst [vmem:[%s306 + $0x58] sm:$0xff] %v1578
        %1643 = vst [vmem:[%s306 + $0x60] sm:$0xff] %v1579
        %1644 = vst [vmem:[%s306 + $0x68] sm:$0xff] %v1580
        %1645 = vst [vmem:[%s306 + $0x70] sm:$0xff] %v1581
        %1646 = vst [vmem:[%s306 + $0x78] sm:$0xff] %v1582
        %1647 = vst [vmem:[%s306 + $0x80] sm:$0xff] %v1583
        %1648 = vst [vmem:[%s306 + $0x88] sm:$0xff] %v1584
        %1649 = vst [vmem:[%s306 + $0x90] sm:$0xff] %v1585
        %1650 = vst [vmem:[%s306 + $0x98] sm:$0xff] %v1586
        %1651 = vst [vmem:[%s306 + $0xa0] sm:$0xff] %v1587
        %1652 = vst [vmem:[%s306 + $0xa8] sm:$0xff] %v1588
        %1653 = vst [vmem:[%s306 + $0xb0] sm:$0xff] %v1589
        %1654 = vst [vmem:[%s306 + $0xb8] sm:$0xff] %v1590
        %1655 = vst [vmem:[%s306 + $0xc0] sm:$0xff] %v1591
        %1656 = vst [vmem:[%s306 + $0xc8] sm:$0xff] %v1592
        %1657 = vst [vmem:[%s306 + $0xd0] sm:$0xff] %v1593
        %1658 = vst [vmem:[%s306 + $0xd8] sm:$0xff] %v1594
        %1659 = vst [vmem:[%s306 + $0xe0] sm:$0xff] %v1595
        %1660 = vst [vmem:[%s306 + $0xe8] sm:$0xff] %v1596
        %1661 = vst [vmem:[%s306 + $0xf0] sm:$0xff] %v1597
        %1662 = vst [vmem:[%s306 + $0xf8] sm:$0xff] %v1598
        %1663 = vst [vmem:[%s306 + $0x100] sm:$0xff] %v1599
        %1664 = vst [vmem:[%s306 + $0x108] sm:$0xff] %v1600
        %1665 = vst [vmem:[%s306 + $0x110] sm:$0xff] %v1601
        %1666 = vst [vmem:[%s306 + $0x118] sm:$0xff] %v1602
        %1667 = vst [vmem:[%s306 + $0x120] sm:$0xff] %v1603
        %1668 = vst [vmem:[%s306 + $0x128] sm:$0xff] %v1604
        %1669 = vst [vmem:[%s306 + $0x130] sm:$0xff] %v1605
        %1670 = vst [vmem:[%s306 + $0x138] sm:$0xff] %v1606
        %1671 = vst [vmem:[%s306 + $0x140] sm:$0xff] %v1607
        %1672 = vst [vmem:[%s306 + $0x148] sm:$0xff] %v1608
        %1673 = vst [vmem:[%s306 + $0x150] sm:$0xff] %v1609
        %1674 = vst [vmem:[%s306 + $0x158] sm:$0xff] %v1610
        %1675 = vst [vmem:[%s306 + $0x160] sm:$0xff] %v1611
        %1676 = vst [vmem:[%s306 + $0x168] sm:$0xff] %v1612
        %1677 = vst [vmem:[%s306 + $0x170] sm:$0xff] %v1613
        %1678 = vst [vmem:[%s306 + $0x178] sm:$0xff] %v1614
        %1679 = vst [vmem:[%s306 + $0x180] sm:$0xff] %v1615
        %1680 = vst [vmem:[%s306 + $0x188] sm:$0xff] %v1616
        %1681 = vst [vmem:[%s306 + $0x190] sm:$0xff] %v1617
        %1682 = vst [vmem:[%s306 + $0x198] sm:$0xff] %v1618
        %1683 = vst [vmem:[%s306 + $0x1a0] sm:$0xff] %v1619
        %1684 = vst [vmem:[%s306 + $0x1a8] sm:$0xff] %v1620
        %1685 = vst [vmem:[%s306 + $0x1b0] sm:$0xff] %v1621
        %1686 = vst [vmem:[%s306 + $0x1b8] sm:$0xff] %v1622
        %1687 = vst [vmem:[%s306 + $0x1c0] sm:$0xff] %v1623
        %1688 = vst [vmem:[%s306 + $0x1c8] sm:$0xff] %v1624
        %1689 = vst [vmem:[%s306 + $0x1d0] sm:$0xff] %v1625
        %1690 = vst [vmem:[%s306 + $0x1d8] sm:$0xff] %v1626
        %1691 = vst [vmem:[%s306 + $0x1e0] sm:$0xff] %v1627
        %1692 = vst [vmem:[%s306 + $0x1e8] sm:$0xff] %v1628
        %1693 = vst [vmem:[%s306 + $0x1f0] sm:$0xff] %v1629
        %1694 = vst [vmem:[%s306 + $0x1f8] sm:$0xff] %v1630
      $region44: #{_lambda_.44} parent=35 // pred_fallthru
        _
      %s1695 = smul.u32 64, %s20
      %p1696 = scmp.lt.s32.totalorder %s1695, 127
      %s1697 = scalar_select %p1696, %s1695, 127
      %p1698 = scmp.lt.s32.totalorder %s21, 0
      %s1699 = scalar_select %p1698, %s21, 0
      %s1700 = sadd.s32 %s1699, %s1697
      %s1701 = smul.addr %s1700, 8
      %s1702 = scalar_lea.vmem %s4, %s1701
      // Predicated region
      $region45: #{_lambda_.44} parent=35 // pred_check
        %p1703 = pneg %p162
      $region46: #{_lambda_.44} parent=35 // pred_check_branch
        %1705 = sbr.rel (%p1703) target = $region48
      $region47: #{_lambda_.44} parent=35 // pred_region
        %s1706 = smul.u32 64, %s20
      $region48: #{_lambda_.44} parent=35 // pred_fallthru
        _
    $region36: #{_lambda_.44} parent=5 // pred_fallthru
      _
    %p1707 = scmp.le.s32.totalorder 2, %s10
    // Predicated region
    $region49: #{_lambda_.44} parent=5 // pred_check
      %p1708 = pneg %p1707
    $region50: #{_lambda_.44} parent=5 // pred_check_branch
      %1710 = sbr.rel (%p1708) target = $region52
    $region51: #{_lambda_.44} parent=5 // pred_region
      %s1711 = ssub.s32 %s10, 2
      // Predicated region
      $region53: #{_lambda_.44} parent=51 // pred_check
        %p1712 = pneg %p168
      $region54: #{_lambda_.44} parent=51 // pred_check_branch
        %1714 = sbr.rel (%p1712) target = $region56
      $region55: #{_lambda_.44} parent=51 // pred_region
        %s1715 = smul.u32 64, %s23
        %p1716 = scmp.lt.s32.totalorder %s1715, 127
        %s1717 = scalar_select %p1716, %s1715, 127
        %p1718 = scmp.lt.s32.totalorder %s24, 0
        %s1719 = scalar_select %p1718, %s24, 0
        %s1720 = sadd.s32 %s1719, %s1717
        %s1721 = smul.addr %s1720, 8
        %s1722 = scalar_lea.vmem %s4, %s1721
      $region56: #{_lambda_.44} parent=51 // pred_fallthru
        _
    $region52: #{_lambda_.44} parent=5 // pred_fallthru
      _
  $region6: #{_lambda_.44} parent=0 // loop_footer
    %s14 = sadd.s32 1, %s10
  $region7: #{_lambda_.44} parent=0 // loop_footer_branch
    %9 = sbr.rel target = $region3
  $region8: #{_lambda_.44} parent=0 // loop_exit
    _

// kernel: _lambda_.47
$region0: #{_lambda_.47}
  #allocation0 [shape = 'u32[]', space=smem, size = 0x4, offset = 0x4, fixed_abs, tag = 'smem constant byte address 0x4 - core index']
  #allocation1 [shape = 'u32[72,128]{1,0:T(1,128)}', space=vmem, size = 0x9000, scoped, tag = 'internal scratch']
  %s0 = inlined_call_operand.vmem [shape: f32[2,64,128], index: 0, kind: input, shape index: {}]
  %s1 = inlined_call_operand.vmem [shape: bf16[2,64,128], index: 1, kind: input, shape index: {}]
  %s2 = inlined_call_operand.vmem [shape: bf16[2,64,128], index: 2, kind: output, shape index: {}]
  %s3 = sld [smem:[#allocation0]]
  $region18: #{_lambda_.47} parent=0
    _
  %s5 = ssub.s32 1, %s3
  %s6 = scalar_select 0, %s5, %s3
  // Predicated region
  $region2: #{_lambda_.47} parent=0 // pred_check
    _
  $region3: #{_lambda_.47} parent=0 // pred_check_branch
    %8 = sbr.rel (0) target = $region5
  $region4: #{_lambda_.47} parent=0 // pred_region
    _
  $region5: #{_lambda_.47} parent=0 // pred_fallthru
    _
  // Predicated region
  $region6: #{_lambda_.47} parent=0 // pred_check
    _
  $region7: #{_lambda_.47} parent=0 // pred_check_branch
    %10 = sbr.rel (0) target = $region9
  $region8: #{_lambda_.47} parent=0 // pred_region
    _
  $region9: #{_lambda_.47} parent=0 // pred_fallthru
    _
  %v11 = vld [vmem:[%s0] sm:$0xff]
  %v12 = vld [vmem:[%s0 + $0x8] sm:$0xff]
  %v13 = vld [vmem:[%s0 + $0x10] sm:$0xff]
  %v14 = vld [vmem:[%s0 + $0x18] sm:$0xff]
  %v15 = vld [vmem:[%s0 + $0x20] sm:$0xff]
  %v16 = vld [vmem:[%s0 + $0x28] sm:$0xff]
  %v17 = vld [vmem:[%s0 + $0x30] sm:$0xff]
  %v18 = vld [vmem:[%s0 + $0x38] sm:$0xff]
  %v19 = vadd.f32 %v11, 0.0
  %v20 = vadd.f32 %v12, 0.0
  %v21 = vadd.f32 %v13, 0.0
  %v22 = vadd.f32 %v14, 0.0
  %v23 = vadd.f32 %v15, 0.0
  %v24 = vadd.f32 %v16, 0.0
  %v25 = vadd.f32 %v17, 0.0
  %v26 = vadd.f32 %v18, 0.0
  %vm27 = vcmp.ge.f32.partialorder %v19, 1.0
  %vm28 = vcmp.ge.f32.partialorder %v20, 1.0
  %vm29 = vcmp.ge.f32.partialorder %v21, 1.0
  %vm30 = vcmp.ge.f32.partialorder %v22, 1.0
  %vm31 = vcmp.ge.f32.partialorder %v23, 1.0
  %vm32 = vcmp.ge.f32.partialorder %v24, 1.0
  %vm33 = vcmp.ge.f32.partialorder %v25, 1.0
  %vm34 = vcmp.ge.f32.partialorder %v26, 1.0
  %v35 = vsel %vm27, 1, 0
  %v36 = vsel %vm28, 1, 0
  %v37 = vsel %vm29, 1, 0
  %v38 = vsel %vm30, 1, 0
  %v39 = vsel %vm31, 1, 0
  %v40 = vsel %vm32, 1, 0
  %v41 = vsel %vm33, 1, 0
  %v42 = vsel %vm34, 1, 0
  %v43 = vcvt.s32.f32 %v35
  %v44 = vcvt.s32.f32 %v36
  %v45 = vcvt.s32.f32 %v37
  %v46 = vcvt.s32.f32 %v38
  %v47 = vcvt.s32.f32 %v39
  %v48 = vcvt.s32.f32 %v40
  %v49 = vcvt.s32.f32 %v41
  %v50 = vcvt.s32.f32 %v42
  %v51 = vld [vmem:[%s1] sm:$0xf]
  %v52 = vld [vmem:[%s1 + $0x4] sm:$0xf]
  %v53 = vld [vmem:[%s1 + $0x8] sm:$0xf]
  %v54 = vld [vmem:[%s1 + $0xc] sm:$0xf]
  %v55 = vld [vmem:[%s1 + $0x10] sm:$0xf]
  %v56 = vld [vmem:[%s1 + $0x14] sm:$0xf]
  %v57 = vld [vmem:[%s1 + $0x18] sm:$0xf]
  %v58 = vld [vmem:[%s1 + $0x1c] sm:$0xf]
  %v59 = vunpack.c.l.bf16 %v51
  %v60 = vunpack.c.l.bf16 %v52
  %v61 = vunpack.c.l.bf16 %v53
  %v62 = vunpack.c.l.bf16 %v54
  %v63 = vunpack.c.l.bf16 %v55
  %v64 = vunpack.c.l.bf16 %v56
  %v65 = vunpack.c.l.bf16 %v57
  %v66 = vunpack.c.l.bf16 %v58
  %v67 = vadd.f32 %v43, %v59
  %v68 = vadd.f32 %v44, %v60
  %v69 = vadd.f32 %v45, %v61
  %v70 = vadd.f32 %v46, %v62
  %v71 = vadd.f32 %v47, %v63
  %v72 = vadd.f32 %v48, %v64
  %v73 = vadd.f32 %v49, %v65
  %v74 = vadd.f32 %v50, %v66
  %v75 = vpack.c.bf16 %v67, %v67
  %v76 = vpack.c.bf16 %v68, %v68
  %v77 = vpack.c.bf16 %v69, %v69
  %v78 = vpack.c.bf16 %v70, %v70
  %v79 = vpack.c.bf16 %v71, %v71
  %v80 = vpack.c.bf16 %v72, %v72
  %v81 = vpack.c.bf16 %v73, %v73
  %v82 = vpack.c.bf16 %v74, %v74
  %83 = vst [vmem:[%s2] sm:$0xf] %v75
  %84 = vst [vmem:[%s2 + $0x4] sm:$0xf] %v76
  %85 = vst [vmem:[%s2 + $0x8] sm:$0xf] %v77
  %86 = vst [vmem:[%s2 + $0xc] sm:$0xf] %v78
  %87 = vst [vmem:[%s2 + $0x10] sm:$0xf] %v79
  %88 = vst [vmem:[%s2 + $0x14] sm:$0xf] %v80
  %89 = vst [vmem:[%s2 + $0x18] sm:$0xf] %v81
  %90 = vst [vmem:[%s2 + $0x1c] sm:$0xf] %v82
  %vm91 = vcmp.gt.f32.partialorder %v43, 0.0
  %vm92 = vcmp.gt.f32.partialorder %v44, 0.0
  %vm93 = vcmp.gt.f32.partialorder %v45, 0.0
  %vm94 = vcmp.gt.f32.partialorder %v46, 0.0
  %vm95 = vcmp.gt.f32.partialorder %v47, 0.0
  %vm96 = vcmp.gt.f32.partialorder %v48, 0.0
  %vm97 = vcmp.gt.f32.partialorder %v49, 0.0
  %vm98 = vcmp.gt.f32.partialorder %v50, 0.0
  %v99 = vsel %vm91, 0.0, %v19
  %v100 = vsel %vm92, 0.0, %v20
  %v101 = vsel %vm93, 0.0, %v21
  %v102 = vsel %vm94, 0.0, %v22
  %v103 = vsel %vm95, 0.0, %v23
  %v104 = vsel %vm96, 0.0, %v24
  %v105 = vsel %vm97, 0.0, %v25
  %v106 = vsel %vm98, 0.0, %v26
  %s107 = scalar_lea.vmem %s0, 64
  %v108 = vld [vmem:[%s107] sm:$0xff]
  %v109 = vld [vmem:[%s107 + $0x8] sm:$0xff]
  %v110 = vld [vmem:[%s107 + $0x10] sm:$0xff]
  %v111 = vld [vmem:[%s107 + $0x18] sm:$0xff]
  %v112 = vld [vmem:[%s107 + $0x20] sm:$0xff]
  %v113 = vld [vmem:[%s107 + $0x28] sm:$0xff]
  %v114 = vld [vmem:[%s107 + $0x30] sm:$0xff]
  %v115 = vld [vmem:[%s107 + $0x38] sm:$0xff]
  %v116 = vadd.f32 %v99, %v108
  %v117 = vadd.f32 %v100, %v109
  %v118 = vadd.f32 %v101, %v110
  %v119 = vadd.f32 %v102, %v111
  %v120 = vadd.f32 %v103, %v112
  %v121 = vadd.f32 %v104, %v113
  %v122 = vadd.f32 %v105, %v114
  %v123 = vadd.f32 %v106, %v115
  %vm124 = vcmp.ge.f32.partialorder %v116, 1.0
  %vm125 = vcmp.ge.f32.partialorder %v117, 1.0
  %vm126 = vcmp.ge.f32.partialorder %v118, 1.0
  %vm127 = vcmp.ge.f32.partialorder %v119, 1.0
  %vm128 = vcmp.ge.f32.partialorder %v120, 1.0
  %vm129 = vcmp.ge.f32.partialorder %v121, 1.0
  %vm130 = vcmp.ge.f32.partialorder %v122, 1.0
  %vm131 = vcmp.ge.f32.partialorder %v123, 1.0
  %v132 = vsel %vm124, 1, 0
  %v133 = vsel %vm125, 1, 0
  %v134 = vsel %vm126, 1, 0
  %v135 = vsel %vm127, 1, 0
  %v136 = vsel %vm128, 1, 0
  %v137 = vsel %vm129, 1, 0
  %v138 = vsel %vm130, 1, 0
  %v139 = vsel %vm131, 1, 0
  %v140 = vcvt.s32.f32 %v132
  %v141 = vcvt.s32.f32 %v133
  %v142 = vcvt.s32.f32 %v134
  %v143 = vcvt.s32.f32 %v135
  %v144 = vcvt.s32.f32 %v136
  %v145 = vcvt.s32.f32 %v137
  %v146 = vcvt.s32.f32 %v138
  %v147 = vcvt.s32.f32 %v139
  %s148 = scalar_lea.vmem %s1, 32
  %v149 = vld [vmem:[%s148] sm:$0xf]
  %v150 = vld [vmem:[%s148 + $0x4] sm:$0xf]
  %v151 = vld [vmem:[%s148 + $0x8] sm:$0xf]
  %v152 = vld [vmem:[%s148 + $0xc] sm:$0xf]
  %v153 = vld [vmem:[%s148 + $0x10] sm:$0xf]
  %v154 = vld [vmem:[%s148 + $0x14] sm:$0xf]
  %v155 = vld [vmem:[%s148 + $0x18] sm:$0xf]
  %v156 = vld [vmem:[%s148 + $0x1c] sm:$0xf]
  %v157 = vunpack.c.l.bf16 %v149
  %v158 = vunpack.c.l.bf16 %v150
  %v159 = vunpack.c.l.bf16 %v151
  %v160 = vunpack.c.l.bf16 %v152
  %v161 = vunpack.c.l.bf16 %v153
  %v162 = vunpack.c.l.bf16 %v154
  %v163 = vunpack.c.l.bf16 %v155
  %v164 = vunpack.c.l.bf16 %v156
  %v165 = vadd.f32 %v140, %v157
  %v166 = vadd.f32 %v141, %v158
  %v167 = vadd.f32 %v142, %v159
  %v168 = vadd.f32 %v143, %v160
  %v169 = vadd.f32 %v144, %v161
  %v170 = vadd.f32 %v145, %v162
  %v171 = vadd.f32 %v146, %v163
  %v172 = vadd.f32 %v147, %v164
  %v173 = vpack.c.bf16 %v165, %v165
  %v174 = vpack.c.bf16 %v166, %v166
  %v175 = vpack.c.bf16 %v167, %v167
  %v176 = vpack.c.bf16 %v168, %v168
  %v177 = vpack.c.bf16 %v169, %v169
  %v178 = vpack.c.bf16 %v170, %v170
  %v179 = vpack.c.bf16 %v171, %v171
  %v180 = vpack.c.bf16 %v172, %v172
  %s181 = scalar_lea.vmem %s2, 32
  %182 = vst [vmem:[%s181] sm:$0xf] %v173
  %183 = vst [vmem:[%s181 + $0x4] sm:$0xf] %v174
  %184 = vst [vmem:[%s181 + $0x8] sm:$0xf] %v175
  %185 = vst [vmem:[%s181 + $0xc] sm:$0xf] %v176
  %186 = vst [vmem:[%s181 + $0x10] sm:$0xf] %v177
  %187 = vst [vmem:[%s181 + $0x14] sm:$0xf] %v178
  %188 = vst [vmem:[%s181 + $0x18] sm:$0xf] %v179
  %189 = vst [vmem:[%s181 + $0x1c] sm:$0xf] %v180
  // Predicated region
  $region10: #{_lambda_.47} parent=0 // pred_check
    _
  $region11: #{_lambda_.47} parent=0 // pred_check_branch
    %191 = sbr.rel (0) target = $region13
  $region12: #{_lambda_.47} parent=0 // pred_region
    _
  $region13: #{_lambda_.47} parent=0 // pred_fallthru
    _
  // Predicated region
  $region14: #{_lambda_.47} parent=0 // pred_check
    _
  $region15: #{_lambda_.47} parent=0 // pred_check_branch
    %193 = sbr.rel (0) target = $region17
  $region16: #{_lambda_.47} parent=0 // pred_region
    _
  $region17: #{_lambda_.47} parent=0 // pred_fallthru
    _

// kernel: _lambda_.56
$region0: #{_lambda_.56}
  #allocation0 [shape = 'u32[]', space=smem, size = 0x4, offset = 0x4, fixed_abs, tag = 'smem constant byte address 0x4 - core index']
  #allocation1 [shape = 'u32[72,128]{1,0:T(1,128)}', space=vmem, size = 0x9000, scoped, tag = 'internal scratch']
  #allocation2 [shape = 'f32[256,128]{1,0:T(8,128)}', space=vmem, size = 0x20000, scoped, tag = 'scratch operand']
  %s0 = inlined_call_operand.vmem [shape: bf16[256,144], index: 0, kind: input, shape index: {}]
  %s1 = inlined_call_operand.vmem [shape: bf16[144,128], index: 1, kind: input, shape index: {}]
  %s2 = inlined_call_operand.vmem [shape: f32[1,128], index: 2, kind: input, shape index: {}]
  %s3 = inlined_call_operand.vmem [shape: f32[1,128], index: 3, kind: input, shape index: {}]
  %s4 = inlined_call_operand.vmem [shape: f32[256,128], index: 4, kind: output, shape index: {}]
  %s5 = sld [smem:[#allocation0]]
  $region34: #{_lambda_.56} parent=0
    _
  %s7 = ssub.s32 1, %s5
  %s8 = scalar_select 0, %s7, %s5
  // Predicated region
  $region2: #{_lambda_.56} parent=0 // pred_check
    _
  $region3: #{_lambda_.56} parent=0 // pred_check_branch
    %10 = sbr.rel (0) target = $region5
  $region4: #{_lambda_.56} parent=0 // pred_region
    _
  $region5: #{_lambda_.56} parent=0 // pred_fallthru
    _
  // Predicated region
  $region6: #{_lambda_.56} parent=0 // pred_check
    _
  $region7: #{_lambda_.56} parent=0 // pred_check_branch
    %12 = sbr.rel (0) target = $region9
  $region8: #{_lambda_.56} parent=0 // pred_region
    _
  $region9: #{_lambda_.56} parent=0 // pred_fallthru
    _
  // Predicated region
  $region10: #{_lambda_.56} parent=0 // pred_check
    _
  $region11: #{_lambda_.56} parent=0 // pred_check_branch
    %14 = sbr.rel (0) target = $region13
  $region12: #{_lambda_.56} parent=0 // pred_region
    _
  $region13: #{_lambda_.56} parent=0 // pred_fallthru
    _
  // Predicated region
  $region14: #{_lambda_.56} parent=0 // pred_check
    _
  $region15: #{_lambda_.56} parent=0 // pred_check_branch
    %16 = sbr.rel (0) target = $region17
  $region16: #{_lambda_.56} parent=0 // pred_region
    _
  $region17: #{_lambda_.56} parent=0 // pred_fallthru
    _
  %p18 = scmp.eq.s32.totalorder 0, 0
  // Predicated region
  $region18: #{_lambda_.56} parent=0 // pred_check
    %p19 = pneg %p18
  $region19: #{_lambda_.56} parent=0 // pred_check_branch
    %21 = sbr.rel (%p19) target = $region21
  $region20: #{_lambda_.56} parent=0 // pred_region
    %22 = vst [vmem:[#allocation2] sm:$0xff] 0.0
    %23 = vst [vmem:[#allocation2 + $0x8] sm:$0xff] 0.0
    %24 = vst [vmem:[#allocation2 + $0x10] sm:$0xff] 0.0
    %25 = vst [vmem:[#allocation2 + $0x18] sm:$0xff] 0.0
    %26 = vst [vmem:[#allocation2 + $0x20] sm:$0xff] 0.0
    %27 = vst [vmem:[#allocation2 + $0x28] sm:$0xff] 0.0
    %28 = vst [vmem:[#allocation2 + $0x30] sm:$0xff] 0.0
    %29 = vst [vmem:[#allocation2 + $0x38] sm:$0xff] 0.0
    %30 = vst [vmem:[#allocation2 + $0x40] sm:$0xff] 0.0
    %31 = vst [vmem:[#allocation2 + $0x48] sm:$0xff] 0.0
    %32 = vst [vmem:[#allocation2 + $0x50] sm:$0xff] 0.0
    %33 = vst [vmem:[#allocation2 + $0x58] sm:$0xff] 0.0
    %34 = vst [vmem:[#allocation2 + $0x60] sm:$0xff] 0.0
    %35 = vst [vmem:[#allocation2 + $0x68] sm:$0xff] 0.0
    %36 = vst [vmem:[#allocation2 + $0x70] sm:$0xff] 0.0
    %37 = vst [vmem:[#allocation2 + $0x78] sm:$0xff] 0.0
    %38 = vst [vmem:[#allocation2 + $0x80] sm:$0xff] 0.0
    %39 = vst [vmem:[#allocation2 + $0x88] sm:$0xff] 0.0
    %40 = vst [vmem:[#allocation2 + $0x90] sm:$0xff] 0.0
    %41 = vst [vmem:[#allocation2 + $0x98] sm:$0xff] 0.0
    %42 = vst [vmem:[#allocation2 + $0xa0] sm:$0xff] 0.0
    %43 = vst [vmem:[#allocation2 + $0xa8] sm:$0xff] 0.0
    %44 = vst [vmem:[#allocation2 + $0xb0] sm:$0xff] 0.0
    %45 = vst [vmem:[#allocation2 + $0xb8] sm:$0xff] 0.0
    %46 = vst [vmem:[#allocation2 + $0xc0] sm:$0xff] 0.0
    %47 = vst [vmem:[#allocation2 + $0xc8] sm:$0xff] 0.0
    %48 = vst [vmem:[#allocation2 + $0xd0] sm:$0xff] 0.0
    %49 = vst [vmem:[#allocation2 + $0xd8] sm:$0xff] 0.0
    %50 = vst [vmem:[#allocation2 + $0xe0] sm:$0xff] 0.0
    %51 = vst [vmem:[#allocation2 + $0xe8] sm:$0xff] 0.0
    %52 = vst [vmem:[#allocation2 + $0xf0] sm:$0xff] 0.0
    %53 = vst [vmem:[#allocation2 + $0xf8] sm:$0xff] 0.0
  $region21: #{_lambda_.56} parent=0 // pred_fallthru
    _
  %v54 = vld [vmem:[#allocation2] sm:$0xff]
  %v55 = vld [vmem:[#allocation2 + $0x8] sm:$0xff]
  %v56 = vld [vmem:[#allocation2 + $0x10] sm:$0xff]
  %v57 = vld [vmem:[#allocation2 + $0x18] sm:$0xff]
  %v58 = vld [vmem:[#allocation2 + $0x20] sm:$0xff]
  %v59 = vld [vmem:[#allocation2 + $0x28] sm:$0xff]
  %v60 = vld [vmem:[#allocation2 + $0x30] sm:$0xff]
  %v61 = vld [vmem:[#allocation2 + $0x38] sm:$0xff]
  %v62 = vld [vmem:[#allocation2 + $0x40] sm:$0xff]
  %v63 = vld [vmem:[#allocation2 + $0x48] sm:$0xff]
  %v64 = vld [vmem:[#allocation2 + $0x50] sm:$0xff]
  %v65 = vld [vmem:[#allocation2 + $0x58] sm:$0xff]
  %v66 = vld [vmem:[#allocation2 + $0x60] sm:$0xff]
  %v67 = vld [vmem:[#allocation2 + $0x68] sm:$0xff]
  %v68 = vld [vmem:[#allocation2 + $0x70] sm:$0xff]
  %v69 = vld [vmem:[#allocation2 + $0x78] sm:$0xff]
  %v70 = vld [vmem:[#allocation2 + $0x80] sm:$0xff]
  %v71 = vld [vmem:[#allocation2 + $0x88] sm:$0xff]
  %v72 = vld [vmem:[#allocation2 + $0x90] sm:$0xff]
  %v73 = vld [vmem:[#allocation2 + $0x98] sm:$0xff]
  %v74 = vld [vmem:[#allocation2 + $0xa0] sm:$0xff]
  %v75 = vld [vmem:[#allocation2 + $0xa8] sm:$0xff]
  %v76 = vld [vmem:[#allocation2 + $0xb0] sm:$0xff]
  %v77 = vld [vmem:[#allocation2 + $0xb8] sm:$0xff]
  %v78 = vld [vmem:[#allocation2 + $0xc0] sm:$0xff]
  %v79 = vld [vmem:[#allocation2 + $0xc8] sm:$0xff]
  %v80 = vld [vmem:[#allocation2 + $0xd0] sm:$0xff]
  %v81 = vld [vmem:[#allocation2 + $0xd8] sm:$0xff]
  %v82 = vld [vmem:[#allocation2 + $0xe0] sm:$0xff]
  %v83 = vld [vmem:[#allocation2 + $0xe8] sm:$0xff]
  %v84 = vld [vmem:[#allocation2 + $0xf0] sm:$0xff]
  %v85 = vld [vmem:[#allocation2 + $0xf8] sm:$0xff]
  %v86 = vld [vmem:[%s0] sm:$0xff]
  %v87 = vld [vmem:[%s0 + $0x8] sm:$0xff]
  %v88 = vld [vmem:[%s0 + $0x10] sm:$0xff]
  %v89 = vld [vmem:[%s0 + $0x18] sm:$0xff]
  %v90 = vld [vmem:[%s0 + $0x20] sm:$0xff]
  %v91 = vld [vmem:[%s0 + $0x28] sm:$0xff]
  %v92 = vld [vmem:[%s0 + $0x30] sm:$0xff]
  %v93 = vld [vmem:[%s0 + $0x38] sm:$0xff]
  %v94 = vld [vmem:[%s0 + $0x40] sm:$0xff]
  %v95 = vld [vmem:[%s0 + $0x48] sm:$0xff]
  %v96 = vld [vmem:[%s0 + $0x50] sm:$0xff]
  %v97 = vld [vmem:[%s0 + $0x58] sm:$0xff]
  %v98 = vld [vmem:[%s0 + $0x60] sm:$0xff]
  %v99 = vld [vmem:[%s0 + $0x68] sm:$0xff]
  %v100 = vld [vmem:[%s0 + $0x70] sm:$0xff]
  %v101 = vld [vmem:[%s0 + $0x78] sm:$0xff]
  %v102 = vld [vmem:[%s0 + $0x80] sm:$0xff]
  %v103 = vld [vmem:[%s0 + $0x88] sm:$0xff]
  %v104 = vld [vmem:[%s0 + $0x90] sm:$0xff]
  %v105 = vld [vmem:[%s0 + $0x98] sm:$0xff]
  %v106 = vld [vmem:[%s0 + $0xa0] sm:$0xff]
  %v107 = vld [vmem:[%s0 + $0xa8] sm:$0xff]
  %v108 = vld [vmem:[%s0 + $0xb0] sm:$0xff]
  %v109 = vld [vmem:[%s0 + $0xb8] sm:$0xff]
  %v110 = vld [vmem:[%s0 + $0xc0] sm:$0xff]
  %v111 = vld [vmem:[%s0 + $0xc8] sm:$0xff]
  %v112 = vld [vmem:[%s0 + $0xd0] sm:$0xff]
  %v113 = vld [vmem:[%s0 + $0xd8] sm:$0xff]
  %v114 = vld [vmem:[%s0 + $0xe0] sm:$0xff]
  %v115 = vld [vmem:[%s0 + $0xe8] sm:$0xff]
  %v116 = vld [vmem:[%s0 + $0xf0] sm:$0xff]
  %v117 = vld [vmem:[%s0 + $0xf8] sm:$0xff]
  %v118 = vld [vmem:[%s1] sm:$0xf]
  %v119 = vld [vmem:[%s1 + $0x4] sm:$0xf]
  %v120 = vld [vmem:[%s1 + $0x8] sm:$0xf]
  %v121 = vld [vmem:[%s1 + $0xc] sm:$0xf]
  %v122 = vld [vmem:[%s1 + $0x10] sm:$0xf]
  %v123 = vld [vmem:[%s1 + $0x14] sm:$0xf]
  %v124 = vld [vmem:[%s1 + $0x18] sm:$0xf]
  %v125 = vld [vmem:[%s1 + $0x1c] sm:$0xf]
  %v126 = vld [vmem:[%s1 + $0x20] sm:$0xf]
  %v127 = vld [vmem:[%s1 + $0x24] sm:$0xf]
  %v128 = vld [vmem:[%s1 + $0x28] sm:$0xf]
  %v129 = vld [vmem:[%s1 + $0x2c] sm:$0xf]
  %v130 = vld [vmem:[%s1 + $0x30] sm:$0xf]
  %v131 = vld [vmem:[%s1 + $0x34] sm:$0xf]
  %v132 = vld [vmem:[%s1 + $0x38] sm:$0xf]
  %v133 = vld [vmem:[%s1 + $0x3c] sm:$0xf]
  %v134 = vld [vmem:[%s1 + $0x40] sm:$0xf]
  %v135 = vld [vmem:[%s1 + $0x44] sm:$0xf]
  %v168 = vunpack.c.l.b16 %v86
  %v169 = vunpack.c.h.b16 %v86
  %v170 = vunpack.c.l.b16 %v87
  %v171 = vunpack.c.h.b16 %v87
  %v172 = vunpack.c.l.b16 %v88
  %v173 = vunpack.c.h.b16 %v88
  %v174 = vunpack.c.l.b16 %v89
  %v175 = vunpack.c.h.b16 %v89
  %v176 = vunpack.c.l.b16 %v90
  %v177 = vunpack.c.h.b16 %v90
  %v178 = vunpack.c.l.b16 %v91
  %v179 = vunpack.c.h.b16 %v91
  %v180 = vunpack.c.l.b16 %v92
  %v181 = vunpack.c.h.b16 %v92
  %v182 = vunpack.c.l.b16 %v93
  %v183 = vunpack.c.h.b16 %v93
  %v184 = vunpack.c.l.b16 %v94
  %v185 = vunpack.c.h.b16 %v94
  %v186 = vunpack.c.l.b16 %v95
  %v187 = vunpack.c.h.b16 %v95
  %v188 = vunpack.c.l.b16 %v96
  %v189 = vunpack.c.h.b16 %v96
  %v190 = vunpack.c.l.b16 %v97
  %v191 = vunpack.c.h.b16 %v97
  %v192 = vunpack.c.l.b16 %v98
  %v193 = vunpack.c.h.b16 %v98
  %v194 = vunpack.c.l.b16 %v99
  %v195 = vunpack.c.h.b16 %v99
  %v196 = vunpack.c.l.b16 %v100
  %v197 = vunpack.c.h.b16 %v100
  %v198 = vunpack.c.l.b16 %v101
  %v199 = vunpack.c.h.b16 %v101
  %v200 = vunpack.c.l.b16 %v102
  %v201 = vunpack.c.h.b16 %v102
  %v202 = vunpack.c.l.b16 %v103
  %v203 = vunpack.c.h.b16 %v103
  %v204 = vunpack.c.l.b16 %v104
  %v205 = vunpack.c.h.b16 %v104
  %v206 = vunpack.c.l.b16 %v105
  %v207 = vunpack.c.h.b16 %v105
  %v208 = vunpack.c.l.b16 %v106
  %v209 = vunpack.c.h.b16 %v106
  %v210 = vunpack.c.l.b16 %v107
  %v211 = vunpack.c.h.b16 %v107
  %v212 = vunpack.c.l.b16 %v108
  %v213 = vunpack.c.h.b16 %v108
  %v214 = vunpack.c.l.b16 %v109
  %v215 = vunpack.c.h.b16 %v109
  %v216 = vunpack.c.l.b16 %v110
  %v217 = vunpack.c.h.b16 %v110
  %v218 = vunpack.c.l.b16 %v111
  %v219 = vunpack.c.h.b16 %v111
  %v220 = vunpack.c.l.b16 %v112
  %v221 = vunpack.c.h.b16 %v112
  %v222 = vunpack.c.l.b16 %v113
  %v223 = vunpack.c.h.b16 %v113
  %v224 = vunpack.c.l.b16 %v114
  %v225 = vunpack.c.h.b16 %v114
  %v226 = vunpack.c.l.b16 %v115
  %v227 = vunpack.c.h.b16 %v115
  %v228 = vunpack.c.l.b16 %v116
  %v229 = vunpack.c.h.b16 %v116
  %v230 = vunpack.c.l.b16 %v117
  %v231 = vunpack.c.h.b16 %v117
  %v232 = vpack.c.b16 %v170, %v168
  %v233 = vpack.c.b16 %v171, %v169
  %v234 = vpack.c.b16 %v174, %v172
  %v235 = vpack.c.b16 %v175, %v173
  %v236 = vpack.c.b16 %v178, %v176
  %v237 = vpack.c.b16 %v179, %v177
  %v238 = vpack.c.b16 %v182, %v180
  %v239 = vpack.c.b16 %v183, %v181
  %v240 = vpack.c.b16 %v186, %v184
  %v241 = vpack.c.b16 %v187, %v185
  %v242 = vpack.c.b16 %v190, %v188
  %v243 = vpack.c.b16 %v191, %v189
  %v244 = vpack.c.b16 %v194, %v192
  %v245 = vpack.c.b16 %v195, %v193
  %v246 = vpack.c.b16 %v198, %v196
  %v247 = vpack.c.b16 %v199, %v197
  %v248 = vpack.c.b16 %v202, %v200
  %v249 = vpack.c.b16 %v203, %v201
  %v250 = vpack.c.b16 %v206, %v204
  %v251 = vpack.c.b16 %v207, %v205
  %v252 = vpack.c.b16 %v210, %v208
  %v253 = vpack.c.b16 %v211, %v209
  %v254 = vpack.c.b16 %v214, %v212
  %v255 = vpack.c.b16 %v215, %v213
  %v256 = vpack.c.b16 %v218, %v216
  %v257 = vpack.c.b16 %v219, %v217
  %v258 = vpack.c.b16 %v222, %v220
  %v259 = vpack.c.b16 %v223, %v221
  %v260 = vpack.c.b16 %v226, %v224
  %v261 = vpack.c.b16 %v227, %v225
  %v262 = vpack.c.b16 %v230, %v228
  %v263 = vpack.c.b16 %v231, %v229
  %v298 = vunpack.c.l.b16 %v118
  %v299 = vunpack.c.l.b16 %v119
  %v300 = vunpack.c.l.b16 %v120
  %v301 = vunpack.c.l.b16 %v121
  %v302 = vunpack.c.l.b16 %v122
  %v303 = vunpack.c.l.b16 %v123
  %v304 = vunpack.c.l.b16 %v124
  %v305 = vunpack.c.l.b16 %v125
  %v306 = vunpack.c.l.b16 %v126
  %v307 = vunpack.c.l.b16 %v127
  %v308 = vunpack.c.l.b16 %v128
  %v309 = vunpack.c.l.b16 %v129
  %v310 = vunpack.c.l.b16 %v130
  %v311 = vunpack.c.l.b16 %v131
  %v312 = vunpack.c.l.b16 %v132
  %v313 = vunpack.c.l.b16 %v133
  %v314 = vunpack.c.l.b16 %v134
  %v315 = vunpack.c.l.b16 %v135
  %v316 = vpack.c.b16 %v299, %v298
  %v317 = vpack.c.b16 %v301, %v300
  %v318 = vpack.c.b16 %v303, %v302
  %v319 = vpack.c.b16 %v305, %v304
  %v320 = vpack.c.b16 %v307, %v306
  %v321 = vpack.c.b16 %v309, %v308
  %v322 = vpack.c.b16 %v311, %v310
  %v323 = vpack.c.b16 %v313, %v312
  %v324 = vpack.c.b16 %v315, %v314
  %vm334 = vcmask 130048
  %v336 = vsel %vm334, %v233, 0
  %v339 = vsel %vm334, %v235, 0
  %v342 = vsel %vm334, %v237, 0
  %v345 = vsel %vm334, %v239, 0
  %v348 = vsel %vm334, %v241, 0
  %v351 = vsel %vm334, %v243, 0
  %v354 = vsel %vm334, %v245, 0
  %v357 = vsel %vm334, %v247, 0
  %v360 = vsel %vm334, %v249, 0
  %v363 = vsel %vm334, %v251, 0
  %v366 = vsel %vm334, %v253, 0
  %v369 = vsel %vm334, %v255, 0
  %v372 = vsel %vm334, %v257, 0
  %v375 = vsel %vm334, %v259, 0
  %v378 = vsel %vm334, %v261, 0
  %v381 = vsel %vm334, %v263, 0
  %383 = vmatpush.bf16.msra.mxu0 %v323
  %384 = vmatpush.bf16.msra.mxu0 %v322
  %385 = vmatpush.bf16.msra.mxu0 %v321
  %386 = vmatpush.bf16.msra.mxu0 %v320
  %387 = vmatpush.bf16.msra.mxu0 %v319
  %388 = vmatpush.bf16.msra.mxu0 %v318
  %389 = vmatpush.bf16.msra.mxu0 %v317
  %390 = vmatpush.bf16.msra.mxu0 %v316
  %391 = vmatmul.bf16.gmra.mxu0 %v232
  %v392 = vpop.f32.mrf.mxu0
  %v393 = vadd.f32 0.0, %v392
  %v394 = vpop.f32.mrf.mxu0
  %v395 = vadd.f32 0.0, %v394
  %396 = vmatmul.bf16.gmra.mxu0 %v234
  %v397 = vpop.f32.mrf.mxu0
  %v398 = vadd.f32 0.0, %v397
  %v399 = vpop.f32.mrf.mxu0
  %v400 = vadd.f32 0.0, %v399
  %401 = vmatmul.bf16.gmra.mxu0 %v236
  %v402 = vpop.f32.mrf.mxu0
  %v403 = vadd.f32 0.0, %v402
  %v404 = vpop.f32.mrf.mxu0
  %v405 = vadd.f32 0.0, %v404
  %406 = vmatmul.bf16.gmra.mxu0 %v238
  %v407 = vpop.f32.mrf.mxu0
  %v408 = vadd.f32 0.0, %v407
  %v409 = vpop.f32.mrf.mxu0
  %v410 = vadd.f32 0.0, %v409
  %411 = vmatmul.bf16.gmra.mxu0 %v240
  %v412 = vpop.f32.mrf.mxu0
  %v413 = vadd.f32 0.0, %v412
  %v414 = vpop.f32.mrf.mxu0
  %v415 = vadd.f32 0.0, %v414
  %416 = vmatmul.bf16.gmra.mxu0 %v242
  %v417 = vpop.f32.mrf.mxu0
  %v418 = vadd.f32 0.0, %v417
  %v419 = vpop.f32.mrf.mxu0
  %v420 = vadd.f32 0.0, %v419
  %421 = vmatmul.bf16.gmra.mxu0 %v244
  %v422 = vpop.f32.mrf.mxu0
  %v423 = vadd.f32 0.0, %v422
  %v424 = vpop.f32.mrf.mxu0
  %v425 = vadd.f32 0.0, %v424
  %426 = vmatmul.bf16.gmra.mxu0 %v246
  %v427 = vpop.f32.mrf.mxu0
  %v428 = vadd.f32 0.0, %v427
  %v429 = vpop.f32.mrf.mxu0
  %v430 = vadd.f32 0.0, %v429
  %431 = vmatmul.bf16.gmra.mxu0 %v248
  %v432 = vpop.f32.mrf.mxu0
  %v433 = vadd.f32 0.0, %v432
  %v434 = vpop.f32.mrf.mxu0
  %v435 = vadd.f32 0.0, %v434
  %436 = vmatmul.bf16.gmra.mxu0 %v250
  %v437 = vpop.f32.mrf.mxu0
  %v438 = vadd.f32 0.0, %v437
  %v439 = vpop.f32.mrf.mxu0
  %v440 = vadd.f32 0.0, %v439
  %441 = vmatmul.bf16.gmra.mxu0 %v252
  %v442 = vpop.f32.mrf.mxu0
  %v443 = vadd.f32 0.0, %v442
  %v444 = vpop.f32.mrf.mxu0
  %v445 = vadd.f32 0.0, %v444
  %446 = vmatmul.bf16.gmra.mxu0 %v254
  %v447 = vpop.f32.mrf.mxu0
  %v448 = vadd.f32 0.0, %v447
  %v449 = vpop.f32.mrf.mxu0
  %v450 = vadd.f32 0.0, %v449
  %451 = vmatmul.bf16.gmra.mxu0 %v256
  %v452 = vpop.f32.mrf.mxu0
  %v453 = vadd.f32 0.0, %v452
  %v454 = vpop.f32.mrf.mxu0
  %v455 = vadd.f32 0.0, %v454
  %456 = vmatmul.bf16.gmra.mxu0 %v258
  %v457 = vpop.f32.mrf.mxu0
  %v458 = vadd.f32 0.0, %v457
  %v459 = vpop.f32.mrf.mxu0
  %v460 = vadd.f32 0.0, %v459
  %461 = vmatmul.bf16.gmra.mxu0 %v260
  %v462 = vpop.f32.mrf.mxu0
  %v463 = vadd.f32 0.0, %v462
  %v464 = vpop.f32.mrf.mxu0
  %v465 = vadd.f32 0.0, %v464
  %466 = vmatmul.bf16.gmra.mxu0 %v262
  %v467 = vpop.f32.mrf.mxu0
  %v468 = vadd.f32 0.0, %v467
  %v469 = vpop.f32.mrf.mxu0
  %v470 = vadd.f32 0.0, %v469
  %471 = vdwg.mxu0
  %472 = vmatpush.bf16.msra.mxu0 0
  %473 = vmatpush.bf16.msra.mxu0 0
  %474 = vmatpush.bf16.msra.mxu0 0
  %475 = vmatpush.bf16.msra.mxu0 0
  %476 = vmatpush.bf16.msra.mxu0 0
  %477 = vmatpush.bf16.msra.mxu0 0
  %478 = vmatpush.bf16.msra.mxu0 0
  %479 = vmatpush.bf16.msra.mxu0 %v324
  %480 = vmatmul.bf16.gmra.mxu0 %v336
  %v481 = vpop.f32.mrf.mxu0
  %v482 = vadd.f32 %v393, %v481
  %v483 = vpop.f32.mrf.mxu0
  %v484 = vadd.f32 %v395, %v483
  %485 = vmatmul.bf16.gmra.mxu0 %v339
  %v486 = vpop.f32.mrf.mxu0
  %v487 = vadd.f32 %v398, %v486
  %v488 = vpop.f32.mrf.mxu0
  %v489 = vadd.f32 %v400, %v488
  %490 = vmatmul.bf16.gmra.mxu0 %v342
  %v491 = vpop.f32.mrf.mxu0
  %v492 = vadd.f32 %v403, %v491
  %v493 = vpop.f32.mrf.mxu0
  %v494 = vadd.f32 %v405, %v493
  %495 = vmatmul.bf16.gmra.mxu0 %v345
  %v496 = vpop.f32.mrf.mxu0
  %v497 = vadd.f32 %v408, %v496
  %v498 = vpop.f32.mrf.mxu0
  %v499 = vadd.f32 %v410, %v498
  %500 = vmatmul.bf16.gmra.mxu0 %v348
  %v501 = vpop.f32.mrf.mxu0
  %v502 = vadd.f32 %v413, %v501
  %v503 = vpop.f32.mrf.mxu0
  %v504 = vadd.f32 %v415, %v503
  %505 = vmatmul.bf16.gmra.mxu0 %v351
  %v506 = vpop.f32.mrf.mxu0
  %v507 = vadd.f32 %v418, %v506
  %v508 = vpop.f32.mrf.mxu0
  %v509 = vadd.f32 %v420, %v508
  %510 = vmatmul.bf16.gmra.mxu0 %v354
  %v511 = vpop.f32.mrf.mxu0
  %v512 = vadd.f32 %v423, %v511
  %v513 = vpop.f32.mrf.mxu0
  %v514 = vadd.f32 %v425, %v513
  %515 = vmatmul.bf16.gmra.mxu0 %v357
  %v516 = vpop.f32.mrf.mxu0
  %v517 = vadd.f32 %v428, %v516
  %v518 = vpop.f32.mrf.mxu0
  %v519 = vadd.f32 %v430, %v518
  %520 = vmatmul.bf16.gmra.mxu0 %v360
  %v521 = vpop.f32.mrf.mxu0
  %v522 = vadd.f32 %v433, %v521
  %v523 = vpop.f32.mrf.mxu0
  %v524 = vadd.f32 %v435, %v523
  %525 = vmatmul.bf16.gmra.mxu0 %v363
  %v526 = vpop.f32.mrf.mxu0
  %v527 = vadd.f32 %v438, %v526
  %v528 = vpop.f32.mrf.mxu0
  %v529 = vadd.f32 %v440, %v528
  %530 = vmatmul.bf16.gmra.mxu0 %v366
  %v531 = vpop.f32.mrf.mxu0
  %v532 = vadd.f32 %v443, %v531
  %v533 = vpop.f32.mrf.mxu0
  %v534 = vadd.f32 %v445, %v533
  %535 = vmatmul.bf16.gmra.mxu0 %v369
  %v536 = vpop.f32.mrf.mxu0
  %v537 = vadd.f32 %v448, %v536
  %v538 = vpop.f32.mrf.mxu0
  %v539 = vadd.f32 %v450, %v538
  %540 = vmatmul.bf16.gmra.mxu0 %v372
  %v541 = vpop.f32.mrf.mxu0
  %v542 = vadd.f32 %v453, %v541
  %v543 = vpop.f32.mrf.mxu0
  %v544 = vadd.f32 %v455, %v543
  %545 = vmatmul.bf16.gmra.mxu0 %v375
  %v546 = vpop.f32.mrf.mxu0
  %v547 = vadd.f32 %v458, %v546
  %v548 = vpop.f32.mrf.mxu0
  %v549 = vadd.f32 %v460, %v548
  %550 = vmatmul.bf16.gmra.mxu0 %v378
  %v551 = vpop.f32.mrf.mxu0
  %v552 = vadd.f32 %v463, %v551
  %v553 = vpop.f32.mrf.mxu0
  %v554 = vadd.f32 %v465, %v553
  %555 = vmatmul.bf16.gmra.mxu0 %v381
  %v556 = vpop.f32.mrf.mxu0
  %v557 = vadd.f32 %v468, %v556
  %v558 = vpop.f32.mrf.mxu0
  %v559 = vadd.f32 %v470, %v558
  %560 = vdwg.mxu0
  %v561 = vadd.f32 %v54, %v482
  %v562 = vadd.f32 %v55, %v484
  %v563 = vadd.f32 %v56, %v487
  %v564 = vadd.f32 %v57, %v489
  %v565 = vadd.f32 %v58, %v492
  %v566 = vadd.f32 %v59, %v494
  %v567 = vadd.f32 %v60, %v497
  %v568 = vadd.f32 %v61, %v499
  %v569 = vadd.f32 %v62, %v502
  %v570 = vadd.f32 %v63, %v504
  %v571 = vadd.f32 %v64, %v507
  %v572 = vadd.f32 %v65, %v509
  %v573 = vadd.f32 %v66, %v512
  %v574 = vadd.f32 %v67, %v514
  %v575 = vadd.f32 %v68, %v517
  %v576 = vadd.f32 %v69, %v519
  %v577 = vadd.f32 %v70, %v522
  %v578 = vadd.f32 %v71, %v524
  %v579 = vadd.f32 %v72, %v527
  %v580 = vadd.f32 %v73, %v529
  %v581 = vadd.f32 %v74, %v532
  %v582 = vadd.f32 %v75, %v534
  %v583 = vadd.f32 %v76, %v537
  %v584 = vadd.f32 %v77, %v539
  %v585 = vadd.f32 %v78, %v542
  %v586 = vadd.f32 %v79, %v544
  %v587 = vadd.f32 %v80, %v547
  %v588 = vadd.f32 %v81, %v549
  %v589 = vadd.f32 %v82, %v552
  %v590 = vadd.f32 %v83, %v554
  %v591 = vadd.f32 %v84, %v557
  %v592 = vadd.f32 %v85, %v559
  %593 = vst [vmem:[#allocation2] sm:$0xff] %v561
  %594 = vst [vmem:[#allocation2 + $0x8] sm:$0xff] %v562
  %595 = vst [vmem:[#allocation2 + $0x10] sm:$0xff] %v563
  %596 = vst [vmem:[#allocation2 + $0x18] sm:$0xff] %v564
  %597 = vst [vmem:[#allocation2 + $0x20] sm:$0xff] %v565
  %598 = vst [vmem:[#allocation2 + $0x28] sm:$0xff] %v566
  %599 = vst [vmem:[#allocation2 + $0x30] sm:$0xff] %v567
  %600 = vst [vmem:[#allocation2 + $0x38] sm:$0xff] %v568
  %601 = vst [vmem:[#allocation2 + $0x40] sm:$0xff] %v569
  %602 = vst [vmem:[#allocation2 + $0x48] sm:$0xff] %v570
  %603 = vst [vmem:[#allocation2 + $0x50] sm:$0xff] %v571
  %604 = vst [vmem:[#allocation2 + $0x58] sm:$0xff] %v572
  %605 = vst [vmem:[#allocation2 + $0x60] sm:$0xff] %v573
  %606 = vst [vmem:[#allocation2 + $0x68] sm:$0xff] %v574
  %607 = vst [vmem:[#allocation2 + $0x70] sm:$0xff] %v575
  %608 = vst [vmem:[#allocation2 + $0x78] sm:$0xff] %v576
  %609 = vst [vmem:[#allocation2 + $0x80] sm:$0xff] %v577
  %610 = vst [vmem:[#allocation2 + $0x88] sm:$0xff] %v578
  %611 = vst [vmem:[#allocation2 + $0x90] sm:$0xff] %v579
  %612 = vst [vmem:[#allocation2 + $0x98] sm:$0xff] %v580
  %613 = vst [vmem:[#allocation2 + $0xa0] sm:$0xff] %v581
  %614 = vst [vmem:[#allocation2 + $0xa8] sm:$0xff] %v582
  %615 = vst [vmem:[#allocation2 + $0xb0] sm:$0xff] %v583
  %616 = vst [vmem:[#allocation2 + $0xb8] sm:$0xff] %v584
  %617 = vst [vmem:[#allocation2 + $0xc0] sm:$0xff] %v585
  %618 = vst [vmem:[#allocation2 + $0xc8] sm:$0xff] %v586
  %619 = vst [vmem:[#allocation2 + $0xd0] sm:$0xff] %v587
  %620 = vst [vmem:[#allocation2 + $0xd8] sm:$0xff] %v588
  %621 = vst [vmem:[#allocation2 + $0xe0] sm:$0xff] %v589
  %622 = vst [vmem:[#allocation2 + $0xe8] sm:$0xff] %v590
  %623 = vst [vmem:[#allocation2 + $0xf0] sm:$0xff] %v591
  %624 = vst [vmem:[#allocation2 + $0xf8] sm:$0xff] %v592
  // Predicated region
  $region22: #{_lambda_.56} parent=0 // pred_check
    %p625 = pneg %p18
  $region23: #{_lambda_.56} parent=0 // pred_check_branch
    %627 = sbr.rel (%p625) target = $region25
  $region24: #{_lambda_.56} parent=0 // pred_region
    %v628 = vld [vmem:[#allocation2] sm:$0xff]
    %v629 = vld [vmem:[#allocation2 + $0x8] sm:$0xff]
    %v630 = vld [vmem:[#allocation2 + $0x10] sm:$0xff]
    %v631 = vld [vmem:[#allocation2 + $0x18] sm:$0xff]
    %v632 = vld [vmem:[#allocation2 + $0x20] sm:$0xff]
    %v633 = vld [vmem:[#allocation2 + $0x28] sm:$0xff]
    %v634 = vld [vmem:[#allocation2 + $0x30] sm:$0xff]
    %v635 = vld [vmem:[#allocation2 + $0x38] sm:$0xff]
    %v636 = vld [vmem:[#allocation2 + $0x40] sm:$0xff]
    %v637 = vld [vmem:[#allocation2 + $0x48] sm:$0xff]
    %v638 = vld [vmem:[#allocation2 + $0x50] sm:$0xff]
    %v639 = vld [vmem:[#allocation2 + $0x58] sm:$0xff]
    %v640 = vld [vmem:[#allocation2 + $0x60] sm:$0xff]
    %v641 = vld [vmem:[#allocation2 + $0x68] sm:$0xff]
    %v642 = vld [vmem:[#allocation2 + $0x70] sm:$0xff]
    %v643 = vld [vmem:[#allocation2 + $0x78] sm:$0xff]
    %v644 = vld [vmem:[#allocation2 + $0x80] sm:$0xff]
    %v645 = vld [vmem:[#allocation2 + $0x88] sm:$0xff]
    %v646 = vld [vmem:[#allocation2 + $0x90] sm:$0xff]
    %v647 = vld [vmem:[#allocation2 + $0x98] sm:$0xff]
    %v648 = vld [vmem:[#allocation2 + $0xa0] sm:$0xff]
    %v649 = vld [vmem:[#allocation2 + $0xa8] sm:$0xff]
    %v650 = vld [vmem:[#allocation2 + $0xb0] sm:$0xff]
    %v651 = vld [vmem:[#allocation2 + $0xb8] sm:$0xff]
    %v652 = vld [vmem:[#allocation2 + $0xc0] sm:$0xff]
    %v653 = vld [vmem:[#allocation2 + $0xc8] sm:$0xff]
    %v654 = vld [vmem:[#allocation2 + $0xd0] sm:$0xff]
    %v655 = vld [vmem:[#allocation2 + $0xd8] sm:$0xff]
    %v656 = vld [vmem:[#allocation2 + $0xe0] sm:$0xff]
    %v657 = vld [vmem:[#allocation2 + $0xe8] sm:$0xff]
    %v658 = vld [vmem:[#allocation2 + $0xf0] sm:$0xff]
    %v659 = vld [vmem:[#allocation2 + $0xf8] sm:$0xff]
    %v660 = vld [vmem:[%s2] sm:$0x1]
    %v662 = vperm.slane %v660, 0
    %v664 = vmul.f32 %v628, %v662
    %v665 = vmul.f32 %v629, %v662
    %v666 = vmul.f32 %v630, %v662
    %v667 = vmul.f32 %v631, %v662
    %v668 = vmul.f32 %v632, %v662
    %v669 = vmul.f32 %v633, %v662
    %v670 = vmul.f32 %v634, %v662
    %v671 = vmul.f32 %v635, %v662
    %v672 = vmul.f32 %v636, %v662
    %v673 = vmul.f32 %v637, %v662
    %v674 = vmul.f32 %v638, %v662
    %v675 = vmul.f32 %v639, %v662
    %v676 = vmul.f32 %v640, %v662
    %v677 = vmul.f32 %v641, %v662
    %v678 = vmul.f32 %v642, %v662
    %v679 = vmul.f32 %v643, %v662
    %v680 = vmul.f32 %v644, %v662
    %v681 = vmul.f32 %v645, %v662
    %v682 = vmul.f32 %v646, %v662
    %v683 = vmul.f32 %v647, %v662
    %v684 = vmul.f32 %v648, %v662
    %v685 = vmul.f32 %v649, %v662
    %v686 = vmul.f32 %v650, %v662
    %v687 = vmul.f32 %v651, %v662
    %v688 = vmul.f32 %v652, %v662
    %v689 = vmul.f32 %v653, %v662
    %v690 = vmul.f32 %v654, %v662
    %v691 = vmul.f32 %v655, %v662
    %v692 = vmul.f32 %v656, %v662
    %v693 = vmul.f32 %v657, %v662
    %v694 = vmul.f32 %v658, %v662
    %v695 = vmul.f32 %v659, %v662
    %v696 = vld [vmem:[%s3] sm:$0x1]
    %v698 = vperm.slane %v696, 0
    %v700 = vadd.f32 %v664, %v698
    %v701 = vadd.f32 %v665, %v698
    %v702 = vadd.f32 %v666, %v698
    %v703 = vadd.f32 %v667, %v698
    %v704 = vadd.f32 %v668, %v698
    %v705 = vadd.f32 %v669, %v698
    %v706 = vadd.f32 %v670, %v698
    %v707 = vadd.f32 %v671, %v698
    %v708 = vadd.f32 %v672, %v698
    %v709 = vadd.f32 %v673, %v698
    %v710 = vadd.f32 %v674, %v698
    %v711 = vadd.f32 %v675, %v698
    %v712 = vadd.f32 %v676, %v698
    %v713 = vadd.f32 %v677, %v698
    %v714 = vadd.f32 %v678, %v698
    %v715 = vadd.f32 %v679, %v698
    %v716 = vadd.f32 %v680, %v698
    %v717 = vadd.f32 %v681, %v698
    %v718 = vadd.f32 %v682, %v698
    %v719 = vadd.f32 %v683, %v698
    %v720 = vadd.f32 %v684, %v698
    %v721 = vadd.f32 %v685, %v698
    %v722 = vadd.f32 %v686, %v698
    %v723 = vadd.f32 %v687, %v698
    %v724 = vadd.f32 %v688, %v698
    %v725 = vadd.f32 %v689, %v698
    %v726 = vadd.f32 %v690, %v698
    %v727 = vadd.f32 %v691, %v698
    %v728 = vadd.f32 %v692, %v698
    %v729 = vadd.f32 %v693, %v698
    %v730 = vadd.f32 %v694, %v698
    %v731 = vadd.f32 %v695, %v698
    %732 = vst [vmem:[%s4] sm:$0xff] %v700
    %733 = vst [vmem:[%s4 + $0x8] sm:$0xff] %v701
    %734 = vst [vmem:[%s4 + $0x10] sm:$0xff] %v702
    %735 = vst [vmem:[%s4 + $0x18] sm:$0xff] %v703
    %736 = vst [vmem:[%s4 + $0x20] sm:$0xff] %v704
    %737 = vst [vmem:[%s4 + $0x28] sm:$0xff] %v705
    %738 = vst [vmem:[%s4 + $0x30] sm:$0xff] %v706
    %739 = vst [vmem:[%s4 + $0x38] sm:$0xff] %v707
    %740 = vst [vmem:[%s4 + $0x40] sm:$0xff] %v708
    %741 = vst [vmem:[%s4 + $0x48] sm:$0xff] %v709
    %742 = vst [vmem:[%s4 + $0x50] sm:$0xff] %v710
    %743 = vst [vmem:[%s4 + $0x58] sm:$0xff] %v711
    %744 = vst [vmem:[%s4 + $0x60] sm:$0xff] %v712
    %745 = vst [vmem:[%s4 + $0x68] sm:$0xff] %v713
    %746 = vst [vmem:[%s4 + $0x70] sm:$0xff] %v714
    %747 = vst [vmem:[%s4 + $0x78] sm:$0xff] %v715
    %748 = vst [vmem:[%s4 + $0x80] sm:$0xff] %v716
    %749 = vst [vmem:[%s4 + $0x88] sm:$0xff] %v717
    %750 = vst [vmem:[%s4 + $0x90] sm:$0xff] %v718
    %751 = vst [vmem:[%s4 + $0x98] sm:$0xff] %v719
    %752 = vst [vmem:[%s4 + $0xa0] sm:$0xff] %v720
    %753 = vst [vmem:[%s4 + $0xa8] sm:$0xff] %v721
    %754 = vst [vmem:[%s4 + $0xb0] sm:$0xff] %v722
    %755 = vst [vmem:[%s4 + $0xb8] sm:$0xff] %v723
    %756 = vst [vmem:[%s4 + $0xc0] sm:$0xff] %v724
    %757 = vst [vmem:[%s4 + $0xc8] sm:$0xff] %v725
    %758 = vst [vmem:[%s4 + $0xd0] sm:$0xff] %v726
    %759 = vst [vmem:[%s4 + $0xd8] sm:$0xff] %v727
    %760 = vst [vmem:[%s4 + $0xe0] sm:$0xff] %v728
    %761 = vst [vmem:[%s4 + $0xe8] sm:$0xff] %v729
    %762 = vst [vmem:[%s4 + $0xf0] sm:$0xff] %v730
    %763 = vst [vmem:[%s4 + $0xf8] sm:$0xff] %v731
  $region25: #{_lambda_.56} parent=0 // pred_fallthru
    _
  // Predicated region
  $region26: #{_lambda_.56} parent=0 // pred_check
    _
  $region27: #{_lambda_.56} parent=0 // pred_check_branch
    %765 = sbr.rel (0) target = $region29
  $region28: #{_lambda_.56} parent=0 // pred_region
    _
  $region29: #{_lambda_.56} parent=0 // pred_fallthru
    _
  // Predicated region
  $region30: #{_lambda_.56} parent=0 // pred_check
    _
  $region31: #{_lambda_.56} parent=0 // pred_check_branch
    %767 = sbr.rel (0) target = $region33
  $region32: #{_lambda_.56} parent=0 // pred_region
    _
  $region33: #{_lambda_.56} parent=0 // pred_fallthru
    _

// kernel: _lambda_.57
$region0: #{_lambda_.57}
  #allocation0 [shape = 'u32[]', space=smem, size = 0x4, offset = 0x4, fixed_abs, tag = 'smem constant byte address 0x4 - core index']
  #allocation1 [shape = 'u32[72,128]{1,0:T(1,128)}', space=vmem, size = 0x9000, scoped, tag = 'internal scratch']
  %s0 = inlined_call_operand.vmem [shape: f32[2,32,128], index: 0, kind: input, shape index: {}]
  %s1 = inlined_call_operand.vmem [shape: bf16[2,32,128], index: 1, kind: output, shape index: {}]
  %s2 = sld [smem:[#allocation0]]
  $region14: #{_lambda_.57} parent=0
    _
  %s4 = ssub.s32 1, %s2
  %s5 = scalar_select 0, %s4, %s2
  // Predicated region
  $region2: #{_lambda_.57} parent=0 // pred_check
    _
  $region3: #{_lambda_.57} parent=0 // pred_check_branch
    %7 = sbr.rel (0) target = $region5
  $region4: #{_lambda_.57} parent=0 // pred_region
    _
  $region5: #{_lambda_.57} parent=0 // pred_fallthru
    _
  %v8 = vld [vmem:[%s0] sm:$0xff]
  %v9 = vld [vmem:[%s0 + $0x8] sm:$0xff]
  %v10 = vld [vmem:[%s0 + $0x10] sm:$0xff]
  %v11 = vld [vmem:[%s0 + $0x18] sm:$0xff]
  %v12 = vadd.f32 %v8, 0.0
  %v13 = vadd.f32 %v9, 0.0
  %v14 = vadd.f32 %v10, 0.0
  %v15 = vadd.f32 %v11, 0.0
  %vm16 = vcmp.ge.f32.partialorder %v12, 1.0
  %vm17 = vcmp.ge.f32.partialorder %v13, 1.0
  %vm18 = vcmp.ge.f32.partialorder %v14, 1.0
  %vm19 = vcmp.ge.f32.partialorder %v15, 1.0
  %v20 = vsel %vm16, 1, 0
  %v21 = vsel %vm17, 1, 0
  %v22 = vsel %vm18, 1, 0
  %v23 = vsel %vm19, 1, 0
  %v24 = vcvt.s32.f32 %v20
  %v25 = vcvt.s32.f32 %v21
  %v26 = vcvt.s32.f32 %v22
  %v27 = vcvt.s32.f32 %v23
  %v28 = vpack.c.bf16 %v24, %v24
  %v29 = vpack.c.bf16 %v25, %v25
  %v30 = vpack.c.bf16 %v26, %v26
  %v31 = vpack.c.bf16 %v27, %v27
  %32 = vst [vmem:[%s1] sm:$0xf] %v28
  %33 = vst [vmem:[%s1 + $0x4] sm:$0xf] %v29
  %34 = vst [vmem:[%s1 + $0x8] sm:$0xf] %v30
  %35 = vst [vmem:[%s1 + $0xc] sm:$0xf] %v31
  %vm36 = vcmp.gt.f32.partialorder %v24, 0.0
  %vm37 = vcmp.gt.f32.partialorder %v25, 0.0
  %vm38 = vcmp.gt.f32.partialorder %v26, 0.0
  %vm39 = vcmp.gt.f32.partialorder %v27, 0.0
  %v40 = vsel %vm36, 0.0, %v12
  %v41 = vsel %vm37, 0.0, %v13
  %v42 = vsel %vm38, 0.0, %v14
  %v43 = vsel %vm39, 0.0, %v15
  %s44 = scalar_lea.vmem %s0, 32
  %v45 = vld [vmem:[%s44] sm:$0xff]
  %v46 = vld [vmem:[%s44 + $0x8] sm:$0xff]
  %v47 = vld [vmem:[%s44 + $0x10] sm:$0xff]
  %v48 = vld [vmem:[%s44 + $0x18] sm:$0xff]
  %v49 = vadd.f32 %v40, %v45
  %v50 = vadd.f32 %v41, %v46
  %v51 = vadd.f32 %v42, %v47
  %v52 = vadd.f32 %v43, %v48
  %vm53 = vcmp.ge.f32.partialorder %v49, 1.0
  %vm54 = vcmp.ge.f32.partialorder %v50, 1.0
  %vm55 = vcmp.ge.f32.partialorder %v51, 1.0
  %vm56 = vcmp.ge.f32.partialorder %v52, 1.0
  %v57 = vsel %vm53, 1, 0
  %v58 = vsel %vm54, 1, 0
  %v59 = vsel %vm55, 1, 0
  %v60 = vsel %vm56, 1, 0
  %v61 = vcvt.s32.f32 %v57
  %v62 = vcvt.s32.f32 %v58
  %v63 = vcvt.s32.f32 %v59
  %v64 = vcvt.s32.f32 %v60
  %v65 = vpack.c.bf16 %v61, %v61
  %v66 = vpack.c.bf16 %v62, %v62
  %v67 = vpack.c.bf16 %v63, %v63
  %v68 = vpack.c.bf16 %v64, %v64
  %s69 = scalar_lea.vmem %s1, 16
  %70 = vst [vmem:[%s69] sm:$0xf] %v65
  %71 = vst [vmem:[%s69 + $0x4] sm:$0xf] %v66
  %72 = vst [vmem:[%s69 + $0x8] sm:$0xf] %v67
  %73 = vst [vmem:[%s69 + $0xc] sm:$0xf] %v68
  // Predicated region
  $region6: #{_lambda_.57} parent=0 // pred_check
    _
  $region7: #{_lambda_.57} parent=0 // pred_check_branch
    %75 = sbr.rel (0) target = $region9
  $region8: #{_lambda_.57} parent=0 // pred_region
    _
  $region9: #{_lambda_.57} parent=0 // pred_fallthru
    _
  // Predicated region
  $region10: #{_lambda_.57} parent=0 // pred_check
    _
  $region11: #{_lambda_.57} parent=0 // pred_check_branch
    %77 = sbr.rel (0) target = $region13
  $region12: #{_lambda_.57} parent=0 // pred_region
    _
  $region13: #{_lambda_.57} parent=0 // pred_fallthru
    _

// kernel: _lambda_.58
$region0: #{_lambda_.58}
  #allocation0 [shape = 'u32[]', space=smem, size = 0x4, offset = 0x4, fixed_abs, tag = 'smem constant byte address 0x4 - core index']
  #allocation1 [shape = 'u32[72,128]{1,0:T(1,128)}', space=vmem, size = 0x9000, scoped, tag = 'internal scratch']
  #allocation2 [shape = 'f32[256,128]{1,0:T(8,128)}', space=vmem, size = 0x20000, scoped, tag = 'scratch operand']
  %s0 = inlined_call_operand.vmem [shape: bf16[256,288], index: 0, kind: input, shape index: {}]
  %s1 = inlined_call_operand.vmem [shape: bf16[288,128], index: 1, kind: input, shape index: {}]
  %s2 = inlined_call_operand.vmem [shape: f32[1,128], index: 2, kind: input, shape index: {}]
  %s3 = inlined_call_operand.vmem [shape: f32[1,128], index: 3, kind: input, shape index: {}]
  %s4 = inlined_call_operand.vmem [shape: f32[256,128], index: 4, kind: output, shape index: {}]
  %s5 = sld [smem:[#allocation0]]
  $region34: #{_lambda_.58} parent=0
    _
  %s7 = ssub.s32 1, %s5
  %s8 = scalar_select 0, %s7, %s5
  // Predicated region
  $region2: #{_lambda_.58} parent=0 // pred_check
    _
  $region3: #{_lambda_.58} parent=0 // pred_check_branch
    %10 = sbr.rel (0) target = $region5
  $region4: #{_lambda_.58} parent=0 // pred_region
    _
  $region5: #{_lambda_.58} parent=0 // pred_fallthru
    _
  // Predicated region
  $region6: #{_lambda_.58} parent=0 // pred_check
    _
  $region7: #{_lambda_.58} parent=0 // pred_check_branch
    %12 = sbr.rel (0) target = $region9
  $region8: #{_lambda_.58} parent=0 // pred_region
    _
  $region9: #{_lambda_.58} parent=0 // pred_fallthru
    _
  // Predicated region
  $region10: #{_lambda_.58} parent=0 // pred_check
    _
  $region11: #{_lambda_.58} parent=0 // pred_check_branch
    %14 = sbr.rel (0) target = $region13
  $region12: #{_lambda_.58} parent=0 // pred_region
    _
  $region13: #{_lambda_.58} parent=0 // pred_fallthru
    _
  // Predicated region
  $region14: #{_lambda_.58} parent=0 // pred_check
    _
  $region15: #{_lambda_.58} parent=0 // pred_check_branch
    %16 = sbr.rel (0) target = $region17
  $region16: #{_lambda_.58} parent=0 // pred_region
    _
  $region17: #{_lambda_.58} parent=0 // pred_fallthru
    _
  %p18 = scmp.eq.s32.totalorder 0, 0
  // Predicated region
  $region18: #{_lambda_.58} parent=0 // pred_check
    %p19 = pneg %p18
  $region19: #{_lambda_.58} parent=0 // pred_check_branch
    %21 = sbr.rel (%p19) target = $region21
  $region20: #{_lambda_.58} parent=0 // pred_region
    %22 = vst [vmem:[#allocation2] sm:$0xff] 0.0
    %23 = vst [vmem:[#allocation2 + $0x8] sm:$0xff] 0.0
    %24 = vst [vmem:[#allocation2 + $0x10] sm:$0xff] 0.0
    %25 = vst [vmem:[#allocation2 + $0x18] sm:$0xff] 0.0
    %26 = vst [vmem:[#allocation2 + $0x20] sm:$0xff] 0.0
    %27 = vst [vmem:[#allocation2 + $0x28] sm:$0xff] 0.0
    %28 = vst [vmem:[#allocation2 + $0x30] sm:$0xff] 0.0
    %29 = vst [vmem:[#allocation2 + $0x38] sm:$0xff] 0.0
    %30 = vst [vmem:[#allocation2 + $0x40] sm:$0xff] 0.0
    %31 = vst [vmem:[#allocation2 + $0x48] sm:$0xff] 0.0
    %32 = vst [vmem:[#allocation2 + $0x50] sm:$0xff] 0.0
    %33 = vst [vmem:[#allocation2 + $0x58] sm:$0xff] 0.0
    %34 = vst [vmem:[#allocation2 + $0x60] sm:$0xff] 0.0
    %35 = vst [vmem:[#allocation2 + $0x68] sm:$0xff] 0.0
    %36 = vst [vmem:[#allocation2 + $0x70] sm:$0xff] 0.0
    %37 = vst [vmem:[#allocation2 + $0x78] sm:$0xff] 0.0
    %38 = vst [vmem:[#allocation2 + $0x80] sm:$0xff] 0.0
    %39 = vst [vmem:[#allocation2 + $0x88] sm:$0xff] 0.0
    %40 = vst [vmem:[#allocation2 + $0x90] sm:$0xff] 0.0
    %41 = vst [vmem:[#allocation2 + $0x98] sm:$0xff] 0.0
    %42 = vst [vmem:[#allocation2 + $0xa0] sm:$0xff] 0.0
    %43 = vst [vmem:[#allocation2 + $0xa8] sm:$0xff] 0.0
    %44 = vst [vmem:[#allocation2 + $0xb0] sm:$0xff] 0.0
    %45 = vst [vmem:[#allocation2 + $0xb8] sm:$0xff] 0.0
    %46 = vst [vmem:[#allocation2 + $0xc0] sm:$0xff] 0.0
    %47 = vst [vmem:[#allocation2 + $0xc8] sm:$0xff] 0.0
    %48 = vst [vmem:[#allocation2 + $0xd0] sm:$0xff] 0.0
    %49 = vst [vmem:[#allocation2 + $0xd8] sm:$0xff] 0.0
    %50 = vst [vmem:[#allocation2 + $0xe0] sm:$0xff] 0.0
    %51 = vst [vmem:[#allocation2 + $0xe8] sm:$0xff] 0.0
    %52 = vst [vmem:[#allocation2 + $0xf0] sm:$0xff] 0.0
    %53 = vst [vmem:[#allocation2 + $0xf8] sm:$0xff] 0.0
  $region21: #{_lambda_.58} parent=0 // pred_fallthru
    _
  %v54 = vld [vmem:[#allocation2] sm:$0xff]
  %v55 = vld [vmem:[#allocation2 + $0x8] sm:$0xff]
  %v56 = vld [vmem:[#allocation2 + $0x10] sm:$0xff]
  %v57 = vld [vmem:[#allocation2 + $0x18] sm:$0xff]
  %v58 = vld [vmem:[#allocation2 + $0x20] sm:$0xff]
  %v59 = vld [vmem:[#allocation2 + $0x28] sm:$0xff]
  %v60 = vld [vmem:[#allocation2 + $0x30] sm:$0xff]
  %v61 = vld [vmem:[#allocation2 + $0x38] sm:$0xff]
  %v62 = vld [vmem:[#allocation2 + $0x40] sm:$0xff]
  %v63 = vld [vmem:[#allocation2 + $0x48] sm:$0xff]
  %v64 = vld [vmem:[#allocation2 + $0x50] sm:$0xff]
  %v65 = vld [vmem:[#allocation2 + $0x58] sm:$0xff]
  %v66 = vld [vmem:[#allocation2 + $0x60] sm:$0xff]
  %v67 = vld [vmem:[#allocation2 + $0x68] sm:$0xff]
  %v68 = vld [vmem:[#allocation2 + $0x70] sm:$0xff]
  %v69 = vld [vmem:[#allocation2 + $0x78] sm:$0xff]
  %v70 = vld [vmem:[#allocation2 + $0x80] sm:$0xff]
  %v71 = vld [vmem:[#allocation2 + $0x88] sm:$0xff]
  %v72 = vld [vmem:[#allocation2 + $0x90] sm:$0xff]
  %v73 = vld [vmem:[#allocation2 + $0x98] sm:$0xff]
  %v74 = vld [vmem:[#allocation2 + $0xa0] sm:$0xff]
  %v75 = vld [vmem:[#allocation2 + $0xa8] sm:$0xff]
  %v76 = vld [vmem:[#allocation2 + $0xb0] sm:$0xff]
  %v77 = vld [vmem:[#allocation2 + $0xb8] sm:$0xff]
  %v78 = vld [vmem:[#allocation2 + $0xc0] sm:$0xff]
  %v79 = vld [vmem:[#allocation2 + $0xc8] sm:$0xff]
  %v80 = vld [vmem:[#allocation2 + $0xd0] sm:$0xff]
  %v81 = vld [vmem:[#allocation2 + $0xd8] sm:$0xff]
  %v82 = vld [vmem:[#allocation2 + $0xe0] sm:$0xff]
  %v83 = vld [vmem:[#allocation2 + $0xe8] sm:$0xff]
  %v84 = vld [vmem:[#allocation2 + $0xf0] sm:$0xff]
  %v85 = vld [vmem:[#allocation2 + $0xf8] sm:$0xff]
  %v86 = vld [vmem:[%s0] sm:$0xff]
  %v87 = vld [vmem:[%s0 + $0x8] sm:$0xf]
  %v88 = vld [vmem:[%s0 + $0xc] sm:$0xff]
  %v89 = vld [vmem:[%s0 + $0x14] sm:$0xf]
  %v90 = vld [vmem:[%s0 + $0x18] sm:$0xff]
  %v91 = vld [vmem:[%s0 + $0x20] sm:$0xf]
  %v92 = vld [vmem:[%s0 + $0x24] sm:$0xff]
  %v93 = vld [vmem:[%s0 + $0x2c] sm:$0xf]
  %v94 = vld [vmem:[%s0 + $0x30] sm:$0xff]
  %v95 = vld [vmem:[%s0 + $0x38] sm:$0xf]
  %v96 = vld [vmem:[%s0 + $0x3c] sm:$0xff]
  %v97 = vld [vmem:[%s0 + $0x44] sm:$0xf]
  %v98 = vld [vmem:[%s0 + $0x48] sm:$0xff]
  %v99 = vld [vmem:[%s0 + $0x50] sm:$0xf]
  %v100 = vld [vmem:[%s0 + $0x54] sm:$0xff]
  %v101 = vld [vmem:[%s0 + $0x5c] sm:$0xf]
  %v102 = vld [vmem:[%s0 + $0x60] sm:$0xff]
  %v103 = vld [vmem:[%s0 + $0x68] sm:$0xf]
  %v104 = vld [vmem:[%s0 + $0x6c] sm:$0xff]
  %v105 = vld [vmem:[%s0 + $0x74] sm:$0xf]
  %v106 = vld [vmem:[%s0 + $0x78] sm:$0xff]
  %v107 = vld [vmem:[%s0 + $0x80] sm:$0xf]
  %v108 = vld [vmem:[%s0 + $0x84] sm:$0xff]
  %v109 = vld [vmem:[%s0 + $0x8c] sm:$0xf]
  %v110 = vld [vmem:[%s0 + $0x90] sm:$0xff]
  %v111 = vld [vmem:[%s0 + $0x98] sm:$0xf]
  %v112 = vld [vmem:[%s0 + $0x9c] sm:$0xff]
  %v113 = vld [vmem:[%s0 + $0xa4] sm:$0xf]
  %v114 = vld [vmem:[%s0 + $0xa8] sm:$0xff]
  %v115 = vld [vmem:[%s0 + $0xb0] sm:$0xf]
  %v116 = vld [vmem:[%s0 + $0xb4] sm:$0xff]
  %v117 = vld [vmem:[%s0 + $0xbc] sm:$0xf]
  %v118 = vld [vmem:[%s0 + $0xc0] sm:$0xff]
  %v119 = vld [vmem:[%s0 + $0xc8] sm:$0xf]
  %v120 = vld [vmem:[%s0 + $0xcc] sm:$0xff]
  %v121 = vld [vmem:[%s0 + $0xd4] sm:$0xf]
  %v122 = vld [vmem:[%s0 + $0xd8] sm:$0xff]
  %v123 = vld [vmem:[%s0 + $0xe0] sm:$0xf]
  %v124 = vld [vmem:[%s0 + $0xe4] sm:$0xff]
  %v125 = vld [vmem:[%s0 + $0xec] sm:$0xf]
  %v126 = vld [vmem:[%s0 + $0xf0] sm:$0xff]
  %v127 = vld [vmem:[%s0 + $0xf8] sm:$0xf]
  %v128 = vld [vmem:[%s0 + $0xfc] sm:$0xff]
  %v129 = vld [vmem:[%s0 + $0x104] sm:$0xf]
  %v130 = vld [vmem:[%s0 + $0x108] sm:$0xff]
  %v131 = vld [vmem:[%s0 + $0x110] sm:$0xf]
  %v132 = vld [vmem:[%s0 + $0x114] sm:$0xff]
  %v133 = vld [vmem:[%s0 + $0x11c] sm:$0xf]
  %v134 = vld [vmem:[%s0 + $0x120] sm:$0xff]
  %v135 = vld [vmem:[%s0 + $0x128] sm:$0xf]
  %v136 = vld [vmem:[%s0 + $0x12c] sm:$0xff]
  %v137 = vld [vmem:[%s0 + $0x134] sm:$0xf]
  %v138 = vld [vmem:[%s0 + $0x138] sm:$0xff]
  %v139 = vld [vmem:[%s0 + $0x140] sm:$0xf]
  %v140 = vld [vmem:[%s0 + $0x144] sm:$0xff]
  %v141 = vld [vmem:[%s0 + $0x14c] sm:$0xf]
  %v142 = vld [vmem:[%s0 + $0x150] sm:$0xff]
  %v143 = vld [vmem:[%s0 + $0x158] sm:$0xf]
  %v144 = vld [vmem:[%s0 + $0x15c] sm:$0xff]
  %v145 = vld [vmem:[%s0 + $0x164] sm:$0xf]
  %v146 = vld [vmem:[%s0 + $0x168] sm:$0xff]
  %v147 = vld [vmem:[%s0 + $0x170] sm:$0xf]
  %v148 = vld [vmem:[%s0 + $0x174] sm:$0xff]
  %v149 = vld [vmem:[%s0 + $0x17c] sm:$0xf]
  %v150 = vld [vmem:[%s1] sm:$0xf]
  %v151 = vld [vmem:[%s1 + $0x4] sm:$0xf]
  %v152 = vld [vmem:[%s1 + $0x8] sm:$0xf]
  %v153 = vld [vmem:[%s1 + $0xc] sm:$0xf]
  %v154 = vld [vmem:[%s1 + $0x10] sm:$0xf]
  %v155 = vld [vmem:[%s1 + $0x14] sm:$0xf]
  %v156 = vld [vmem:[%s1 + $0x18] sm:$0xf]
  %v157 = vld [vmem:[%s1 + $0x1c] sm:$0xf]
  %v158 = vld [vmem:[%s1 + $0x20] sm:$0xf]
  %v159 = vld [vmem:[%s1 + $0x24] sm:$0xf]
  %v160 = vld [vmem:[%s1 + $0x28] sm:$0xf]
  %v161 = vld [vmem:[%s1 + $0x2c] sm:$0xf]
  %v162 = vld [vmem:[%s1 + $0x30] sm:$0xf]
  %v163 = vld [vmem:[%s1 + $0x34] sm:$0xf]
  %v164 = vld [vmem:[%s1 + $0x38] sm:$0xf]
  %v165 = vld [vmem:[%s1 + $0x3c] sm:$0xf]
  %v166 = vld [vmem:[%s1 + $0x40] sm:$0xf]
  %v167 = vld [vmem:[%s1 + $0x44] sm:$0xf]
  %v168 = vld [vmem:[%s1 + $0x48] sm:$0xf]
  %v169 = vld [vmem:[%s1 + $0x4c] sm:$0xf]
  %v170 = vld [vmem:[%s1 + $0x50] sm:$0xf]
  %v171 = vld [vmem:[%s1 + $0x54] sm:$0xf]
  %v172 = vld [vmem:[%s1 + $0x58] sm:$0xf]
  %v173 = vld [vmem:[%s1 + $0x5c] sm:$0xf]
  %v174 = vld [vmem:[%s1 + $0x60] sm:$0xf]
  %v175 = vld [vmem:[%s1 + $0x64] sm:$0xf]
  %v176 = vld [vmem:[%s1 + $0x68] sm:$0xf]
  %v177 = vld [vmem:[%s1 + $0x6c] sm:$0xf]
  %v178 = vld [vmem:[%s1 + $0x70] sm:$0xf]
  %v179 = vld [vmem:[%s1 + $0x74] sm:$0xf]
  %v180 = vld [vmem:[%s1 + $0x78] sm:$0xf]
  %v181 = vld [vmem:[%s1 + $0x7c] sm:$0xf]
  %v182 = vld [vmem:[%s1 + $0x80] sm:$0xf]
  %v183 = vld [vmem:[%s1 + $0x84] sm:$0xf]
  %v184 = vld [vmem:[%s1 + $0x88] sm:$0xf]
  %v185 = vld [vmem:[%s1 + $0x8c] sm:$0xf]
  %v250 = vunpack.c.l.b16 %v86
  %v251 = vunpack.c.h.b16 %v86
  %v252 = vunpack.c.l.b16 %v87
  %v253 = vunpack.c.l.b16 %v88
  %v254 = vunpack.c.h.b16 %v88
  %v255 = vunpack.c.l.b16 %v89
  %v256 = vunpack.c.l.b16 %v90
  %v257 = vunpack.c.h.b16 %v90
  %v258 = vunpack.c.l.b16 %v91
  %v259 = vunpack.c.l.b16 %v92
  %v260 = vunpack.c.h.b16 %v92
  %v261 = vunpack.c.l.b16 %v93
  %v262 = vunpack.c.l.b16 %v94
  %v263 = vunpack.c.h.b16 %v94
  %v264 = vunpack.c.l.b16 %v95
  %v265 = vunpack.c.l.b16 %v96
  %v266 = vunpack.c.h.b16 %v96
  %v267 = vunpack.c.l.b16 %v97
  %v268 = vunpack.c.l.b16 %v98
  %v269 = vunpack.c.h.b16 %v98
  %v270 = vunpack.c.l.b16 %v99
  %v271 = vunpack.c.l.b16 %v100
  %v272 = vunpack.c.h.b16 %v100
  %v273 = vunpack.c.l.b16 %v101
  %v274 = vunpack.c.l.b16 %v102
  %v275 = vunpack.c.h.b16 %v102
  %v276 = vunpack.c.l.b16 %v103
  %v277 = vunpack.c.l.b16 %v104
  %v278 = vunpack.c.h.b16 %v104
  %v279 = vunpack.c.l.b16 %v105
  %v280 = vunpack.c.l.b16 %v106
  %v281 = vunpack.c.h.b16 %v106
  %v282 = vunpack.c.l.b16 %v107
  %v283 = vunpack.c.l.b16 %v108
  %v284 = vunpack.c.h.b16 %v108
  %v285 = vunpack.c.l.b16 %v109
  %v286 = vunpack.c.l.b16 %v110
  %v287 = vunpack.c.h.b16 %v110
  %v288 = vunpack.c.l.b16 %v111
  %v289 = vunpack.c.l.b16 %v112
  %v290 = vunpack.c.h.b16 %v112
  %v291 = vunpack.c.l.b16 %v113
  %v292 = vunpack.c.l.b16 %v114
  %v293 = vunpack.c.h.b16 %v114
  %v294 = vunpack.c.l.b16 %v115
  %v295 = vunpack.c.l.b16 %v116
  %v296 = vunpack.c.h.b16 %v116
  %v297 = vunpack.c.l.b16 %v117
  %v298 = vunpack.c.l.b16 %v118
  %v299 = vunpack.c.h.b16 %v118
  %v300 = vunpack.c.l.b16 %v119
  %v301 = vunpack.c.l.b16 %v120
  %v302 = vunpack.c.h.b16 %v120
  %v303 = vunpack.c.l.b16 %v121
  %v304 = vunpack.c.l.b16 %v122
  %v305 = vunpack.c.h.b16 %v122
  %v306 = vunpack.c.l.b16 %v123
  %v307 = vunpack.c.l.b16 %v124
  %v308 = vunpack.c.h.b16 %v124
  %v309 = vunpack.c.l.b16 %v125
  %v310 = vunpack.c.l.b16 %v126
  %v311 = vunpack.c.h.b16 %v126
  %v312 = vunpack.c.l.b16 %v127
  %v313 = vunpack.c.l.b16 %v128
  %v314 = vunpack.c.h.b16 %v128
  %v315 = vunpack.c.l.b16 %v129
  %v316 = vunpack.c.l.b16 %v130
  %v317 = vunpack.c.h.b16 %v130
  %v318 = vunpack.c.l.b16 %v131
  %v319 = vunpack.c.l.b16 %v132
  %v320 = vunpack.c.h.b16 %v132
  %v321 = vunpack.c.l.b16 %v133
  %v322 = vunpack.c.l.b16 %v134
  %v323 = vunpack.c.h.b16 %v134
  %v324 = vunpack.c.l.b16 %v135
  %v325 = vunpack.c.l.b16 %v136
  %v326 = vunpack.c.h.b16 %v136
  %v327 = vunpack.c.l.b16 %v137
  %v328 = vunpack.c.l.b16 %v138
  %v329 = vunpack.c.h.b16 %v138
  %v330 = vunpack.c.l.b16 %v139
  %v331 = vunpack.c.l.b16 %v140
  %v332 = vunpack.c.h.b16 %v140
  %v333 = vunpack.c.l.b16 %v141
  %v334 = vunpack.c.l.b16 %v142
  %v335 = vunpack.c.h.b16 %v142
  %v336 = vunpack.c.l.b16 %v143
  %v337 = vunpack.c.l.b16 %v144
  %v338 = vunpack.c.h.b16 %v144
  %v339 = vunpack.c.l.b16 %v145
  %v340 = vunpack.c.l.b16 %v146
  %v341 = vunpack.c.h.b16 %v146
  %v342 = vunpack.c.l.b16 %v147
  %v343 = vunpack.c.l.b16 %v148
  %v344 = vunpack.c.h.b16 %v148
  %v345 = vunpack.c.l.b16 %v149
  %v346 = vpack.c.b16 %v253, %v250
  %v347 = vpack.c.b16 %v254, %v251
  %v348 = vpack.c.b16 %v255, %v252
  %v349 = vpack.c.b16 %v259, %v256
  %v350 = vpack.c.b16 %v260, %v257
  %v351 = vpack.c.b16 %v261, %v258
  %v352 = vpack.c.b16 %v265, %v262
  %v353 = vpack.c.b16 %v266, %v263
  %v354 = vpack.c.b16 %v267, %v264
  %v355 = vpack.c.b16 %v271, %v268
  %v356 = vpack.c.b16 %v272, %v269
  %v357 = vpack.c.b16 %v273, %v270
  %v358 = vpack.c.b16 %v277, %v274
  %v359 = vpack.c.b16 %v278, %v275
  %v360 = vpack.c.b16 %v279, %v276
  %v361 = vpack.c.b16 %v283, %v280
  %v362 = vpack.c.b16 %v284, %v281
  %v363 = vpack.c.b16 %v285, %v282
  %v364 = vpack.c.b16 %v289, %v286
  %v365 = vpack.c.b16 %v290, %v287
  %v366 = vpack.c.b16 %v291, %v288
  %v367 = vpack.c.b16 %v295, %v292
  %v368 = vpack.c.b16 %v296, %v293
  %v369 = vpack.c.b16 %v297, %v294
  %v370 = vpack.c.b16 %v301, %v298
  %v371 = vpack.c.b16 %v302, %v299
  %v372 = vpack.c.b16 %v303, %v300
  %v373 = vpack.c.b16 %v307, %v304
  %v374 = vpack.c.b16 %v308, %v305
  %v375 = vpack.c.b16 %v309, %v306
  %v376 = vpack.c.b16 %v313, %v310
  %v377 = vpack.c.b16 %v314, %v311
  %v378 = vpack.c.b16 %v315, %v312
  %v379 = vpack.c.b16 %v319, %v316
  %v380 = vpack.c.b16 %v320, %v317
  %v381 = vpack.c.b16 %v321, %v318
  %v382 = vpack.c.b16 %v325, %v322
  %v383 = vpack.c.b16 %v326, %v323
  %v384 = vpack.c.b16 %v327, %v324
  %v385 = vpack.c.b16 %v331, %v328
  %v386 = vpack.c.b16 %v332, %v329
  %v387 = vpack.c.b16 %v333, %v330
  %v388 = vpack.c.b16 %v337, %v334
  %v389 = vpack.c.b16 %v338, %v335
  %v390 = vpack.c.b16 %v339, %v336
  %v391 = vpack.c.b16 %v343, %v340
  %v392 = vpack.c.b16 %v344, %v341
  %v393 = vpack.c.b16 %v345, %v342
  %v462 = vunpack.c.l.b16 %v150
  %v463 = vunpack.c.l.b16 %v151
  %v464 = vunpack.c.l.b16 %v152
  %v465 = vunpack.c.l.b16 %v153
  %v466 = vunpack.c.l.b16 %v154
  %v467 = vunpack.c.l.b16 %v155
  %v468 = vunpack.c.l.b16 %v156
  %v469 = vunpack.c.l.b16 %v157
  %v470 = vunpack.c.l.b16 %v158
  %v471 = vunpack.c.l.b16 %v159
  %v472 = vunpack.c.l.b16 %v160
  %v473 = vunpack.c.l.b16 %v161
  %v474 = vunpack.c.l.b16 %v162
  %v475 = vunpack.c.l.b16 %v163
  %v476 = vunpack.c.l.b16 %v164
  %v477 = vunpack.c.l.b16 %v165
  %v478 = vunpack.c.l.b16 %v166
  %v479 = vunpack.c.l.b16 %v167
  %v480 = vunpack.c.l.b16 %v168
  %v481 = vunpack.c.l.b16 %v169
  %v482 = vunpack.c.l.b16 %v170
  %v483 = vunpack.c.l.b16 %v171
  %v484 = vunpack.c.l.b16 %v172
  %v485 = vunpack.c.l.b16 %v173
  %v486 = vunpack.c.l.b16 %v174
  %v487 = vunpack.c.l.b16 %v175
  %v488 = vunpack.c.l.b16 %v176
  %v489 = vunpack.c.l.b16 %v177
  %v490 = vunpack.c.l.b16 %v178
  %v491 = vunpack.c.l.b16 %v179
  %v492 = vunpack.c.l.b16 %v180
  %v493 = vunpack.c.l.b16 %v181
  %v494 = vunpack.c.l.b16 %v182
  %v495 = vunpack.c.l.b16 %v183
  %v496 = vunpack.c.l.b16 %v184
  %v497 = vunpack.c.l.b16 %v185
  %v498 = vpack.c.b16 %v463, %v462
  %v499 = vpack.c.b16 %v465, %v464
  %v500 = vpack.c.b16 %v467, %v466
  %v501 = vpack.c.b16 %v469, %v468
  %v502 = vpack.c.b16 %v471, %v470
  %v503 = vpack.c.b16 %v473, %v472
  %v504 = vpack.c.b16 %v475, %v474
  %v505 = vpack.c.b16 %v477, %v476
  %v506 = vpack.c.b16 %v479, %v478
  %v507 = vpack.c.b16 %v481, %v480
  %v508 = vpack.c.b16 %v483, %v482
  %v509 = vpack.c.b16 %v485, %v484
  %v510 = vpack.c.b16 %v487, %v486
  %v511 = vpack.c.b16 %v489, %v488
  %v512 = vpack.c.b16 %v491, %v490
  %v513 = vpack.c.b16 %v493, %v492
  %v514 = vpack.c.b16 %v495, %v494
  %v515 = vpack.c.b16 %v497, %v496
  %vm534 = vcmask 261120
  %v536 = vsel %vm534, %v348, 0
  %v539 = vsel %vm534, %v351, 0
  %v542 = vsel %vm534, %v354, 0
  %v545 = vsel %vm534, %v357, 0
  %v548 = vsel %vm534, %v360, 0
  %v551 = vsel %vm534, %v363, 0
  %v554 = vsel %vm534, %v366, 0
  %v557 = vsel %vm534, %v369, 0
  %v560 = vsel %vm534, %v372, 0
  %v563 = vsel %vm534, %v375, 0
  %v566 = vsel %vm534, %v378, 0
  %v569 = vsel %vm534, %v381, 0
  %v572 = vsel %vm534, %v384, 0
  %v575 = vsel %vm534, %v387, 0
  %v578 = vsel %vm534, %v390, 0
  %v581 = vsel %vm534, %v393, 0
  %583 = vmatpush.bf16.msra.mxu0 %v505
  %584 = vmatpush.bf16.msra.mxu0 %v504
  %585 = vmatpush.bf16.msra.mxu0 %v503
  %586 = vmatpush.bf16.msra.mxu0 %v502
  %587 = vmatpush.bf16.msra.mxu0 %v501
  %588 = vmatpush.bf16.msra.mxu0 %v500
  %589 = vmatpush.bf16.msra.mxu0 %v499
  %590 = vmatpush.bf16.msra.mxu0 %v498
  %591 = vmatmul.bf16.gmra.mxu0 %v346
  %v592 = vpop.f32.mrf.mxu0
  %v593 = vadd.f32 0.0, %v592
  %v594 = vpop.f32.mrf.mxu0
  %v595 = vadd.f32 0.0, %v594
  %596 = vmatmul.bf16.gmra.mxu0 %v349
  %v597 = vpop.f32.mrf.mxu0
  %v598 = vadd.f32 0.0, %v597
  %v599 = vpop.f32.mrf.mxu0
  %v600 = vadd.f32 0.0, %v599
  %601 = vmatmul.bf16.gmra.mxu0 %v352
  %v602 = vpop.f32.mrf.mxu0
  %v603 = vadd.f32 0.0, %v602
  %v604 = vpop.f32.mrf.mxu0
  %v605 = vadd.f32 0.0, %v604
  %606 = vmatmul.bf16.gmra.mxu0 %v355
  %v607 = vpop.f32.mrf.mxu0
  %v608 = vadd.f32 0.0, %v607
  %v609 = vpop.f32.mrf.mxu0
  %v610 = vadd.f32 0.0, %v609
  %611 = vmatmul.bf16.gmra.mxu0 %v358
  %v612 = vpop.f32.mrf.mxu0
  %v613 = vadd.f32 0.0, %v612
  %v614 = vpop.f32.mrf.mxu0
  %v615 = vadd.f32 0.0, %v614
  %616 = vmatmul.bf16.gmra.mxu0 %v361
  %v617 = vpop.f32.mrf.mxu0
  %v618 = vadd.f32 0.0, %v617
  %v619 = vpop.f32.mrf.mxu0
  %v620 = vadd.f32 0.0, %v619
  %621 = vmatmul.bf16.gmra.mxu0 %v364
  %v622 = vpop.f32.mrf.mxu0
  %v623 = vadd.f32 0.0, %v622
  %v624 = vpop.f32.mrf.mxu0
  %v625 = vadd.f32 0.0, %v624
  %626 = vmatmul.bf16.gmra.mxu0 %v367
  %v627 = vpop.f32.mrf.mxu0
  %v628 = vadd.f32 0.0, %v627
  %v629 = vpop.f32.mrf.mxu0
  %v630 = vadd.f32 0.0, %v629
  %631 = vmatmul.bf16.gmra.mxu0 %v370
  %v632 = vpop.f32.mrf.mxu0
  %v633 = vadd.f32 0.0, %v632
  %v634 = vpop.f32.mrf.mxu0
  %v635 = vadd.f32 0.0, %v634
  %636 = vmatmul.bf16.gmra.mxu0 %v373
  %v637 = vpop.f32.mrf.mxu0
  %v638 = vadd.f32 0.0, %v637
  %v639 = vpop.f32.mrf.mxu0
  %v640 = vadd.f32 0.0, %v639
  %641 = vmatmul.bf16.gmra.mxu0 %v376
  %v642 = vpop.f32.mrf.mxu0
  %v643 = vadd.f32 0.0, %v642
  %v644 = vpop.f32.mrf.mxu0
  %v645 = vadd.f32 0.0, %v644
  %646 = vmatmul.bf16.gmra.mxu0 %v379
  %v647 = vpop.f32.mrf.mxu0
  %v648 = vadd.f32 0.0, %v647
  %v649 = vpop.f32.mrf.mxu0
  %v650 = vadd.f32 0.0, %v649
  %651 = vmatmul.bf16.gmra.mxu0 %v382
  %v652 = vpop.f32.mrf.mxu0
  %v653 = vadd.f32 0.0, %v652
  %v654 = vpop.f32.mrf.mxu0
  %v655 = vadd.f32 0.0, %v654
  %656 = vmatmul.bf16.gmra.mxu0 %v385
  %v657 = vpop.f32.mrf.mxu0
  %v658 = vadd.f32 0.0, %v657
  %v659 = vpop.f32.mrf.mxu0
  %v660 = vadd.f32 0.0, %v659
  %661 = vmatmul.bf16.gmra.mxu0 %v388
  %v662 = vpop.f32.mrf.mxu0
  %v663 = vadd.f32 0.0, %v662
  %v664 = vpop.f32.mrf.mxu0
  %v665 = vadd.f32 0.0, %v664
  %666 = vmatmul.bf16.gmra.mxu0 %v391
  %v667 = vpop.f32.mrf.mxu0
  %v668 = vadd.f32 0.0, %v667
  %v669 = vpop.f32.mrf.mxu0
  %v670 = vadd.f32 0.0, %v669
  %671 = vdwg.mxu0
  %672 = vmatpush.bf16.msra.mxu0 %v513
  %673 = vmatpush.bf16.msra.mxu0 %v512
  %674 = vmatpush.bf16.msra.mxu0 %v511
  %675 = vmatpush.bf16.msra.mxu0 %v510
  %676 = vmatpush.bf16.msra.mxu0 %v509
  %677 = vmatpush.bf16.msra.mxu0 %v508
  %678 = vmatpush.bf16.msra.mxu0 %v507
  %679 = vmatpush.bf16.msra.mxu0 %v506
  %680 = vmatmul.bf16.gmra.mxu0 %v347
  %v681 = vpop.f32.mrf.mxu0
  %v682 = vadd.f32 %v593, %v681
  %v683 = vpop.f32.mrf.mxu0
  %v684 = vadd.f32 %v595, %v683
  %685 = vmatmul.bf16.gmra.mxu0 %v350
  %v686 = vpop.f32.mrf.mxu0
  %v687 = vadd.f32 %v598, %v686
  %v688 = vpop.f32.mrf.mxu0
  %v689 = vadd.f32 %v600, %v688
  %690 = vmatmul.bf16.gmra.mxu0 %v353
  %v691 = vpop.f32.mrf.mxu0
  %v692 = vadd.f32 %v603, %v691
  %v693 = vpop.f32.mrf.mxu0
  %v694 = vadd.f32 %v605, %v693
  %695 = vmatmul.bf16.gmra.mxu0 %v356
  %v696 = vpop.f32.mrf.mxu0
  %v697 = vadd.f32 %v608, %v696
  %v698 = vpop.f32.mrf.mxu0
  %v699 = vadd.f32 %v610, %v698
  %700 = vmatmul.bf16.gmra.mxu0 %v359
  %v701 = vpop.f32.mrf.mxu0
  %v702 = vadd.f32 %v613, %v701
  %v703 = vpop.f32.mrf.mxu0
  %v704 = vadd.f32 %v615, %v703
  %705 = vmatmul.bf16.gmra.mxu0 %v362
  %v706 = vpop.f32.mrf.mxu0
  %v707 = vadd.f32 %v618, %v706
  %v708 = vpop.f32.mrf.mxu0
  %v709 = vadd.f32 %v620, %v708
  %710 = vmatmul.bf16.gmra.mxu0 %v365
  %v711 = vpop.f32.mrf.mxu0
  %v712 = vadd.f32 %v623, %v711
  %v713 = vpop.f32.mrf.mxu0
  %v714 = vadd.f32 %v625, %v713
  %715 = vmatmul.bf16.gmra.mxu0 %v368
  %v716 = vpop.f32.mrf.mxu0
  %v717 = vadd.f32 %v628, %v716
  %v718 = vpop.f32.mrf.mxu0
  %v719 = vadd.f32 %v630, %v718
  %720 = vmatmul.bf16.gmra.mxu0 %v371
  %v721 = vpop.f32.mrf.mxu0
  %v722 = vadd.f32 %v633, %v721
  %v723 = vpop.f32.mrf.mxu0
  %v724 = vadd.f32 %v635, %v723
  %725 = vmatmul.bf16.gmra.mxu0 %v374
  %v726 = vpop.f32.mrf.mxu0
  %v727 = vadd.f32 %v638, %v726
  %v728 = vpop.f32.mrf.mxu0
  %v729 = vadd.f32 %v640, %v728
  %730 = vmatmul.bf16.gmra.mxu0 %v377
  %v731 = vpop.f32.mrf.mxu0
  %v732 = vadd.f32 %v643, %v731
  %v733 = vpop.f32.mrf.mxu0
  %v734 = vadd.f32 %v645, %v733
  %735 = vmatmul.bf16.gmra.mxu0 %v380
  %v736 = vpop.f32.mrf.mxu0
  %v737 = vadd.f32 %v648, %v736
  %v738 = vpop.f32.mrf.mxu0
  %v739 = vadd.f32 %v650, %v738
  %740 = vmatmul.bf16.gmra.mxu0 %v383
  %v741 = vpop.f32.mrf.mxu0
  %v742 = vadd.f32 %v653, %v741
  %v743 = vpop.f32.mrf.mxu0
  %v744 = vadd.f32 %v655, %v743
  %745 = vmatmul.bf16.gmra.mxu0 %v386
  %v746 = vpop.f32.mrf.mxu0
  %v747 = vadd.f32 %v658, %v746
  %v748 = vpop.f32.mrf.mxu0
  %v749 = vadd.f32 %v660, %v748
  %750 = vmatmul.bf16.gmra.mxu0 %v389
  %v751 = vpop.f32.mrf.mxu0
  %v752 = vadd.f32 %v663, %v751
  %v753 = vpop.f32.mrf.mxu0
  %v754 = vadd.f32 %v665, %v753
  %755 = vmatmul.bf16.gmra.mxu0 %v392
  %v756 = vpop.f32.mrf.mxu0
  %v757 = vadd.f32 %v668, %v756
  %v758 = vpop.f32.mrf.mxu0
  %v759 = vadd.f32 %v670, %v758
  %760 = vdwg.mxu0
  %761 = vmatpush.bf16.msra.mxu0 0
  %762 = vmatpush.bf16.msra.mxu0 0
  %763 = vmatpush.bf16.msra.mxu0 0
  %764 = vmatpush.bf16.msra.mxu0 0
  %765 = vmatpush.bf16.msra.mxu0 0
  %766 = vmatpush.bf16.msra.mxu0 0
  %767 = vmatpush.bf16.msra.mxu0 %v515
  %768 = vmatpush.bf16.msra.mxu0 %v514
  %769 = vmatmul.bf16.gmra.mxu0 %v536
  %v770 = vpop.f32.mrf.mxu0
  %v771 = vadd.f32 %v682, %v770
  %v772 = vpop.f32.mrf.mxu0
  %v773 = vadd.f32 %v684, %v772
  %774 = vmatmul.bf16.gmra.mxu0 %v539
  %v775 = vpop.f32.mrf.mxu0
  %v776 = vadd.f32 %v687, %v775
  %v777 = vpop.f32.mrf.mxu0
  %v778 = vadd.f32 %v689, %v777
  %779 = vmatmul.bf16.gmra.mxu0 %v542
  %v780 = vpop.f32.mrf.mxu0
  %v781 = vadd.f32 %v692, %v780
  %v782 = vpop.f32.mrf.mxu0
  %v783 = vadd.f32 %v694, %v782
  %784 = vmatmul.bf16.gmra.mxu0 %v545
  %v785 = vpop.f32.mrf.mxu0
  %v786 = vadd.f32 %v697, %v785
  %v787 = vpop.f32.mrf.mxu0
  %v788 = vadd.f32 %v699, %v787
  %789 = vmatmul.bf16.gmra.mxu0 %v548
  %v790 = vpop.f32.mrf.mxu0
  %v791 = vadd.f32 %v702, %v790
  %v792 = vpop.f32.mrf.mxu0
  %v793 = vadd.f32 %v704, %v792
  %794 = vmatmul.bf16.gmra.mxu0 %v551
  %v795 = vpop.f32.mrf.mxu0
  %v796 = vadd.f32 %v707, %v795
  %v797 = vpop.f32.mrf.mxu0
  %v798 = vadd.f32 %v709, %v797
  %799 = vmatmul.bf16.gmra.mxu0 %v554
  %v800 = vpop.f32.mrf.mxu0
  %v801 = vadd.f32 %v712, %v800
  %v802 = vpop.f32.mrf.mxu0
  %v803 = vadd.f32 %v714, %v802
  %804 = vmatmul.bf16.gmra.mxu0 %v557
  %v805 = vpop.f32.mrf.mxu0
  %v806 = vadd.f32 %v717, %v805
  %v807 = vpop.f32.mrf.mxu0
  %v808 = vadd.f32 %v719, %v807
  %809 = vmatmul.bf16.gmra.mxu0 %v560
  %v810 = vpop.f32.mrf.mxu0
  %v811 = vadd.f32 %v722, %v810
  %v812 = vpop.f32.mrf.mxu0
  %v813 = vadd.f32 %v724, %v812
  %814 = vmatmul.bf16.gmra.mxu0 %v563
  %v815 = vpop.f32.mrf.mxu0
  %v816 = vadd.f32 %v727, %v815
  %v817 = vpop.f32.mrf.mxu0
  %v818 = vadd.f32 %v729, %v817
  %819 = vmatmul.bf16.gmra.mxu0 %v566
  %v820 = vpop.f32.mrf.mxu0
  %v821 = vadd.f32 %v732, %v820
  %v822 = vpop.f32.mrf.mxu0
  %v823 = vadd.f32 %v734, %v822
  %824 = vmatmul.bf16.gmra.mxu0 %v569
  %v825 = vpop.f32.mrf.mxu0
  %v826 = vadd.f32 %v737, %v825
  %v827 = vpop.f32.mrf.mxu0
  %v828 = vadd.f32 %v739, %v827
  %829 = vmatmul.bf16.gmra.mxu0 %v572
  %v830 = vpop.f32.mrf.mxu0
  %v831 = vadd.f32 %v742, %v830
  %v832 = vpop.f32.mrf.mxu0
  %v833 = vadd.f32 %v744, %v832
  %834 = vmatmul.bf16.gmra.mxu0 %v575
  %v835 = vpop.f32.mrf.mxu0
  %v836 = vadd.f32 %v747, %v835
  %v837 = vpop.f32.mrf.mxu0
  %v838 = vadd.f32 %v749, %v837
  %839 = vmatmul.bf16.gmra.mxu0 %v578
  %v840 = vpop.f32.mrf.mxu0
  %v841 = vadd.f32 %v752, %v840
  %v842 = vpop.f32.mrf.mxu0
  %v843 = vadd.f32 %v754, %v842
  %844 = vmatmul.bf16.gmra.mxu0 %v581
  %v845 = vpop.f32.mrf.mxu0
  %v846 = vadd.f32 %v757, %v845
  %v847 = vpop.f32.mrf.mxu0
  %v848 = vadd.f32 %v759, %v847
  %849 = vdwg.mxu0
  %v850 = vadd.f32 %v54, %v771
  %v851 = vadd.f32 %v55, %v773
  %v852 = vadd.f32 %v56, %v776
  %v853 = vadd.f32 %v57, %v778
  %v854 = vadd.f32 %v58, %v781
  %v855 = vadd.f32 %v59, %v783
  %v856 = vadd.f32 %v60, %v786
  %v857 = vadd.f32 %v61, %v788
  %v858 = vadd.f32 %v62, %v791
  %v859 = vadd.f32 %v63, %v793
  %v860 = vadd.f32 %v64, %v796
  %v861 = vadd.f32 %v65, %v798
  %v862 = vadd.f32 %v66, %v801
  %v863 = vadd.f32 %v67, %v803
  %v864 = vadd.f32 %v68, %v806
  %v865 = vadd.f32 %v69, %v808
  %v866 = vadd.f32 %v70, %v811
  %v867 = vadd.f32 %v71, %v813
  %v868 = vadd.f32 %v72, %v816
  %v869 = vadd.f32 %v73, %v818
  %v870 = vadd.f32 %v74, %v821
  %v871 = vadd.f32 %v75, %v823
  %v872 = vadd.f32 %v76, %v826
  %v873 = vadd.f32 %v77, %v828
  %v874 = vadd.f32 %v78, %v831
  %v875 = vadd.f32 %v79, %v833
  %v876 = vadd.f32 %v80, %v836
  %v877 = vadd.f32 %v81, %v838
  %v878 = vadd.f32 %v82, %v841
  %v879 = vadd.f32 %v83, %v843
  %v880 = vadd.f32 %v84, %v846
  %v881 = vadd.f32 %v85, %v848
  %882 = vst [vmem:[#allocation2] sm:$0xff] %v850
  %883 = vst [vmem:[#allocation2 + $0x8] sm:$0xff] %v851
  %884 = vst [vmem:[#allocation2 + $0x10] sm:$0xff] %v852
  %885 = vst [vmem:[#allocation2 + $0x18] sm:$0xff] %v853
  %886 = vst [vmem:[#allocation2 + $0x20] sm:$0xff] %v854
  %887 = vst [vmem:[#allocation2 + $0x28] sm:$0xff] %v855
  %888 = vst [vmem:[#allocation2 + $0x30] sm:$0xff] %v856
  %889 = vst [vmem:[#allocation2 + $0x38] sm:$0xff] %v857
  %890 = vst [vmem:[#allocation2 + $0x40] sm:$0xff] %v858
  %891 = vst [vmem:[#allocation2 + $0x48] sm:$0xff] %v859
  %892 = vst [vmem:[#allocation2 + $0x50] sm:$0xff] %v860
  %893 = vst [vmem:[#allocation2 + $0x58] sm:$0xff] %v861
  %894 = vst [vmem:[#allocation2 + $0x60] sm:$0xff] %v862
  %895 = vst [vmem:[#allocation2 + $0x68] sm:$0xff] %v863
  %896 = vst [vmem:[#allocation2 + $0x70] sm:$0xff] %v864
  %897 = vst [vmem:[#allocation2 + $0x78] sm:$0xff] %v865
  %898 = vst [vmem:[#allocation2 + $0x80] sm:$0xff] %v866
  %899 = vst [vmem:[#allocation2 + $0x88] sm:$0xff] %v867
  %900 = vst [vmem:[#allocation2 + $0x90] sm:$0xff] %v868
  %901 = vst [vmem:[#allocation2 + $0x98] sm:$0xff] %v869
  %902 = vst [vmem:[#allocation2 + $0xa0] sm:$0xff] %v870
  %903 = vst [vmem:[#allocation2 + $0xa8] sm:$0xff] %v871
  %904 = vst [vmem:[#allocation2 + $0xb0] sm:$0xff] %v872
  %905 = vst [vmem:[#allocation2 + $0xb8] sm:$0xff] %v873
  %906 = vst [vmem:[#allocation2 + $0xc0] sm:$0xff] %v874
  %907 = vst [vmem:[#allocation2 + $0xc8] sm:$0xff] %v875
  %908 = vst [vmem:[#allocation2 + $0xd0] sm:$0xff] %v876
  %909 = vst [vmem:[#allocation2 + $0xd8] sm:$0xff] %v877
  %910 = vst [vmem:[#allocation2 + $0xe0] sm:$0xff] %v878
  %911 = vst [vmem:[#allocation2 + $0xe8] sm:$0xff] %v879
  %912 = vst [vmem:[#allocation2 + $0xf0] sm:$0xff] %v880
  %913 = vst [vmem:[#allocation2 + $0xf8] sm:$0xff] %v881
  // Predicated region
  $region22: #{_lambda_.58} parent=0 // pred_check
    %p914 = pneg %p18
  $region23: #{_lambda_.58} parent=0 // pred_check_branch
    %916 = sbr.rel (%p914) target = $region25
  $region24: #{_lambda_.58} parent=0 // pred_region
    %v917 = vld [vmem:[#allocation2] sm:$0xff]
    %v918 = vld [vmem:[#allocation2 + $0x8] sm:$0xff]
    %v919 = vld [vmem:[#allocation2 + $0x10] sm:$0xff]
    %v920 = vld [vmem:[#allocation2 + $0x18] sm:$0xff]
    %v921 = vld [vmem:[#allocation2 + $0x20] sm:$0xff]
    %v922 = vld [vmem:[#allocation2 + $0x28] sm:$0xff]
    %v923 = vld [vmem:[#allocation2 + $0x30] sm:$0xff]
    %v924 = vld [vmem:[#allocation2 + $0x38] sm:$0xff]
    %v925 = vld [vmem:[#allocation2 + $0x40] sm:$0xff]
    %v926 = vld [vmem:[#allocation2 + $0x48] sm:$0xff]
    %v927 = vld [vmem:[#allocation2 + $0x50] sm:$0xff]
    %v928 = vld [vmem:[#allocation2 + $0x58] sm:$0xff]
    %v929 = vld [vmem:[#allocation2 + $0x60] sm:$0xff]
    %v930 = vld [vmem:[#allocation2 + $0x68] sm:$0xff]
    %v931 = vld [vmem:[#allocation2 + $0x70] sm:$0xff]
    %v932 = vld [vmem:[#allocation2 + $0x78] sm:$0xff]
    %v933 = vld [vmem:[#allocation2 + $0x80] sm:$0xff]
    %v934 = vld [vmem:[#allocation2 + $0x88] sm:$0xff]
    %v935 = vld [vmem:[#allocation2 + $0x90] sm:$0xff]
    %v936 = vld [vmem:[#allocation2 + $0x98] sm:$0xff]
    %v937 = vld [vmem:[#allocation2 + $0xa0] sm:$0xff]
    %v938 = vld [vmem:[#allocation2 + $0xa8] sm:$0xff]
    %v939 = vld [vmem:[#allocation2 + $0xb0] sm:$0xff]
    %v940 = vld [vmem:[#allocation2 + $0xb8] sm:$0xff]
    %v941 = vld [vmem:[#allocation2 + $0xc0] sm:$0xff]
    %v942 = vld [vmem:[#allocation2 + $0xc8] sm:$0xff]
    %v943 = vld [vmem:[#allocation2 + $0xd0] sm:$0xff]
    %v944 = vld [vmem:[#allocation2 + $0xd8] sm:$0xff]
    %v945 = vld [vmem:[#allocation2 + $0xe0] sm:$0xff]
    %v946 = vld [vmem:[#allocation2 + $0xe8] sm:$0xff]
    %v947 = vld [vmem:[#allocation2 + $0xf0] sm:$0xff]
    %v948 = vld [vmem:[#allocation2 + $0xf8] sm:$0xff]
    %v949 = vld [vmem:[%s2] sm:$0x1]
    %v951 = vperm.slane %v949, 0
    %v953 = vmul.f32 %v917, %v951
    %v954 = vmul.f32 %v918, %v951
    %v955 = vmul.f32 %v919, %v951
    %v956 = vmul.f32 %v920, %v951
    %v957 = vmul.f32 %v921, %v951
    %v958 = vmul.f32 %v922, %v951
    %v959 = vmul.f32 %v923, %v951
    %v960 = vmul.f32 %v924, %v951
    %v961 = vmul.f32 %v925, %v951
    %v962 = vmul.f32 %v926, %v951
    %v963 = vmul.f32 %v927, %v951
    %v964 = vmul.f32 %v928, %v951
    %v965 = vmul.f32 %v929, %v951
    %v966 = vmul.f32 %v930, %v951
    %v967 = vmul.f32 %v931, %v951
    %v968 = vmul.f32 %v932, %v951
    %v969 = vmul.f32 %v933, %v951
    %v970 = vmul.f32 %v934, %v951
    %v971 = vmul.f32 %v935, %v951
    %v972 = vmul.f32 %v936, %v951
    %v973 = vmul.f32 %v937, %v951
    %v974 = vmul.f32 %v938, %v951
    %v975 = vmul.f32 %v939, %v951
    %v976 = vmul.f32 %v940, %v951
    %v977 = vmul.f32 %v941, %v951
    %v978 = vmul.f32 %v942, %v951
    %v979 = vmul.f32 %v943, %v951
    %v980 = vmul.f32 %v944, %v951
    %v981 = vmul.f32 %v945, %v951
    %v982 = vmul.f32 %v946, %v951
    %v983 = vmul.f32 %v947, %v951
    %v984 = vmul.f32 %v948, %v951
    %v985 = vld [vmem:[%s3] sm:$0x1]
    %v987 = vperm.slane %v985, 0
    %v989 = vadd.f32 %v953, %v987
    %v990 = vadd.f32 %v954, %v987
    %v991 = vadd.f32 %v955, %v987
    %v992 = vadd.f32 %v956, %v987
    %v993 = vadd.f32 %v957, %v987
    %v994 = vadd.f32 %v958, %v987
    %v995 = vadd.f32 %v959, %v987
    %v996 = vadd.f32 %v960, %v987
    %v997 = vadd.f32 %v961, %v987
    %v998 = vadd.f32 %v962, %v987
    %v999 = vadd.f32 %v963, %v987
    %v1000 = vadd.f32 %v964, %v987
    %v1001 = vadd.f32 %v965, %v987
    %v1002 = vadd.f32 %v966, %v987
    %v1003 = vadd.f32 %v967, %v987
    %v1004 = vadd.f32 %v968, %v987
    %v1005 = vadd.f32 %v969, %v987
    %v1006 = vadd.f32 %v970, %v987
    %v1007 = vadd.f32 %v971, %v987
    %v1008 = vadd.f32 %v972, %v987
    %v1009 = vadd.f32 %v973, %v987
    %v1010 = vadd.f32 %v974, %v987
    %v1011 = vadd.f32 %v975, %v987
    %v1012 = vadd.f32 %v976, %v987
    %v1013 = vadd.f32 %v977, %v987
    %v1014 = vadd.f32 %v978, %v987
    %v1015 = vadd.f32 %v979, %v987
    %v1016 = vadd.f32 %v980, %v987
    %v1017 = vadd.f32 %v981, %v987
    %v1018 = vadd.f32 %v982, %v987
    %v1019 = vadd.f32 %v983, %v987
    %v1020 = vadd.f32 %v984, %v987
    %1021 = vst [vmem:[%s4] sm:$0xff] %v989
    %1022 = vst [vmem:[%s4 + $0x8] sm:$0xff] %v990
    %1023 = vst [vmem:[%s4 + $0x10] sm:$0xff] %v991
    %1024 = vst [vmem:[%s4 + $0x18] sm:$0xff] %v992
    %1025 = vst [vmem:[%s4 + $0x20] sm:$0xff] %v993
    %1026 = vst [vmem:[%s4 + $0x28] sm:$0xff] %v994
    %1027 = vst [vmem:[%s4 + $0x30] sm:$0xff] %v995
    %1028 = vst [vmem:[%s4 + $0x38] sm:$0xff] %v996
    %1029 = vst [vmem:[%s4 + $0x40] sm:$0xff] %v997
    %1030 = vst [vmem:[%s4 + $0x48] sm:$0xff] %v998
    %1031 = vst [vmem:[%s4 + $0x50] sm:$0xff] %v999
    %1032 = vst [vmem:[%s4 + $0x58] sm:$0xff] %v1000
    %1033 = vst [vmem:[%s4 + $0x60] sm:$0xff] %v1001
    %1034 = vst [vmem:[%s4 + $0x68] sm:$0xff] %v1002
    %1035 = vst [vmem:[%s4 + $0x70] sm:$0xff] %v1003
    %1036 = vst [vmem:[%s4 + $0x78] sm:$0xff] %v1004
    %1037 = vst [vmem:[%s4 + $0x80] sm:$0xff] %v1005
    %1038 = vst [vmem:[%s4 + $0x88] sm:$0xff] %v1006
    %1039 = vst [vmem:[%s4 + $0x90] sm:$0xff] %v1007
    %1040 = vst [vmem:[%s4 + $0x98] sm:$0xff] %v1008
    %1041 = vst [vmem:[%s4 + $0xa0] sm:$0xff] %v1009
    %1042 = vst [vmem:[%s4 + $0xa8] sm:$0xff] %v1010
    %1043 = vst [vmem:[%s4 + $0xb0] sm:$0xff] %v1011
    %1044 = vst [vmem:[%s4 + $0xb8] sm:$0xff] %v1012
    %1045 = vst [vmem:[%s4 + $0xc0] sm:$0xff] %v1013
    %1046 = vst [vmem:[%s4 + $0xc8] sm:$0xff] %v1014
    %1047 = vst [vmem:[%s4 + $0xd0] sm:$0xff] %v1015
    %1048 = vst [vmem:[%s4 + $0xd8] sm:$0xff] %v1016
    %1049 = vst [vmem:[%s4 + $0xe0] sm:$0xff] %v1017
    %1050 = vst [vmem:[%s4 + $0xe8] sm:$0xff] %v1018
    %1051 = vst [vmem:[%s4 + $0xf0] sm:$0xff] %v1019
    %1052 = vst [vmem:[%s4 + $0xf8] sm:$0xff] %v1020
  $region25: #{_lambda_.58} parent=0 // pred_fallthru
    _
  // Predicated region
  $region26: #{_lambda_.58} parent=0 // pred_check
    _
  $region27: #{_lambda_.58} parent=0 // pred_check_branch
    %1054 = sbr.rel (0) target = $region29
  $region28: #{_lambda_.58} parent=0 // pred_region
    _
  $region29: #{_lambda_.58} parent=0 // pred_fallthru
    _
  // Predicated region
  $region30: #{_lambda_.58} parent=0 // pred_check
    _
  $region31: #{_lambda_.58} parent=0 // pred_check_branch
    %1056 = sbr.rel (0) target = $region33
  $region32: #{_lambda_.58} parent=0 // pred_region
    _
  $region33: #{_lambda_.58} parent=0 // pred_fallthru
    _

// kernel: _lambda_.59
$region0: #{_lambda_.59}
  #allocation0 [shape = 'u32[]', space=smem, size = 0x4, offset = 0x4, fixed_abs, tag = 'smem constant byte address 0x4 - core index']
  #allocation1 [shape = 'u32[72,128]{1,0:T(1,128)}', space=vmem, size = 0x9000, scoped, tag = 'internal scratch']
  #allocation2 [shape = 'f32[256,128]{1,0:T(8,128)}', space=vmem, size = 0x20000, scoped, tag = 'scratch operand']
  %s0 = inlined_call_operand.vmem [shape: bf16[256,16], index: 0, kind: input, shape index: {}]
  %s1 = inlined_call_operand.vmem [shape: bf16[16,128], index: 1, kind: input, shape index: {}]
  %s2 = inlined_call_operand.vmem [shape: f32[1,128], index: 2, kind: input, shape index: {}]
  %s3 = inlined_call_operand.vmem [shape: f32[1,128], index: 3, kind: input, shape index: {}]
  %s4 = inlined_call_operand.vmem [shape: f32[256,128], index: 4, kind: output, shape index: {}]
  %s5 = sld [smem:[#allocation0]]
  $region34: #{_lambda_.59} parent=0
    _
  %s7 = ssub.s32 1, %s5
  %s8 = scalar_select 0, %s7, %s5
  // Predicated region
  $region2: #{_lambda_.59} parent=0 // pred_check
    _
  $region3: #{_lambda_.59} parent=0 // pred_check_branch
    %10 = sbr.rel (0) target = $region5
  $region4: #{_lambda_.59} parent=0 // pred_region
    _
  $region5: #{_lambda_.59} parent=0 // pred_fallthru
    _
  // Predicated region
  $region6: #{_lambda_.59} parent=0 // pred_check
    _
  $region7: #{_lambda_.59} parent=0 // pred_check_branch
    %12 = sbr.rel (0) target = $region9
  $region8: #{_lambda_.59} parent=0 // pred_region
    _
  $region9: #{_lambda_.59} parent=0 // pred_fallthru
    _
  // Predicated region
  $region10: #{_lambda_.59} parent=0 // pred_check
    _
  $region11: #{_lambda_.59} parent=0 // pred_check_branch
    %14 = sbr.rel (0) target = $region13
  $region12: #{_lambda_.59} parent=0 // pred_region
    _
  $region13: #{_lambda_.59} parent=0 // pred_fallthru
    _
  // Predicated region
  $region14: #{_lambda_.59} parent=0 // pred_check
    _
  $region15: #{_lambda_.59} parent=0 // pred_check_branch
    %16 = sbr.rel (0) target = $region17
  $region16: #{_lambda_.59} parent=0 // pred_region
    _
  $region17: #{_lambda_.59} parent=0 // pred_fallthru
    _
  %p18 = scmp.eq.s32.totalorder 0, 0
  // Predicated region
  $region18: #{_lambda_.59} parent=0 // pred_check
    %p19 = pneg %p18
  $region19: #{_lambda_.59} parent=0 // pred_check_branch
    %21 = sbr.rel (%p19) target = $region21
  $region20: #{_lambda_.59} parent=0 // pred_region
    %22 = vst [vmem:[#allocation2] sm:$0xff] 0.0
    %23 = vst [vmem:[#allocation2 + $0x8] sm:$0xff] 0.0
    %24 = vst [vmem:[#allocation2 + $0x10] sm:$0xff] 0.0
    %25 = vst [vmem:[#allocation2 + $0x18] sm:$0xff] 0.0
    %26 = vst [vmem:[#allocation2 + $0x20] sm:$0xff] 0.0
    %27 = vst [vmem:[#allocation2 + $0x28] sm:$0xff] 0.0
    %28 = vst [vmem:[#allocation2 + $0x30] sm:$0xff] 0.0
    %29 = vst [vmem:[#allocation2 + $0x38] sm:$0xff] 0.0
    %30 = vst [vmem:[#allocation2 + $0x40] sm:$0xff] 0.0
    %31 = vst [vmem:[#allocation2 + $0x48] sm:$0xff] 0.0
    %32 = vst [vmem:[#allocation2 + $0x50] sm:$0xff] 0.0
    %33 = vst [vmem:[#allocation2 + $0x58] sm:$0xff] 0.0
    %34 = vst [vmem:[#allocation2 + $0x60] sm:$0xff] 0.0
    %35 = vst [vmem:[#allocation2 + $0x68] sm:$0xff] 0.0
    %36 = vst [vmem:[#allocation2 + $0x70] sm:$0xff] 0.0
    %37 = vst [vmem:[#allocation2 + $0x78] sm:$0xff] 0.0
    %38 = vst [vmem:[#allocation2 + $0x80] sm:$0xff] 0.0
    %39 = vst [vmem:[#allocation2 + $0x88] sm:$0xff] 0.0
    %40 = vst [vmem:[#allocation2 + $0x90] sm:$0xff] 0.0
    %41 = vst [vmem:[#allocation2 + $0x98] sm:$0xff] 0.0
    %42 = vst [vmem:[#allocation2 + $0xa0] sm:$0xff] 0.0
    %43 = vst [vmem:[#allocation2 + $0xa8] sm:$0xff] 0.0
    %44 = vst [vmem:[#allocation2 + $0xb0] sm:$0xff] 0.0
    %45 = vst [vmem:[#allocation2 + $0xb8] sm:$0xff] 0.0
    %46 = vst [vmem:[#allocation2 + $0xc0] sm:$0xff] 0.0
    %47 = vst [vmem:[#allocation2 + $0xc8] sm:$0xff] 0.0
    %48 = vst [vmem:[#allocation2 + $0xd0] sm:$0xff] 0.0
    %49 = vst [vmem:[#allocation2 + $0xd8] sm:$0xff] 0.0
    %50 = vst [vmem:[#allocation2 + $0xe0] sm:$0xff] 0.0
    %51 = vst [vmem:[#allocation2 + $0xe8] sm:$0xff] 0.0
    %52 = vst [vmem:[#allocation2 + $0xf0] sm:$0xff] 0.0
    %53 = vst [vmem:[#allocation2 + $0xf8] sm:$0xff] 0.0
  $region21: #{_lambda_.59} parent=0 // pred_fallthru
    _
  %v54 = vld [vmem:[#allocation2] sm:$0xff]
  %v55 = vld [vmem:[#allocation2 + $0x8] sm:$0xff]
  %v56 = vld [vmem:[#allocation2 + $0x10] sm:$0xff]
  %v57 = vld [vmem:[#allocation2 + $0x18] sm:$0xff]
  %v58 = vld [vmem:[#allocation2 + $0x20] sm:$0xff]
  %v59 = vld [vmem:[#allocation2 + $0x28] sm:$0xff]
  %v60 = vld [vmem:[#allocation2 + $0x30] sm:$0xff]
  %v61 = vld [vmem:[#allocation2 + $0x38] sm:$0xff]
  %v62 = vld [vmem:[#allocation2 + $0x40] sm:$0xff]
  %v63 = vld [vmem:[#allocation2 + $0x48] sm:$0xff]
  %v64 = vld [vmem:[#allocation2 + $0x50] sm:$0xff]
  %v65 = vld [vmem:[#allocation2 + $0x58] sm:$0xff]
  %v66 = vld [vmem:[#allocation2 + $0x60] sm:$0xff]
  %v67 = vld [vmem:[#allocation2 + $0x68] sm:$0xff]
  %v68 = vld [vmem:[#allocation2 + $0x70] sm:$0xff]
  %v69 = vld [vmem:[#allocation2 + $0x78] sm:$0xff]
  %v70 = vld [vmem:[#allocation2 + $0x80] sm:$0xff]
  %v71 = vld [vmem:[#allocation2 + $0x88] sm:$0xff]
  %v72 = vld [vmem:[#allocation2 + $0x90] sm:$0xff]
  %v73 = vld [vmem:[#allocation2 + $0x98] sm:$0xff]
  %v74 = vld [vmem:[#allocation2 + $0xa0] sm:$0xff]
  %v75 = vld [vmem:[#allocation2 + $0xa8] sm:$0xff]
  %v76 = vld [vmem:[#allocation2 + $0xb0] sm:$0xff]
  %v77 = vld [vmem:[#allocation2 + $0xb8] sm:$0xff]
  %v78 = vld [vmem:[#allocation2 + $0xc0] sm:$0xff]
  %v79 = vld [vmem:[#allocation2 + $0xc8] sm:$0xff]
  %v80 = vld [vmem:[#allocation2 + $0xd0] sm:$0xff]
  %v81 = vld [vmem:[#allocation2 + $0xd8] sm:$0xff]
  %v82 = vld [vmem:[#allocation2 + $0xe0] sm:$0xff]
  %v83 = vld [vmem:[#allocation2 + $0xe8] sm:$0xff]
  %v84 = vld [vmem:[#allocation2 + $0xf0] sm:$0xff]
  %v85 = vld [vmem:[#allocation2 + $0xf8] sm:$0xff]
  %v86 = vld [vmem:[%s0] sm:$0xf]
  %v87 = vld [vmem:[%s0 + $0x4] sm:$0xf]
  %v88 = vld [vmem:[%s0 + $0x8] sm:$0xf]
  %v89 = vld [vmem:[%s0 + $0xc] sm:$0xf]
  %v90 = vld [vmem:[%s0 + $0x10] sm:$0xf]
  %v91 = vld [vmem:[%s0 + $0x14] sm:$0xf]
  %v92 = vld [vmem:[%s0 + $0x18] sm:$0xf]
  %v93 = vld [vmem:[%s0 + $0x1c] sm:$0xf]
  %v94 = vld [vmem:[%s0 + $0x20] sm:$0xf]
  %v95 = vld [vmem:[%s0 + $0x24] sm:$0xf]
  %v96 = vld [vmem:[%s0 + $0x28] sm:$0xf]
  %v97 = vld [vmem:[%s0 + $0x2c] sm:$0xf]
  %v98 = vld [vmem:[%s0 + $0x30] sm:$0xf]
  %v99 = vld [vmem:[%s0 + $0x34] sm:$0xf]
  %v100 = vld [vmem:[%s0 + $0x38] sm:$0xf]
  %v101 = vld [vmem:[%s0 + $0x3c] sm:$0xf]
  %v102 = vld [vmem:[%s0 + $0x40] sm:$0xf]
  %v103 = vld [vmem:[%s0 + $0x44] sm:$0xf]
  %v104 = vld [vmem:[%s0 + $0x48] sm:$0xf]
  %v105 = vld [vmem:[%s0 + $0x4c] sm:$0xf]
  %v106 = vld [vmem:[%s0 + $0x50] sm:$0xf]
  %v107 = vld [vmem:[%s0 + $0x54] sm:$0xf]
  %v108 = vld [vmem:[%s0 + $0x58] sm:$0xf]
  %v109 = vld [vmem:[%s0 + $0x5c] sm:$0xf]
  %v110 = vld [vmem:[%s0 + $0x60] sm:$0xf]
  %v111 = vld [vmem:[%s0 + $0x64] sm:$0xf]
  %v112 = vld [vmem:[%s0 + $0x68] sm:$0xf]
  %v113 = vld [vmem:[%s0 + $0x6c] sm:$0xf]
  %v114 = vld [vmem:[%s0 + $0x70] sm:$0xf]
  %v115 = vld [vmem:[%s0 + $0x74] sm:$0xf]
  %v116 = vld [vmem:[%s0 + $0x78] sm:$0xf]
  %v117 = vld [vmem:[%s0 + $0x7c] sm:$0xf]
  %v118 = vld [vmem:[%s1] sm:$0xf]
  %v119 = vld [vmem:[%s1 + $0x4] sm:$0xf]
  %v152 = vunpack.c.l.b16 %v86
  %v153 = vunpack.c.l.b16 %v87
  %v154 = vunpack.c.l.b16 %v88
  %v155 = vunpack.c.l.b16 %v89
  %v156 = vunpack.c.l.b16 %v90
  %v157 = vunpack.c.l.b16 %v91
  %v158 = vunpack.c.l.b16 %v92
  %v159 = vunpack.c.l.b16 %v93
  %v160 = vunpack.c.l.b16 %v94
  %v161 = vunpack.c.l.b16 %v95
  %v162 = vunpack.c.l.b16 %v96
  %v163 = vunpack.c.l.b16 %v97
  %v164 = vunpack.c.l.b16 %v98
  %v165 = vunpack.c.l.b16 %v99
  %v166 = vunpack.c.l.b16 %v100
  %v167 = vunpack.c.l.b16 %v101
  %v168 = vunpack.c.l.b16 %v102
  %v169 = vunpack.c.l.b16 %v103
  %v170 = vunpack.c.l.b16 %v104
  %v171 = vunpack.c.l.b16 %v105
  %v172 = vunpack.c.l.b16 %v106
  %v173 = vunpack.c.l.b16 %v107
  %v174 = vunpack.c.l.b16 %v108
  %v175 = vunpack.c.l.b16 %v109
  %v176 = vunpack.c.l.b16 %v110
  %v177 = vunpack.c.l.b16 %v111
  %v178 = vunpack.c.l.b16 %v112
  %v179 = vunpack.c.l.b16 %v113
  %v180 = vunpack.c.l.b16 %v114
  %v181 = vunpack.c.l.b16 %v115
  %v182 = vunpack.c.l.b16 %v116
  %v183 = vunpack.c.l.b16 %v117
  %v184 = vpack.c.b16 %v153, %v152
  %v185 = vpack.c.b16 %v155, %v154
  %v186 = vpack.c.b16 %v157, %v156
  %v187 = vpack.c.b16 %v159, %v158
  %v188 = vpack.c.b16 %v161, %v160
  %v189 = vpack.c.b16 %v163, %v162
  %v190 = vpack.c.b16 %v165, %v164
  %v191 = vpack.c.b16 %v167, %v166
  %v192 = vpack.c.b16 %v169, %v168
  %v193 = vpack.c.b16 %v171, %v170
  %v194 = vpack.c.b16 %v173, %v172
  %v195 = vpack.c.b16 %v175, %v174
  %v196 = vpack.c.b16 %v177, %v176
  %v197 = vpack.c.b16 %v179, %v178
  %v198 = vpack.c.b16 %v181, %v180
  %v199 = vpack.c.b16 %v183, %v182
  %v202 = vunpack.c.l.b16 %v118
  %v203 = vunpack.c.l.b16 %v119
  %v204 = vpack.c.b16 %v203, %v202
  %vm206 = vcmask 130048
  %v208 = vsel %vm206, %v184, 0
  %v211 = vsel %vm206, %v185, 0
  %v214 = vsel %vm206, %v186, 0
  %v217 = vsel %vm206, %v187, 0
  %v220 = vsel %vm206, %v188, 0
  %v223 = vsel %vm206, %v189, 0
  %v226 = vsel %vm206, %v190, 0
  %v229 = vsel %vm206, %v191, 0
  %v232 = vsel %vm206, %v192, 0
  %v235 = vsel %vm206, %v193, 0
  %v238 = vsel %vm206, %v194, 0
  %v241 = vsel %vm206, %v195, 0
  %v244 = vsel %vm206, %v196, 0
  %v247 = vsel %vm206, %v197, 0
  %v250 = vsel %vm206, %v198, 0
  %v253 = vsel %vm206, %v199, 0
  %255 = vmatpush.bf16.msra.mxu0 0
  %256 = vmatpush.bf16.msra.mxu0 0
  %257 = vmatpush.bf16.msra.mxu0 0
  %258 = vmatpush.bf16.msra.mxu0 0
  %259 = vmatpush.bf16.msra.mxu0 0
  %260 = vmatpush.bf16.msra.mxu0 0
  %261 = vmatpush.bf16.msra.mxu0 0
  %262 = vmatpush.bf16.msra.mxu0 %v204
  %263 = vmatmul.bf16.gmra.mxu0 %v208
  %v264 = vpop.f32.mrf.mxu0
  %v265 = vadd.f32 0.0, %v264
  %v266 = vpop.f32.mrf.mxu0
  %v267 = vadd.f32 0.0, %v266
  %268 = vmatmul.bf16.gmra.mxu0 %v211
  %v269 = vpop.f32.mrf.mxu0
  %v270 = vadd.f32 0.0, %v269
  %v271 = vpop.f32.mrf.mxu0
  %v272 = vadd.f32 0.0, %v271
  %273 = vmatmul.bf16.gmra.mxu0 %v214
  %v274 = vpop.f32.mrf.mxu0
  %v275 = vadd.f32 0.0, %v274
  %v276 = vpop.f32.mrf.mxu0
  %v277 = vadd.f32 0.0, %v276
  %278 = vmatmul.bf16.gmra.mxu0 %v217
  %v279 = vpop.f32.mrf.mxu0
  %v280 = vadd.f32 0.0, %v279
  %v281 = vpop.f32.mrf.mxu0
  %v282 = vadd.f32 0.0, %v281
  %283 = vmatmul.bf16.gmra.mxu0 %v220
  %v284 = vpop.f32.mrf.mxu0
  %v285 = vadd.f32 0.0, %v284
  %v286 = vpop.f32.mrf.mxu0
  %v287 = vadd.f32 0.0, %v286
  %288 = vmatmul.bf16.gmra.mxu0 %v223
  %v289 = vpop.f32.mrf.mxu0
  %v290 = vadd.f32 0.0, %v289
  %v291 = vpop.f32.mrf.mxu0
  %v292 = vadd.f32 0.0, %v291
  %293 = vmatmul.bf16.gmra.mxu0 %v226
  %v294 = vpop.f32.mrf.mxu0
  %v295 = vadd.f32 0.0, %v294
  %v296 = vpop.f32.mrf.mxu0
  %v297 = vadd.f32 0.0, %v296
  %298 = vmatmul.bf16.gmra.mxu0 %v229
  %v299 = vpop.f32.mrf.mxu0
  %v300 = vadd.f32 0.0, %v299
  %v301 = vpop.f32.mrf.mxu0
  %v302 = vadd.f32 0.0, %v301
  %303 = vmatmul.bf16.gmra.mxu0 %v232
  %v304 = vpop.f32.mrf.mxu0
  %v305 = vadd.f32 0.0, %v304
  %v306 = vpop.f32.mrf.mxu0
  %v307 = vadd.f32 0.0, %v306
  %308 = vmatmul.bf16.gmra.mxu0 %v235
  %v309 = vpop.f32.mrf.mxu0
  %v310 = vadd.f32 0.0, %v309
  %v311 = vpop.f32.mrf.mxu0
  %v312 = vadd.f32 0.0, %v311
  %313 = vmatmul.bf16.gmra.mxu0 %v238
  %v314 = vpop.f32.mrf.mxu0
  %v315 = vadd.f32 0.0, %v314
  %v316 = vpop.f32.mrf.mxu0
  %v317 = vadd.f32 0.0, %v316
  %318 = vmatmul.bf16.gmra.mxu0 %v241
  %v319 = vpop.f32.mrf.mxu0
  %v320 = vadd.f32 0.0, %v319
  %v321 = vpop.f32.mrf.mxu0
  %v322 = vadd.f32 0.0, %v321
  %323 = vmatmul.bf16.gmra.mxu0 %v244
  %v324 = vpop.f32.mrf.mxu0
  %v325 = vadd.f32 0.0, %v324
  %v326 = vpop.f32.mrf.mxu0
  %v327 = vadd.f32 0.0, %v326
  %328 = vmatmul.bf16.gmra.mxu0 %v247
  %v329 = vpop.f32.mrf.mxu0
  %v330 = vadd.f32 0.0, %v329
  %v331 = vpop.f32.mrf.mxu0
  %v332 = vadd.f32 0.0, %v331
  %333 = vmatmul.bf16.gmra.mxu0 %v250
  %v334 = vpop.f32.mrf.mxu0
  %v335 = vadd.f32 0.0, %v334
  %v336 = vpop.f32.mrf.mxu0
  %v337 = vadd.f32 0.0, %v336
  %338 = vmatmul.bf16.gmra.mxu0 %v253
  %v339 = vpop.f32.mrf.mxu0
  %v340 = vadd.f32 0.0, %v339
  %v341 = vpop.f32.mrf.mxu0
  %v342 = vadd.f32 0.0, %v341
  %343 = vdwg.mxu0
  %v344 = vadd.f32 %v54, %v265
  %v345 = vadd.f32 %v55, %v267
  %v346 = vadd.f32 %v56, %v270
  %v347 = vadd.f32 %v57, %v272
  %v348 = vadd.f32 %v58, %v275
  %v349 = vadd.f32 %v59, %v277
  %v350 = vadd.f32 %v60, %v280
  %v351 = vadd.f32 %v61, %v282
  %v352 = vadd.f32 %v62, %v285
  %v353 = vadd.f32 %v63, %v287
  %v354 = vadd.f32 %v64, %v290
  %v355 = vadd.f32 %v65, %v292
  %v356 = vadd.f32 %v66, %v295
  %v357 = vadd.f32 %v67, %v297
  %v358 = vadd.f32 %v68, %v300
  %v359 = vadd.f32 %v69, %v302
  %v360 = vadd.f32 %v70, %v305
  %v361 = vadd.f32 %v71, %v307
  %v362 = vadd.f32 %v72, %v310
  %v363 = vadd.f32 %v73, %v312
  %v364 = vadd.f32 %v74, %v315
  %v365 = vadd.f32 %v75, %v317
  %v366 = vadd.f32 %v76, %v320
  %v367 = vadd.f32 %v77, %v322
  %v368 = vadd.f32 %v78, %v325
  %v369 = vadd.f32 %v79, %v327
  %v370 = vadd.f32 %v80, %v330
  %v371 = vadd.f32 %v81, %v332
  %v372 = vadd.f32 %v82, %v335
  %v373 = vadd.f32 %v83, %v337
  %v374 = vadd.f32 %v84, %v340
  %v375 = vadd.f32 %v85, %v342
  %376 = vst [vmem:[#allocation2] sm:$0xff] %v344
  %377 = vst [vmem:[#allocation2 + $0x8] sm:$0xff] %v345
  %378 = vst [vmem:[#allocation2 + $0x10] sm:$0xff] %v346
  %379 = vst [vmem:[#allocation2 + $0x18] sm:$0xff] %v347
  %380 = vst [vmem:[#allocation2 + $0x20] sm:$0xff] %v348
  %381 = vst [vmem:[#allocation2 + $0x28] sm:$0xff] %v349
  %382 = vst [vmem:[#allocation2 + $0x30] sm:$0xff] %v350
  %383 = vst [vmem:[#allocation2 + $0x38] sm:$0xff] %v351
  %384 = vst [vmem:[#allocation2 + $0x40] sm:$0xff] %v352
  %385 = vst [vmem:[#allocation2 + $0x48] sm:$0xff] %v353
  %386 = vst [vmem:[#allocation2 + $0x50] sm:$0xff] %v354
  %387 = vst [vmem:[#allocation2 + $0x58] sm:$0xff] %v355
  %388 = vst [vmem:[#allocation2 + $0x60] sm:$0xff] %v356
  %389 = vst [vmem:[#allocation2 + $0x68] sm:$0xff] %v357
  %390 = vst [vmem:[#allocation2 + $0x70] sm:$0xff] %v358
  %391 = vst [vmem:[#allocation2 + $0x78] sm:$0xff] %v359
  %392 = vst [vmem:[#allocation2 + $0x80] sm:$0xff] %v360
  %393 = vst [vmem:[#allocation2 + $0x88] sm:$0xff] %v361
  %394 = vst [vmem:[#allocation2 + $0x90] sm:$0xff] %v362
  %395 = vst [vmem:[#allocation2 + $0x98] sm:$0xff] %v363
  %396 = vst [vmem:[#allocation2 + $0xa0] sm:$0xff] %v364
  %397 = vst [vmem:[#allocation2 + $0xa8] sm:$0xff] %v365
  %398 = vst [vmem:[#allocation2 + $0xb0] sm:$0xff] %v366
  %399 = vst [vmem:[#allocation2 + $0xb8] sm:$0xff] %v367
  %400 = vst [vmem:[#allocation2 + $0xc0] sm:$0xff] %v368
  %401 = vst [vmem:[#allocation2 + $0xc8] sm:$0xff] %v369
  %402 = vst [vmem:[#allocation2 + $0xd0] sm:$0xff] %v370
  %403 = vst [vmem:[#allocation2 + $0xd8] sm:$0xff] %v371
  %404 = vst [vmem:[#allocation2 + $0xe0] sm:$0xff] %v372
  %405 = vst [vmem:[#allocation2 + $0xe8] sm:$0xff] %v373
  %406 = vst [vmem:[#allocation2 + $0xf0] sm:$0xff] %v374
  %407 = vst [vmem:[#allocation2 + $0xf8] sm:$0xff] %v375
  // Predicated region
  $region22: #{_lambda_.59} parent=0 // pred_check
    %p408 = pneg %p18
  $region23: #{_lambda_.59} parent=0 // pred_check_branch
    %410 = sbr.rel (%p408) target = $region25
  $region24: #{_lambda_.59} parent=0 // pred_region
    %v411 = vld [vmem:[#allocation2] sm:$0xff]
    %v412 = vld [vmem:[#allocation2 + $0x8] sm:$0xff]
    %v413 = vld [vmem:[#allocation2 + $0x10] sm:$0xff]
    %v414 = vld [vmem:[#allocation2 + $0x18] sm:$0xff]
    %v415 = vld [vmem:[#allocation2 + $0x20] sm:$0xff]
    %v416 = vld [vmem:[#allocation2 + $0x28] sm:$0xff]
    %v417 = vld [vmem:[#allocation2 + $0x30] sm:$0xff]
    %v418 = vld [vmem:[#allocation2 + $0x38] sm:$0xff]
    %v419 = vld [vmem:[#allocation2 + $0x40] sm:$0xff]
    %v420 = vld [vmem:[#allocation2 + $0x48] sm:$0xff]
    %v421 = vld [vmem:[#allocation2 + $0x50] sm:$0xff]
    %v422 = vld [vmem:[#allocation2 + $0x58] sm:$0xff]
    %v423 = vld [vmem:[#allocation2 + $0x60] sm:$0xff]
    %v424 = vld [vmem:[#allocation2 + $0x68] sm:$0xff]
    %v425 = vld [vmem:[#allocation2 + $0x70] sm:$0xff]
    %v426 = vld [vmem:[#allocation2 + $0x78] sm:$0xff]
    %v427 = vld [vmem:[#allocation2 + $0x80] sm:$0xff]
    %v428 = vld [vmem:[#allocation2 + $0x88] sm:$0xff]
    %v429 = vld [vmem:[#allocation2 + $0x90] sm:$0xff]
    %v430 = vld [vmem:[#allocation2 + $0x98] sm:$0xff]
    %v431 = vld [vmem:[#allocation2 + $0xa0] sm:$0xff]
    %v432 = vld [vmem:[#allocation2 + $0xa8] sm:$0xff]
    %v433 = vld [vmem:[#allocation2 + $0xb0] sm:$0xff]
    %v434 = vld [vmem:[#allocation2 + $0xb8] sm:$0xff]
    %v435 = vld [vmem:[#allocation2 + $0xc0] sm:$0xff]
    %v436 = vld [vmem:[#allocation2 + $0xc8] sm:$0xff]
    %v437 = vld [vmem:[#allocation2 + $0xd0] sm:$0xff]
    %v438 = vld [vmem:[#allocation2 + $0xd8] sm:$0xff]
    %v439 = vld [vmem:[#allocation2 + $0xe0] sm:$0xff]
    %v440 = vld [vmem:[#allocation2 + $0xe8] sm:$0xff]
    %v441 = vld [vmem:[#allocation2 + $0xf0] sm:$0xff]
    %v442 = vld [vmem:[#allocation2 + $0xf8] sm:$0xff]
    %v443 = vld [vmem:[%s2] sm:$0x1]
    %v445 = vperm.slane %v443, 0
    %v447 = vmul.f32 %v411, %v445
    %v448 = vmul.f32 %v412, %v445
    %v449 = vmul.f32 %v413, %v445
    %v450 = vmul.f32 %v414, %v445
    %v451 = vmul.f32 %v415, %v445
    %v452 = vmul.f32 %v416, %v445
    %v453 = vmul.f32 %v417, %v445
    %v454 = vmul.f32 %v418, %v445
    %v455 = vmul.f32 %v419, %v445
    %v456 = vmul.f32 %v420, %v445
    %v457 = vmul.f32 %v421, %v445
    %v458 = vmul.f32 %v422, %v445
    %v459 = vmul.f32 %v423, %v445
    %v460 = vmul.f32 %v424, %v445
    %v461 = vmul.f32 %v425, %v445
    %v462 = vmul.f32 %v426, %v445
    %v463 = vmul.f32 %v427, %v445
    %v464 = vmul.f32 %v428, %v445
    %v465 = vmul.f32 %v429, %v445
    %v466 = vmul.f32 %v430, %v445
    %v467 = vmul.f32 %v431, %v445
    %v468 = vmul.f32 %v432, %v445
    %v469 = vmul.f32 %v433, %v445
    %v470 = vmul.f32 %v434, %v445
    %v471 = vmul.f32 %v435, %v445
    %v472 = vmul.f32 %v436, %v445
    %v473 = vmul.f32 %v437, %v445
    %v474 = vmul.f32 %v438, %v445
    %v475 = vmul.f32 %v439, %v445
    %v476 = vmul.f32 %v440, %v445
    %v477 = vmul.f32 %v441, %v445
    %v478 = vmul.f32 %v442, %v445
    %v479 = vld [vmem:[%s3] sm:$0x1]
    %v481 = vperm.slane %v479, 0
    %v483 = vadd.f32 %v447, %v481
    %v484 = vadd.f32 %v448, %v481
    %v485 = vadd.f32 %v449, %v481
    %v486 = vadd.f32 %v450, %v481
    %v487 = vadd.f32 %v451, %v481
    %v488 = vadd.f32 %v452, %v481
    %v489 = vadd.f32 %v453, %v481
    %v490 = vadd.f32 %v454, %v481
    %v491 = vadd.f32 %v455, %v481
    %v492 = vadd.f32 %v456, %v481
    %v493 = vadd.f32 %v457, %v481
    %v494 = vadd.f32 %v458, %v481
    %v495 = vadd.f32 %v459, %v481
    %v496 = vadd.f32 %v460, %v481
    %v497 = vadd.f32 %v461, %v481
    %v498 = vadd.f32 %v462, %v481
    %v499 = vadd.f32 %v463, %v481
    %v500 = vadd.f32 %v464, %v481
    %v501 = vadd.f32 %v465, %v481
    %v502 = vadd.f32 %v466, %v481
    %v503 = vadd.f32 %v467, %v481
    %v504 = vadd.f32 %v468, %v481
    %v505 = vadd.f32 %v469, %v481
    %v506 = vadd.f32 %v470, %v481
    %v507 = vadd.f32 %v471, %v481
    %v508 = vadd.f32 %v472, %v481
    %v509 = vadd.f32 %v473, %v481
    %v510 = vadd.f32 %v474, %v481
    %v511 = vadd.f32 %v475, %v481
    %v512 = vadd.f32 %v476, %v481
    %v513 = vadd.f32 %v477, %v481
    %v514 = vadd.f32 %v478, %v481
    %515 = vst [vmem:[%s4] sm:$0xff] %v483
    %516 = vst [vmem:[%s4 + $0x8] sm:$0xff] %v484
    %517 = vst [vmem:[%s4 + $0x10] sm:$0xff] %v485
    %518 = vst [vmem:[%s4 + $0x18] sm:$0xff] %v486
    %519 = vst [vmem:[%s4 + $0x20] sm:$0xff] %v487
    %520 = vst [vmem:[%s4 + $0x28] sm:$0xff] %v488
    %521 = vst [vmem:[%s4 + $0x30] sm:$0xff] %v489
    %522 = vst [vmem:[%s4 + $0x38] sm:$0xff] %v490
    %523 = vst [vmem:[%s4 + $0x40] sm:$0xff] %v491
    %524 = vst [vmem:[%s4 + $0x48] sm:$0xff] %v492
    %525 = vst [vmem:[%s4 + $0x50] sm:$0xff] %v493
    %526 = vst [vmem:[%s4 + $0x58] sm:$0xff] %v494
    %527 = vst [vmem:[%s4 + $0x60] sm:$0xff] %v495
    %528 = vst [vmem:[%s4 + $0x68] sm:$0xff] %v496
    %529 = vst [vmem:[%s4 + $0x70] sm:$0xff] %v497
    %530 = vst [vmem:[%s4 + $0x78] sm:$0xff] %v498
    %531 = vst [vmem:[%s4 + $0x80] sm:$0xff] %v499
    %532 = vst [vmem:[%s4 + $0x88] sm:$0xff] %v500
    %533 = vst [vmem:[%s4 + $0x90] sm:$0xff] %v501
    %534 = vst [vmem:[%s4 + $0x98] sm:$0xff] %v502
    %535 = vst [vmem:[%s4 + $0xa0] sm:$0xff] %v503
    %536 = vst [vmem:[%s4 + $0xa8] sm:$0xff] %v504
    %537 = vst [vmem:[%s4 + $0xb0] sm:$0xff] %v505
    %538 = vst [vmem:[%s4 + $0xb8] sm:$0xff] %v506
    %539 = vst [vmem:[%s4 + $0xc0] sm:$0xff] %v507
    %540 = vst [vmem:[%s4 + $0xc8] sm:$0xff] %v508
    %541 = vst [vmem:[%s4 + $0xd0] sm:$0xff] %v509
    %542 = vst [vmem:[%s4 + $0xd8] sm:$0xff] %v510
    %543 = vst [vmem:[%s4 + $0xe0] sm:$0xff] %v511
    %544 = vst [vmem:[%s4 + $0xe8] sm:$0xff] %v512
    %545 = vst [vmem:[%s4 + $0xf0] sm:$0xff] %v513
    %546 = vst [vmem:[%s4 + $0xf8] sm:$0xff] %v514
  $region25: #{_lambda_.59} parent=0 // pred_fallthru
    _
  // Predicated region
  $region26: #{_lambda_.59} parent=0 // pred_check
    _
  $region27: #{_lambda_.59} parent=0 // pred_check_branch
    %548 = sbr.rel (0) target = $region29
  $region28: #{_lambda_.59} parent=0 // pred_region
    _
  $region29: #{_lambda_.59} parent=0 // pred_fallthru
    _
  // Predicated region
  $region30: #{_lambda_.59} parent=0 // pred_check
    _
  $region31: #{_lambda_.59} parent=0 // pred_check_branch
    %550 = sbr.rel (0) target = $region33
  $region32: #{_lambda_.59} parent=0 // pred_region
    _
  $region33: #{_lambda_.59} parent=0 // pred_fallthru
    _

// kernel: _lambda_.61
$region0: #{_lambda_.61}
  #allocation0 [shape = 'u32[]', space=smem, size = 0x4, offset = 0x4, fixed_abs, tag = 'smem constant byte address 0x4 - core index']
  #allocation1 [shape = 'u32[72,128]{1,0:T(1,128)}', space=vmem, size = 0x9000, scoped, tag = 'internal scratch']
  %s0 = inlined_call_operand.vmem [shape: f32[2,32,128], index: 0, kind: input, shape index: {}]
  %s1 = inlined_call_operand.vmem [shape: bf16[2,32,128], index: 1, kind: input, shape index: {}]
  %s2 = inlined_call_operand.vmem [shape: bf16[2,32,128], index: 2, kind: output, shape index: {}]
  %s3 = sld [smem:[#allocation0]]
  $region18: #{_lambda_.61} parent=0
    _
  %s5 = ssub.s32 1, %s3
  %s6 = scalar_select 0, %s5, %s3
  // Predicated region
  $region2: #{_lambda_.61} parent=0 // pred_check
    _
  $region3: #{_lambda_.61} parent=0 // pred_check_branch
    %8 = sbr.rel (0) target = $region5
  $region4: #{_lambda_.61} parent=0 // pred_region
    _
  $region5: #{_lambda_.61} parent=0 // pred_fallthru
    _
  // Predicated region
  $region6: #{_lambda_.61} parent=0 // pred_check
    _
  $region7: #{_lambda_.61} parent=0 // pred_check_branch
    %10 = sbr.rel (0) target = $region9
  $region8: #{_lambda_.61} parent=0 // pred_region
    _
  $region9: #{_lambda_.61} parent=0 // pred_fallthru
    _
  %v11 = vld [vmem:[%s0] sm:$0xff]
  %v12 = vld [vmem:[%s0 + $0x8] sm:$0xff]
  %v13 = vld [vmem:[%s0 + $0x10] sm:$0xff]
  %v14 = vld [vmem:[%s0 + $0x18] sm:$0xff]
  %v15 = vadd.f32 %v11, 0.0
  %v16 = vadd.f32 %v12, 0.0
  %v17 = vadd.f32 %v13, 0.0
  %v18 = vadd.f32 %v14, 0.0
  %vm19 = vcmp.ge.f32.partialorder %v15, 1.0
  %vm20 = vcmp.ge.f32.partialorder %v16, 1.0
  %vm21 = vcmp.ge.f32.partialorder %v17, 1.0
  %vm22 = vcmp.ge.f32.partialorder %v18, 1.0
  %v23 = vsel %vm19, 1, 0
  %v24 = vsel %vm20, 1, 0
  %v25 = vsel %vm21, 1, 0
  %v26 = vsel %vm22, 1, 0
  %v27 = vcvt.s32.f32 %v23
  %v28 = vcvt.s32.f32 %v24
  %v29 = vcvt.s32.f32 %v25
  %v30 = vcvt.s32.f32 %v26
  %v31 = vld [vmem:[%s1] sm:$0xf]
  %v32 = vld [vmem:[%s1 + $0x4] sm:$0xf]
  %v33 = vld [vmem:[%s1 + $0x8] sm:$0xf]
  %v34 = vld [vmem:[%s1 + $0xc] sm:$0xf]
  %v35 = vunpack.c.l.bf16 %v31
  %v36 = vunpack.c.l.bf16 %v32
  %v37 = vunpack.c.l.bf16 %v33
  %v38 = vunpack.c.l.bf16 %v34
  %v39 = vadd.f32 %v27, %v35
  %v40 = vadd.f32 %v28, %v36
  %v41 = vadd.f32 %v29, %v37
  %v42 = vadd.f32 %v30, %v38
  %v43 = vpack.c.bf16 %v39, %v39
  %v44 = vpack.c.bf16 %v40, %v40
  %v45 = vpack.c.bf16 %v41, %v41
  %v46 = vpack.c.bf16 %v42, %v42
  %47 = vst [vmem:[%s2] sm:$0xf] %v43
  %48 = vst [vmem:[%s2 + $0x4] sm:$0xf] %v44
  %49 = vst [vmem:[%s2 + $0x8] sm:$0xf] %v45
  %50 = vst [vmem:[%s2 + $0xc] sm:$0xf] %v46
  %vm51 = vcmp.gt.f32.partialorder %v27, 0.0
  %vm52 = vcmp.gt.f32.partialorder %v28, 0.0
  %vm53 = vcmp.gt.f32.partialorder %v29, 0.0
  %vm54 = vcmp.gt.f32.partialorder %v30, 0.0
  %v55 = vsel %vm51, 0.0, %v15
  %v56 = vsel %vm52, 0.0, %v16
  %v57 = vsel %vm53, 0.0, %v17
  %v58 = vsel %vm54, 0.0, %v18
  %s59 = scalar_lea.vmem %s0, 32
  %v60 = vld [vmem:[%s59] sm:$0xff]
  %v61 = vld [vmem:[%s59 + $0x8] sm:$0xff]
  %v62 = vld [vmem:[%s59 + $0x10] sm:$0xff]
  %v63 = vld [vmem:[%s59 + $0x18] sm:$0xff]
  %v64 = vadd.f32 %v55, %v60
  %v65 = vadd.f32 %v56, %v61
  %v66 = vadd.f32 %v57, %v62
  %v67 = vadd.f32 %v58, %v63
  %vm68 = vcmp.ge.f32.partialorder %v64, 1.0
  %vm69 = vcmp.ge.f32.partialorder %v65, 1.0
  %vm70 = vcmp.ge.f32.partialorder %v66, 1.0
  %vm71 = vcmp.ge.f32.partialorder %v67, 1.0
  %v72 = vsel %vm68, 1, 0
  %v73 = vsel %vm69, 1, 0
  %v74 = vsel %vm70, 1, 0
  %v75 = vsel %vm71, 1, 0
  %v76 = vcvt.s32.f32 %v72
  %v77 = vcvt.s32.f32 %v73
  %v78 = vcvt.s32.f32 %v74
  %v79 = vcvt.s32.f32 %v75
  %s80 = scalar_lea.vmem %s1, 16
  %v81 = vld [vmem:[%s80] sm:$0xf]
  %v82 = vld [vmem:[%s80 + $0x4] sm:$0xf]
  %v83 = vld [vmem:[%s80 + $0x8] sm:$0xf]
  %v84 = vld [vmem:[%s80 + $0xc] sm:$0xf]
  %v85 = vunpack.c.l.bf16 %v81
  %v86 = vunpack.c.l.bf16 %v82
  %v87 = vunpack.c.l.bf16 %v83
  %v88 = vunpack.c.l.bf16 %v84
  %v89 = vadd.f32 %v76, %v85
  %v90 = vadd.f32 %v77, %v86
  %v91 = vadd.f32 %v78, %v87
  %v92 = vadd.f32 %v79, %v88
  %v93 = vpack.c.bf16 %v89, %v89
  %v94 = vpack.c.bf16 %v90, %v90
  %v95 = vpack.c.bf16 %v91, %v91
  %v96 = vpack.c.bf16 %v92, %v92
  %s97 = scalar_lea.vmem %s2, 16
  %98 = vst [vmem:[%s97] sm:$0xf] %v93
  %99 = vst [vmem:[%s97 + $0x4] sm:$0xf] %v94
  %100 = vst [vmem:[%s97 + $0x8] sm:$0xf] %v95
  %101 = vst [vmem:[%s97 + $0xc] sm:$0xf] %v96
  // Predicated region
  $region10: #{_lambda_.61} parent=0 // pred_check
    _
  $region11: #{_lambda_.61} parent=0 // pred_check_branch
    %103 = sbr.rel (0) target = $region13
  $region12: #{_lambda_.61} parent=0 // pred_region
    _
  $region13: #{_lambda_.61} parent=0 // pred_fallthru
    _
  // Predicated region
  $region14: #{_lambda_.61} parent=0 // pred_check
    _
  $region15: #{_lambda_.61} parent=0 // pred_check_branch
    %105 = sbr.rel (0) target = $region17
  $region16: #{_lambda_.61} parent=0 // pred_region
    _
  $region17: #{_lambda_.61} parent=0 // pred_fallthru
    _

// kernel: _lambda_.70
$region0: #{_lambda_.70}
  #allocation0 [shape = 'u32[]', space=smem, size = 0x4, offset = 0x4, fixed_abs, tag = 'smem constant byte address 0x4 - core index']
  #allocation1 [shape = 'u32[72,128]{1,0:T(1,128)}', space=vmem, size = 0x9000, scoped, tag = 'internal scratch']
  #allocation2 [shape = 'f32[64,128]{1,0:T(8,128)}', space=vmem, size = 0x8000, scoped, tag = 'scratch operand']
  %s0 = inlined_call_operand.vmem [shape: bf16[64,288], index: 0, kind: input, shape index: {}]
  %s1 = inlined_call_operand.vmem [shape: bf16[288,128], index: 1, kind: input, shape index: {}]
  %s2 = inlined_call_operand.vmem [shape: f32[1,128], index: 2, kind: input, shape index: {}]
  %s3 = inlined_call_operand.vmem [shape: f32[1,128], index: 3, kind: input, shape index: {}]
  %s4 = inlined_call_operand.vmem [shape: f32[64,128], index: 4, kind: output, shape index: {}]
  %s5 = sld [smem:[#allocation0]]
  $region34: #{_lambda_.70} parent=0
    _
  %s7 = ssub.s32 1, %s5
  %s8 = scalar_select 0, %s7, %s5
  // Predicated region
  $region2: #{_lambda_.70} parent=0 // pred_check
    _
  $region3: #{_lambda_.70} parent=0 // pred_check_branch
    %10 = sbr.rel (0) target = $region5
  $region4: #{_lambda_.70} parent=0 // pred_region
    _
  $region5: #{_lambda_.70} parent=0 // pred_fallthru
    _
  // Predicated region
  $region6: #{_lambda_.70} parent=0 // pred_check
    _
  $region7: #{_lambda_.70} parent=0 // pred_check_branch
    %12 = sbr.rel (0) target = $region9
  $region8: #{_lambda_.70} parent=0 // pred_region
    _
  $region9: #{_lambda_.70} parent=0 // pred_fallthru
    _
  // Predicated region
  $region10: #{_lambda_.70} parent=0 // pred_check
    _
  $region11: #{_lambda_.70} parent=0 // pred_check_branch
    %14 = sbr.rel (0) target = $region13
  $region12: #{_lambda_.70} parent=0 // pred_region
    _
  $region13: #{_lambda_.70} parent=0 // pred_fallthru
    _
  // Predicated region
  $region14: #{_lambda_.70} parent=0 // pred_check
    _
  $region15: #{_lambda_.70} parent=0 // pred_check_branch
    %16 = sbr.rel (0) target = $region17
  $region16: #{_lambda_.70} parent=0 // pred_region
    _
  $region17: #{_lambda_.70} parent=0 // pred_fallthru
    _
  %p18 = scmp.eq.s32.totalorder 0, 0
  // Predicated region
  $region18: #{_lambda_.70} parent=0 // pred_check
    %p19 = pneg %p18
  $region19: #{_lambda_.70} parent=0 // pred_check_branch
    %21 = sbr.rel (%p19) target = $region21
  $region20: #{_lambda_.70} parent=0 // pred_region
    %22 = vst [vmem:[#allocation2] sm:$0xff] 0.0
    %23 = vst [vmem:[#allocation2 + $0x8] sm:$0xff] 0.0
    %24 = vst [vmem:[#allocation2 + $0x10] sm:$0xff] 0.0
    %25 = vst [vmem:[#allocation2 + $0x18] sm:$0xff] 0.0
    %26 = vst [vmem:[#allocation2 + $0x20] sm:$0xff] 0.0
    %27 = vst [vmem:[#allocation2 + $0x28] sm:$0xff] 0.0
    %28 = vst [vmem:[#allocation2 + $0x30] sm:$0xff] 0.0
    %29 = vst [vmem:[#allocation2 + $0x38] sm:$0xff] 0.0
  $region21: #{_lambda_.70} parent=0 // pred_fallthru
    _
  %v30 = vld [vmem:[#allocation2] sm:$0xff]
  %v31 = vld [vmem:[#allocation2 + $0x8] sm:$0xff]
  %v32 = vld [vmem:[#allocation2 + $0x10] sm:$0xff]
  %v33 = vld [vmem:[#allocation2 + $0x18] sm:$0xff]
  %v34 = vld [vmem:[#allocation2 + $0x20] sm:$0xff]
  %v35 = vld [vmem:[#allocation2 + $0x28] sm:$0xff]
  %v36 = vld [vmem:[#allocation2 + $0x30] sm:$0xff]
  %v37 = vld [vmem:[#allocation2 + $0x38] sm:$0xff]
  %v38 = vld [vmem:[%s0] sm:$0xff]
  %v39 = vld [vmem:[%s0 + $0x8] sm:$0xf]
  %v40 = vld [vmem:[%s0 + $0xc] sm:$0xff]
  %v41 = vld [vmem:[%s0 + $0x14] sm:$0xf]
  %v42 = vld [vmem:[%s0 + $0x18] sm:$0xff]
  %v43 = vld [vmem:[%s0 + $0x20] sm:$0xf]
  %v44 = vld [vmem:[%s0 + $0x24] sm:$0xff]
  %v45 = vld [vmem:[%s0 + $0x2c] sm:$0xf]
  %v46 = vld [vmem:[%s0 + $0x30] sm:$0xff]
  %v47 = vld [vmem:[%s0 + $0x38] sm:$0xf]
  %v48 = vld [vmem:[%s0 + $0x3c] sm:$0xff]
  %v49 = vld [vmem:[%s0 + $0x44] sm:$0xf]
  %v50 = vld [vmem:[%s0 + $0x48] sm:$0xff]
  %v51 = vld [vmem:[%s0 + $0x50] sm:$0xf]
  %v52 = vld [vmem:[%s0 + $0x54] sm:$0xff]
  %v53 = vld [vmem:[%s0 + $0x5c] sm:$0xf]
  %v54 = vld [vmem:[%s1] sm:$0xf]
  %v55 = vld [vmem:[%s1 + $0x4] sm:$0xf]
  %v56 = vld [vmem:[%s1 + $0x8] sm:$0xf]
  %v57 = vld [vmem:[%s1 + $0xc] sm:$0xf]
  %v58 = vld [vmem:[%s1 + $0x10] sm:$0xf]
  %v59 = vld [vmem:[%s1 + $0x14] sm:$0xf]
  %v60 = vld [vmem:[%s1 + $0x18] sm:$0xf]
  %v61 = vld [vmem:[%s1 + $0x1c] sm:$0xf]
  %v62 = vld [vmem:[%s1 + $0x20] sm:$0xf]
  %v63 = vld [vmem:[%s1 + $0x24] sm:$0xf]
  %v64 = vld [vmem:[%s1 + $0x28] sm:$0xf]
  %v65 = vld [vmem:[%s1 + $0x2c] sm:$0xf]
  %v66 = vld [vmem:[%s1 + $0x30] sm:$0xf]
  %v67 = vld [vmem:[%s1 + $0x34] sm:$0xf]
  %v68 = vld [vmem:[%s1 + $0x38] sm:$0xf]
  %v69 = vld [vmem:[%s1 + $0x3c] sm:$0xf]
  %v70 = vld [vmem:[%s1 + $0x40] sm:$0xf]
  %v71 = vld [vmem:[%s1 + $0x44] sm:$0xf]
  %v72 = vld [vmem:[%s1 + $0x48] sm:$0xf]
  %v73 = vld [vmem:[%s1 + $0x4c] sm:$0xf]
  %v74 = vld [vmem:[%s1 + $0x50] sm:$0xf]
  %v75 = vld [vmem:[%s1 + $0x54] sm:$0xf]
  %v76 = vld [vmem:[%s1 + $0x58] sm:$0xf]
  %v77 = vld [vmem:[%s1 + $0x5c] sm:$0xf]
  %v78 = vld [vmem:[%s1 + $0x60] sm:$0xf]
  %v79 = vld [vmem:[%s1 + $0x64] sm:$0xf]
  %v80 = vld [vmem:[%s1 + $0x68] sm:$0xf]
  %v81 = vld [vmem:[%s1 + $0x6c] sm:$0xf]
  %v82 = vld [vmem:[%s1 + $0x70] sm:$0xf]
  %v83 = vld [vmem:[%s1 + $0x74] sm:$0xf]
  %v84 = vld [vmem:[%s1 + $0x78] sm:$0xf]
  %v85 = vld [vmem:[%s1 + $0x7c] sm:$0xf]
  %v86 = vld [vmem:[%s1 + $0x80] sm:$0xf]
  %v87 = vld [vmem:[%s1 + $0x84] sm:$0xf]
  %v88 = vld [vmem:[%s1 + $0x88] sm:$0xf]
  %v89 = vld [vmem:[%s1 + $0x8c] sm:$0xf]
  %v106 = vunpack.c.l.b16 %v38
  %v107 = vunpack.c.h.b16 %v38
  %v108 = vunpack.c.l.b16 %v39
  %v109 = vunpack.c.l.b16 %v40
  %v110 = vunpack.c.h.b16 %v40
  %v111 = vunpack.c.l.b16 %v41
  %v112 = vunpack.c.l.b16 %v42
  %v113 = vunpack.c.h.b16 %v42
  %v114 = vunpack.c.l.b16 %v43
  %v115 = vunpack.c.l.b16 %v44
  %v116 = vunpack.c.h.b16 %v44
  %v117 = vunpack.c.l.b16 %v45
  %v118 = vunpack.c.l.b16 %v46
  %v119 = vunpack.c.h.b16 %v46
  %v120 = vunpack.c.l.b16 %v47
  %v121 = vunpack.c.l.b16 %v48
  %v122 = vunpack.c.h.b16 %v48
  %v123 = vunpack.c.l.b16 %v49
  %v124 = vunpack.c.l.b16 %v50
  %v125 = vunpack.c.h.b16 %v50
  %v126 = vunpack.c.l.b16 %v51
  %v127 = vunpack.c.l.b16 %v52
  %v128 = vunpack.c.h.b16 %v52
  %v129 = vunpack.c.l.b16 %v53
  %v130 = vpack.c.b16 %v109, %v106
  %v131 = vpack.c.b16 %v110, %v107
  %v132 = vpack.c.b16 %v111, %v108
  %v133 = vpack.c.b16 %v115, %v112
  %v134 = vpack.c.b16 %v116, %v113
  %v135 = vpack.c.b16 %v117, %v114
  %v136 = vpack.c.b16 %v121, %v118
  %v137 = vpack.c.b16 %v122, %v119
  %v138 = vpack.c.b16 %v123, %v120
  %v139 = vpack.c.b16 %v127, %v124
  %v140 = vpack.c.b16 %v128, %v125
  %v141 = vpack.c.b16 %v129, %v126
  %v186 = vunpack.c.l.b16 %v54
  %v187 = vunpack.c.l.b16 %v55
  %v188 = vunpack.c.l.b16 %v56
  %v189 = vunpack.c.l.b16 %v57
  %v190 = vunpack.c.l.b16 %v58
  %v191 = vunpack.c.l.b16 %v59
  %v192 = vunpack.c.l.b16 %v60
  %v193 = vunpack.c.l.b16 %v61
  %v194 = vunpack.c.l.b16 %v62
  %v195 = vunpack.c.l.b16 %v63
  %v196 = vunpack.c.l.b16 %v64
  %v197 = vunpack.c.l.b16 %v65
  %v198 = vunpack.c.l.b16 %v66
  %v199 = vunpack.c.l.b16 %v67
  %v200 = vunpack.c.l.b16 %v68
  %v201 = vunpack.c.l.b16 %v69
  %v202 = vunpack.c.l.b16 %v70
  %v203 = vunpack.c.l.b16 %v71
  %v204 = vunpack.c.l.b16 %v72
  %v205 = vunpack.c.l.b16 %v73
  %v206 = vunpack.c.l.b16 %v74
  %v207 = vunpack.c.l.b16 %v75
  %v208 = vunpack.c.l.b16 %v76
  %v209 = vunpack.c.l.b16 %v77
  %v210 = vunpack.c.l.b16 %v78
  %v211 = vunpack.c.l.b16 %v79
  %v212 = vunpack.c.l.b16 %v80
  %v213 = vunpack.c.l.b16 %v81
  %v214 = vunpack.c.l.b16 %v82
  %v215 = vunpack.c.l.b16 %v83
  %v216 = vunpack.c.l.b16 %v84
  %v217 = vunpack.c.l.b16 %v85
  %v218 = vunpack.c.l.b16 %v86
  %v219 = vunpack.c.l.b16 %v87
  %v220 = vunpack.c.l.b16 %v88
  %v221 = vunpack.c.l.b16 %v89
  %v222 = vpack.c.b16 %v187, %v186
  %v223 = vpack.c.b16 %v189, %v188
  %v224 = vpack.c.b16 %v191, %v190
  %v225 = vpack.c.b16 %v193, %v192
  %v226 = vpack.c.b16 %v195, %v194
  %v227 = vpack.c.b16 %v197, %v196
  %v228 = vpack.c.b16 %v199, %v198
  %v229 = vpack.c.b16 %v201, %v200
  %v230 = vpack.c.b16 %v203, %v202
  %v231 = vpack.c.b16 %v205, %v204
  %v232 = vpack.c.b16 %v207, %v206
  %v233 = vpack.c.b16 %v209, %v208
  %v234 = vpack.c.b16 %v211, %v210
  %v235 = vpack.c.b16 %v213, %v212
  %v236 = vpack.c.b16 %v215, %v214
  %v237 = vpack.c.b16 %v217, %v216
  %v238 = vpack.c.b16 %v219, %v218
  %v239 = vpack.c.b16 %v221, %v220
  %vm258 = vcmask 261120
  %v260 = vsel %vm258, %v132, 0
  %v263 = vsel %vm258, %v135, 0
  %v266 = vsel %vm258, %v138, 0
  %v269 = vsel %vm258, %v141, 0
  %271 = vmatpush.bf16.msra.mxu0 %v229
  %272 = vmatpush.bf16.msra.mxu0 %v228
  %273 = vmatpush.bf16.msra.mxu0 %v227
  %274 = vmatpush.bf16.msra.mxu0 %v226
  %275 = vmatpush.bf16.msra.mxu0 %v225
  %276 = vmatpush.bf16.msra.mxu0 %v224
  %277 = vmatpush.bf16.msra.mxu0 %v223
  %278 = vmatpush.bf16.msra.mxu0 %v222
  %279 = vmatmul.bf16.gmra.mxu0 %v130
  %v280 = vpop.f32.mrf.mxu0
  %v281 = vadd.f32 0.0, %v280
  %v282 = vpop.f32.mrf.mxu0
  %v283 = vadd.f32 0.0, %v282
  %284 = vmatmul.bf16.gmra.mxu0 %v133
  %v285 = vpop.f32.mrf.mxu0
  %v286 = vadd.f32 0.0, %v285
  %v287 = vpop.f32.mrf.mxu0
  %v288 = vadd.f32 0.0, %v287
  %289 = vmatmul.bf16.gmra.mxu0 %v136
  %v290 = vpop.f32.mrf.mxu0
  %v291 = vadd.f32 0.0, %v290
  %v292 = vpop.f32.mrf.mxu0
  %v293 = vadd.f32 0.0, %v292
  %294 = vmatmul.bf16.gmra.mxu0 %v139
  %v295 = vpop.f32.mrf.mxu0
  %v296 = vadd.f32 0.0, %v295
  %v297 = vpop.f32.mrf.mxu0
  %v298 = vadd.f32 0.0, %v297
  %299 = vdwg.mxu0
  %300 = vmatpush.bf16.msra.mxu0 %v237
  %301 = vmatpush.bf16.msra.mxu0 %v236
  %302 = vmatpush.bf16.msra.mxu0 %v235
  %303 = vmatpush.bf16.msra.mxu0 %v234
  %304 = vmatpush.bf16.msra.mxu0 %v233
  %305 = vmatpush.bf16.msra.mxu0 %v232
  %306 = vmatpush.bf16.msra.mxu0 %v231
  %307 = vmatpush.bf16.msra.mxu0 %v230
  %308 = vmatmul.bf16.gmra.mxu0 %v131
  %v309 = vpop.f32.mrf.mxu0
  %v310 = vadd.f32 %v281, %v309
  %v311 = vpop.f32.mrf.mxu0
  %v312 = vadd.f32 %v283, %v311
  %313 = vmatmul.bf16.gmra.mxu0 %v134
  %v314 = vpop.f32.mrf.mxu0
  %v315 = vadd.f32 %v286, %v314
  %v316 = vpop.f32.mrf.mxu0
  %v317 = vadd.f32 %v288, %v316
  %318 = vmatmul.bf16.gmra.mxu0 %v137
  %v319 = vpop.f32.mrf.mxu0
  %v320 = vadd.f32 %v291, %v319
  %v321 = vpop.f32.mrf.mxu0
  %v322 = vadd.f32 %v293, %v321
  %323 = vmatmul.bf16.gmra.mxu0 %v140
  %v324 = vpop.f32.mrf.mxu0
  %v325 = vadd.f32 %v296, %v324
  %v326 = vpop.f32.mrf.mxu0
  %v327 = vadd.f32 %v298, %v326
  %328 = vdwg.mxu0
  %329 = vmatpush.bf16.msra.mxu0 0
  %330 = vmatpush.bf16.msra.mxu0 0
  %331 = vmatpush.bf16.msra.mxu0 0
  %332 = vmatpush.bf16.msra.mxu0 0
  %333 = vmatpush.bf16.msra.mxu0 0
  %334 = vmatpush.bf16.msra.mxu0 0
  %335 = vmatpush.bf16.msra.mxu0 %v239
  %336 = vmatpush.bf16.msra.mxu0 %v238
  %337 = vmatmul.bf16.gmra.mxu0 %v260
  %v338 = vpop.f32.mrf.mxu0
  %v339 = vadd.f32 %v310, %v338
  %v340 = vpop.f32.mrf.mxu0
  %v341 = vadd.f32 %v312, %v340
  %342 = vmatmul.bf16.gmra.mxu0 %v263
  %v343 = vpop.f32.mrf.mxu0
  %v344 = vadd.f32 %v315, %v343
  %v345 = vpop.f32.mrf.mxu0
  %v346 = vadd.f32 %v317, %v345
  %347 = vmatmul.bf16.gmra.mxu0 %v266
  %v348 = vpop.f32.mrf.mxu0
  %v349 = vadd.f32 %v320, %v348
  %v350 = vpop.f32.mrf.mxu0
  %v351 = vadd.f32 %v322, %v350
  %352 = vmatmul.bf16.gmra.mxu0 %v269
  %v353 = vpop.f32.mrf.mxu0
  %v354 = vadd.f32 %v325, %v353
  %v355 = vpop.f32.mrf.mxu0
  %v356 = vadd.f32 %v327, %v355
  %357 = vdwg.mxu0
  %v358 = vadd.f32 %v30, %v339
  %v359 = vadd.f32 %v31, %v341
  %v360 = vadd.f32 %v32, %v344
  %v361 = vadd.f32 %v33, %v346
  %v362 = vadd.f32 %v34, %v349
  %v363 = vadd.f32 %v35, %v351
  %v364 = vadd.f32 %v36, %v354
  %v365 = vadd.f32 %v37, %v356
  %366 = vst [vmem:[#allocation2] sm:$0xff] %v358
  %367 = vst [vmem:[#allocation2 + $0x8] sm:$0xff] %v359
  %368 = vst [vmem:[#allocation2 + $0x10] sm:$0xff] %v360
  %369 = vst [vmem:[#allocation2 + $0x18] sm:$0xff] %v361
  %370 = vst [vmem:[#allocation2 + $0x20] sm:$0xff] %v362
  %371 = vst [vmem:[#allocation2 + $0x28] sm:$0xff] %v363
  %372 = vst [vmem:[#allocation2 + $0x30] sm:$0xff] %v364
  %373 = vst [vmem:[#allocation2 + $0x38] sm:$0xff] %v365
  // Predicated region
  $region22: #{_lambda_.70} parent=0 // pred_check
    %p374 = pneg %p18
  $region23: #{_lambda_.70} parent=0 // pred_check_branch
    %376 = sbr.rel (%p374) target = $region25
  $region24: #{_lambda_.70} parent=0 // pred_region
    %v377 = vld [vmem:[#allocation2] sm:$0xff]
    %v378 = vld [vmem:[#allocation2 + $0x8] sm:$0xff]
    %v379 = vld [vmem:[#allocation2 + $0x10] sm:$0xff]
    %v380 = vld [vmem:[#allocation2 + $0x18] sm:$0xff]
    %v381 = vld [vmem:[#allocation2 + $0x20] sm:$0xff]
    %v382 = vld [vmem:[#allocation2 + $0x28] sm:$0xff]
    %v383 = vld [vmem:[#allocation2 + $0x30] sm:$0xff]
    %v384 = vld [vmem:[#allocation2 + $0x38] sm:$0xff]
    %v385 = vld [vmem:[%s2] sm:$0x1]
    %v387 = vperm.slane %v385, 0
    %v389 = vmul.f32 %v377, %v387
    %v390 = vmul.f32 %v378, %v387
    %v391 = vmul.f32 %v379, %v387
    %v392 = vmul.f32 %v380, %v387
    %v393 = vmul.f32 %v381, %v387
    %v394 = vmul.f32 %v382, %v387
    %v395 = vmul.f32 %v383, %v387
    %v396 = vmul.f32 %v384, %v387
    %v397 = vld [vmem:[%s3] sm:$0x1]
    %v399 = vperm.slane %v397, 0
    %v401 = vadd.f32 %v389, %v399
    %v402 = vadd.f32 %v390, %v399
    %v403 = vadd.f32 %v391, %v399
    %v404 = vadd.f32 %v392, %v399
    %v405 = vadd.f32 %v393, %v399
    %v406 = vadd.f32 %v394, %v399
    %v407 = vadd.f32 %v395, %v399
    %v408 = vadd.f32 %v396, %v399
    %409 = vst [vmem:[%s4] sm:$0xff] %v401
    %410 = vst [vmem:[%s4 + $0x8] sm:$0xff] %v402
    %411 = vst [vmem:[%s4 + $0x10] sm:$0xff] %v403
    %412 = vst [vmem:[%s4 + $0x18] sm:$0xff] %v404
    %413 = vst [vmem:[%s4 + $0x20] sm:$0xff] %v405
    %414 = vst [vmem:[%s4 + $0x28] sm:$0xff] %v406
    %415 = vst [vmem:[%s4 + $0x30] sm:$0xff] %v407
    %416 = vst [vmem:[%s4 + $0x38] sm:$0xff] %v408
  $region25: #{_lambda_.70} parent=0 // pred_fallthru
    _
  // Predicated region
  $region26: #{_lambda_.70} parent=0 // pred_check
    _
  $region27: #{_lambda_.70} parent=0 // pred_check_branch
    %418 = sbr.rel (0) target = $region29
  $region28: #{_lambda_.70} parent=0 // pred_region
    _
  $region29: #{_lambda_.70} parent=0 // pred_fallthru
    _
  // Predicated region
  $region30: #{_lambda_.70} parent=0 // pred_check
    _
  $region31: #{_lambda_.70} parent=0 // pred_check_branch
    %420 = sbr.rel (0) target = $region33
  $region32: #{_lambda_.70} parent=0 // pred_region
    _
  $region33: #{_lambda_.70} parent=0 // pred_fallthru
    _

// kernel: _lambda_.71
$region0: #{_lambda_.71}
  #allocation0 [shape = 'u32[]', space=smem, size = 0x4, offset = 0x4, fixed_abs, tag = 'smem constant byte address 0x4 - core index']
  #allocation1 [shape = 'u32[72,128]{1,0:T(1,128)}', space=vmem, size = 0x9000, scoped, tag = 'internal scratch']
  %s0 = inlined_call_operand.vmem [shape: f32[2,16,128], index: 0, kind: input, shape index: {}]
  %s1 = inlined_call_operand.vmem [shape: bf16[2,16,128], index: 1, kind: output, shape index: {}]
  %s2 = sld [smem:[#allocation0]]
  $region14: #{_lambda_.71} parent=0
    _
  %s4 = ssub.s32 1, %s2
  %s5 = scalar_select 0, %s4, %s2
  // Predicated region
  $region2: #{_lambda_.71} parent=0 // pred_check
    _
  $region3: #{_lambda_.71} parent=0 // pred_check_branch
    %7 = sbr.rel (0) target = $region5
  $region4: #{_lambda_.71} parent=0 // pred_region
    _
  $region5: #{_lambda_.71} parent=0 // pred_fallthru
    _
  %v8 = vld [vmem:[%s0] sm:$0xff]
  %v9 = vld [vmem:[%s0 + $0x8] sm:$0xff]
  %v10 = vadd.f32 %v8, 0.0
  %v11 = vadd.f32 %v9, 0.0
  %vm12 = vcmp.ge.f32.partialorder %v10, 1.0
  %vm13 = vcmp.ge.f32.partialorder %v11, 1.0
  %v14 = vsel %vm12, 1, 0
  %v15 = vsel %vm13, 1, 0
  %v16 = vcvt.s32.f32 %v14
  %v17 = vcvt.s32.f32 %v15
  %v18 = vpack.c.bf16 %v16, %v16
  %v19 = vpack.c.bf16 %v17, %v17
  %20 = vst [vmem:[%s1] sm:$0xf] %v18
  %21 = vst [vmem:[%s1 + $0x4] sm:$0xf] %v19
  %vm22 = vcmp.gt.f32.partialorder %v16, 0.0
  %vm23 = vcmp.gt.f32.partialorder %v17, 0.0
  %v24 = vsel %vm22, 0.0, %v10
  %v25 = vsel %vm23, 0.0, %v11
  %s26 = scalar_lea.vmem %s0, 16
  %v27 = vld [vmem:[%s26] sm:$0xff]
  %v28 = vld [vmem:[%s26 + $0x8] sm:$0xff]
  %v29 = vadd.f32 %v24, %v27
  %v30 = vadd.f32 %v25, %v28
  %vm31 = vcmp.ge.f32.partialorder %v29, 1.0
  %vm32 = vcmp.ge.f32.partialorder %v30, 1.0
  %v33 = vsel %vm31, 1, 0
  %v34 = vsel %vm32, 1, 0
  %v35 = vcvt.s32.f32 %v33
  %v36 = vcvt.s32.f32 %v34
  %v37 = vpack.c.bf16 %v35, %v35
  %v38 = vpack.c.bf16 %v36, %v36
  %s39 = scalar_lea.vmem %s1, 8
  %40 = vst [vmem:[%s39] sm:$0xf] %v37
  %41 = vst [vmem:[%s39 + $0x4] sm:$0xf] %v38
  // Predicated region
  $region6: #{_lambda_.71} parent=0 // pred_check
    _
  $region7: #{_lambda_.71} parent=0 // pred_check_branch
    %43 = sbr.rel (0) target = $region9
  $region8: #{_lambda_.71} parent=0 // pred_region
    _
  $region9: #{_lambda_.71} parent=0 // pred_fallthru
    _
  // Predicated region
  $region10: #{_lambda_.71} parent=0 // pred_check
    _
  $region11: #{_lambda_.71} parent=0 // pred_check_branch
    %45 = sbr.rel (0) target = $region13
  $region12: #{_lambda_.71} parent=0 // pred_region
    _
  $region13: #{_lambda_.71} parent=0 // pred_fallthru
    _

// kernel: _lambda_.72
$region0: #{_lambda_.72}
  #allocation0 [shape = 'u32[]', space=smem, size = 0x4, offset = 0x4, fixed_abs, tag = 'smem constant byte address 0x4 - core index']
  #allocation1 [shape = 'u32[72,128]{1,0:T(1,128)}', space=vmem, size = 0x9000, scoped, tag = 'internal scratch']
  #allocation2 [shape = 'f32[64,128]{1,0:T(8,128)}', space=vmem, size = 0x8000, scoped, tag = 'scratch operand']
  %s0 = inlined_call_operand.vmem [shape: bf16[64,1024], index: 0, kind: input, shape index: {}]
  %s1 = inlined_call_operand.vmem [shape: bf16[1024,128], index: 1, kind: input, shape index: {}]
  %s2 = inlined_call_operand.vmem [shape: f32[1,128], index: 2, kind: input, shape index: {}]
  %s3 = inlined_call_operand.vmem [shape: f32[1,128], index: 3, kind: input, shape index: {}]
  %s4 = inlined_call_operand.vmem [shape: f32[64,128], index: 4, kind: output, shape index: {}]
  %s5 = sld [smem:[#allocation0]]
  $region80: #{_lambda_.72} parent=0
    _
  %s7 = ssub.s32 1, %s5
  %s8 = scalar_select 0, %s7, %s5
  $region1: #{_lambda_.72} parent=0
    #allocation3 [shape = 'u8[131072]{0}', space=vmem, size = 0x20000, scoped, tag = 'input window, operand 0']
    loop: start=0, step=1, limit=4
    $region2: #{_lambda_.72} parent=1 // loop_pre_header
      _
    $region3: #{_lambda_.72} parent=1 // loop_header
      %s10 = sphi 0, %s14
      %p11 = scmp.ge.s32.totalorder %s10, 4
      %s17 = sphi 0, %s36
      %s18 = sphi 0, %s32
      %s19 = sphi 0, %s28
      %s20 = sphi 0, %s17
      %s21 = sphi 0, %s18
      %s22 = sphi 0, %s19
      %s23 = sphi 0, %s20
      %s24 = sphi 0, %s21
      %s25 = sphi 0, %s22
      %s41 = sphi 0, %s43
      %s44 = sphi 0, %s41
      %s45 = sphi 0, %s44
      %s61 = sphi 0, %s45
      %s69 = sphi 0, %s71
      %s72 = sphi 0, %s69
      %s73 = sphi 0, %s72
      %s89 = sphi 0, %s73
      %s95 = sphi 0, %s97
      %s98 = sphi 0, %s95
      %s99 = sphi 0, %s98
      %s115 = sphi 0, %s99
      %s121 = sphi 0, %s123
      %s124 = sphi 0, %s121
      %s125 = sphi 0, %s124
      %s141 = sphi 0, %s125
      %s149 = sphi 0, %s151
      %s152 = sphi 0, %s149
      %s153 = sphi 0, %s152
      %s169 = sphi 0, %s153
    $region4: #{_lambda_.72} parent=1 // loop_header_branch
      %13 = sbr.rel (%p11) target = $region8
    $region5: #{_lambda_.72} parent=1 // loop_body
      %s15 = ssub.s32 %s10, 1
      %s16 = ssub.s32 %s10, 2
      %s26 = sadd.s32 1, %s19
      %p27 = scmp.ge.s32.totalorder %s26, 2
      %s28 = scalar_select %p27, 0, %s26
      %s29 = sadd.s32 1, %s18
      %s30 = scalar_select %p27, %s29, %s18
      %p31 = scmp.ge.s32.totalorder %s30, 1
      %s32 = scalar_select %p31, 0, %s30
      %s33 = sadd.s32 1, %s17
      %s34 = scalar_select %p31, %s33, %s17
      %p35 = scmp.ge.s32.totalorder %s34, 1
      %s36 = scalar_select %p35, 0, %s34
      %s37 = ssub.s32 %s17, %s36
      %s38 = ssub.s32 %s19, %s28
      %s39 = sor.u32 %s37, %s38
      %p40 = scmp.eq.s32.totalorder %s39, 0
      %s42 = sadd.s32 %s41, 1
      %s43 = scalar_select %p40, %s41, %s42
      %p46 = pneg %p40
      %p47 = scmp.eq.s32.totalorder %s10, 1
      %p48 = por %p46, %p47
      %p49 = scmp.ne.s32.totalorder %s41, %s44
      %p50 = scmp.eq.s32.totalorder %s10, 0
      %p51 = por %p49, %p50
      %p52 = scmp.ne.s32.totalorder %s41, %s44
      %p53 = scmp.eq.s32.totalorder %s15, 1
      %p54 = por %p52, %p53
      %p55 = scmp.ne.s32.totalorder %s44, %s45
      %p56 = scmp.eq.s32.totalorder %s15, 0
      %p57 = por %p55, %p56
      %p58 = scmp.ne.s32.totalorder %s44, %s45
      %p59 = scmp.eq.s32.totalorder %s16, 1
      %p60 = por %p58, %p59
      %p62 = scmp.ne.s32.totalorder %s45, %s61
      %p63 = scmp.eq.s32.totalorder %s16, 0
      %p64 = por %p62, %p63
      %s65 = ssub.s32 %s19, %s28
      %s66 = ssub.s32 %s18, %s32
      %s67 = sor.u32 %s65, %s66
      %p68 = scmp.eq.s32.totalorder %s67, 0
      %s70 = sadd.s32 %s69, 1
      %s71 = scalar_select %p68, %s69, %s70
      %p74 = pneg %p68
      %p75 = scmp.eq.s32.totalorder %s10, 1
      %p76 = por %p74, %p75
      %p77 = scmp.ne.s32.totalorder %s69, %s72
      %p78 = scmp.eq.s32.totalorder %s10, 0
      %p79 = por %p77, %p78
      %p80 = scmp.ne.s32.totalorder %s69, %s72
      %p81 = scmp.eq.s32.totalorder %s15, 1
      %p82 = por %p80, %p81
      %p83 = scmp.ne.s32.totalorder %s72, %s73
      %p84 = scmp.eq.s32.totalorder %s15, 0
      %p85 = por %p83, %p84
      %p86 = scmp.ne.s32.totalorder %s72, %s73
      %p87 = scmp.eq.s32.totalorder %s16, 1
      %p88 = por %p86, %p87
      %p90 = scmp.ne.s32.totalorder %s73, %s89
      %p91 = scmp.eq.s32.totalorder %s16, 0
      %p92 = por %p90, %p91
      %s93 = ssub.s32 %s18, %s32
      %p94 = scmp.eq.s32.totalorder %s93, 0
      %s96 = sadd.s32 %s95, 1
      %s97 = scalar_select %p94, %s95, %s96
      %p100 = pneg %p94
      %p101 = scmp.eq.s32.totalorder %s10, 1
      %p102 = por %p100, %p101
      %p103 = scmp.ne.s32.totalorder %s95, %s98
      %p104 = scmp.eq.s32.totalorder %s10, 0
      %p105 = por %p103, %p104
      %p106 = scmp.ne.s32.totalorder %s95, %s98
      %p107 = scmp.eq.s32.totalorder %s15, 1
      %p108 = por %p106, %p107
      %p109 = scmp.ne.s32.totalorder %s98, %s99
      %p110 = scmp.eq.s32.totalorder %s15, 0
      %p111 = por %p109, %p110
      %p112 = scmp.ne.s32.totalorder %s98, %s99
      %p113 = scmp.eq.s32.totalorder %s16, 1
      %p114 = por %p112, %p113
      %p116 = scmp.ne.s32.totalorder %s99, %s115
      %p117 = scmp.eq.s32.totalorder %s16, 0
      %p118 = por %p116, %p117
      %s119 = ssub.s32 %s18, %s32
      %p120 = scmp.eq.s32.totalorder %s119, 0
      %s122 = sadd.s32 %s121, 1
      %s123 = scalar_select %p120, %s121, %s122
      %p126 = pneg %p120
      %p127 = scmp.eq.s32.totalorder %s10, 1
      %p128 = por %p126, %p127
      %p129 = scmp.ne.s32.totalorder %s121, %s124
      %p130 = scmp.eq.s32.totalorder %s10, 0
      %p131 = por %p129, %p130
      %p132 = scmp.ne.s32.totalorder %s121, %s124
      %p133 = scmp.eq.s32.totalorder %s15, 1
      %p134 = por %p132, %p133
      %p135 = scmp.ne.s32.totalorder %s124, %s125
      %p136 = scmp.eq.s32.totalorder %s15, 0
      %p137 = por %p135, %p136
      %p138 = scmp.ne.s32.totalorder %s124, %s125
      %p139 = scmp.eq.s32.totalorder %s16, 1
      %p140 = por %p138, %p139
      %p142 = scmp.ne.s32.totalorder %s125, %s141
      %p143 = scmp.eq.s32.totalorder %s16, 0
      %p144 = por %p142, %p143
      %s145 = ssub.s32 %s17, %s36
      %s146 = ssub.s32 %s18, %s32
      %s147 = sor.u32 %s145, %s146
      %p148 = scmp.eq.s32.totalorder %s147, 0
      %s150 = sadd.s32 %s149, 1
      %s151 = scalar_select %p148, %s149, %s150
      %p154 = pneg %p148
      %p155 = scmp.eq.s32.totalorder %s10, 1
      %p156 = por %p154, %p155
      %p157 = scmp.ne.s32.totalorder %s149, %s152
      %p158 = scmp.eq.s32.totalorder %s10, 0
      %p159 = por %p157, %p158
      %p160 = scmp.ne.s32.totalorder %s149, %s152
      %p161 = scmp.eq.s32.totalorder %s15, 1
      %p162 = por %p160, %p161
      %p163 = scmp.ne.s32.totalorder %s152, %s153
      %p164 = scmp.eq.s32.totalorder %s15, 0
      %p165 = por %p163, %p164
      %p166 = scmp.ne.s32.totalorder %s152, %s153
      %p167 = scmp.eq.s32.totalorder %s16, 1
      %p168 = por %p166, %p167
      %p170 = scmp.ne.s32.totalorder %s153, %s169
      %p171 = scmp.eq.s32.totalorder %s16, 0
      %p172 = por %p170, %p171
      %p173 = scmp.le.s32.totalorder 1, %s10
      %p174 = scmp.lt.s32.totalorder %s10, 3
      %p175 = pnand %p173, %p174
      %p176 = pneg %p175
      // Predicated region
      $region9: #{_lambda_.72} parent=5 // pred_check
        _
      $region10: #{_lambda_.72} parent=5 // pred_check_branch
        %178 = sbr.rel (%p175) target = $region12
      $region11: #{_lambda_.72} parent=5 // pred_region
        %s179 = ssub.s32 %s10, 1
        // Predicated region
        $region13: #{_lambda_.72} parent=11 // pred_check
          %p180 = pneg %p111
        $region14: #{_lambda_.72} parent=11 // pred_check_branch
          %182 = sbr.rel (%p180) target = $region16
        $region15: #{_lambda_.72} parent=11 // pred_region
          %p183 = scmp.lt.s32.totalorder %s21, 0
          %s184 = scalar_select %p183, %s21, 0
          %s185 = scalar_lea.vmem %s2, %s184
        $region16: #{_lambda_.72} parent=11 // pred_fallthru
          _
        // Predicated region
        $region17: #{_lambda_.72} parent=11 // pred_check
          %p186 = pneg %p137
        $region18: #{_lambda_.72} parent=11 // pred_check_branch
          %188 = sbr.rel (%p186) target = $region20
        $region19: #{_lambda_.72} parent=11 // pred_region
          %p189 = scmp.lt.s32.totalorder %s21, 0
          %s190 = scalar_select %p189, %s21, 0
          %s191 = scalar_lea.vmem %s3, %s190
        $region20: #{_lambda_.72} parent=11 // pred_fallthru
          _
      $region12: #{_lambda_.72} parent=5 // pred_fallthru
        _
      %p192 = scmp.lt.s32.totalorder %s10, 2
      // Predicated region
      $region21: #{_lambda_.72} parent=5 // pred_check
        %p193 = pneg %p192
      $region22: #{_lambda_.72} parent=5 // pred_check_branch
        %195 = sbr.rel (%p193) target = $region24
      $region23: #{_lambda_.72} parent=5 // pred_region
        // Predicated region
        $region25: #{_lambda_.72} parent=23 // pred_check
          %p196 = pneg %p51
        $region26: #{_lambda_.72} parent=23 // pred_check_branch
          %198 = sbr.rel (%p196) target = $region28
        $region27: #{_lambda_.72} parent=23 // pred_region
          %s199 = sand.u32 %s41, 1
          %s200 = sand.u32 %s41, 1
          %s201 = smul.addr %s200, 128
          %s202 = scalar_lea.vmem [#allocation3], %s201
          %s203 = smul.u32 8, %s17
          %s204 = smul.u32 4, %s19
          %s205 = smul.addr %s203, 8
          %s206 = sadd.s32 %s204, %s205
          %s207 = smul.addr %s206, 4
          %s208 = scalar_lea.vmem %s0, %s207
          // Predicated region
          $region29: #{_lambda_.72} parent=27 // pred_check
            _
          $region30: #{_lambda_.72} parent=27 // pred_check_branch
            %210 = sbr.rel (0) target = $region32
          $region31: #{_lambda_.72} parent=27 // pred_region
            // Predicated region
            $region33: #{_lambda_.72} parent=31 // pred_check
              _
            $region34: #{_lambda_.72} parent=31 // pred_check_branch
              %212 = sbr.rel (0) target = $region36
            $region35: #{_lambda_.72} parent=31 // pred_region
              loop: start=0, step=1, limit=1
              $region37: #{_lambda_.72} parent=35 // loop_pre_header
                _
              $region38: #{_lambda_.72} parent=35 // loop_header
                %s214 = sphi 0, %s218
                %p215 = scmp.ge.s32.totalorder %s214, 1
                %s219 = sphi %s208, %s208
                %s220 = sphi %s202, %s202
              $region39: #{_lambda_.72} parent=35 // loop_header_branch
                %217 = sbr.rel (%p215) target = $region43
              $region40: #{_lambda_.72} parent=35 // loop_body
                %v221 = vld [vmem:[%s219] sm:$0xff]
                %222 = vst [vmem:[%s220] sm:$0xff] %v221
                %v223 = vld [vmem:[%s219 + $0x8] sm:$0xff]
                %224 = vst [vmem:[%s220 + $0x8] sm:$0xff] %v223
                %v225 = vld [vmem:[%s219 + $0x20] sm:$0xff]
                %226 = vst [vmem:[%s220 + $0x10] sm:$0xff] %v225
                %v227 = vld [vmem:[%s219 + $0x28] sm:$0xff]
                %228 = vst [vmem:[%s220 + $0x18] sm:$0xff] %v227
                %v229 = vld [vmem:[%s219 + $0x40] sm:$0xff]
                %230 = vst [vmem:[%s220 + $0x20] sm:$0xff] %v229
                %v231 = vld [vmem:[%s219 + $0x48] sm:$0xff]
                %232 = vst [vmem:[%s220 + $0x28] sm:$0xff] %v231
                %v233 = vld [vmem:[%s219 + $0x60] sm:$0xff]
                %234 = vst [vmem:[%s220 + $0x30] sm:$0xff] %v233
                %v235 = vld [vmem:[%s219 + $0x68] sm:$0xff]
                %236 = vst [vmem:[%s220 + $0x38] sm:$0xff] %v235
                %v237 = vld [vmem:[%s219 + $0x80] sm:$0xff]
                %238 = vst [vmem:[%s220 + $0x40] sm:$0xff] %v237
                %v239 = vld [vmem:[%s219 + $0x88] sm:$0xff]
                %240 = vst [vmem:[%s220 + $0x48] sm:$0xff] %v239
                %v241 = vld [vmem:[%s219 + $0xa0] sm:$0xff]
                %242 = vst [vmem:[%s220 + $0x50] sm:$0xff] %v241
                %v243 = vld [vmem:[%s219 + $0xa8] sm:$0xff]
                %244 = vst [vmem:[%s220 + $0x58] sm:$0xff] %v243
                %v245 = vld [vmem:[%s219 + $0xc0] sm:$0xff]
                %246 = vst [vmem:[%s220 + $0x60] sm:$0xff] %v245
                %v247 = vld [vmem:[%s219 + $0xc8] sm:$0xff]
                %248 = vst [vmem:[%s220 + $0x68] sm:$0xff] %v247
                %v249 = vld [vmem:[%s219 + $0xe0] sm:$0xff]
                %250 = vst [vmem:[%s220 + $0x70] sm:$0xff] %v249
                %v251 = vld [vmem:[%s219 + $0xe8] sm:$0xff]
                %252 = vst [vmem:[%s220 + $0x78] sm:$0xff] %v251
              $region41: #{_lambda_.72} parent=35 // loop_footer
                %s218 = sadd.s32 1, %s214
              $region42: #{_lambda_.72} parent=35 // loop_footer_branch
                %213 = sbr.rel target = $region38
              $region43: #{_lambda_.72} parent=35 // loop_exit
                _
            $region36: #{_lambda_.72} parent=31 // pred_fallthru
              _
            // Predicated region
            $region44: #{_lambda_.72} parent=31 // pred_check
              _
            $region45: #{_lambda_.72} parent=31 // pred_check_branch
              %254 = sbr.rel target = $region47
            $region46: #{_lambda_.72} parent=31 // pred_region
              _
            $region47: #{_lambda_.72} parent=31 // pred_fallthru
              _
          $region32: #{_lambda_.72} parent=27 // pred_fallthru
            _
          %255 = vnop
        $region28: #{_lambda_.72} parent=23 // pred_fallthru
          _
        // Predicated region
        $region48: #{_lambda_.72} parent=23 // pred_check
          %p256 = pneg %p79
        $region49: #{_lambda_.72} parent=23 // pred_check_branch
          %258 = sbr.rel (%p256) target = $region51
        $region50: #{_lambda_.72} parent=23 // pred_region
          %s259 = smul.u32 64, %s19
          %p260 = scmp.lt.s32.totalorder %s259, 127
          %s261 = scalar_select %p260, %s259, 127
          %p262 = scmp.lt.s32.totalorder %s18, 0
          %s263 = scalar_select %p262, %s18, 0
          %s264 = sadd.s32 %s263, %s261
          %s265 = smul.addr %s264, 4
          %s266 = scalar_lea.vmem %s1, %s265
          %s267 = smul.u32 64, %s19
        $region51: #{_lambda_.72} parent=23 // pred_fallthru
          _
      $region24: #{_lambda_.72} parent=5 // pred_fallthru
        _
      %p268 = scmp.le.s32.totalorder 1, %s10
      %p269 = scmp.lt.s32.totalorder %s10, 3
      %p270 = pnand %p268, %p269
      %p271 = pneg %p270
      // Predicated region
      $region52: #{_lambda_.72} parent=5 // pred_check
        _
      $region53: #{_lambda_.72} parent=5 // pred_check_branch
        %273 = sbr.rel (%p270) target = $region55
      $region54: #{_lambda_.72} parent=5 // pred_region
        %s274 = ssub.s32 %s10, 1
        %s275 = sand.u32 %s44, 1
        %s276 = sand.u32 %s44, 1
        %s277 = smul.addr %s276, 128
        %s278 = scalar_lea.vmem [#allocation3], %s277
        // Predicated region
        $region56: #{_lambda_.72} parent=54 // pred_check
          %p279 = pneg %p57
        $region57: #{_lambda_.72} parent=54 // pred_check_branch
          %281 = sbr.rel (%p279) target = $region59
        $region58: #{_lambda_.72} parent=54 // pred_region
          _
        $region59: #{_lambda_.72} parent=54 // pred_fallthru
          _
        %s282 = sand.u32 %s44, 1
        %s283 = sand.u32 %s44, 1
        %s284 = smul.addr %s283, 128
        %s285 = scalar_lea.vmem [#allocation3], %s284
        %p286 = pneg %p57
        %p287 = pneg %p54
        %s288 = smul.u32 64, %s22
        %p289 = scmp.lt.s32.totalorder %s288, 127
        %s290 = scalar_select %p289, %s288, 127
        %p291 = scmp.lt.s32.totalorder %s21, 0
        %s292 = scalar_select %p291, %s21, 0
        %s293 = sadd.s32 %s292, %s290
        %s294 = smul.addr %s293, 4
        %s295 = scalar_lea.vmem %s1, %s294
        %p296 = pneg %p85
        %p297 = pneg %p82
        %p298 = scmp.lt.s32.totalorder %s21, 0
        %s299 = scalar_select %p298, %s21, 0
        %s300 = scalar_lea.vmem %s2, %s299
        %p301 = pneg %p111
        %p302 = pneg %p108
        %p303 = scmp.lt.s32.totalorder %s21, 0
        %s304 = scalar_select %p303, %s21, 0
        %s305 = scalar_lea.vmem %s3, %s304
        %p306 = pneg %p137
        %p307 = pneg %p134
        %p308 = pneg %p165
        %p309 = pneg %p162
        %s310 = smul.u32 8, %s20
        %p311 = scmp.lt.s32.totalorder %s310, 7
        %s312 = scalar_select %p311, %s310, 7
        %p313 = scmp.lt.s32.totalorder %s21, 0
        %s314 = scalar_select %p313, %s21, 0
        %s315 = sadd.s32 %s314, %s312
        %s316 = smul.addr %s315, 8
        %s317 = scalar_lea.vmem %s4, %s316
        %s318 = smul.u32 8, %s20
        %s319 = smul.u32 4, %s22
        %s320 = smul.u32 64, %s22
        %p321 = scmp.lt.s32.totalorder %s320, 127
        %s322 = scalar_select %p321, %s320, 127
        %p323 = scmp.lt.s32.totalorder %s21, 0
        %s324 = scalar_select %p323, %s21, 0
        %s325 = sadd.s32 %s324, %s322
        %s326 = smul.addr %s325, 4
        %s327 = scalar_lea.vmem %s1, %s326
        %s328 = smul.u32 64, %s22
        %p329 = scmp.lt.s32.totalorder %s21, 0
        %s330 = scalar_select %p329, %s21, 0
        %s331 = scalar_lea.vmem %s2, %s330
        %p332 = scmp.lt.s32.totalorder %s21, 0
        %s333 = scalar_select %p332, %s21, 0
        %s334 = scalar_lea.vmem %s3, %s333
        %s335 = smul.u32 8, %s20
        %p336 = scmp.lt.s32.totalorder %s335, 7
        %s337 = scalar_select %p336, %s335, 7
        %p338 = scmp.lt.s32.totalorder %s21, 0
        %s339 = scalar_select %p338, %s21, 0
        %s340 = sadd.s32 %s339, %s337
        %s341 = smul.addr %s340, 8
        %s342 = scalar_lea.vmem %s4, %s341
        %s343 = smul.u32 8, %s20
        %p344 = scmp.eq.s32.totalorder %s22, 0
        // Predicated region
        $region60: #{_lambda_.72} parent=54 // pred_check
          %p345 = pneg %p344
        $region61: #{_lambda_.72} parent=54 // pred_check_branch
          %347 = sbr.rel (%p345) target = $region63
        $region62: #{_lambda_.72} parent=54 // pred_region
          %348 = vst [vmem:[#allocation2] sm:$0xff] 0.0
          %349 = vst [vmem:[#allocation2 + $0x8] sm:$0xff] 0.0
          %350 = vst [vmem:[#allocation2 + $0x10] sm:$0xff] 0.0
          %351 = vst [vmem:[#allocation2 + $0x18] sm:$0xff] 0.0
          %352 = vst [vmem:[#allocation2 + $0x20] sm:$0xff] 0.0
          %353 = vst [vmem:[#allocation2 + $0x28] sm:$0xff] 0.0
          %354 = vst [vmem:[#allocation2 + $0x30] sm:$0xff] 0.0
          %355 = vst [vmem:[#allocation2 + $0x38] sm:$0xff] 0.0
        $region63: #{_lambda_.72} parent=54 // pred_fallthru
          _
        %v356 = vld [vmem:[#allocation2] sm:$0xff]
        %v357 = vld [vmem:[#allocation2 + $0x8] sm:$0xff]
        %v358 = vld [vmem:[#allocation2 + $0x10] sm:$0xff]
        %v359 = vld [vmem:[#allocation2 + $0x18] sm:$0xff]
        %v360 = vld [vmem:[#allocation2 + $0x20] sm:$0xff]
        %v361 = vld [vmem:[#allocation2 + $0x28] sm:$0xff]
        %v362 = vld [vmem:[#allocation2 + $0x30] sm:$0xff]
        %v363 = vld [vmem:[#allocation2 + $0x38] sm:$0xff]
        %v364 = vld [vmem:[%s278] sm:$0xff]
        %v365 = vld [vmem:[%s278 + $0x8] sm:$0xff]
        %v366 = vld [vmem:[%s278 + $0x10] sm:$0xff]
        %v367 = vld [vmem:[%s278 + $0x18] sm:$0xff]
        %v368 = vld [vmem:[%s278 + $0x20] sm:$0xff]
        %v369 = vld [vmem:[%s278 + $0x28] sm:$0xff]
        %v370 = vld [vmem:[%s278 + $0x30] sm:$0xff]
        %v371 = vld [vmem:[%s278 + $0x38] sm:$0xff]
        %v372 = vld [vmem:[%s278 + $0x40] sm:$0xff]
        %v373 = vld [vmem:[%s278 + $0x48] sm:$0xff]
        %v374 = vld [vmem:[%s278 + $0x50] sm:$0xff]
        %v375 = vld [vmem:[%s278 + $0x58] sm:$0xff]
        %v376 = vld [vmem:[%s278 + $0x60] sm:$0xff]
        %v377 = vld [vmem:[%s278 + $0x68] sm:$0xff]
        %v378 = vld [vmem:[%s278 + $0x70] sm:$0xff]
        %v379 = vld [vmem:[%s278 + $0x78] sm:$0xff]
        %v380 = vld [vmem:[%s327] sm:$0xf]
        %v381 = vld [vmem:[%s327 + $0x4] sm:$0xf]
        %v382 = vld [vmem:[%s327 + $0x8] sm:$0xf]
        %v383 = vld [vmem:[%s327 + $0xc] sm:$0xf]
        %v384 = vld [vmem:[%s327 + $0x10] sm:$0xf]
        %v385 = vld [vmem:[%s327 + $0x14] sm:$0xf]
        %v386 = vld [vmem:[%s327 + $0x18] sm:$0xf]
        %v387 = vld [vmem:[%s327 + $0x1c] sm:$0xf]
        %v388 = vld [vmem:[%s327 + $0x20] sm:$0xf]
        %v389 = vld [vmem:[%s327 + $0x24] sm:$0xf]
        %v390 = vld [vmem:[%s327 + $0x28] sm:$0xf]
        %v391 = vld [vmem:[%s327 + $0x2c] sm:$0xf]
        %v392 = vld [vmem:[%s327 + $0x30] sm:$0xf]
        %v393 = vld [vmem:[%s327 + $0x34] sm:$0xf]
        %v394 = vld [vmem:[%s327 + $0x38] sm:$0xf]
        %v395 = vld [vmem:[%s327 + $0x3c] sm:$0xf]
        %v396 = vld [vmem:[%s327 + $0x40] sm:$0xf]
        %v397 = vld [vmem:[%s327 + $0x44] sm:$0xf]
        %v398 = vld [vmem:[%s327 + $0x48] sm:$0xf]
        %v399 = vld [vmem:[%s327 + $0x4c] sm:$0xf]
        %v400 = vld [vmem:[%s327 + $0x50] sm:$0xf]
        %v401 = vld [vmem:[%s327 + $0x54] sm:$0xf]
        %v402 = vld [vmem:[%s327 + $0x58] sm:$0xf]
        %v403 = vld [vmem:[%s327 + $0x5c] sm:$0xf]
        %v404 = vld [vmem:[%s327 + $0x60] sm:$0xf]
        %v405 = vld [vmem:[%s327 + $0x64] sm:$0xf]
        %v406 = vld [vmem:[%s327 + $0x68] sm:$0xf]
        %v407 = vld [vmem:[%s327 + $0x6c] sm:$0xf]
        %v408 = vld [vmem:[%s327 + $0x70] sm:$0xf]
        %v409 = vld [vmem:[%s327 + $0x74] sm:$0xf]
        %v410 = vld [vmem:[%s327 + $0x78] sm:$0xf]
        %v411 = vld [vmem:[%s327 + $0x7c] sm:$0xf]
        %v412 = vld [vmem:[%s327 + $0x80] sm:$0xf]
        %v413 = vld [vmem:[%s327 + $0x84] sm:$0xf]
        %v414 = vld [vmem:[%s327 + $0x88] sm:$0xf]
        %v415 = vld [vmem:[%s327 + $0x8c] sm:$0xf]
        %v416 = vld [vmem:[%s327 + $0x90] sm:$0xf]
        %v417 = vld [vmem:[%s327 + $0x94] sm:$0xf]
        %v418 = vld [vmem:[%s327 + $0x98] sm:$0xf]
        %v419 = vld [vmem:[%s327 + $0x9c] sm:$0xf]
        %v420 = vld [vmem:[%s327 + $0xa0] sm:$0xf]
        %v421 = vld [vmem:[%s327 + $0xa4] sm:$0xf]
        %v422 = vld [vmem:[%s327 + $0xa8] sm:$0xf]
        %v423 = vld [vmem:[%s327 + $0xac] sm:$0xf]
        %v424 = vld [vmem:[%s327 + $0xb0] sm:$0xf]
        %v425 = vld [vmem:[%s327 + $0xb4] sm:$0xf]
        %v426 = vld [vmem:[%s327 + $0xb8] sm:$0xf]
        %v427 = vld [vmem:[%s327 + $0xbc] sm:$0xf]
        %v428 = vld [vmem:[%s327 + $0xc0] sm:$0xf]
        %v429 = vld [vmem:[%s327 + $0xc4] sm:$0xf]
        %v430 = vld [vmem:[%s327 + $0xc8] sm:$0xf]
        %v431 = vld [vmem:[%s327 + $0xcc] sm:$0xf]
        %v432 = vld [vmem:[%s327 + $0xd0] sm:$0xf]
        %v433 = vld [vmem:[%s327 + $0xd4] sm:$0xf]
        %v434 = vld [vmem:[%s327 + $0xd8] sm:$0xf]
        %v435 = vld [vmem:[%s327 + $0xdc] sm:$0xf]
        %v436 = vld [vmem:[%s327 + $0xe0] sm:$0xf]
        %v437 = vld [vmem:[%s327 + $0xe4] sm:$0xf]
        %v438 = vld [vmem:[%s327 + $0xe8] sm:$0xf]
        %v439 = vld [vmem:[%s327 + $0xec] sm:$0xf]
        %v440 = vld [vmem:[%s327 + $0xf0] sm:$0xf]
        %v441 = vld [vmem:[%s327 + $0xf4] sm:$0xf]
        %v442 = vld [vmem:[%s327 + $0xf8] sm:$0xf]
        %v443 = vld [vmem:[%s327 + $0xfc] sm:$0xf]
        %v460 = vunpack.c.l.b16 %v364
        %v461 = vunpack.c.h.b16 %v364
        %v462 = vunpack.c.l.b16 %v365
        %v463 = vunpack.c.h.b16 %v365
        %v464 = vunpack.c.l.b16 %v366
        %v465 = vunpack.c.h.b16 %v366
        %v466 = vunpack.c.l.b16 %v367
        %v467 = vunpack.c.h.b16 %v367
        %v468 = vunpack.c.l.b16 %v368
        %v469 = vunpack.c.h.b16 %v368
        %v470 = vunpack.c.l.b16 %v369
        %v471 = vunpack.c.h.b16 %v369
        %v472 = vunpack.c.l.b16 %v370
        %v473 = vunpack.c.h.b16 %v370
        %v474 = vunpack.c.l.b16 %v371
        %v475 = vunpack.c.h.b16 %v371
        %v476 = vunpack.c.l.b16 %v372
        %v477 = vunpack.c.h.b16 %v372
        %v478 = vunpack.c.l.b16 %v373
        %v479 = vunpack.c.h.b16 %v373
        %v480 = vunpack.c.l.b16 %v374
        %v481 = vunpack.c.h.b16 %v374
        %v482 = vunpack.c.l.b16 %v375
        %v483 = vunpack.c.h.b16 %v375
        %v484 = vunpack.c.l.b16 %v376
        %v485 = vunpack.c.h.b16 %v376
        %v486 = vunpack.c.l.b16 %v377
        %v487 = vunpack.c.h.b16 %v377
        %v488 = vunpack.c.l.b16 %v378
        %v489 = vunpack.c.h.b16 %v378
        %v490 = vunpack.c.l.b16 %v379
        %v491 = vunpack.c.h.b16 %v379
        %v492 = vpack.c.b16 %v464, %v460
        %v493 = vpack.c.b16 %v465, %v461
        %v494 = vpack.c.b16 %v466, %v462
        %v495 = vpack.c.b16 %v467, %v463
        %v496 = vpack.c.b16 %v472, %v468
        %v497 = vpack.c.b16 %v473, %v469
        %v498 = vpack.c.b16 %v474, %v470
        %v499 = vpack.c.b16 %v475, %v471
        %v500 = vpack.c.b16 %v480, %v476
        %v501 = vpack.c.b16 %v481, %v477
        %v502 = vpack.c.b16 %v482, %v478
        %v503 = vpack.c.b16 %v483, %v479
        %v504 = vpack.c.b16 %v488, %v484
        %v505 = vpack.c.b16 %v489, %v485
        %v506 = vpack.c.b16 %v490, %v486
        %v507 = vpack.c.b16 %v491, %v487
        %v588 = vunpack.c.l.b16 %v380
        %v589 = vunpack.c.l.b16 %v381
        %v590 = vunpack.c.l.b16 %v382
        %v591 = vunpack.c.l.b16 %v383
        %v592 = vunpack.c.l.b16 %v384
        %v593 = vunpack.c.l.b16 %v385
        %v594 = vunpack.c.l.b16 %v386
        %v595 = vunpack.c.l.b16 %v387
        %v596 = vunpack.c.l.b16 %v388
        %v597 = vunpack.c.l.b16 %v389
        %v598 = vunpack.c.l.b16 %v390
        %v599 = vunpack.c.l.b16 %v391
        %v600 = vunpack.c.l.b16 %v392
        %v601 = vunpack.c.l.b16 %v393
        %v602 = vunpack.c.l.b16 %v394
        %v603 = vunpack.c.l.b16 %v395
        %v604 = vunpack.c.l.b16 %v396
        %v605 = vunpack.c.l.b16 %v397
        %v606 = vunpack.c.l.b16 %v398
        %v607 = vunpack.c.l.b16 %v399
        %v608 = vunpack.c.l.b16 %v400
        %v609 = vunpack.c.l.b16 %v401
        %v610 = vunpack.c.l.b16 %v402
        %v611 = vunpack.c.l.b16 %v403
        %v612 = vunpack.c.l.b16 %v404
        %v613 = vunpack.c.l.b16 %v405
        %v614 = vunpack.c.l.b16 %v406
        %v615 = vunpack.c.l.b16 %v407
        %v616 = vunpack.c.l.b16 %v408
        %v617 = vunpack.c.l.b16 %v409
        %v618 = vunpack.c.l.b16 %v410
        %v619 = vunpack.c.l.b16 %v411
        %v620 = vunpack.c.l.b16 %v412
        %v621 = vunpack.c.l.b16 %v413
        %v622 = vunpack.c.l.b16 %v414
        %v623 = vunpack.c.l.b16 %v415
        %v624 = vunpack.c.l.b16 %v416
        %v625 = vunpack.c.l.b16 %v417
        %v626 = vunpack.c.l.b16 %v418
        %v627 = vunpack.c.l.b16 %v419
        %v628 = vunpack.c.l.b16 %v420
        %v629 = vunpack.c.l.b16 %v421
        %v630 = vunpack.c.l.b16 %v422
        %v631 = vunpack.c.l.b16 %v423
        %v632 = vunpack.c.l.b16 %v424
        %v633 = vunpack.c.l.b16 %v425
        %v634 = vunpack.c.l.b16 %v426
        %v635 = vunpack.c.l.b16 %v427
        %v636 = vunpack.c.l.b16 %v428
        %v637 = vunpack.c.l.b16 %v429
        %v638 = vunpack.c.l.b16 %v430
        %v639 = vunpack.c.l.b16 %v431
        %v640 = vunpack.c.l.b16 %v432
        %v641 = vunpack.c.l.b16 %v433
        %v642 = vunpack.c.l.b16 %v434
        %v643 = vunpack.c.l.b16 %v435
        %v644 = vunpack.c.l.b16 %v436
        %v645 = vunpack.c.l.b16 %v437
        %v646 = vunpack.c.l.b16 %v438
        %v647 = vunpack.c.l.b16 %v439
        %v648 = vunpack.c.l.b16 %v440
        %v649 = vunpack.c.l.b16 %v441
        %v650 = vunpack.c.l.b16 %v442
        %v651 = vunpack.c.l.b16 %v443
        %v652 = vpack.c.b16 %v589, %v588
        %v653 = vpack.c.b16 %v591, %v590
        %v654 = vpack.c.b16 %v593, %v592
        %v655 = vpack.c.b16 %v595, %v594
        %v656 = vpack.c.b16 %v597, %v596
        %v657 = vpack.c.b16 %v599, %v598
        %v658 = vpack.c.b16 %v601, %v600
        %v659 = vpack.c.b16 %v603, %v602
        %v660 = vpack.c.b16 %v605, %v604
        %v661 = vpack.c.b16 %v607, %v606
        %v662 = vpack.c.b16 %v609, %v608
        %v663 = vpack.c.b16 %v611, %v610
        %v664 = vpack.c.b16 %v613, %v612
        %v665 = vpack.c.b16 %v615, %v614
        %v666 = vpack.c.b16 %v617, %v616
        %v667 = vpack.c.b16 %v619, %v618
        %v668 = vpack.c.b16 %v621, %v620
        %v669 = vpack.c.b16 %v623, %v622
        %v670 = vpack.c.b16 %v625, %v624
        %v671 = vpack.c.b16 %v627, %v626
        %v672 = vpack.c.b16 %v629, %v628
        %v673 = vpack.c.b16 %v631, %v630
        %v674 = vpack.c.b16 %v633, %v632
        %v675 = vpack.c.b16 %v635, %v634
        %v676 = vpack.c.b16 %v637, %v636
        %v677 = vpack.c.b16 %v639, %v638
        %v678 = vpack.c.b16 %v641, %v640
        %v679 = vpack.c.b16 %v643, %v642
        %v680 = vpack.c.b16 %v645, %v644
        %v681 = vpack.c.b16 %v647, %v646
        %v682 = vpack.c.b16 %v649, %v648
        %v683 = vpack.c.b16 %v651, %v650
        %716 = vmatpush.bf16.msra.mxu0 %v659
        %717 = vmatpush.bf16.msra.mxu0 %v658
        %718 = vmatpush.bf16.msra.mxu0 %v657
        %719 = vmatpush.bf16.msra.mxu0 %v656
        %720 = vmatpush.bf16.msra.mxu0 %v655
        %721 = vmatpush.bf16.msra.mxu0 %v654
        %722 = vmatpush.bf16.msra.mxu0 %v653
        %723 = vmatpush.bf16.msra.mxu0 %v652
        %724 = vmatmul.bf16.gmra.mxu0 %v492
        %v725 = vpop.f32.mrf.mxu0
        %v726 = vadd.f32 0.0, %v725
        %v727 = vpop.f32.mrf.mxu0
        %v728 = vadd.f32 0.0, %v727
        %729 = vmatmul.bf16.gmra.mxu0 %v496
        %v730 = vpop.f32.mrf.mxu0
        %v731 = vadd.f32 0.0, %v730
        %v732 = vpop.f32.mrf.mxu0
        %v733 = vadd.f32 0.0, %v732
        %734 = vmatmul.bf16.gmra.mxu0 %v500
        %v735 = vpop.f32.mrf.mxu0
        %v736 = vadd.f32 0.0, %v735
        %v737 = vpop.f32.mrf.mxu0
        %v738 = vadd.f32 0.0, %v737
        %739 = vmatmul.bf16.gmra.mxu0 %v504
        %v740 = vpop.f32.mrf.mxu0
        %v741 = vadd.f32 0.0, %v740
        %v742 = vpop.f32.mrf.mxu0
        %v743 = vadd.f32 0.0, %v742
        %744 = vdwg.mxu0
        %745 = vmatpush.bf16.msra.mxu0 %v667
        %746 = vmatpush.bf16.msra.mxu0 %v666
        %747 = vmatpush.bf16.msra.mxu0 %v665
        %748 = vmatpush.bf16.msra.mxu0 %v664
        %749 = vmatpush.bf16.msra.mxu0 %v663
        %750 = vmatpush.bf16.msra.mxu0 %v662
        %751 = vmatpush.bf16.msra.mxu0 %v661
        %752 = vmatpush.bf16.msra.mxu0 %v660
        %753 = vmatmul.bf16.gmra.mxu0 %v493
        %v754 = vpop.f32.mrf.mxu0
        %v755 = vadd.f32 %v726, %v754
        %v756 = vpop.f32.mrf.mxu0
        %v757 = vadd.f32 %v728, %v756
        %758 = vmatmul.bf16.gmra.mxu0 %v497
        %v759 = vpop.f32.mrf.mxu0
        %v760 = vadd.f32 %v731, %v759
        %v761 = vpop.f32.mrf.mxu0
        %v762 = vadd.f32 %v733, %v761
        %763 = vmatmul.bf16.gmra.mxu0 %v501
        %v764 = vpop.f32.mrf.mxu0
        %v765 = vadd.f32 %v736, %v764
        %v766 = vpop.f32.mrf.mxu0
        %v767 = vadd.f32 %v738, %v766
        %768 = vmatmul.bf16.gmra.mxu0 %v505
        %v769 = vpop.f32.mrf.mxu0
        %v770 = vadd.f32 %v741, %v769
        %v771 = vpop.f32.mrf.mxu0
        %v772 = vadd.f32 %v743, %v771
        %773 = vdwg.mxu0
        %774 = vmatpush.bf16.msra.mxu0 %v675
        %775 = vmatpush.bf16.msra.mxu0 %v674
        %776 = vmatpush.bf16.msra.mxu0 %v673
        %777 = vmatpush.bf16.msra.mxu0 %v672
        %778 = vmatpush.bf16.msra.mxu0 %v671
        %779 = vmatpush.bf16.msra.mxu0 %v670
        %780 = vmatpush.bf16.msra.mxu0 %v669
        %781 = vmatpush.bf16.msra.mxu0 %v668
        %782 = vmatmul.bf16.gmra.mxu0 %v494
        %v783 = vpop.f32.mrf.mxu0
        %v784 = vadd.f32 %v755, %v783
        %v785 = vpop.f32.mrf.mxu0
        %v786 = vadd.f32 %v757, %v785
        %787 = vmatmul.bf16.gmra.mxu0 %v498
        %v788 = vpop.f32.mrf.mxu0
        %v789 = vadd.f32 %v760, %v788
        %v790 = vpop.f32.mrf.mxu0
        %v791 = vadd.f32 %v762, %v790
        %792 = vmatmul.bf16.gmra.mxu0 %v502
        %v793 = vpop.f32.mrf.mxu0
        %v794 = vadd.f32 %v765, %v793
        %v795 = vpop.f32.mrf.mxu0
        %v796 = vadd.f32 %v767, %v795
        %797 = vmatmul.bf16.gmra.mxu0 %v506
        %v798 = vpop.f32.mrf.mxu0
        %v799 = vadd.f32 %v770, %v798
        %v800 = vpop.f32.mrf.mxu0
        %v801 = vadd.f32 %v772, %v800
        %802 = vdwg.mxu0
        %803 = vmatpush.bf16.msra.mxu0 %v683
        %804 = vmatpush.bf16.msra.mxu0 %v682
        %805 = vmatpush.bf16.msra.mxu0 %v681
        %806 = vmatpush.bf16.msra.mxu0 %v680
        %807 = vmatpush.bf16.msra.mxu0 %v679
        %808 = vmatpush.bf16.msra.mxu0 %v678
        %809 = vmatpush.bf16.msra.mxu0 %v677
        %810 = vmatpush.bf16.msra.mxu0 %v676
        %811 = vmatmul.bf16.gmra.mxu0 %v495
        %v812 = vpop.f32.mrf.mxu0
        %v813 = vadd.f32 %v784, %v812
        %v814 = vpop.f32.mrf.mxu0
        %v815 = vadd.f32 %v786, %v814
        %816 = vmatmul.bf16.gmra.mxu0 %v499
        %v817 = vpop.f32.mrf.mxu0
        %v818 = vadd.f32 %v789, %v817
        %v819 = vpop.f32.mrf.mxu0
        %v820 = vadd.f32 %v791, %v819
        %821 = vmatmul.bf16.gmra.mxu0 %v503
        %v822 = vpop.f32.mrf.mxu0
        %v823 = vadd.f32 %v794, %v822
        %v824 = vpop.f32.mrf.mxu0
        %v825 = vadd.f32 %v796, %v824
        %826 = vmatmul.bf16.gmra.mxu0 %v507
        %v827 = vpop.f32.mrf.mxu0
        %v828 = vadd.f32 %v799, %v827
        %v829 = vpop.f32.mrf.mxu0
        %v830 = vadd.f32 %v801, %v829
        %831 = vdwg.mxu0
        %v832 = vadd.f32 %v356, %v813
        %v833 = vadd.f32 %v357, %v815
        %v834 = vadd.f32 %v358, %v818
        %v835 = vadd.f32 %v359, %v820
        %v836 = vadd.f32 %v360, %v823
        %v837 = vadd.f32 %v361, %v825
        %v838 = vadd.f32 %v362, %v828
        %v839 = vadd.f32 %v363, %v830
        %840 = vst [vmem:[#allocation2] sm:$0xff] %v832
        %841 = vst [vmem:[#allocation2 + $0x8] sm:$0xff] %v833
        %842 = vst [vmem:[#allocation2 + $0x10] sm:$0xff] %v834
        %843 = vst [vmem:[#allocation2 + $0x18] sm:$0xff] %v835
        %844 = vst [vmem:[#allocation2 + $0x20] sm:$0xff] %v836
        %845 = vst [vmem:[#allocation2 + $0x28] sm:$0xff] %v837
        %846 = vst [vmem:[#allocation2 + $0x30] sm:$0xff] %v838
        %847 = vst [vmem:[#allocation2 + $0x38] sm:$0xff] %v839
        %p848 = scmp.eq.s32.totalorder %s22, 1
        // Predicated region
        $region64: #{_lambda_.72} parent=54 // pred_check
          %p849 = pneg %p848
        $region65: #{_lambda_.72} parent=54 // pred_check_branch
          %851 = sbr.rel (%p849) target = $region67
        $region66: #{_lambda_.72} parent=54 // pred_region
          %v852 = vld [vmem:[#allocation2] sm:$0xff]
          %v853 = vld [vmem:[#allocation2 + $0x8] sm:$0xff]
          %v854 = vld [vmem:[#allocation2 + $0x10] sm:$0xff]
          %v855 = vld [vmem:[#allocation2 + $0x18] sm:$0xff]
          %v856 = vld [vmem:[#allocation2 + $0x20] sm:$0xff]
          %v857 = vld [vmem:[#allocation2 + $0x28] sm:$0xff]
          %v858 = vld [vmem:[#allocation2 + $0x30] sm:$0xff]
          %v859 = vld [vmem:[#allocation2 + $0x38] sm:$0xff]
          %v860 = vld [vmem:[%s331] sm:$0x1]
          %v862 = vperm.slane %v860, 0
          %v864 = vmul.f32 %v852, %v862
          %v865 = vmul.f32 %v853, %v862
          %v866 = vmul.f32 %v854, %v862
          %v867 = vmul.f32 %v855, %v862
          %v868 = vmul.f32 %v856, %v862
          %v869 = vmul.f32 %v857, %v862
          %v870 = vmul.f32 %v858, %v862
          %v871 = vmul.f32 %v859, %v862
          %v872 = vld [vmem:[%s334] sm:$0x1]
          %v874 = vperm.slane %v872, 0
          %v876 = vadd.f32 %v864, %v874
          %v877 = vadd.f32 %v865, %v874
          %v878 = vadd.f32 %v866, %v874
          %v879 = vadd.f32 %v867, %v874
          %v880 = vadd.f32 %v868, %v874
          %v881 = vadd.f32 %v869, %v874
          %v882 = vadd.f32 %v870, %v874
          %v883 = vadd.f32 %v871, %v874
          %884 = vst [vmem:[%s342] sm:$0xff] %v876
          %885 = vst [vmem:[%s342 + $0x8] sm:$0xff] %v877
          %886 = vst [vmem:[%s342 + $0x10] sm:$0xff] %v878
          %887 = vst [vmem:[%s342 + $0x18] sm:$0xff] %v879
          %888 = vst [vmem:[%s342 + $0x20] sm:$0xff] %v880
          %889 = vst [vmem:[%s342 + $0x28] sm:$0xff] %v881
          %890 = vst [vmem:[%s342 + $0x30] sm:$0xff] %v882
          %891 = vst [vmem:[%s342 + $0x38] sm:$0xff] %v883
        $region67: #{_lambda_.72} parent=54 // pred_fallthru
          _
        %s892 = smul.u32 8, %s20
        %p893 = scmp.lt.s32.totalorder %s892, 7
        %s894 = scalar_select %p893, %s892, 7
        %p895 = scmp.lt.s32.totalorder %s21, 0
        %s896 = scalar_select %p895, %s21, 0
        %s897 = sadd.s32 %s896, %s894
        %s898 = smul.addr %s897, 8
        %s899 = scalar_lea.vmem %s4, %s898
        // Predicated region
        $region68: #{_lambda_.72} parent=54 // pred_check
          %p900 = pneg %p162
        $region69: #{_lambda_.72} parent=54 // pred_check_branch
          %902 = sbr.rel (%p900) target = $region71
        $region70: #{_lambda_.72} parent=54 // pred_region
          %s903 = smul.u32 8, %s20
        $region71: #{_lambda_.72} parent=54 // pred_fallthru
          _
        // Predicated region
        $region72: #{_lambda_.72} parent=54 // pred_check
          %p904 = pneg %p162
        $region73: #{_lambda_.72} parent=54 // pred_check_branch
          %906 = sbr.rel (%p904) target = $region75
        $region74: #{_lambda_.72} parent=54 // pred_region
          %s907 = smul.u32 8, %s20
          %p908 = scmp.lt.s32.totalorder %s907, 7
          %s909 = scalar_select %p908, %s907, 7
          %p910 = scmp.lt.s32.totalorder %s21, 0
          %s911 = scalar_select %p910, %s21, 0
          %s912 = sadd.s32 %s911, %s909
          %s913 = smul.addr %s912, 8
          %s914 = scalar_lea.vmem %s4, %s913
        $region75: #{_lambda_.72} parent=54 // pred_fallthru
          _
      $region55: #{_lambda_.72} parent=5 // pred_fallthru
        _
      %p915 = scmp.le.s32.totalorder 2, %s10
      // Predicated region
      $region76: #{_lambda_.72} parent=5 // pred_check
        %p916 = pneg %p915
      $region77: #{_lambda_.72} parent=5 // pred_check_branch
        %918 = sbr.rel (%p916) target = $region79
      $region78: #{_lambda_.72} parent=5 // pred_region
        %s919 = ssub.s32 %s10, 2
      $region79: #{_lambda_.72} parent=5 // pred_fallthru
        _
    $region6: #{_lambda_.72} parent=1 // loop_footer
      %s14 = sadd.s32 1, %s10
    $region7: #{_lambda_.72} parent=1 // loop_footer_branch
      %9 = sbr.rel target = $region3
    $region8: #{_lambda_.72} parent=1 // loop_exit
      _

// kernel: _lambda_.73
$region0: #{_lambda_.73}
  #allocation0 [shape = 'u32[]', space=smem, size = 0x4, offset = 0x4, fixed_abs, tag = 'smem constant byte address 0x4 - core index']
  #allocation1 [shape = 'u32[72,128]{1,0:T(1,128)}', space=vmem, size = 0x9000, scoped, tag = 'internal scratch']
  #allocation2 [shape = 'f32[64,128]{1,0:T(8,128)}', space=vmem, size = 0x8000, scoped, tag = 'scratch operand']
  %s0 = inlined_call_operand.vmem [shape: bf16[64,32], index: 0, kind: input, shape index: {}]
  %s1 = inlined_call_operand.vmem [shape: bf16[32,128], index: 1, kind: input, shape index: {}]
  %s2 = inlined_call_operand.vmem [shape: f32[1,128], index: 2, kind: input, shape index: {}]
  %s3 = inlined_call_operand.vmem [shape: f32[1,128], index: 3, kind: input, shape index: {}]
  %s4 = inlined_call_operand.vmem [shape: f32[64,128], index: 4, kind: output, shape index: {}]
  %s5 = sld [smem:[#allocation0]]
  $region34: #{_lambda_.73} parent=0
    _
  %s7 = ssub.s32 1, %s5
  %s8 = scalar_select 0, %s7, %s5
  // Predicated region
  $region2: #{_lambda_.73} parent=0 // pred_check
    _
  $region3: #{_lambda_.73} parent=0 // pred_check_branch
    %10 = sbr.rel (0) target = $region5
  $region4: #{_lambda_.73} parent=0 // pred_region
    _
  $region5: #{_lambda_.73} parent=0 // pred_fallthru
    _
  // Predicated region
  $region6: #{_lambda_.73} parent=0 // pred_check
    _
  $region7: #{_lambda_.73} parent=0 // pred_check_branch
    %12 = sbr.rel (0) target = $region9
  $region8: #{_lambda_.73} parent=0 // pred_region
    _
  $region9: #{_lambda_.73} parent=0 // pred_fallthru
    _
  // Predicated region
  $region10: #{_lambda_.73} parent=0 // pred_check
    _
  $region11: #{_lambda_.73} parent=0 // pred_check_branch
    %14 = sbr.rel (0) target = $region13
  $region12: #{_lambda_.73} parent=0 // pred_region
    _
  $region13: #{_lambda_.73} parent=0 // pred_fallthru
    _
  // Predicated region
  $region14: #{_lambda_.73} parent=0 // pred_check
    _
  $region15: #{_lambda_.73} parent=0 // pred_check_branch
    %16 = sbr.rel (0) target = $region17
  $region16: #{_lambda_.73} parent=0 // pred_region
    _
  $region17: #{_lambda_.73} parent=0 // pred_fallthru
    _
  %p18 = scmp.eq.s32.totalorder 0, 0
  // Predicated region
  $region18: #{_lambda_.73} parent=0 // pred_check
    %p19 = pneg %p18
  $region19: #{_lambda_.73} parent=0 // pred_check_branch
    %21 = sbr.rel (%p19) target = $region21
  $region20: #{_lambda_.73} parent=0 // pred_region
    %22 = vst [vmem:[#allocation2] sm:$0xff] 0.0
    %23 = vst [vmem:[#allocation2 + $0x8] sm:$0xff] 0.0
    %24 = vst [vmem:[#allocation2 + $0x10] sm:$0xff] 0.0
    %25 = vst [vmem:[#allocation2 + $0x18] sm:$0xff] 0.0
    %26 = vst [vmem:[#allocation2 + $0x20] sm:$0xff] 0.0
    %27 = vst [vmem:[#allocation2 + $0x28] sm:$0xff] 0.0
    %28 = vst [vmem:[#allocation2 + $0x30] sm:$0xff] 0.0
    %29 = vst [vmem:[#allocation2 + $0x38] sm:$0xff] 0.0
  $region21: #{_lambda_.73} parent=0 // pred_fallthru
    _
  %v30 = vld [vmem:[#allocation2] sm:$0xff]
  %v31 = vld [vmem:[#allocation2 + $0x8] sm:$0xff]
  %v32 = vld [vmem:[#allocation2 + $0x10] sm:$0xff]
  %v33 = vld [vmem:[#allocation2 + $0x18] sm:$0xff]
  %v34 = vld [vmem:[#allocation2 + $0x20] sm:$0xff]
  %v35 = vld [vmem:[#allocation2 + $0x28] sm:$0xff]
  %v36 = vld [vmem:[#allocation2 + $0x30] sm:$0xff]
  %v37 = vld [vmem:[#allocation2 + $0x38] sm:$0xff]
  %v38 = vld [vmem:[%s0] sm:$0xf]
  %v39 = vld [vmem:[%s0 + $0x4] sm:$0xf]
  %v40 = vld [vmem:[%s0 + $0x8] sm:$0xf]
  %v41 = vld [vmem:[%s0 + $0xc] sm:$0xf]
  %v42 = vld [vmem:[%s0 + $0x10] sm:$0xf]
  %v43 = vld [vmem:[%s0 + $0x14] sm:$0xf]
  %v44 = vld [vmem:[%s0 + $0x18] sm:$0xf]
  %v45 = vld [vmem:[%s0 + $0x1c] sm:$0xf]
  %v46 = vld [vmem:[%s1] sm:$0xf]
  %v47 = vld [vmem:[%s1 + $0x4] sm:$0xf]
  %v48 = vld [vmem:[%s1 + $0x8] sm:$0xf]
  %v49 = vld [vmem:[%s1 + $0xc] sm:$0xf]
  %v58 = vunpack.c.l.b16 %v38
  %v59 = vunpack.c.l.b16 %v39
  %v60 = vunpack.c.l.b16 %v40
  %v61 = vunpack.c.l.b16 %v41
  %v62 = vunpack.c.l.b16 %v42
  %v63 = vunpack.c.l.b16 %v43
  %v64 = vunpack.c.l.b16 %v44
  %v65 = vunpack.c.l.b16 %v45
  %v66 = vpack.c.b16 %v59, %v58
  %v67 = vpack.c.b16 %v61, %v60
  %v68 = vpack.c.b16 %v63, %v62
  %v69 = vpack.c.b16 %v65, %v64
  %v74 = vunpack.c.l.b16 %v46
  %v75 = vunpack.c.l.b16 %v47
  %v76 = vunpack.c.l.b16 %v48
  %v77 = vunpack.c.l.b16 %v49
  %v78 = vpack.c.b16 %v75, %v74
  %v79 = vpack.c.b16 %v77, %v76
  %vm82 = vcmask 261120
  %v84 = vsel %vm82, %v66, 0
  %v87 = vsel %vm82, %v67, 0
  %v90 = vsel %vm82, %v68, 0
  %v93 = vsel %vm82, %v69, 0
  %95 = vmatpush.bf16.msra.mxu0 0
  %96 = vmatpush.bf16.msra.mxu0 0
  %97 = vmatpush.bf16.msra.mxu0 0
  %98 = vmatpush.bf16.msra.mxu0 0
  %99 = vmatpush.bf16.msra.mxu0 0
  %100 = vmatpush.bf16.msra.mxu0 0
  %101 = vmatpush.bf16.msra.mxu0 %v79
  %102 = vmatpush.bf16.msra.mxu0 %v78
  %103 = vmatmul.bf16.gmra.mxu0 %v84
  %v104 = vpop.f32.mrf.mxu0
  %v105 = vadd.f32 0.0, %v104
  %v106 = vpop.f32.mrf.mxu0
  %v107 = vadd.f32 0.0, %v106
  %108 = vmatmul.bf16.gmra.mxu0 %v87
  %v109 = vpop.f32.mrf.mxu0
  %v110 = vadd.f32 0.0, %v109
  %v111 = vpop.f32.mrf.mxu0
  %v112 = vadd.f32 0.0, %v111
  %113 = vmatmul.bf16.gmra.mxu0 %v90
  %v114 = vpop.f32.mrf.mxu0
  %v115 = vadd.f32 0.0, %v114
  %v116 = vpop.f32.mrf.mxu0
  %v117 = vadd.f32 0.0, %v116
  %118 = vmatmul.bf16.gmra.mxu0 %v93
  %v119 = vpop.f32.mrf.mxu0
  %v120 = vadd.f32 0.0, %v119
  %v121 = vpop.f32.mrf.mxu0
  %v122 = vadd.f32 0.0, %v121
  %123 = vdwg.mxu0
  %v124 = vadd.f32 %v30, %v105
  %v125 = vadd.f32 %v31, %v107
  %v126 = vadd.f32 %v32, %v110
  %v127 = vadd.f32 %v33, %v112
  %v128 = vadd.f32 %v34, %v115
  %v129 = vadd.f32 %v35, %v117
  %v130 = vadd.f32 %v36, %v120
  %v131 = vadd.f32 %v37, %v122
  %132 = vst [vmem:[#allocation2] sm:$0xff] %v124
  %133 = vst [vmem:[#allocation2 + $0x8] sm:$0xff] %v125
  %134 = vst [vmem:[#allocation2 + $0x10] sm:$0xff] %v126
  %135 = vst [vmem:[#allocation2 + $0x18] sm:$0xff] %v127
  %136 = vst [vmem:[#allocation2 + $0x20] sm:$0xff] %v128
  %137 = vst [vmem:[#allocation2 + $0x28] sm:$0xff] %v129
  %138 = vst [vmem:[#allocation2 + $0x30] sm:$0xff] %v130
  %139 = vst [vmem:[#allocation2 + $0x38] sm:$0xff] %v131
  // Predicated region
  $region22: #{_lambda_.73} parent=0 // pred_check
    %p140 = pneg %p18
  $region23: #{_lambda_.73} parent=0 // pred_check_branch
    %142 = sbr.rel (%p140) target = $region25
  $region24: #{_lambda_.73} parent=0 // pred_region
    %v143 = vld [vmem:[#allocation2] sm:$0xff]
    %v144 = vld [vmem:[#allocation2 + $0x8] sm:$0xff]
    %v145 = vld [vmem:[#allocation2 + $0x10] sm:$0xff]
    %v146 = vld [vmem:[#allocation2 + $0x18] sm:$0xff]
    %v147 = vld [vmem:[#allocation2 + $0x20] sm:$0xff]
    %v148 = vld [vmem:[#allocation2 + $0x28] sm:$0xff]
    %v149 = vld [vmem:[#allocation2 + $0x30] sm:$0xff]
    %v150 = vld [vmem:[#allocation2 + $0x38] sm:$0xff]
    %v151 = vld [vmem:[%s2] sm:$0x1]
    %v153 = vperm.slane %v151, 0
    %v155 = vmul.f32 %v143, %v153
    %v156 = vmul.f32 %v144, %v153
    %v157 = vmul.f32 %v145, %v153
    %v158 = vmul.f32 %v146, %v153
    %v159 = vmul.f32 %v147, %v153
    %v160 = vmul.f32 %v148, %v153
    %v161 = vmul.f32 %v149, %v153
    %v162 = vmul.f32 %v150, %v153
    %v163 = vld [vmem:[%s3] sm:$0x1]
    %v165 = vperm.slane %v163, 0
    %v167 = vadd.f32 %v155, %v165
    %v168 = vadd.f32 %v156, %v165
    %v169 = vadd.f32 %v157, %v165
    %v170 = vadd.f32 %v158, %v165
    %v171 = vadd.f32 %v159, %v165
    %v172 = vadd.f32 %v160, %v165
    %v173 = vadd.f32 %v161, %v165
    %v174 = vadd.f32 %v162, %v165
    %175 = vst [vmem:[%s4] sm:$0xff] %v167
    %176 = vst [vmem:[%s4 + $0x8] sm:$0xff] %v168
    %177 = vst [vmem:[%s4 + $0x10] sm:$0xff] %v169
    %178 = vst [vmem:[%s4 + $0x18] sm:$0xff] %v170
    %179 = vst [vmem:[%s4 + $0x20] sm:$0xff] %v171
    %180 = vst [vmem:[%s4 + $0x28] sm:$0xff] %v172
    %181 = vst [vmem:[%s4 + $0x30] sm:$0xff] %v173
    %182 = vst [vmem:[%s4 + $0x38] sm:$0xff] %v174
  $region25: #{_lambda_.73} parent=0 // pred_fallthru
    _
  // Predicated region
  $region26: #{_lambda_.73} parent=0 // pred_check
    _
  $region27: #{_lambda_.73} parent=0 // pred_check_branch
    %184 = sbr.rel (0) target = $region29
  $region28: #{_lambda_.73} parent=0 // pred_region
    _
  $region29: #{_lambda_.73} parent=0 // pred_fallthru
    _
  // Predicated region
  $region30: #{_lambda_.73} parent=0 // pred_check
    _
  $region31: #{_lambda_.73} parent=0 // pred_check_branch
    %186 = sbr.rel (0) target = $region33
  $region32: #{_lambda_.73} parent=0 // pred_region
    _
  $region33: #{_lambda_.73} parent=0 // pred_fallthru
    _

// kernel: _lambda_.75
$region0: #{_lambda_.75}
  #allocation0 [shape = 'u32[]', space=smem, size = 0x4, offset = 0x4, fixed_abs, tag = 'smem constant byte address 0x4 - core index']
  #allocation1 [shape = 'u32[72,128]{1,0:T(1,128)}', space=vmem, size = 0x9000, scoped, tag = 'internal scratch']
  %s0 = inlined_call_operand.vmem [shape: f32[2,16,128], index: 0, kind: input, shape index: {}]
  %s1 = inlined_call_operand.vmem [shape: bf16[2,16,128], index: 1, kind: input, shape index: {}]
  %s2 = inlined_call_operand.vmem [shape: bf16[2,16,128], index: 2, kind: output, shape index: {}]
  %s3 = sld [smem:[#allocation0]]
  $region18: #{_lambda_.75} parent=0
    _
  %s5 = ssub.s32 1, %s3
  %s6 = scalar_select 0, %s5, %s3
  // Predicated region
  $region2: #{_lambda_.75} parent=0 // pred_check
    _
  $region3: #{_lambda_.75} parent=0 // pred_check_branch
    %8 = sbr.rel (0) target = $region5
  $region4: #{_lambda_.75} parent=0 // pred_region
    _
  $region5: #{_lambda_.75} parent=0 // pred_fallthru
    _
  // Predicated region
  $region6: #{_lambda_.75} parent=0 // pred_check
    _
  $region7: #{_lambda_.75} parent=0 // pred_check_branch
    %10 = sbr.rel (0) target = $region9
  $region8: #{_lambda_.75} parent=0 // pred_region
    _
  $region9: #{_lambda_.75} parent=0 // pred_fallthru
    _
  %v11 = vld [vmem:[%s0] sm:$0xff]
  %v12 = vld [vmem:[%s0 + $0x8] sm:$0xff]
  %v13 = vadd.f32 %v11, 0.0
  %v14 = vadd.f32 %v12, 0.0
  %vm15 = vcmp.ge.f32.partialorder %v13, 1.0
  %vm16 = vcmp.ge.f32.partialorder %v14, 1.0
  %v17 = vsel %vm15, 1, 0
  %v18 = vsel %vm16, 1, 0
  %v19 = vcvt.s32.f32 %v17
  %v20 = vcvt.s32.f32 %v18
  %v21 = vld [vmem:[%s1] sm:$0xf]
  %v22 = vld [vmem:[%s1 + $0x4] sm:$0xf]
  %v23 = vunpack.c.l.bf16 %v21
  %v24 = vunpack.c.l.bf16 %v22
  %v25 = vadd.f32 %v19, %v23
  %v26 = vadd.f32 %v20, %v24
  %v27 = vpack.c.bf16 %v25, %v25
  %v28 = vpack.c.bf16 %v26, %v26
  %29 = vst [vmem:[%s2] sm:$0xf] %v27
  %30 = vst [vmem:[%s2 + $0x4] sm:$0xf] %v28
  %vm31 = vcmp.gt.f32.partialorder %v19, 0.0
  %vm32 = vcmp.gt.f32.partialorder %v20, 0.0
  %v33 = vsel %vm31, 0.0, %v13
  %v34 = vsel %vm32, 0.0, %v14
  %s35 = scalar_lea.vmem %s0, 16
  %v36 = vld [vmem:[%s35] sm:$0xff]
  %v37 = vld [vmem:[%s35 + $0x8] sm:$0xff]
  %v38 = vadd.f32 %v33, %v36
  %v39 = vadd.f32 %v34, %v37
  %vm40 = vcmp.ge.f32.partialorder %v38, 1.0
  %vm41 = vcmp.ge.f32.partialorder %v39, 1.0
  %v42 = vsel %vm40, 1, 0
  %v43 = vsel %vm41, 1, 0
  %v44 = vcvt.s32.f32 %v42
  %v45 = vcvt.s32.f32 %v43
  %s46 = scalar_lea.vmem %s1, 8
  %v47 = vld [vmem:[%s46] sm:$0xf]
  %v48 = vld [vmem:[%s46 + $0x4] sm:$0xf]
  %v49 = vunpack.c.l.bf16 %v47
  %v50 = vunpack.c.l.bf16 %v48
  %v51 = vadd.f32 %v44, %v49
  %v52 = vadd.f32 %v45, %v50
  %v53 = vpack.c.bf16 %v51, %v51
  %v54 = vpack.c.bf16 %v52, %v52
  %s55 = scalar_lea.vmem %s2, 8
  %56 = vst [vmem:[%s55] sm:$0xf] %v53
  %57 = vst [vmem:[%s55 + $0x4] sm:$0xf] %v54
  // Predicated region
  $region10: #{_lambda_.75} parent=0 // pred_check
    _
  $region11: #{_lambda_.75} parent=0 // pred_check_branch
    %59 = sbr.rel (0) target = $region13
  $region12: #{_lambda_.75} parent=0 // pred_region
    _
  $region13: #{_lambda_.75} parent=0 // pred_fallthru
    _
  // Predicated region
  $region14: #{_lambda_.75} parent=0 // pred_check
    _
  $region15: #{_lambda_.75} parent=0 // pred_check_branch
    %61 = sbr.rel (0) target = $region17
  $region16: #{_lambda_.75} parent=0 // pred_region
    _
  $region17: #{_lambda_.75} parent=0 // pred_fallthru
    _

// kernel: _lambda_.80
$region0: #{_lambda_.80}
  #allocation0 [shape = 'u32[]', space=smem, size = 0x4, offset = 0x4, fixed_abs, tag = 'smem constant byte address 0x4 - core index']
  #allocation1 [shape = 'u32[72,128]{1,0:T(1,128)}', space=vmem, size = 0x9000, scoped, tag = 'internal scratch']
  %s0 = inlined_call_operand.vmem [shape: bf16[4,16,64], index: 0, kind: input, shape index: {}]
  %s1 = inlined_call_operand.vmem [shape: f32[4,64], index: 1, kind: output, shape index: {}]
  %s2 = sld [smem:[#allocation0]]
  $region14: #{_lambda_.80} parent=0
    _
  %s4 = ssub.s32 1, %s2
  %s5 = scalar_select 0, %s4, %s2
  // Predicated region
  $region2: #{_lambda_.80} parent=0 // pred_check
    _
  $region3: #{_lambda_.80} parent=0 // pred_check_branch
    %7 = sbr.rel (0) target = $region5
  $region4: #{_lambda_.80} parent=0 // pred_region
    _
  $region5: #{_lambda_.80} parent=0 // pred_fallthru
    _
  %v8 = vld [vmem:[%s0] sm:$0xf]
  %v9 = vld [vmem:[%s0 + $0x4] sm:$0xf]
  %v10 = vld [vmem:[%s0 + $0x8] sm:$0xf]
  %v11 = vld [vmem:[%s0 + $0xc] sm:$0xf]
  %v12 = vld [vmem:[%s0 + $0x10] sm:$0xf]
  %v13 = vld [vmem:[%s0 + $0x14] sm:$0xf]
  %v14 = vld [vmem:[%s0 + $0x18] sm:$0xf]
  %v15 = vld [vmem:[%s0 + $0x1c] sm:$0xf]
  %v16 = vunpack.c.l.bf16 %v8
  %v17 = vunpack.c.l.bf16 %v9
  %v18 = vunpack.c.l.bf16 %v10
  %v19 = vunpack.c.l.bf16 %v11
  %v20 = vunpack.c.l.bf16 %v12
  %v21 = vunpack.c.l.bf16 %v13
  %v22 = vunpack.c.l.bf16 %v14
  %v23 = vunpack.c.l.bf16 %v15
  %vm24 = vcmask 523264
  %v25 = vsel %vm24, %v16, 0.0
  %v26 = vsel %vm24, %v17, 0.0
  %v27 = vadd.f32 %v25, %v26
  %v28 = vrot.slane %v27, 4
  %v29 = vadd.f32 %v27, %v28
  %v30 = vrot.slane %v29, 2
  %v31 = vadd.f32 %v29, %v30
  %v32 = vrot.slane %v31, 1
  %v33 = vadd.f32 %v31, %v32
  %v34 = vsel %vm24, %v18, 0.0
  %v35 = vsel %vm24, %v19, 0.0
  %v36 = vadd.f32 %v34, %v35
  %v37 = vrot.slane %v36, 4
  %v38 = vadd.f32 %v36, %v37
  %v39 = vrot.slane %v38, 2
  %v40 = vadd.f32 %v38, %v39
  %v41 = vrot.slane %v40, 1
  %v42 = vadd.f32 %v40, %v41
  %v43 = vsel %vm24, %v20, 0.0
  %v44 = vsel %vm24, %v21, 0.0
  %v45 = vadd.f32 %v43, %v44
  %v46 = vrot.slane %v45, 4
  %v47 = vadd.f32 %v45, %v46
  %v48 = vrot.slane %v47, 2
  %v49 = vadd.f32 %v47, %v48
  %v50 = vrot.slane %v49, 1
  %v51 = vadd.f32 %v49, %v50
  %v52 = vsel %vm24, %v22, 0.0
  %v53 = vsel %vm24, %v23, 0.0
  %v54 = vadd.f32 %v52, %v53
  %v55 = vrot.slane %v54, 4
  %v56 = vadd.f32 %v54, %v55
  %v57 = vrot.slane %v56, 2
  %v58 = vadd.f32 %v56, %v57
  %v59 = vrot.slane %v58, 1
  %v60 = vadd.f32 %v58, %v59
  %v61 = vrcp.pop 16.0
  %v62 = vmul.f32 16.0, %v61
  %v63 = vsub.f32 1.0, %v62
  %v64 = vmul.f32 %v61, %v63
  %v65 = vadd.f32 %v61, %v64
  %vm66 = vweird.f32 %v61
  %v67 = vsel %vm66, %v61, %v65
  %v68 = vmul.f32 %v33, %v67
  %v69 = vmul.f32 %v42, %v67
  %v70 = vmul.f32 %v51, %v67
  %v71 = vmul.f32 %v60, %v67
  %vm76 = vcmask 1041409
  %v77 = vsel %vm76, %v69, %v68
  %vm78 = vcmask 1042434
  %v79 = vsel %vm78, %v70, %v77
  %vm80 = vcmask 1043459
  %v81 = vsel %vm80, %v71, %v79
  %vm83 = vcmask 519168
  %84 = vst.msk [vmem:[%s1] sm:$0xf] %vm83, %v81
  // Predicated region
  $region6: #{_lambda_.80} parent=0 // pred_check
    _
  $region7: #{_lambda_.80} parent=0 // pred_check_branch
    %86 = sbr.rel (0) target = $region9
  $region8: #{_lambda_.80} parent=0 // pred_region
    _
  $region9: #{_lambda_.80} parent=0 // pred_fallthru
    _
  // Predicated region
  $region10: #{_lambda_.80} parent=0 // pred_check
    _
  $region11: #{_lambda_.80} parent=0 // pred_check_branch
    %88 = sbr.rel (0) target = $region13
  $region12: #{_lambda_.80} parent=0 // pred_region
    _
  $region13: #{_lambda_.80} parent=0 // pred_fallthru
    _

// kernel: _lambda_.81
$region0: #{_lambda_.81}
  #allocation0 [shape = 'u32[]', space=smem, size = 0x4, offset = 0x4, fixed_abs, tag = 'smem constant byte address 0x4 - core index']
  #allocation1 [shape = 'u32[72,128]{1,0:T(1,128)}', space=vmem, size = 0x9000, scoped, tag = 'internal scratch']
  #allocation2 [shape = 'f32[4,128]{1,0:T(4,128)}', space=vmem, size = 0x800, scoped, tag = 'scratch operand']
  %s0 = inlined_call_operand.vmem [shape: bf16[4,64], index: 0, kind: input, shape index: {}]
  %s1 = inlined_call_operand.vmem [shape: bf16[64,128], index: 1, kind: input, shape index: {}]
  %s2 = inlined_call_operand.vmem [shape: f32[1,128], index: 2, kind: input, shape index: {}]
  %s3 = inlined_call_operand.vmem [shape: f32[1,128], index: 3, kind: input, shape index: {}]
  %s4 = inlined_call_operand.vmem [shape: f32[4,128], index: 4, kind: output, shape index: {}]
  %s5 = sld [smem:[#allocation0]]
  $region34: #{_lambda_.81} parent=0
    _
  %s7 = ssub.s32 1, %s5
  %s8 = scalar_select 0, %s7, %s5
  // Predicated region
  $region2: #{_lambda_.81} parent=0 // pred_check
    _
  $region3: #{_lambda_.81} parent=0 // pred_check_branch
    %10 = sbr.rel (0) target = $region5
  $region4: #{_lambda_.81} parent=0 // pred_region
    _
  $region5: #{_lambda_.81} parent=0 // pred_fallthru
    _
  // Predicated region
  $region6: #{_lambda_.81} parent=0 // pred_check
    _
  $region7: #{_lambda_.81} parent=0 // pred_check_branch
    %12 = sbr.rel (0) target = $region9
  $region8: #{_lambda_.81} parent=0 // pred_region
    _
  $region9: #{_lambda_.81} parent=0 // pred_fallthru
    _
  // Predicated region
  $region10: #{_lambda_.81} parent=0 // pred_check
    _
  $region11: #{_lambda_.81} parent=0 // pred_check_branch
    %14 = sbr.rel (0) target = $region13
  $region12: #{_lambda_.81} parent=0 // pred_region
    _
  $region13: #{_lambda_.81} parent=0 // pred_fallthru
    _
  // Predicated region
  $region14: #{_lambda_.81} parent=0 // pred_check
    _
  $region15: #{_lambda_.81} parent=0 // pred_check_branch
    %16 = sbr.rel (0) target = $region17
  $region16: #{_lambda_.81} parent=0 // pred_region
    _
  $region17: #{_lambda_.81} parent=0 // pred_fallthru
    _
  %p18 = scmp.eq.s32.totalorder 0, 0
  // Predicated region
  $region18: #{_lambda_.81} parent=0 // pred_check
    %p19 = pneg %p18
  $region19: #{_lambda_.81} parent=0 // pred_check_branch
    %21 = sbr.rel (%p19) target = $region21
  $region20: #{_lambda_.81} parent=0 // pred_region
    %22 = vst [vmem:[#allocation2] sm:$0xf] 0.0
  $region21: #{_lambda_.81} parent=0 // pred_fallthru
    _
  %v23 = vld [vmem:[#allocation2] sm:$0xf]
  %v24 = vld [vmem:[%s0] sm:$0x3]
  %v25 = vld [vmem:[%s1] sm:$0xf]
  %v26 = vld [vmem:[%s1 + $0x4] sm:$0xf]
  %v27 = vld [vmem:[%s1 + $0x8] sm:$0xf]
  %v28 = vld [vmem:[%s1 + $0xc] sm:$0xf]
  %v29 = vld [vmem:[%s1 + $0x10] sm:$0xf]
  %v30 = vld [vmem:[%s1 + $0x14] sm:$0xf]
  %v31 = vld [vmem:[%s1 + $0x18] sm:$0xf]
  %v32 = vld [vmem:[%s1 + $0x1c] sm:$0xf]
  %v41 = vunpack.c.l.b16 %v25
  %v42 = vunpack.c.l.b16 %v26
  %v43 = vunpack.c.l.b16 %v27
  %v44 = vunpack.c.l.b16 %v28
  %v45 = vunpack.c.l.b16 %v29
  %v46 = vunpack.c.l.b16 %v30
  %v47 = vunpack.c.l.b16 %v31
  %v48 = vunpack.c.l.b16 %v32
  %v49 = vpack.c.b16 %v42, %v41
  %v50 = vpack.c.b16 %v44, %v43
  %v51 = vpack.c.b16 %v46, %v45
  %v52 = vpack.c.b16 %v48, %v47
  %vm57 = vcmask 523264
  %v59 = vsel %vm57, %v24, 0
  %61 = vmatpush.bf16.msra.mxu0 0
  %62 = vmatpush.bf16.msra.mxu0 0
  %63 = vmatpush.bf16.msra.mxu0 0
  %64 = vmatpush.bf16.msra.mxu0 0
  %65 = vmatpush.bf16.msra.mxu0 %v52
  %66 = vmatpush.bf16.msra.mxu0 %v51
  %67 = vmatpush.bf16.msra.mxu0 %v50
  %68 = vmatpush.bf16.msra.mxu0 %v49
  %69 = vmatmul.bf16.gmra.mxu0 %v59
  %v70 = vpop.f32.mrf.mxu0
  %v71 = vadd.f32 0.0, %v70
  %v72 = vpop.f32.mrf.mxu0
  %73 = vdwg.mxu0
  %v74 = vadd.f32 %v23, %v71
  %75 = vst [vmem:[#allocation2] sm:$0xf] %v74
  // Predicated region
  $region22: #{_lambda_.81} parent=0 // pred_check
    %p76 = pneg %p18
  $region23: #{_lambda_.81} parent=0 // pred_check_branch
    %78 = sbr.rel (%p76) target = $region25
  $region24: #{_lambda_.81} parent=0 // pred_region
    %v79 = vld [vmem:[#allocation2] sm:$0xf]
    %v80 = vld [vmem:[%s2] sm:$0x1]
    %v82 = vperm.slane %v80, 0
    %v84 = vmul.f32 %v79, %v82
    %v85 = vld [vmem:[%s3] sm:$0x1]
    %v87 = vperm.slane %v85, 0
    %v89 = vadd.f32 %v84, %v87
    %90 = vst [vmem:[%s4] sm:$0xf] %v89
  $region25: #{_lambda_.81} parent=0 // pred_fallthru
    _
  // Predicated region
  $region26: #{_lambda_.81} parent=0 // pred_check
    _
  $region27: #{_lambda_.81} parent=0 // pred_check_branch
    %92 = sbr.rel (0) target = $region29
  $region28: #{_lambda_.81} parent=0 // pred_region
    _
  $region29: #{_lambda_.81} parent=0 // pred_fallthru
    _
  // Predicated region
  $region30: #{_lambda_.81} parent=0 // pred_check
    _
  $region31: #{_lambda_.81} parent=0 // pred_check_branch
    %94 = sbr.rel (0) target = $region33
  $region32: #{_lambda_.81} parent=0 // pred_region
    _
  $region33: #{_lambda_.81} parent=0 // pred_fallthru
    _

// kernel: _lambda_.82
$region0: #{_lambda_.82}
  #allocation0 [shape = 'u32[]', space=smem, size = 0x4, offset = 0x4, fixed_abs, tag = 'smem constant byte address 0x4 - core index']
  #allocation1 [shape = 'u32[72,128]{1,0:T(1,128)}', space=vmem, size = 0x9000, scoped, tag = 'internal scratch']
  %s0 = inlined_call_operand.vmem [shape: f32[2,1,128], index: 0, kind: input, shape index: {}]
  %s1 = inlined_call_operand.vmem [shape: bf16[2,1,128], index: 1, kind: output, shape index: {}]
  %s2 = sld [smem:[#allocation0]]
  $region14: #{_lambda_.82} parent=0
    _
  %s4 = ssub.s32 1, %s2
  %s5 = scalar_select 0, %s4, %s2
  // Predicated region
  $region2: #{_lambda_.82} parent=0 // pred_check
    _
  $region3: #{_lambda_.82} parent=0 // pred_check_branch
    %7 = sbr.rel (0) target = $region5
  $region4: #{_lambda_.82} parent=0 // pred_region
    _
  $region5: #{_lambda_.82} parent=0 // pred_fallthru
    _
  %v8 = vld [vmem:[%s0] sm:$0x1]
  %v9 = vadd.f32 %v8, 0.0
  %vm10 = vcmp.ge.f32.partialorder %v9, 1.0
  %v11 = vsel %vm10, 1, 0
  %v12 = vcvt.s32.f32 %v11
  %v13 = vpack.c.bf16 %v12, %v12
  %vm14 = vcmask 1040384
  %vm15 = vsmask.f32 256
  %vm16 = vmand %vm14, %vm15
  %v17 = vld [vmem:[%s1] sm:$0x1]
  %v18 = vsel %vm16, %v13, %v17
  %19 = vst [vmem:[%s1] sm:$0x1] %v18
  %vm20 = vcmp.gt.f32.partialorder %v12, 0.0
  %v21 = vsel %vm20, 0.0, %v9
  %s22 = scalar_lea.vmem %s0, 1
  %v23 = vld [vmem:[%s22] sm:$0x1]
  %v24 = vadd.f32 %v21, %v23
  %vm25 = vcmp.ge.f32.partialorder %v24, 1.0
  %v26 = vsel %vm25, 1, 0
  %v27 = vcvt.s32.f32 %v26
  %v28 = vpack.c.bf16 %v27, %v27
  %s29 = scalar_lea.vmem %s1, 1
  %v30 = vld [vmem:[%s29] sm:$0x1]
  %v31 = vsel %vm16, %v28, %v30
  %32 = vst [vmem:[%s29] sm:$0x1] %v31
  // Predicated region
  $region6: #{_lambda_.82} parent=0 // pred_check
    _
  $region7: #{_lambda_.82} parent=0 // pred_check_branch
    %34 = sbr.rel (0) target = $region9
  $region8: #{_lambda_.82} parent=0 // pred_region
    _
  $region9: #{_lambda_.82} parent=0 // pred_fallthru
    _
  // Predicated region
  $region10: #{_lambda_.82} parent=0 // pred_check
    _
  $region11: #{_lambda_.82} parent=0 // pred_check_branch
    %36 = sbr.rel (0) target = $region13
  $region12: #{_lambda_.82} parent=0 // pred_region
    _
  $region13: #{_lambda_.82} parent=0 // pred_fallthru
    _

// kernel: _lambda_.83
$region0: #{_lambda_.83}
  #allocation0 [shape = 'u32[]', space=smem, size = 0x4, offset = 0x4, fixed_abs, tag = 'smem constant byte address 0x4 - core index']
  #allocation1 [shape = 'u32[72,128]{1,0:T(1,128)}', space=vmem, size = 0x9000, scoped, tag = 'internal scratch']
  #allocation2 [shape = 'f32[4,128]{1,0:T(4,128)}', space=vmem, size = 0x800, scoped, tag = 'scratch operand']
  %s0 = inlined_call_operand.vmem [shape: bf16[4,32], index: 0, kind: input, shape index: {}]
  %s1 = inlined_call_operand.vmem [shape: bf16[32,128], index: 1, kind: input, shape index: {}]
  %s2 = inlined_call_operand.vmem [shape: f32[4,128], index: 2, kind: output, shape index: {}]
  %s3 = sld [smem:[#allocation0]]
  $region26: #{_lambda_.83} parent=0
    _
  %s5 = ssub.s32 1, %s3
  %s6 = scalar_select 0, %s5, %s3
  // Predicated region
  $region2: #{_lambda_.83} parent=0 // pred_check
    _
  $region3: #{_lambda_.83} parent=0 // pred_check_branch
    %8 = sbr.rel (0) target = $region5
  $region4: #{_lambda_.83} parent=0 // pred_region
    _
  $region5: #{_lambda_.83} parent=0 // pred_fallthru
    _
  // Predicated region
  $region6: #{_lambda_.83} parent=0 // pred_check
    _
  $region7: #{_lambda_.83} parent=0 // pred_check_branch
    %10 = sbr.rel (0) target = $region9
  $region8: #{_lambda_.83} parent=0 // pred_region
    _
  $region9: #{_lambda_.83} parent=0 // pred_fallthru
    _
  %p12 = scmp.eq.s32.totalorder 0, 0
  // Predicated region
  $region10: #{_lambda_.83} parent=0 // pred_check
    %p13 = pneg %p12
  $region11: #{_lambda_.83} parent=0 // pred_check_branch
    %15 = sbr.rel (%p13) target = $region13
  $region12: #{_lambda_.83} parent=0 // pred_region
    %16 = vst [vmem:[#allocation2] sm:$0xf] 0.0
  $region13: #{_lambda_.83} parent=0 // pred_fallthru
    _
  %v17 = vld [vmem:[#allocation2] sm:$0xf]
  %v18 = vld [vmem:[%s0] sm:$0x3]
  %v19 = vld [vmem:[%s1] sm:$0xf]
  %v20 = vld [vmem:[%s1 + $0x4] sm:$0xf]
  %v21 = vld [vmem:[%s1 + $0x8] sm:$0xf]
  %v22 = vld [vmem:[%s1 + $0xc] sm:$0xf]
  %v27 = vunpack.c.l.b16 %v19
  %v28 = vunpack.c.l.b16 %v20
  %v29 = vunpack.c.l.b16 %v21
  %v30 = vunpack.c.l.b16 %v22
  %v31 = vpack.c.b16 %v28, %v27
  %v32 = vpack.c.b16 %v30, %v29
  %vm35 = vcmask 261120
  %v37 = vsel %vm35, %v18, 0
  %39 = vmatpush.bf16.msra.mxu0 0
  %40 = vmatpush.bf16.msra.mxu0 0
  %41 = vmatpush.bf16.msra.mxu0 0
  %42 = vmatpush.bf16.msra.mxu0 0
  %43 = vmatpush.bf16.msra.mxu0 0
  %44 = vmatpush.bf16.msra.mxu0 0
  %45 = vmatpush.bf16.msra.mxu0 %v32
  %46 = vmatpush.bf16.msra.mxu0 %v31
  %47 = vmatmul.bf16.gmra.mxu0 %v37
  %v48 = vpop.f32.mrf.mxu0
  %v49 = vadd.f32 0.0, %v48
  %v50 = vpop.f32.mrf.mxu0
  %51 = vdwg.mxu0
  %v52 = vadd.f32 %v17, %v49
  %53 = vst [vmem:[#allocation2] sm:$0xf] %v52
  // Predicated region
  $region14: #{_lambda_.83} parent=0 // pred_check
    %p54 = pneg %p12
  $region15: #{_lambda_.83} parent=0 // pred_check_branch
    %56 = sbr.rel (%p54) target = $region17
  $region16: #{_lambda_.83} parent=0 // pred_region
    %v57 = vld [vmem:[#allocation2] sm:$0xf]
    %58 = vst [vmem:[%s2] sm:$0xf] %v57
  $region17: #{_lambda_.83} parent=0 // pred_fallthru
    _
  // Predicated region
  $region18: #{_lambda_.83} parent=0 // pred_check
    _
  $region19: #{_lambda_.83} parent=0 // pred_check_branch
    %60 = sbr.rel (0) target = $region21
  $region20: #{_lambda_.83} parent=0 // pred_region
    _
  $region21: #{_lambda_.83} parent=0 // pred_fallthru
    _
  // Predicated region
  $region22: #{_lambda_.83} parent=0 // pred_check
    _
  $region23: #{_lambda_.83} parent=0 // pred_check_branch
    %62 = sbr.rel (0) target = $region25
  $region24: #{_lambda_.83} parent=0 // pred_region
    _
  $region25: #{_lambda_.83} parent=0 // pred_fallthru
    _

</llo_original>
